<compile_context>
chip_gen: v6e
topology: v6e:2x2x1
jax: 0.10.0
libtpu: 0.0.40
codegen_flags: <defaults>
</compile_context>

<pallas_src>
import jax
import jax.numpy as jnp
from jax import lax
from jax.experimental import pallas as pl
from jax.experimental.pallas import tpu as pltpu


# ------------------------------------------------------------------ kernel A --

def _conv_pool_kernel(x_ref, w1b_ref, b1b_ref, w2b_ref, b2b_ref,
                      ce1_ref, re1_ref, ce2_ref, re2_ref,
                      feat_ref, p1_scr):
    """Per-image conv/pool feature extractor. One grid step == one image."""
    f32 = jnp.float32
    x = x_ref[0]                                               # (28, 28)

    # ---- layer1: conv 3x3 (1->3 ch, BN folded) + ReLU ------------------------
    # Channel-vectorized MACs; one partial accumulator per kernel row (kh) breaks
    # the serial add chain; bias slab seeds the first partial accumulator.
    parts1 = []
    for kh in range(3):
        acc = b1b_ref[...] if kh == 0 else None
        for kw in range(3):
            t = x[kh:kh + 26, kw:kw + 26][None, :, :] * w1b_ref[3 * kh + kw]
            acc = t if acc is None else acc + t
        parts1.append(acc)
    y1 = jnp.maximum(parts1[0] + parts1[1] + parts1[2], 0.0)   # (3, 26, 26)

    # ---- maxpool 2x2/2, all channels at once (channel-stacked sublanes) ------
    # pairwise max on 1-offset slices (VALU) + one 0/1-selection dot per axis.
    ycat = jnp.concatenate([y1[0], y1[1], y1[2]], axis=0)      # (78, 26)
    mh = jnp.maximum(ycat[:, 0:25], ycat[:, 1:26])             # (78, 25) column pairs
    yc = jnp.dot(mh, ce1_ref[...], preferred_element_type=f32)          # (78, 13)
    mv = jnp.maximum(yc[0:77, :], yc[1:78, :])                 # (77, 13) row pairs
    p1_scr[...] = jnp.dot(re1_ref[...], mv, preferred_element_type=f32)  # (39, 13)

    # ---- layer2: conv 5x5 (3->3 ch, BN folded) + ReLU -------------------------
    # Slices loaded on demand from the channel-stacked scratch; one partial
    # accumulator per input channel (chain length 25 instead of 75).
    parts2 = []
    for ci in range(3):
        acc = b2b_ref[...] if ci == 0 else None
        for kh in range(5):
            for kw in range(5):
                k = 25 * ci + 5 * kh + kw
                s = p1_scr[13 * ci + kh:13 * ci + kh + 9, kw:kw + 9]    # (9, 9)
                t = s[None, :, :] * w2b_ref[k]
                acc = t if acc is None else acc + t
        parts2.append(acc)
    y2 = jnp.maximum(parts2[0] + parts2[1] + parts2[2], 0.0)   # (3, 9, 9)

    # ---- maxpool 2x2/2 (floor), channel-stacked --------------------------------
    ycat2 = jnp.concatenate([y2[0], y2[1], y2[2]], axis=0)     # (27, 9)
    mh2 = jnp.maximum(ycat2[:, 0:8], ycat2[:, 1:9])            # (27, 8)
    c2 = jnp.dot(mh2, ce2_ref[...], preferred_element_type=f32)          # (27, 4)
    mv2 = jnp.maximum(c2[0:26, :], c2[1:27, :])                # (26, 4)
    # result rows are (channel*4 + row): row-major flatten == torch CHW order.
    feat_ref[0] = jnp.dot(re2_ref[...], mv2, preferred_element_type=f32)  # (12, 4)


# ------------------------------------------------------------------ kernel B --

def _fc_head_kernel(feat_ref, fc1w_ref, fc1b_ref, fc2w_ref, fc2b_ref, out_ref):
    """Batched FC head: (N,48)x(48,164), ReLU, (N,164)x(164,10), softmax, one store."""
    f32 = jnp.float32
    h = jnp.dot(feat_ref[...], fc1w_ref[...], preferred_element_type=f32) + fc1b_ref[...]
    h = jnp.maximum(h, 0.0)                                    # Dropout(0.5): identity in eval
    logits = jnp.dot(h, fc2w_ref[...], preferred_element_type=f32) + fc2b_ref[...]
    m = jnp.max(logits, axis=-1, keepdims=True)
    e = jnp.exp(logits - m)
    out_ref[...] = e / jnp.sum(e, axis=-1, keepdims=True)      # exact softmax


# ------------------------------------------------------------------ wrapper ---

def _fold_bn(w, b, bn, eps=1e-5):
    """Fold eval-mode BatchNorm2d into conv weight/bias. w: (Cout, Cin, k, k)."""
    s = bn["gamma"] / jnp.sqrt(bn["var"] + eps)                # (Cout,)
    cout = w.shape[0]
    w_eff = w.reshape(cout, -1) * s[:, None]                   # (Cout, Cin*k*k)
    b_eff = (b - bn["mean"]) * s + bn["beta"]                  # (Cout,)
    return w_eff, b_eff


def _col_select(m, pw):
    """(m, pw) 0/1 matrix: output column p <- pairwise-max column 2p."""
    r = jnp.arange(m)[:, None]
    c = jnp.arange(pw)[None, :]
    return (r == 2 * c).astype(jnp.float32)


def _row_select(nch, ph, h, m):
    """(nch*ph, m) 0/1 matrix: output row c*ph+i <- pairwise-max row c*h+2i."""
    r = jnp.arange(nch * ph)
    src = (r // ph) * h + 2 * (r % ph)
    s = jnp.arange(m)[None, :]
    return (src[:, None] == s).astype(jnp.float32)


@jax.jit
def forward(x, p):
    """x: (N, 1, 28, 28) float32 -> (N, 10) softmax probabilities (eval mode)."""
    N = x.shape[0]
    x3 = x.reshape(N, 28, 28)

    # Fold eval-mode BatchNorm into the convs at trace time.
    w1_eff, b1_eff = _fold_bn(p["w1"], p["b1"], p["bn1"])      # (3, 9),  (3,)
    w2_eff, b2_eff = _fold_bn(p["w2"], p["b2"], p["bn2"])      # (3, 75), (3,)

    # Pre-broadcast per-tap weight/bias slabs (no scalar splats inside the kernel).
    w1b = jnp.broadcast_to(w1_eff.T.reshape(9, 3, 1, 1), (9, 3, 26, 26))
    w2b = jnp.broadcast_to(w2_eff.T.reshape(75, 3, 1, 1), (75, 3, 9, 9))
    b1b = jnp.broadcast_to(b1_eff.reshape(3, 1, 1), (3, 26, 26))
    b2b = jnp.broadcast_to(b2_eff.reshape(3, 1, 1), (3, 9, 9))

    # Exact 0/1 selection matrices for the pooling dots (trace-time constants).
    ce1 = _col_select(25, 13)                                  # 26 -> 13 columns
    re1 = _row_select(3, 13, 26, 77)                           # 3x26 -> 3x13 rows
    ce2 = _col_select(8, 4)                                    # 9 -> 4 columns (floor)
    re2 = _row_select(3, 4, 9, 26)                             # 3x9 -> 3x4 rows (floor)

    feat = pl.pallas_call(
        _conv_pool_kernel,
        out_shape=jax.ShapeDtypeStruct((N, 12, 4), jnp.float32),
        grid=(N,),
        in_specs=[
            pl.BlockSpec((1, 28, 28), lambda n: (n, 0, 0)),          # x (one image / step)
            pl.BlockSpec((9, 3, 26, 26), lambda n: (0, 0, 0, 0)),    # conv1 weight slabs
            pl.BlockSpec((3, 26, 26), lambda n: (0, 0, 0)),          # conv1 bias slab
            pl.BlockSpec((75, 3, 9, 9), lambda n: (0, 0, 0, 0)),     # conv2 weight slabs
            pl.BlockSpec((3, 9, 9), lambda n: (0, 0, 0)),            # conv2 bias slab
            pl.BlockSpec((25, 13), lambda n: (0, 0)),                # pool1 column select
            pl.BlockSpec((39, 77), lambda n: (0, 0)),                # pool1 row select
            pl.BlockSpec((8, 4), lambda n: (0, 0)),                  # pool2 column select
            pl.BlockSpec((12, 26), lambda n: (0, 0)),                # pool2 row select
        ],
        out_specs=pl.BlockSpec((1, 12, 4), lambda n: (n, 0, 0)),
        scratch_shapes=[pltpu.VMEM((39, 13), jnp.float32)],          # pooled layer1 maps
        compiler_params=pltpu.CompilerParams(
            dimension_semantics=("parallel",)),                      # v7x: batch over 2 TCs
    )(x3, w1b, b1b, w2b, b2b, ce1, re1, ce2, re2)

    # Flatten (N,12,4) -> (N,48); row-major == torch CHW flatten order.
    feat2 = feat.reshape(N, 48)

    vmem = pl.BlockSpec(memory_space=pltpu.MemorySpace.VMEM)
    return pl.pallas_call(
        _fc_head_kernel,
        out_shape=jax.ShapeDtypeStruct((N, 10), jnp.float32),
        in_specs=[vmem] * 5,
        out_specs=vmem,
    )(feat2, p["fc1_w"].T, p["fc1_b"].reshape(1, -1),
      p["fc2_w"].T, p["fc2_b"].reshape(1, -1))


# ---------------------------------------------------------- params & reference

def init_params(key):
    ks = jax.random.split(key, 8)

    def nrm(k_, shape, scale=0.1):
        return scale * jax.random.normal(k_, shape, dtype=jnp.float32)

    def bn(c):
        return dict(gamma=1.0 + 0.1 * jnp.arange(c, dtype=jnp.float32),
                    beta=0.01 * jnp.arange(c, dtype=jnp.float32),
                    mean=0.05 * jnp.arange(c, dtype=jnp.float32),
                    var=1.0 + 0.1 * jnp.arange(c, dtype=jnp.float32))

    return dict(
        w1=nrm(ks[0], (3, 1, 3, 3)), b1=nrm(ks[1], (3,)), bn1=bn(3),
        w2=nrm(ks[2], (3, 3, 5, 5)), b2=nrm(ks[3], (3,)), bn2=bn(3),
        fc1_w=nrm(ks[4], (164, 48)), fc1_b=nrm(ks[5], (164,)),
        fc2_w=nrm(ks[6], (10, 164)), fc2_b=nrm(ks[7], (10,)),
    )


def _reference_forward(x, p, eps=1e-5):
    """Plain-JAX replica of the PyTorch module (eval mode) for validation."""
    hp = lax.Precision.HIGHEST

    def conv(x, w, b):
        y = lax.conv_general_dilated(x, w, (1, 1), "VALID",
                                     dimension_numbers=("NCHW", "OIHW", "NCHW"),
                                     precision=hp)
        return y + b[None, :, None, None]

    def bn(x, d):
        return ((x - d["mean"][None, :, None, None])
                / jnp.sqrt(d["var"][None, :, None, None] + eps)
                * d["gamma"][None, :, None, None]
                + d["beta"][None, :, None, None])

    def pool(x):
        n, c, h, w = x.shape
        ho, wo = h // 2, w // 2
        return x[:, :, :2 * ho, :2 * wo].reshape(n, c, ho, 2, wo, 2).max(axis=(3, 5))

    y = pool(jnp.maximum(bn(conv(x, p["w1"], p["b1"]), p["bn1"]), 0.0))
    y = pool(jnp.maximum(bn(conv(y, p["w2"], p["b2"]), p["bn2"]), 0.0))
    flat = y.reshape(y.shape[0], -1)
    h = jnp.maximum(jnp.dot(flat, p["fc1_w"].T, precision=hp) + p["fc1_b"], 0.0)
    logits = jnp.dot(h, p["fc2_w"].T, precision=hp) + p["fc2_b"]
    return jax.nn.softmax(logits, axis=1)


# -------------------------------------------------------------------- main ----

if __name__ == "__main__":
    key = jax.random.PRNGKey(0)
    kx, kp = jax.random.split(key)
    # Linear(48, 164) pins the input to 28x28:
    # 28 -conv3-> 26 -pool-> 13 -conv5-> 9 -pool-> 4 ; 3*4*4 = 48.
    x = jax.random.normal(kx, (2, 1, 28, 28), dtype=jnp.float32)
    params = init_params(kp)

    out = jax.block_until_ready(forward(x, params))
    assert out.shape == (2, 10)
    row_sums = jnp.sum(out, axis=1)
    assert bool(jnp.all(jnp.abs(row_sums - 1.0) < 1e-4)), row_sums
    ref = _reference_forward(x, params)
    assert bool(jnp.allclose(out, ref, atol=2e-3)), (out, ref)
    print("KERNEL_OK")
</pallas_src>

<mosaic_0001>
module attributes {stable_mosaic.version = 11 : i64} {
  func.func @_fc_head_kernel(%arg0: memref<2x48xf32, #tpu.memory_space<vmem>>, %arg1: memref<48x164xf32, #tpu.memory_space<vmem>>, %arg2: memref<1x164xf32, #tpu.memory_space<vmem>>, %arg3: memref<164x10xf32, #tpu.memory_space<vmem>>, %arg4: memref<1x10xf32, #tpu.memory_space<vmem>>, %arg5: memref<2x10xf32, #tpu.memory_space<vmem>>) attributes {dimension_semantics = [], scalar_prefetch = 0 : i64, scratch_operands = 0 : i64, tpu.core_type = #tpu.core_type<tc>} {
    %c0 = arith.constant 0 : index
    %c0_0 = arith.constant 0 : index
    %0 = vector.load %arg0[%c0, %c0_0] : memref<2x48xf32, #tpu.memory_space<vmem>>, vector<2x48xf32>
    %c0_1 = arith.constant 0 : index
    %c0_2 = arith.constant 0 : index
    %1 = vector.load %arg1[%c0_1, %c0_2] : memref<48x164xf32, #tpu.memory_space<vmem>>, vector<48x164xf32>
    %cst = arith.constant dense<0.000000e+00> : vector<2x164xf32>
    %2 = tpu.matmul %0, %1, %cst {dimension_numbers = #tpu.dot_dimension_numbers<[1], [0], [0], [1], [0, 0, 1, 1], [], []>} : vector<2x48xf32>, vector<48x164xf32>, vector<2x164xf32> -> vector<2x164xf32>
    %c0_3 = arith.constant 0 : index
    %c0_4 = arith.constant 0 : index
    %3 = vector.load %arg2[%c0_3, %c0_4] : memref<1x164xf32, #tpu.memory_space<vmem>>, vector<1x164xf32>
    %4 = vector.broadcast %3 : vector<1x164xf32> to vector<2x164xf32>
    %5 = arith.addf %2, %4 : vector<2x164xf32>
    %cst_5 = arith.constant 0.000000e+00 : f32
    %6 = vector.broadcast %cst_5 : f32 to vector<2x164xf32>
    %7 = arith.maximumf %5, %6 : vector<2x164xf32>
    %c0_6 = arith.constant 0 : index
    %c0_7 = arith.constant 0 : index
    %8 = vector.load %arg3[%c0_6, %c0_7] : memref<164x10xf32, #tpu.memory_space<vmem>>, vector<164x10xf32>
    %cst_8 = arith.constant dense<0.000000e+00> : vector<2x10xf32>
    %9 = tpu.matmul %7, %8, %cst_8 {dimension_numbers = #tpu.dot_dimension_numbers<[1], [0], [0], [1], [0, 0, 1, 1], [], []>} : vector<2x164xf32>, vector<164x10xf32>, vector<2x10xf32> -> vector<2x10xf32>
    %c0_9 = arith.constant 0 : index
    %c0_10 = arith.constant 0 : index
    %10 = vector.load %arg4[%c0_9, %c0_10] : memref<1x10xf32, #tpu.memory_space<vmem>>, vector<1x10xf32>
    %11 = vector.broadcast %10 : vector<1x10xf32> to vector<2x10xf32>
    %12 = arith.addf %9, %11 : vector<2x10xf32>
    %cst_11 = arith.constant dense<0xFF800000> : vector<2xf32>
    %13 = vector.multi_reduction <maximumf>, %12, %cst_11 [1] : vector<2x10xf32> to vector<2xf32>
    %14 = vector.shape_cast %13 : vector<2xf32> to vector<2x1xf32>
    %15 = vector.broadcast %14 : vector<2x1xf32> to vector<2x10xf32>
    %16 = arith.subf %12, %15 : vector<2x10xf32>
    %17 = math.exp %16 : vector<2x10xf32>
    %cst_12 = arith.constant dense<0.000000e+00> : vector<2xf32>
    %18 = vector.multi_reduction <add>, %17, %cst_12 [1] : vector<2x10xf32> to vector<2xf32>
    %19 = vector.shape_cast %18 : vector<2xf32> to vector<2x1xf32>
    %20 = vector.broadcast %19 : vector<2x1xf32> to vector<2x10xf32>
    %21 = arith.divf %17, %20 : vector<2x10xf32>
    %c0_13 = arith.constant 0 : index
    %c0_14 = arith.constant 0 : index
    %22 = vector.load %arg5[%c0_13, %c0_14] : memref<2x10xf32, #tpu.memory_space<vmem>>, vector<2x10xf32>
    tpu.vector_store %arg5[%c0_13, %c0_14], %21 {strides = array<i32>} : memref<2x10xf32, #tpu.memory_space<vmem>>, vector<2x10xf32>,
    return
  }
}

module attributes {stable_mosaic.version = 11 : i64} {
  func.func @_conv_pool_kernel(%arg0: i32, %arg1: memref<1x28x28xf32, #tpu.memory_space<vmem>>, %arg2: memref<9x3x26x26xf32, #tpu.memory_space<vmem>>, %arg3: memref<3x26x26xf32, #tpu.memory_space<vmem>>, %arg4: memref<75x3x9x9xf32, #tpu.memory_space<vmem>>, %arg5: memref<3x9x9xf32, #tpu.memory_space<vmem>>, %arg6: memref<25x13xf32, #tpu.memory_space<vmem>>, %arg7: memref<39x77xf32, #tpu.memory_space<vmem>>, %arg8: memref<8x4xf32, #tpu.memory_space<vmem>>, %arg9: memref<12x26xf32, #tpu.memory_space<vmem>>, %arg10: memref<1x12x4xf32, #tpu.memory_space<vmem>>, %arg11: memref<39x13xf32, #tpu.memory_space<vmem>>) attributes {dimension_semantics = [#tpu.dimension_semantics<parallel>], iteration_bounds = array<i64: 2>, scalar_prefetch = 0 : i64, scratch_operands = 1 : i64, tpu.core_type = #tpu.core_type<tc>, window_params = [{transform_indices = @transform_0, window_bounds = array<i64: 1, 28, 28>}, {pipeline_mode = #tpu.pipeline_mode<synchronous>, transform_indices = @transform_1, window_bounds = array<i64: 9, 3, 26, 26>}, {pipeline_mode = #tpu.pipeline_mode<synchronous>, transform_indices = @transform_2, window_bounds = array<i64: 3, 26, 26>}, {pipeline_mode = #tpu.pipeline_mode<synchronous>, transform_indices = @transform_3, window_bounds = array<i64: 75, 3, 9, 9>}, {pipeline_mode = #tpu.pipeline_mode<synchronous>, transform_indices = @transform_4, window_bounds = array<i64: 3, 9, 9>}, {pipeline_mode = #tpu.pipeline_mode<synchronous>, transform_indices = @transform_5, window_bounds = array<i64: 25, 13>}, {pipeline_mode = #tpu.pipeline_mode<synchronous>, transform_indices = @transform_6, window_bounds = array<i64: 39, 77>}, {pipeline_mode = #tpu.pipeline_mode<synchronous>, transform_indices = @transform_7, window_bounds = array<i64: 8, 4>}, {pipeline_mode = #tpu.pipeline_mode<synchronous>, transform_indices = @transform_8, window_bounds = array<i64: 12, 26>}, {transform_indices = @transform_9, window_bounds = array<i64: 1, 12, 4>}]} {
    %c0 = arith.constant 0 : index
    %c0_0 = arith.constant 0 : index
    %c0_1 = arith.constant 0 : index
    %0 = vector.load %arg1[%c0, %c0_0, %c0_1] : memref<1x28x28xf32, #tpu.memory_space<vmem>>, vector<1x28x28xf32>
    %1 = vector.shape_cast %0 : vector<1x28x28xf32> to vector<28x28xf32>
    %c0_2 = arith.constant 0 : index
    %c0_3 = arith.constant 0 : index
    %c0_4 = arith.constant 0 : index
    %2 = vector.load %arg3[%c0_2, %c0_3, %c0_4] : memref<3x26x26xf32, #tpu.memory_space<vmem>>, vector<3x26x26xf32>
    %3 = vector.extract_strided_slice %1 {offsets = [0, 0], sizes = [26, 26], strides = [1, 1]} : vector<28x28xf32> to vector<26x26xf32>
    %4 = vector.shape_cast %3 : vector<26x26xf32> to vector<1x26x26xf32>
    %c0_5 = arith.constant 0 : index
    %c0_6 = arith.constant 0 : index
    %c0_7 = arith.constant 0 : index
    %c0_8 = arith.constant 0 : index
    %5 = vector.load %arg2[%c0_5, %c0_6, %c0_7, %c0_8] : memref<9x3x26x26xf32, #tpu.memory_space<vmem>>, vector<1x3x26x26xf32>
    %6 = vector.shape_cast %5 : vector<1x3x26x26xf32> to vector<3x26x26xf32>
    %7 = vector.broadcast %4 : vector<1x26x26xf32> to vector<3x26x26xf32>
    %8 = arith.mulf %7, %6 : vector<3x26x26xf32>
    %9 = arith.addf %2, %8 : vector<3x26x26xf32>
    %10 = vector.extract_strided_slice %1 {offsets = [0, 1], sizes = [26, 26], strides = [1, 1]} : vector<28x28xf32> to vector<26x26xf32>
    %11 = vector.shape_cast %10 : vector<26x26xf32> to vector<1x26x26xf32>
    %c1 = arith.constant 1 : index
    %c0_9 = arith.constant 0 : index
    %c0_10 = arith.constant 0 : index
    %c0_11 = arith.constant 0 : index
    %12 = vector.load %arg2[%c1, %c0_9, %c0_10, %c0_11] : memref<9x3x26x26xf32, #tpu.memory_space<vmem>>, vector<1x3x26x26xf32>
    %13 = vector.shape_cast %12 : vector<1x3x26x26xf32> to vector<3x26x26xf32>
    %14 = vector.broadcast %11 : vector<1x26x26xf32> to vector<3x26x26xf32>
    %15 = arith.mulf %14, %13 : vector<3x26x26xf32>
    %16 = arith.addf %9, %15 : vector<3x26x26xf32>
    %17 = vector.extract_strided_slice %1 {offsets = [0, 2], sizes = [26, 26], strides = [1, 1]} : vector<28x28xf32> to vector<26x26xf32>
    %18 = vector.shape_cast %17 : vector<26x26xf32> to vector<1x26x26xf32>
    %c2 = arith.constant 2 : index
    %c0_12 = arith.constant 0 : index
    %c0_13 = arith.constant 0 : index
    %c0_14 = arith.constant 0 : index
    %19 = vector.load %arg2[%c2, %c0_12, %c0_13, %c0_14] : memref<9x3x26x26xf32, #tpu.memory_space<vmem>>, vector<1x3x26x26xf32>
    %20 = vector.shape_cast %19 : vector<1x3x26x26xf32> to vector<3x26x26xf32>
    %21 = vector.broadcast %18 : vector<1x26x26xf32> to vector<3x26x26xf32>
    %22 = arith.mulf %21, %20 : vector<3x26x26xf32>
    %23 = arith.addf %16, %22 : vector<3x26x26xf32>
    %24 = vector.extract_strided_slice %1 {offsets = [1, 0], sizes = [26, 26], strides = [1, 1]} : vector<28x28xf32> to vector<26x26xf32>
    %25 = vector.shape_cast %24 : vector<26x26xf32> to vector<1x26x26xf32>
    %c3 = arith.constant 3 : index
    %c0_15 = arith.constant 0 : index
    %c0_16 = arith.constant 0 : index
    %c0_17 = arith.constant 0 : index
    %26 = vector.load %arg2[%c3, %c0_15, %c0_16, %c0_17] : memref<9x3x26x26xf32, #tpu.memory_space<vmem>>, vector<1x3x26x26xf32>
    %27 = vector.shape_cast %26 : vector<1x3x26x26xf32> to vector<3x26x26xf32>
    %28 = vector.broadcast %25 : vector<1x26x26xf32> to vector<3x26x26xf32>
    %29 = arith.mulf %28, %27 : vector<3x26x26xf32>
    %30 = vector.extract_strided_slice %1 {offsets = [1, 1], sizes = [26, 26], strides = [1, 1]} : vector<28x28xf32> to vector<26x26xf32>
    %31 = vector.shape_cast %30 : vector<26x26xf32> to vector<1x26x26xf32>
    %c4 = arith.constant 4 : index
    %c0_18 = arith.constant 0 : index
    %c0_19 = arith.constant 0 : index
    %c0_20 = arith.constant 0 : index
    %32 = vector.load %arg2[%c4, %c0_18, %c0_19, %c0_20] : memref<9x3x26x26xf32, #tpu.memory_space<vmem>>, vector<1x3x26x26xf32>
    %33 = vector.shape_cast %32 : vector<1x3x26x26xf32> to vector<3x26x26xf32>
    %34 = vector.broadcast %31 : vector<1x26x26xf32> to vector<3x26x26xf32>
    %35 = arith.mulf %34, %33 : vector<3x26x26xf32>
    %36 = arith.addf %29, %35 : vector<3x26x26xf32>
    %37 = vector.extract_strided_slice %1 {offsets = [1, 2], sizes = [26, 26], strides = [1, 1]} : vector<28x28xf32> to vector<26x26xf32>
    %38 = vector.shape_cast %37 : vector<26x26xf32> to vector<1x26x26xf32>
    %c5 = arith.constant 5 : index
    %c0_21 = arith.constant 0 : index
    %c0_22 = arith.constant 0 : index
    %c0_23 = arith.constant 0 : index
    %39 = vector.load %arg2[%c5, %c0_21, %c0_22, %c0_23] : memref<9x3x26x26xf32, #tpu.memory_space<vmem>>, vector<1x3x26x26xf32>
    %40 = vector.shape_cast %39 : vector<1x3x26x26xf32> to vector<3x26x26xf32>
    %41 = vector.broadcast %38 : vector<1x26x26xf32> to vector<3x26x26xf32>
    %42 = arith.mulf %41, %40 : vector<3x26x26xf32>
    %43 = arith.addf %36, %42 : vector<3x26x26xf32>
    %44 = vector.extract_strided_slice %1 {offsets = [2, 0], sizes = [26, 26], strides = [1, 1]} : vector<28x28xf32> to vector<26x26xf32>
    %45 = vector.shape_cast %44 : vector<26x26xf32> to vector<1x26x26xf32>
    %c6 = arith.constant 6 : index
    %c0_24 = arith.constant 0 : index
    %c0_25 = arith.constant 0 : index
    %c0_26 = arith.constant 0 : index
    %46 = vector.load %arg2[%c6, %c0_24, %c0_25, %c0_26] : memref<9x3x26x26xf32, #tpu.memory_space<vmem>>, vector<1x3x26x26xf32>
    %47 = vector.shape_cast %46 : vector<1x3x26x26xf32> to vector<3x26x26xf32>
    %48 = vector.broadcast %45 : vector<1x26x26xf32> to vector<3x26x26xf32>
    %49 = arith.mulf %48, %47 : vector<3x26x26xf32>
    %50 = vector.extract_strided_slice %1 {offsets = [2, 1], sizes = [26, 26], strides = [1, 1]} : vector<28x28xf32> to vector<26x26xf32>
    %51 = vector.shape_cast %50 : vector<26x26xf32> to vector<1x26x26xf32>
    %c7 = arith.constant 7 : index
    %c0_27 = arith.constant 0 : index
    %c0_28 = arith.constant 0 : index
    %c0_29 = arith.constant 0 : index
    %52 = vector.load %arg2[%c7, %c0_27, %c0_28, %c0_29] : memref<9x3x26x26xf32, #tpu.memory_space<vmem>>, vector<1x3x26x26xf32>
    %53 = vector.shape_cast %52 : vector<1x3x26x26xf32> to vector<3x26x26xf32>
    %54 = vector.broadcast %51 : vector<1x26x26xf32> to vector<3x26x26xf32>
    %55 = arith.mulf %54, %53 : vector<3x26x26xf32>
    %56 = arith.addf %49, %55 : vector<3x26x26xf32>
    %57 = vector.extract_strided_slice %1 {offsets = [2, 2], sizes = [26, 26], strides = [1, 1]} : vector<28x28xf32> to vector<26x26xf32>
    %58 = vector.shape_cast %57 : vector<26x26xf32> to vector<1x26x26xf32>
    %c8 = arith.constant 8 : index
    %c0_30 = arith.constant 0 : index
    %c0_31 = arith.constant 0 : index
    %c0_32 = arith.constant 0 : index
    %59 = vector.load %arg2[%c8, %c0_30, %c0_31, %c0_32] : memref<9x3x26x26xf32, #tpu.memory_space<vmem>>, vector<1x3x26x26xf32>
    %60 = vector.shape_cast %59 : vector<1x3x26x26xf32> to vector<3x26x26xf32>
    %61 = vector.broadcast %58 : vector<1x26x26xf32> to vector<3x26x26xf32>
    %62 = arith.mulf %61, %60 : vector<3x26x26xf32>
    %63 = arith.addf %56, %62 : vector<3x26x26xf32>
    %64 = arith.addf %23, %43 : vector<3x26x26xf32>
    %65 = arith.addf %64, %63 : vector<3x26x26xf32>
    %cst = arith.constant 0.000000e+00 : f32
    %66 = vector.broadcast %cst : f32 to vector<3x26x26xf32>
    %67 = arith.maximumf %65, %66 : vector<3x26x26xf32>
    %68 = vector.extract_strided_slice %67 {offsets = [0, 0, 0], sizes = [1, 26, 26], strides = [1, 1, 1]} : vector<3x26x26xf32> to vector<1x26x26xf32>
    %69 = vector.shape_cast %68 : vector<1x26x26xf32> to vector<26x26xf32>
    %70 = vector.extract_strided_slice %67 {offsets = [1, 0, 0], sizes = [1, 26, 26], strides = [1, 1, 1]} : vector<3x26x26xf32> to vector<1x26x26xf32>
    %71 = vector.shape_cast %70 : vector<1x26x26xf32> to vector<26x26xf32>
    %72 = vector.extract_strided_slice %67 {offsets = [2, 0, 0], sizes = [1, 26, 26], strides = [1, 1, 1]} : vector<3x26x26xf32> to vector<1x26x26xf32>
    %73 = vector.shape_cast %72 : vector<1x26x26xf32> to vector<26x26xf32>
    %74 = tpu.concatenate %69, %71, %73 in 0 : vector<26x26xf32>, vector<26x26xf32>, vector<26x26xf32> -> vector<78x26xf32>
    %75 = vector.extract_strided_slice %74 {offsets = [0, 0], sizes = [78, 25], strides = [1, 1]} : vector<78x26xf32> to vector<78x25xf32>
    %76 = vector.extract_strided_slice %74 {offsets = [0, 1], sizes = [78, 25], strides = [1, 1]} : vector<78x26xf32> to vector<78x25xf32>
    %77 = arith.maximumf %75, %76 : vector<78x25xf32>
    %c0_33 = arith.constant 0 : index
    %c0_34 = arith.constant 0 : index
    %78 = vector.load %arg6[%c0_33, %c0_34] : memref<25x13xf32, #tpu.memory_space<vmem>>, vector<25x13xf32>
    %cst_35 = arith.constant dense<0.000000e+00> : vector<78x13xf32>
    %79 = tpu.matmul %77, %78, %cst_35 {dimension_numbers = #tpu.dot_dimension_numbers<[1], [0], [0], [1], [0, 0, 1, 1], [], []>} : vector<78x25xf32>, vector<25x13xf32>, vector<78x13xf32> -> vector<78x13xf32>
    %80 = vector.extract_strided_slice %79 {offsets = [0, 0], sizes = [77, 13], strides = [1, 1]} : vector<78x13xf32> to vector<77x13xf32>
    %81 = vector.extract_strided_slice %79 {offsets = [1, 0], sizes = [77, 13], strides = [1, 1]} : vector<78x13xf32> to vector<77x13xf32>
    %82 = arith.maximumf %80, %81 : vector<77x13xf32>
    %c0_36 = arith.constant 0 : index
    %c0_37 = arith.constant 0 : index
    %83 = vector.load %arg7[%c0_36, %c0_37] : memref<39x77xf32, #tpu.memory_space<vmem>>, vector<39x77xf32>
    %cst_38 = arith.constant dense<0.000000e+00> : vector<39x13xf32>
    %84 = tpu.matmul %83, %82, %cst_38 {dimension_numbers = #tpu.dot_dimension_numbers<[1], [0], [0], [1], [0, 0, 1, 1], [], []>} : vector<39x77xf32>, vector<77x13xf32>, vector<39x13xf32> -> vector<39x13xf32>
    %c0_39 = arith.constant 0 : index
    %c0_40 = arith.constant 0 : index
    %85 = vector.load %arg11[%c0_39, %c0_40] : memref<39x13xf32, #tpu.memory_space<vmem>>, vector<39x13xf32>
    tpu.vector_store %arg11[%c0_39, %c0_40], %84 {strides = array<i32>} : memref<39x13xf32, #tpu.memory_space<vmem>>, vector<39x13xf32>,
    %c0_41 = arith.constant 0 : index
    %c0_42 = arith.constant 0 : index
    %c0_43 = arith.constant 0 : index
    %86 = vector.load %arg5[%c0_41, %c0_42, %c0_43] : memref<3x9x9xf32, #tpu.memory_space<vmem>>, vector<3x9x9xf32>
    %c0_44 = arith.constant 0 : index
    %c0_45 = arith.constant 0 : index
    %87 = vector.load %arg11[%c0_44, %c0_45] : memref<39x13xf32, #tpu.memory_space<vmem>>, vector<9x9xf32>
    %88 = vector.shape_cast %87 : vector<9x9xf32> to vector<1x9x9xf32>
    %c0_46 = arith.constant 0 : index
    %c0_47 = arith.constant 0 : index
    %c0_48 = arith.constant 0 : index
    %c0_49 = arith.constant 0 : index
    %89 = vector.load %arg4[%c0_46, %c0_47, %c0_48, %c0_49] : memref<75x3x9x9xf32, #tpu.memory_space<vmem>>, vector<1x3x9x9xf32>
    %90 = vector.shape_cast %89 : vector<1x3x9x9xf32> to vector<3x9x9xf32>
    %91 = vector.broadcast %88 : vector<1x9x9xf32> to vector<3x9x9xf32>
    %92 = arith.mulf %91, %90 : vector<3x9x9xf32>
    %93 = arith.addf %86, %92 : vector<3x9x9xf32>
    %c0_50 = arith.constant 0 : index
    %c1_51 = arith.constant 1 : index
    %94 = vector.load %arg11[%c0_50, %c1_51] : memref<39x13xf32, #tpu.memory_space<vmem>>, vector<9x9xf32>
    %95 = vector.shape_cast %94 : vector<9x9xf32> to vector<1x9x9xf32>
    %c1_52 = arith.constant 1 : index
    %c0_53 = arith.constant 0 : index
    %c0_54 = arith.constant 0 : index
    %c0_55 = arith.constant 0 : index
    %96 = vector.load %arg4[%c1_52, %c0_53, %c0_54, %c0_55] : memref<75x3x9x9xf32, #tpu.memory_space<vmem>>, vector<1x3x9x9xf32>
    %97 = vector.shape_cast %96 : vector<1x3x9x9xf32> to vector<3x9x9xf32>
    %98 = vector.broadcast %95 : vector<1x9x9xf32> to vector<3x9x9xf32>
    %99 = arith.mulf %98, %97 : vector<3x9x9xf32>
    %100 = arith.addf %93, %99 : vector<3x9x9xf32>
    %c0_56 = arith.constant 0 : index
    %c2_57 = arith.constant 2 : index
    %101 = vector.load %arg11[%c0_56, %c2_57] : memref<39x13xf32, #tpu.memory_space<vmem>>, vector<9x9xf32>
    %102 = vector.shape_cast %101 : vector<9x9xf32> to vector<1x9x9xf32>
    %c2_58 = arith.constant 2 : index
    %c0_59 = arith.constant 0 : index
    %c0_60 = arith.constant 0 : index
    %c0_61 = arith.constant 0 : index
    %103 = vector.load %arg4[%c2_58, %c0_59, %c0_60, %c0_61] : memref<75x3x9x9xf32, #tpu.memory_space<vmem>>, vector<1x3x9x9xf32>
    %104 = vector.shape_cast %103 : vector<1x3x9x9xf32> to vector<3x9x9xf32>
    %105 = vector.broadcast %102 : vector<1x9x9xf32> to vector<3x9x9xf32>
    %106 = arith.mulf %105, %104 : vector<3x9x9xf32>
    %107 = arith.addf %100, %106 : vector<3x9x9xf32>
    %c0_62 = arith.constant 0 : index
    %c3_63 = arith.constant 3 : index
    %108 = vector.load %arg11[%c0_62, %c3_63] : memref<39x13xf32, #tpu.memory_space<vmem>>, vector<9x9xf32>
    %109 = vector.shape_cast %108 : vector<9x9xf32> to vector<1x9x9xf32>
    %c3_64 = arith.constant 3 : index
    %c0_65 = arith.constant 0 : index
    %c0_66 = arith.constant 0 : index
    %c0_67 = arith.constant 0 : index
    %110 = vector.load %arg4[%c3_64, %c0_65, %c0_66, %c0_67] : memref<75x3x9x9xf32, #tpu.memory_space<vmem>>, vector<1x3x9x9xf32>
    %111 = vector.shape_cast %110 : vector<1x3x9x9xf32> to vector<3x9x9xf32>
    %112 = vector.broadcast %109 : vector<1x9x9xf32> to vector<3x9x9xf32>
    %113 = arith.mulf %112, %111 : vector<3x9x9xf32>
    %114 = arith.addf %107, %113 : vector<3x9x9xf32>
    %c0_68 = arith.constant 0 : index
    %c4_69 = arith.constant 4 : index
    %115 = vector.load %arg11[%c0_68, %c4_69] : memref<39x13xf32, #tpu.memory_space<vmem>>, vector<9x9xf32>
    %116 = vector.shape_cast %115 : vector<9x9xf32> to vector<1x9x9xf32>
    %c4_70 = arith.constant 4 : index
    %c0_71 = arith.constant 0 : index
    %c0_72 = arith.constant 0 : index
    %c0_73 = arith.constant 0 : index
    %117 = vector.load %arg4[%c4_70, %c0_71, %c0_72, %c0_73] : memref<75x3x9x9xf32, #tpu.memory_space<vmem>>, vector<1x3x9x9xf32>
    %118 = vector.shape_cast %117 : vector<1x3x9x9xf32> to vector<3x9x9xf32>
    %119 = vector.broadcast %116 : vector<1x9x9xf32> to vector<3x9x9xf32>
    %120 = arith.mulf %119, %118 : vector<3x9x9xf32>
    %121 = arith.addf %114, %120 : vector<3x9x9xf32>
    %c1_74 = arith.constant 1 : index
    %c0_75 = arith.constant 0 : index
    %122 = vector.load %arg11[%c1_74, %c0_75] : memref<39x13xf32, #tpu.memory_space<vmem>>, vector<9x9xf32>
    %123 = vector.shape_cast %122 : vector<9x9xf32> to vector<1x9x9xf32>
    %c5_76 = arith.constant 5 : index
    %c0_77 = arith.constant 0 : index
    %c0_78 = arith.constant 0 : index
    %c0_79 = arith.constant 0 : index
    %124 = vector.load %arg4[%c5_76, %c0_77, %c0_78, %c0_79] : memref<75x3x9x9xf32, #tpu.memory_space<vmem>>, vector<1x3x9x9xf32>
    %125 = vector.shape_cast %124 : vector<1x3x9x9xf32> to vector<3x9x9xf32>
    %126 = vector.broadcast %123 : vector<1x9x9xf32> to vector<3x9x9xf32>
    %127 = arith.mulf %126, %125 : vector<3x9x9xf32>
    %128 = arith.addf %121, %127 : vector<3x9x9xf32>
    %c1_80 = arith.constant 1 : index
    %c1_81 = arith.constant 1 : index
    %129 = vector.load %arg11[%c1_80, %c1_81] : memref<39x13xf32, #tpu.memory_space<vmem>>, vector<9x9xf32>
    %130 = vector.shape_cast %129 : vector<9x9xf32> to vector<1x9x9xf32>
    %c6_82 = arith.constant 6 : index
    %c0_83 = arith.constant 0 : index
    %c0_84 = arith.constant 0 : index
    %c0_85 = arith.constant 0 : index
    %131 = vector.load %arg4[%c6_82, %c0_83, %c0_84, %c0_85] : memref<75x3x9x9xf32, #tpu.memory_space<vmem>>, vector<1x3x9x9xf32>
    %132 = vector.shape_cast %131 : vector<1x3x9x9xf32> to vector<3x9x9xf32>
    %133 = vector.broadcast %130 : vector<1x9x9xf32> to vector<3x9x9xf32>
    %134 = arith.mulf %133, %132 : vector<3x9x9xf32>
    %135 = arith.addf %128, %134 : vector<3x9x9xf32>
    %c1_86 = arith.constant 1 : index
    %c2_87 = arith.constant 2 : index
    %136 = vector.load %arg11[%c1_86, %c2_87] : memref<39x13xf32, #tpu.memory_space<vmem>>, vector<9x9xf32>
    %137 = vector.shape_cast %136 : vector<9x9xf32> to vector<1x9x9xf32>
    %c7_88 = arith.constant 7 : index
    %c0_89 = arith.constant 0 : index
    %c0_90 = arith.constant 0 : index
    %c0_91 = arith.constant 0 : index
    %138 = vector.load %arg4[%c7_88, %c0_89, %c0_90, %c0_91] : memref<75x3x9x9xf32, #tpu.memory_space<vmem>>, vector<1x3x9x9xf32>
    %139 = vector.shape_cast %138 : vector<1x3x9x9xf32> to vector<3x9x9xf32>
    %140 = vector.broadcast %137 : vector<1x9x9xf32> to vector<3x9x9xf32>
    %141 = arith.mulf %140, %139 : vector<3x9x9xf32>
    %142 = arith.addf %135, %141 : vector<3x9x9xf32>
    %c1_92 = arith.constant 1 : index
    %c3_93 = arith.constant 3 : index
    %143 = vector.load %arg11[%c1_92, %c3_93] : memref<39x13xf32, #tpu.memory_space<vmem>>, vector<9x9xf32>
    %144 = vector.shape_cast %143 : vector<9x9xf32> to vector<1x9x9xf32>
    %c8_94 = arith.constant 8 : index
    %c0_95 = arith.constant 0 : index
    %c0_96 = arith.constant 0 : index
    %c0_97 = arith.constant 0 : index
    %145 = vector.load %arg4[%c8_94, %c0_95, %c0_96, %c0_97] : memref<75x3x9x9xf32, #tpu.memory_space<vmem>>, vector<1x3x9x9xf32>
    %146 = vector.shape_cast %145 : vector<1x3x9x9xf32> to vector<3x9x9xf32>
    %147 = vector.broadcast %144 : vector<1x9x9xf32> to vector<3x9x9xf32>
    %148 = arith.mulf %147, %146 : vector<3x9x9xf32>
    %149 = arith.addf %142, %148 : vector<3x9x9xf32>
    %c1_98 = arith.constant 1 : index
    %c4_99 = arith.constant 4 : index
    %150 = vector.load %arg11[%c1_98, %c4_99] : memref<39x13xf32, #tpu.memory_space<vmem>>, vector<9x9xf32>
    %151 = vector.shape_cast %150 : vector<9x9xf32> to vector<1x9x9xf32>
    %c9 = arith.constant 9 : index
    %c0_100 = arith.constant 0 : index
    %c0_101 = arith.constant 0 : index
    %c0_102 = arith.constant 0 : index
    %152 = vector.load %arg4[%c9, %c0_100, %c0_101, %c0_102] : memref<75x3x9x9xf32, #tpu.memory_space<vmem>>, vector<1x3x9x9xf32>
    %153 = vector.shape_cast %152 : vector<1x3x9x9xf32> to vector<3x9x9xf32>
    %154 = vector.broadcast %151 : vector<1x9x9xf32> to vector<3x9x9xf32>
    %155 = arith.mulf %154, %153 : vector<3x9x9xf32>
    %156 = arith.addf %149, %155 : vector<3x9x9xf32>
    %c2_103 = arith.constant 2 : index
    %c0_104 = arith.constant 0 : index
    %157 = vector.load %arg11[%c2_103, %c0_104] : memref<39x13xf32, #tpu.memory_space<vmem>>, vector<9x9xf32>
    %158 = vector.shape_cast %157 : vector<9x9xf32> to vector<1x9x9xf32>
    %c10 = arith.constant 10 : index
    %c0_105 = arith.constant 0 : index
    %c0_106 = arith.constant 0 : index
    %c0_107 = arith.constant 0 : index
    %159 = vector.load %arg4[%c10, %c0_105, %c0_106, %c0_107] : memref<75x3x9x9xf32, #tpu.memory_space<vmem>>, vector<1x3x9x9xf32>
    %160 = vector.shape_cast %159 : vector<1x3x9x9xf32> to vector<3x9x9xf32>
    %161 = vector.broadcast %158 : vector<1x9x9xf32> to vector<3x9x9xf32>
    %162 = arith.mulf %161, %160 : vector<3x9x9xf32>
    %163 = arith.addf %156, %162 : vector<3x9x9xf32>
    %c2_108 = arith.constant 2 : index
    %c1_109 = arith.constant 1 : index
    %164 = vector.load %arg11[%c2_108, %c1_109] : memref<39x13xf32, #tpu.memory_space<vmem>>, vector<9x9xf32>
    %165 = vector.shape_cast %164 : vector<9x9xf32> to vector<1x9x9xf32>
    %c11 = arith.constant 11 : index
    %c0_110 = arith.constant 0 : index
    %c0_111 = arith.constant 0 : index
    %c0_112 = arith.constant 0 : index
    %166 = vector.load %arg4[%c11, %c0_110, %c0_111, %c0_112] : memref<75x3x9x9xf32, #tpu.memory_space<vmem>>, vector<1x3x9x9xf32>
    %167 = vector.shape_cast %166 : vector<1x3x9x9xf32> to vector<3x9x9xf32>
    %168 = vector.broadcast %165 : vector<1x9x9xf32> to vector<3x9x9xf32>
    %169 = arith.mulf %168, %167 : vector<3x9x9xf32>
    %170 = arith.addf %163, %169 : vector<3x9x9xf32>
    %c2_113 = arith.constant 2 : index
    %c2_114 = arith.constant 2 : index
    %171 = vector.load %arg11[%c2_113, %c2_114] : memref<39x13xf32, #tpu.memory_space<vmem>>, vector<9x9xf32>
    %172 = vector.shape_cast %171 : vector<9x9xf32> to vector<1x9x9xf32>
    %c12 = arith.constant 12 : index
    %c0_115 = arith.constant 0 : index
    %c0_116 = arith.constant 0 : index
    %c0_117 = arith.constant 0 : index
    %173 = vector.load %arg4[%c12, %c0_115, %c0_116, %c0_117] : memref<75x3x9x9xf32, #tpu.memory_space<vmem>>, vector<1x3x9x9xf32>
    %174 = vector.shape_cast %173 : vector<1x3x9x9xf32> to vector<3x9x9xf32>
    %175 = vector.broadcast %172 : vector<1x9x9xf32> to vector<3x9x9xf32>
    %176 = arith.mulf %175, %174 : vector<3x9x9xf32>
    %177 = arith.addf %170, %176 : vector<3x9x9xf32>
    %c2_118 = arith.constant 2 : index
    %c3_119 = arith.constant 3 : index
    %178 = vector.load %arg11[%c2_118, %c3_119] : memref<39x13xf32, #tpu.memory_space<vmem>>, vector<9x9xf32>
    %179 = vector.shape_cast %178 : vector<9x9xf32> to vector<1x9x9xf32>
    %c13 = arith.constant 13 : index
    %c0_120 = arith.constant 0 : index
    %c0_121 = arith.constant 0 : index
    %c0_122 = arith.constant 0 : index
    %180 = vector.load %arg4[%c13, %c0_120, %c0_121, %c0_122] : memref<75x3x9x9xf32, #tpu.memory_space<vmem>>, vector<1x3x9x9xf32>
    %181 = vector.shape_cast %180 : vector<1x3x9x9xf32> to vector<3x9x9xf32>
    %182 = vector.broadcast %179 : vector<1x9x9xf32> to vector<3x9x9xf32>
    %183 = arith.mulf %182, %181 : vector<3x9x9xf32>
    %184 = arith.addf %177, %183 : vector<3x9x9xf32>
    %c2_123 = arith.constant 2 : index
    %c4_124 = arith.constant 4 : index
    %185 = vector.load %arg11[%c2_123, %c4_124] : memref<39x13xf32, #tpu.memory_space<vmem>>, vector<9x9xf32>
    %186 = vector.shape_cast %185 : vector<9x9xf32> to vector<1x9x9xf32>
    %c14 = arith.constant 14 : index
    %c0_125 = arith.constant 0 : index
    %c0_126 = arith.constant 0 : index
    %c0_127 = arith.constant 0 : index
    %187 = vector.load %arg4[%c14, %c0_125, %c0_126, %c0_127] : memref<75x3x9x9xf32, #tpu.memory_space<vmem>>, vector<1x3x9x9xf32>
    %188 = vector.shape_cast %187 : vector<1x3x9x9xf32> to vector<3x9x9xf32>
    %189 = vector.broadcast %186 : vector<1x9x9xf32> to vector<3x9x9xf32>
    %190 = arith.mulf %189, %188 : vector<3x9x9xf32>
    %191 = arith.addf %184, %190 : vector<3x9x9xf32>
    %c3_128 = arith.constant 3 : index
    %c0_129 = arith.constant 0 : index
    %192 = vector.load %arg11[%c3_128, %c0_129] : memref<39x13xf32, #tpu.memory_space<vmem>>, vector<9x9xf32>
    %193 = vector.shape_cast %192 : vector<9x9xf32> to vector<1x9x9xf32>
    %c15 = arith.constant 15 : index
    %c0_130 = arith.constant 0 : index
    %c0_131 = arith.constant 0 : index
    %c0_132 = arith.constant 0 : index
    %194 = vector.load %arg4[%c15, %c0_130, %c0_131, %c0_132] : memref<75x3x9x9xf32, #tpu.memory_space<vmem>>, vector<1x3x9x9xf32>
    %195 = vector.shape_cast %194 : vector<1x3x9x9xf32> to vector<3x9x9xf32>
    %196 = vector.broadcast %193 : vector<1x9x9xf32> to vector<3x9x9xf32>
    %197 = arith.mulf %196, %195 : vector<3x9x9xf32>
    %198 = arith.addf %191, %197 : vector<3x9x9xf32>
    %c3_133 = arith.constant 3 : index
    %c1_134 = arith.constant 1 : index
    %199 = vector.load %arg11[%c3_133, %c1_134] : memref<39x13xf32, #tpu.memory_space<vmem>>, vector<9x9xf32>
    %200 = vector.shape_cast %199 : vector<9x9xf32> to vector<1x9x9xf32>
    %c16 = arith.constant 16 : index
    %c0_135 = arith.constant 0 : index
    %c0_136 = arith.constant 0 : index
    %c0_137 = arith.constant 0 : index
    %201 = vector.load %arg4[%c16, %c0_135, %c0_136, %c0_137] : memref<75x3x9x9xf32, #tpu.memory_space<vmem>>, vector<1x3x9x9xf32>
    %202 = vector.shape_cast %201 : vector<1x3x9x9xf32> to vector<3x9x9xf32>
    %203 = vector.broadcast %200 : vector<1x9x9xf32> to vector<3x9x9xf32>
    %204 = arith.mulf %203, %202 : vector<3x9x9xf32>
    %205 = arith.addf %198, %204 : vector<3x9x9xf32>
    %c3_138 = arith.constant 3 : index
    %c2_139 = arith.constant 2 : index
    %206 = vector.load %arg11[%c3_138, %c2_139] : memref<39x13xf32, #tpu.memory_space<vmem>>, vector<9x9xf32>
    %207 = vector.shape_cast %206 : vector<9x9xf32> to vector<1x9x9xf32>
    %c17 = arith.constant 17 : index
    %c0_140 = arith.constant 0 : index
    %c0_141 = arith.constant 0 : index
    %c0_142 = arith.constant 0 : index
    %208 = vector.load %arg4[%c17, %c0_140, %c0_141, %c0_142] : memref<75x3x9x9xf32, #tpu.memory_space<vmem>>, vector<1x3x9x9xf32>
    %209 = vector.shape_cast %208 : vector<1x3x9x9xf32> to vector<3x9x9xf32>
    %210 = vector.broadcast %207 : vector<1x9x9xf32> to vector<3x9x9xf32>
    %211 = arith.mulf %210, %209 : vector<3x9x9xf32>
    %212 = arith.addf %205, %211 : vector<3x9x9xf32>
    %c3_143 = arith.constant 3 : index
    %c3_144 = arith.constant 3 : index
    %213 = vector.load %arg11[%c3_143, %c3_144] : memref<39x13xf32, #tpu.memory_space<vmem>>, vector<9x9xf32>
    %214 = vector.shape_cast %213 : vector<9x9xf32> to vector<1x9x9xf32>
    %c18 = arith.constant 18 : index
    %c0_145 = arith.constant 0 : index
    %c0_146 = arith.constant 0 : index
    %c0_147 = arith.constant 0 : index
    %215 = vector.load %arg4[%c18, %c0_145, %c0_146, %c0_147] : memref<75x3x9x9xf32, #tpu.memory_space<vmem>>, vector<1x3x9x9xf32>
    %216 = vector.shape_cast %215 : vector<1x3x9x9xf32> to vector<3x9x9xf32>
    %217 = vector.broadcast %214 : vector<1x9x9xf32> to vector<3x9x9xf32>
    %218 = arith.mulf %217, %216 : vector<3x9x9xf32>
    %219 = arith.addf %212, %218 : vector<3x9x9xf32>
    %c3_148 = arith.constant 3 : index
    %c4_149 = arith.constant 4 : index
    %220 = vector.load %arg11[%c3_148, %c4_149] : memref<39x13xf32, #tpu.memory_space<vmem>>, vector<9x9xf32>
    %221 = vector.shape_cast %220 : vector<9x9xf32> to vector<1x9x9xf32>
    %c19 = arith.constant 19 : index
    %c0_150 = arith.constant 0 : index
    %c0_151 = arith.constant 0 : index
    %c0_152 = arith.constant 0 : index
    %222 = vector.load %arg4[%c19, %c0_150, %c0_151, %c0_152] : memref<75x3x9x9xf32, #tpu.memory_space<vmem>>, vector<1x3x9x9xf32>
    %223 = vector.shape_cast %222 : vector<1x3x9x9xf32> to vector<3x9x9xf32>
    %224 = vector.broadcast %221 : vector<1x9x9xf32> to vector<3x9x9xf32>
    %225 = arith.mulf %224, %223 : vector<3x9x9xf32>
    %226 = arith.addf %219, %225 : vector<3x9x9xf32>
    %c4_153 = arith.constant 4 : index
    %c0_154 = arith.constant 0 : index
    %227 = vector.load %arg11[%c4_153, %c0_154] : memref<39x13xf32, #tpu.memory_space<vmem>>, vector<9x9xf32>
    %228 = vector.shape_cast %227 : vector<9x9xf32> to vector<1x9x9xf32>
    %c20 = arith.constant 20 : index
    %c0_155 = arith.constant 0 : index
    %c0_156 = arith.constant 0 : index
    %c0_157 = arith.constant 0 : index
    %229 = vector.load %arg4[%c20, %c0_155, %c0_156, %c0_157] : memref<75x3x9x9xf32, #tpu.memory_space<vmem>>, vector<1x3x9x9xf32>
    %230 = vector.shape_cast %229 : vector<1x3x9x9xf32> to vector<3x9x9xf32>
    %231 = vector.broadcast %228 : vector<1x9x9xf32> to vector<3x9x9xf32>
    %232 = arith.mulf %231, %230 : vector<3x9x9xf32>
    %233 = arith.addf %226, %232 : vector<3x9x9xf32>
    %c4_158 = arith.constant 4 : index
    %c1_159 = arith.constant 1 : index
    %234 = vector.load %arg11[%c4_158, %c1_159] : memref<39x13xf32, #tpu.memory_space<vmem>>, vector<9x9xf32>
    %235 = vector.shape_cast %234 : vector<9x9xf32> to vector<1x9x9xf32>
    %c21 = arith.constant 21 : index
    %c0_160 = arith.constant 0 : index
    %c0_161 = arith.constant 0 : index
    %c0_162 = arith.constant 0 : index
    %236 = vector.load %arg4[%c21, %c0_160, %c0_161, %c0_162] : memref<75x3x9x9xf32, #tpu.memory_space<vmem>>, vector<1x3x9x9xf32>
    %237 = vector.shape_cast %236 : vector<1x3x9x9xf32> to vector<3x9x9xf32>
    %238 = vector.broadcast %235 : vector<1x9x9xf32> to vector<3x9x9xf32>
    %239 = arith.mulf %238, %237 : vector<3x9x9xf32>
    %240 = arith.addf %233, %239 : vector<3x9x9xf32>
    %c4_163 = arith.constant 4 : index
    %c2_164 = arith.constant 2 : index
    %241 = vector.load %arg11[%c4_163, %c2_164] : memref<39x13xf32, #tpu.memory_space<vmem>>, vector<9x9xf32>
    %242 = vector.shape_cast %241 : vector<9x9xf32> to vector<1x9x9xf32>
    %c22 = arith.constant 22 : index
    %c0_165 = arith.constant 0 : index
    %c0_166 = arith.constant 0 : index
    %c0_167 = arith.constant 0 : index
    %243 = vector.load %arg4[%c22, %c0_165, %c0_166, %c0_167] : memref<75x3x9x9xf32, #tpu.memory_space<vmem>>, vector<1x3x9x9xf32>
    %244 = vector.shape_cast %243 : vector<1x3x9x9xf32> to vector<3x9x9xf32>
    %245 = vector.broadcast %242 : vector<1x9x9xf32> to vector<3x9x9xf32>
    %246 = arith.mulf %245, %244 : vector<3x9x9xf32>
    %247 = arith.addf %240, %246 : vector<3x9x9xf32>
    %c4_168 = arith.constant 4 : index
    %c3_169 = arith.constant 3 : index
    %248 = vector.load %arg11[%c4_168, %c3_169] : memref<39x13xf32, #tpu.memory_space<vmem>>, vector<9x9xf32>
    %249 = vector.shape_cast %248 : vector<9x9xf32> to vector<1x9x9xf32>
    %c23 = arith.constant 23 : index
    %c0_170 = arith.constant 0 : index
    %c0_171 = arith.constant 0 : index
    %c0_172 = arith.constant 0 : index
    %250 = vector.load %arg4[%c23, %c0_170, %c0_171, %c0_172] : memref<75x3x9x9xf32, #tpu.memory_space<vmem>>, vector<1x3x9x9xf32>
    %251 = vector.shape_cast %250 : vector<1x3x9x9xf32> to vector<3x9x9xf32>
    %252 = vector.broadcast %249 : vector<1x9x9xf32> to vector<3x9x9xf32>
    %253 = arith.mulf %252, %251 : vector<3x9x9xf32>
    %254 = arith.addf %247, %253 : vector<3x9x9xf32>
    %c4_173 = arith.constant 4 : index
    %c4_174 = arith.constant 4 : index
    %255 = vector.load %arg11[%c4_173, %c4_174] : memref<39x13xf32, #tpu.memory_space<vmem>>, vector<9x9xf32>
    %256 = vector.shape_cast %255 : vector<9x9xf32> to vector<1x9x9xf32>
    %c24 = arith.constant 24 : index
    %c0_175 = arith.constant 0 : index
    %c0_176 = arith.constant 0 : index
    %c0_177 = arith.constant 0 : index
    %257 = vector.load %arg4[%c24, %c0_175, %c0_176, %c0_177] : memref<75x3x9x9xf32, #tpu.memory_space<vmem>>, vector<1x3x9x9xf32>
    %258 = vector.shape_cast %257 : vector<1x3x9x9xf32> to vector<3x9x9xf32>
    %259 = vector.broadcast %256 : vector<1x9x9xf32> to vector<3x9x9xf32>
    %260 = arith.mulf %259, %258 : vector<3x9x9xf32>
    %261 = arith.addf %254, %260 : vector<3x9x9xf32>
    %c13_178 = arith.constant 13 : index
    %c0_179 = arith.constant 0 : index
    %262 = vector.load %arg11[%c13_178, %c0_179] : memref<39x13xf32, #tpu.memory_space<vmem>>, vector<9x9xf32>
    %263 = vector.shape_cast %262 : vector<9x9xf32> to vector<1x9x9xf32>
    %c25 = arith.constant 25 : index
    %c0_180 = arith.constant 0 : index
    %c0_181 = arith.constant 0 : index
    %c0_182 = arith.constant 0 : index
    %264 = vector.load %arg4[%c25, %c0_180, %c0_181, %c0_182] : memref<75x3x9x9xf32, #tpu.memory_space<vmem>>, vector<1x3x9x9xf32>
    %265 = vector.shape_cast %264 : vector<1x3x9x9xf32> to vector<3x9x9xf32>
    %266 = vector.broadcast %263 : vector<1x9x9xf32> to vector<3x9x9xf32>
    %267 = arith.mulf %266, %265 : vector<3x9x9xf32>
    %c13_183 = arith.constant 13 : index
    %c1_184 = arith.constant 1 : index
    %268 = vector.load %arg11[%c13_183, %c1_184] : memref<39x13xf32, #tpu.memory_space<vmem>>, vector<9x9xf32>
    %269 = vector.shape_cast %268 : vector<9x9xf32> to vector<1x9x9xf32>
    %c26 = arith.constant 26 : index
    %c0_185 = arith.constant 0 : index
    %c0_186 = arith.constant 0 : index
    %c0_187 = arith.constant 0 : index
    %270 = vector.load %arg4[%c26, %c0_185, %c0_186, %c0_187] : memref<75x3x9x9xf32, #tpu.memory_space<vmem>>, vector<1x3x9x9xf32>
    %271 = vector.shape_cast %270 : vector<1x3x9x9xf32> to vector<3x9x9xf32>
    %272 = vector.broadcast %269 : vector<1x9x9xf32> to vector<3x9x9xf32>
    %273 = arith.mulf %272, %271 : vector<3x9x9xf32>
    %274 = arith.addf %267, %273 : vector<3x9x9xf32>
    %c13_188 = arith.constant 13 : index
    %c2_189 = arith.constant 2 : index
    %275 = vector.load %arg11[%c13_188, %c2_189] : memref<39x13xf32, #tpu.memory_space<vmem>>, vector<9x9xf32>
    %276 = vector.shape_cast %275 : vector<9x9xf32> to vector<1x9x9xf32>
    %c27 = arith.constant 27 : index
    %c0_190 = arith.constant 0 : index
    %c0_191 = arith.constant 0 : index
    %c0_192 = arith.constant 0 : index
    %277 = vector.load %arg4[%c27, %c0_190, %c0_191, %c0_192] : memref<75x3x9x9xf32, #tpu.memory_space<vmem>>, vector<1x3x9x9xf32>
    %278 = vector.shape_cast %277 : vector<1x3x9x9xf32> to vector<3x9x9xf32>
    %279 = vector.broadcast %276 : vector<1x9x9xf32> to vector<3x9x9xf32>
    %280 = arith.mulf %279, %278 : vector<3x9x9xf32>
    %281 = arith.addf %274, %280 : vector<3x9x9xf32>
    %c13_193 = arith.constant 13 : index
    %c3_194 = arith.constant 3 : index
    %282 = vector.load %arg11[%c13_193, %c3_194] : memref<39x13xf32, #tpu.memory_space<vmem>>, vector<9x9xf32>
    %283 = vector.shape_cast %282 : vector<9x9xf32> to vector<1x9x9xf32>
    %c28 = arith.constant 28 : index
    %c0_195 = arith.constant 0 : index
    %c0_196 = arith.constant 0 : index
    %c0_197 = arith.constant 0 : index
    %284 = vector.load %arg4[%c28, %c0_195, %c0_196, %c0_197] : memref<75x3x9x9xf32, #tpu.memory_space<vmem>>, vector<1x3x9x9xf32>
    %285 = vector.shape_cast %284 : vector<1x3x9x9xf32> to vector<3x9x9xf32>
    %286 = vector.broadcast %283 : vector<1x9x9xf32> to vector<3x9x9xf32>
    %287 = arith.mulf %286, %285 : vector<3x9x9xf32>
    %288 = arith.addf %281, %287 : vector<3x9x9xf32>
    %c13_198 = arith.constant 13 : index
    %c4_199 = arith.constant 4 : index
    %289 = vector.load %arg11[%c13_198, %c4_199] : memref<39x13xf32, #tpu.memory_space<vmem>>, vector<9x9xf32>
    %290 = vector.shape_cast %289 : vector<9x9xf32> to vector<1x9x9xf32>
    %c29 = arith.constant 29 : index
    %c0_200 = arith.constant 0 : index
    %c0_201 = arith.constant 0 : index
    %c0_202 = arith.constant 0 : index
    %291 = vector.load %arg4[%c29, %c0_200, %c0_201, %c0_202] : memref<75x3x9x9xf32, #tpu.memory_space<vmem>>, vector<1x3x9x9xf32>
    %292 = vector.shape_cast %291 : vector<1x3x9x9xf32> to vector<3x9x9xf32>
    %293 = vector.broadcast %290 : vector<1x9x9xf32> to vector<3x9x9xf32>
    %294 = arith.mulf %293, %292 : vector<3x9x9xf32>
    %295 = arith.addf %288, %294 : vector<3x9x9xf32>
    %c14_203 = arith.constant 14 : index
    %c0_204 = arith.constant 0 : index
    %296 = vector.load %arg11[%c14_203, %c0_204] : memref<39x13xf32, #tpu.memory_space<vmem>>, vector<9x9xf32>
    %297 = vector.shape_cast %296 : vector<9x9xf32> to vector<1x9x9xf32>
    %c30 = arith.constant 30 : index
    %c0_205 = arith.constant 0 : index
    %c0_206 = arith.constant 0 : index
    %c0_207 = arith.constant 0 : index
    %298 = vector.load %arg4[%c30, %c0_205, %c0_206, %c0_207] : memref<75x3x9x9xf32, #tpu.memory_space<vmem>>, vector<1x3x9x9xf32>
    %299 = vector.shape_cast %298 : vector<1x3x9x9xf32> to vector<3x9x9xf32>
    %300 = vector.broadcast %297 : vector<1x9x9xf32> to vector<3x9x9xf32>
    %301 = arith.mulf %300, %299 : vector<3x9x9xf32>
    %302 = arith.addf %295, %301 : vector<3x9x9xf32>
    %c14_208 = arith.constant 14 : index
    %c1_209 = arith.constant 1 : index
    %303 = vector.load %arg11[%c14_208, %c1_209] : memref<39x13xf32, #tpu.memory_space<vmem>>, vector<9x9xf32>
    %304 = vector.shape_cast %303 : vector<9x9xf32> to vector<1x9x9xf32>
    %c31 = arith.constant 31 : index
    %c0_210 = arith.constant 0 : index
    %c0_211 = arith.constant 0 : index
    %c0_212 = arith.constant 0 : index
    %305 = vector.load %arg4[%c31, %c0_210, %c0_211, %c0_212] : memref<75x3x9x9xf32, #tpu.memory_space<vmem>>, vector<1x3x9x9xf32>
    %306 = vector.shape_cast %305 : vector<1x3x9x9xf32> to vector<3x9x9xf32>
    %307 = vector.broadcast %304 : vector<1x9x9xf32> to vector<3x9x9xf32>
    %308 = arith.mulf %307, %306 : vector<3x9x9xf32>
    %309 = arith.addf %302, %308 : vector<3x9x9xf32>
    %c14_213 = arith.constant 14 : index
    %c2_214 = arith.constant 2 : index
    %310 = vector.load %arg11[%c14_213, %c2_214] : memref<39x13xf32, #tpu.memory_space<vmem>>, vector<9x9xf32>
    %311 = vector.shape_cast %310 : vector<9x9xf32> to vector<1x9x9xf32>
    %c32 = arith.constant 32 : index
    %c0_215 = arith.constant 0 : index
    %c0_216 = arith.constant 0 : index
    %c0_217 = arith.constant 0 : index
    %312 = vector.load %arg4[%c32, %c0_215, %c0_216, %c0_217] : memref<75x3x9x9xf32, #tpu.memory_space<vmem>>, vector<1x3x9x9xf32>
    %313 = vector.shape_cast %312 : vector<1x3x9x9xf32> to vector<3x9x9xf32>
    %314 = vector.broadcast %311 : vector<1x9x9xf32> to vector<3x9x9xf32>
    %315 = arith.mulf %314, %313 : vector<3x9x9xf32>
    %316 = arith.addf %309, %315 : vector<3x9x9xf32>
    %c14_218 = arith.constant 14 : index
    %c3_219 = arith.constant 3 : index
    %317 = vector.load %arg11[%c14_218, %c3_219] : memref<39x13xf32, #tpu.memory_space<vmem>>, vector<9x9xf32>
    %318 = vector.shape_cast %317 : vector<9x9xf32> to vector<1x9x9xf32>
    %c33 = arith.constant 33 : index
    %c0_220 = arith.constant 0 : index
    %c0_221 = arith.constant 0 : index
    %c0_222 = arith.constant 0 : index
    %319 = vector.load %arg4[%c33, %c0_220, %c0_221, %c0_222] : memref<75x3x9x9xf32, #tpu.memory_space<vmem>>, vector<1x3x9x9xf32>
    %320 = vector.shape_cast %319 : vector<1x3x9x9xf32> to vector<3x9x9xf32>
    %321 = vector.broadcast %318 : vector<1x9x9xf32> to vector<3x9x9xf32>
    %322 = arith.mulf %321, %320 : vector<3x9x9xf32>
    %323 = arith.addf %316, %322 : vector<3x9x9xf32>
    %c14_223 = arith.constant 14 : index
    %c4_224 = arith.constant 4 : index
    %324 = vector.load %arg11[%c14_223, %c4_224] : memref<39x13xf32, #tpu.memory_space<vmem>>, vector<9x9xf32>
    %325 = vector.shape_cast %324 : vector<9x9xf32> to vector<1x9x9xf32>
    %c34 = arith.constant 34 : index
    %c0_225 = arith.constant 0 : index
    %c0_226 = arith.constant 0 : index
    %c0_227 = arith.constant 0 : index
    %326 = vector.load %arg4[%c34, %c0_225, %c0_226, %c0_227] : memref<75x3x9x9xf32, #tpu.memory_space<vmem>>, vector<1x3x9x9xf32>
    %327 = vector.shape_cast %326 : vector<1x3x9x9xf32> to vector<3x9x9xf32>
    %328 = vector.broadcast %325 : vector<1x9x9xf32> to vector<3x9x9xf32>
    %329 = arith.mulf %328, %327 : vector<3x9x9xf32>
    %330 = arith.addf %323, %329 : vector<3x9x9xf32>
    %c15_228 = arith.constant 15 : index
    %c0_229 = arith.constant 0 : index
    %331 = vector.load %arg11[%c15_228, %c0_229] : memref<39x13xf32, #tpu.memory_space<vmem>>, vector<9x9xf32>
    %332 = vector.shape_cast %331 : vector<9x9xf32> to vector<1x9x9xf32>
    %c35 = arith.constant 35 : index
    %c0_230 = arith.constant 0 : index
    %c0_231 = arith.constant 0 : index
    %c0_232 = arith.constant 0 : index
    %333 = vector.load %arg4[%c35, %c0_230, %c0_231, %c0_232] : memref<75x3x9x9xf32, #tpu.memory_space<vmem>>, vector<1x3x9x9xf32>
    %334 = vector.shape_cast %333 : vector<1x3x9x9xf32> to vector<3x9x9xf32>
    %335 = vector.broadcast %332 : vector<1x9x9xf32> to vector<3x9x9xf32>
    %336 = arith.mulf %335, %334 : vector<3x9x9xf32>
    %337 = arith.addf %330, %336 : vector<3x9x9xf32>
    %c15_233 = arith.constant 15 : index
    %c1_234 = arith.constant 1 : index
    %338 = vector.load %arg11[%c15_233, %c1_234] : memref<39x13xf32, #tpu.memory_space<vmem>>, vector<9x9xf32>
    %339 = vector.shape_cast %338 : vector<9x9xf32> to vector<1x9x9xf32>
    %c36 = arith.constant 36 : index
    %c0_235 = arith.constant 0 : index
    %c0_236 = arith.constant 0 : index
    %c0_237 = arith.constant 0 : index
    %340 = vector.load %arg4[%c36, %c0_235, %c0_236, %c0_237] : memref<75x3x9x9xf32, #tpu.memory_space<vmem>>, vector<1x3x9x9xf32>
    %341 = vector.shape_cast %340 : vector<1x3x9x9xf32> to vector<3x9x9xf32>
    %342 = vector.broadcast %339 : vector<1x9x9xf32> to vector<3x9x9xf32>
    %343 = arith.mulf %342, %341 : vector<3x9x9xf32>
    %344 = arith.addf %337, %343 : vector<3x9x9xf32>
    %c15_238 = arith.constant 15 : index
    %c2_239 = arith.constant 2 : index
    %345 = vector.load %arg11[%c15_238, %c2_239] : memref<39x13xf32, #tpu.memory_space<vmem>>, vector<9x9xf32>
    %346 = vector.shape_cast %345 : vector<9x9xf32> to vector<1x9x9xf32>
    %c37 = arith.constant 37 : index
    %c0_240 = arith.constant 0 : index
    %c0_241 = arith.constant 0 : index
    %c0_242 = arith.constant 0 : index
    %347 = vector.load %arg4[%c37, %c0_240, %c0_241, %c0_242] : memref<75x3x9x9xf32, #tpu.memory_space<vmem>>, vector<1x3x9x9xf32>
    %348 = vector.shape_cast %347 : vector<1x3x9x9xf32> to vector<3x9x9xf32>
    %349 = vector.broadcast %346 : vector<1x9x9xf32> to vector<3x9x9xf32>
    %350 = arith.mulf %349, %348 : vector<3x9x9xf32>
    %351 = arith.addf %344, %350 : vector<3x9x9xf32>
    %c15_243 = arith.constant 15 : index
    %c3_244 = arith.constant 3 : index
    %352 = vector.load %arg11[%c15_243, %c3_244] : memref<39x13xf32, #tpu.memory_space<vmem>>, vector<9x9xf32>
    %353 = vector.shape_cast %352 : vector<9x9xf32> to vector<1x9x9xf32>
    %c38 = arith.constant 38 : index
    %c0_245 = arith.constant 0 : index
    %c0_246 = arith.constant 0 : index
    %c0_247 = arith.constant 0 : index
    %354 = vector.load %arg4[%c38, %c0_245, %c0_246, %c0_247] : memref<75x3x9x9xf32, #tpu.memory_space<vmem>>, vector<1x3x9x9xf32>
    %355 = vector.shape_cast %354 : vector<1x3x9x9xf32> to vector<3x9x9xf32>
    %356 = vector.broadcast %353 : vector<1x9x9xf32> to vector<3x9x9xf32>
    %357 = arith.mulf %356, %355 : vector<3x9x9xf32>
    %358 = arith.addf %351, %357 : vector<3x9x9xf32>
    %c15_248 = arith.constant 15 : index
    %c4_249 = arith.constant 4 : index
    %359 = vector.load %arg11[%c15_248, %c4_249] : memref<39x13xf32, #tpu.memory_space<vmem>>, vector<9x9xf32>
    %360 = vector.shape_cast %359 : vector<9x9xf32> to vector<1x9x9xf32>
    %c39 = arith.constant 39 : index
    %c0_250 = arith.constant 0 : index
    %c0_251 = arith.constant 0 : index
    %c0_252 = arith.constant 0 : index
    %361 = vector.load %arg4[%c39, %c0_250, %c0_251, %c0_252] : memref<75x3x9x9xf32, #tpu.memory_space<vmem>>, vector<1x3x9x9xf32>
    %362 = vector.shape_cast %361 : vector<1x3x9x9xf32> to vector<3x9x9xf32>
    %363 = vector.broadcast %360 : vector<1x9x9xf32> to vector<3x9x9xf32>
    %364 = arith.mulf %363, %362 : vector<3x9x9xf32>
    %365 = arith.addf %358, %364 : vector<3x9x9xf32>
    %c16_253 = arith.constant 16 : index
    %c0_254 = arith.constant 0 : index
    %366 = vector.load %arg11[%c16_253, %c0_254] : memref<39x13xf32, #tpu.memory_space<vmem>>, vector<9x9xf32>
    %367 = vector.shape_cast %366 : vector<9x9xf32> to vector<1x9x9xf32>
    %c40 = arith.constant 40 : index
    %c0_255 = arith.constant 0 : index
    %c0_256 = arith.constant 0 : index
    %c0_257 = arith.constant 0 : index
    %368 = vector.load %arg4[%c40, %c0_255, %c0_256, %c0_257] : memref<75x3x9x9xf32, #tpu.memory_space<vmem>>, vector<1x3x9x9xf32>
    %369 = vector.shape_cast %368 : vector<1x3x9x9xf32> to vector<3x9x9xf32>
    %370 = vector.broadcast %367 : vector<1x9x9xf32> to vector<3x9x9xf32>
    %371 = arith.mulf %370, %369 : vector<3x9x9xf32>
    %372 = arith.addf %365, %371 : vector<3x9x9xf32>
    %c16_258 = arith.constant 16 : index
    %c1_259 = arith.constant 1 : index
    %373 = vector.load %arg11[%c16_258, %c1_259] : memref<39x13xf32, #tpu.memory_space<vmem>>, vector<9x9xf32>
    %374 = vector.shape_cast %373 : vector<9x9xf32> to vector<1x9x9xf32>
    %c41 = arith.constant 41 : index
    %c0_260 = arith.constant 0 : index
    %c0_261 = arith.constant 0 : index
    %c0_262 = arith.constant 0 : index
    %375 = vector.load %arg4[%c41, %c0_260, %c0_261, %c0_262] : memref<75x3x9x9xf32, #tpu.memory_space<vmem>>, vector<1x3x9x9xf32>
    %376 = vector.shape_cast %375 : vector<1x3x9x9xf32> to vector<3x9x9xf32>
    %377 = vector.broadcast %374 : vector<1x9x9xf32> to vector<3x9x9xf32>
    %378 = arith.mulf %377, %376 : vector<3x9x9xf32>
    %379 = arith.addf %372, %378 : vector<3x9x9xf32>
    %c16_263 = arith.constant 16 : index
    %c2_264 = arith.constant 2 : index
    %380 = vector.load %arg11[%c16_263, %c2_264] : memref<39x13xf32, #tpu.memory_space<vmem>>, vector<9x9xf32>
    %381 = vector.shape_cast %380 : vector<9x9xf32> to vector<1x9x9xf32>
    %c42 = arith.constant 42 : index
    %c0_265 = arith.constant 0 : index
    %c0_266 = arith.constant 0 : index
    %c0_267 = arith.constant 0 : index
    %382 = vector.load %arg4[%c42, %c0_265, %c0_266, %c0_267] : memref<75x3x9x9xf32, #tpu.memory_space<vmem>>, vector<1x3x9x9xf32>
    %383 = vector.shape_cast %382 : vector<1x3x9x9xf32> to vector<3x9x9xf32>
    %384 = vector.broadcast %381 : vector<1x9x9xf32> to vector<3x9x9xf32>
    %385 = arith.mulf %384, %383 : vector<3x9x9xf32>
    %386 = arith.addf %379, %385 : vector<3x9x9xf32>
    %c16_268 = arith.constant 16 : index
    %c3_269 = arith.constant 3 : index
    %387 = vector.load %arg11[%c16_268, %c3_269] : memref<39x13xf32, #tpu.memory_space<vmem>>, vector<9x9xf32>
    %388 = vector.shape_cast %387 : vector<9x9xf32> to vector<1x9x9xf32>
    %c43 = arith.constant 43 : index
    %c0_270 = arith.constant 0 : index
    %c0_271 = arith.constant 0 : index
    %c0_272 = arith.constant 0 : index
    %389 = vector.load %arg4[%c43, %c0_270, %c0_271, %c0_272] : memref<75x3x9x9xf32, #tpu.memory_space<vmem>>, vector<1x3x9x9xf32>
    %390 = vector.shape_cast %389 : vector<1x3x9x9xf32> to vector<3x9x9xf32>
    %391 = vector.broadcast %388 : vector<1x9x9xf32> to vector<3x9x9xf32>
    %392 = arith.mulf %391, %390 : vector<3x9x9xf32>
    %393 = arith.addf %386, %392 : vector<3x9x9xf32>
    %c16_273 = arith.constant 16 : index
    %c4_274 = arith.constant 4 : index
    %394 = vector.load %arg11[%c16_273, %c4_274] : memref<39x13xf32, #tpu.memory_space<vmem>>, vector<9x9xf32>
    %395 = vector.shape_cast %394 : vector<9x9xf32> to vector<1x9x9xf32>
    %c44 = arith.constant 44 : index
    %c0_275 = arith.constant 0 : index
    %c0_276 = arith.constant 0 : index
    %c0_277 = arith.constant 0 : index
    %396 = vector.load %arg4[%c44, %c0_275, %c0_276, %c0_277] : memref<75x3x9x9xf32, #tpu.memory_space<vmem>>, vector<1x3x9x9xf32>
    %397 = vector.shape_cast %396 : vector<1x3x9x9xf32> to vector<3x9x9xf32>
    %398 = vector.broadcast %395 : vector<1x9x9xf32> to vector<3x9x9xf32>
    %399 = arith.mulf %398, %397 : vector<3x9x9xf32>
    %400 = arith.addf %393, %399 : vector<3x9x9xf32>
    %c17_278 = arith.constant 17 : index
    %c0_279 = arith.constant 0 : index
    %401 = vector.load %arg11[%c17_278, %c0_279] : memref<39x13xf32, #tpu.memory_space<vmem>>, vector<9x9xf32>
    %402 = vector.shape_cast %401 : vector<9x9xf32> to vector<1x9x9xf32>
    %c45 = arith.constant 45 : index
    %c0_280 = arith.constant 0 : index
    %c0_281 = arith.constant 0 : index
    %c0_282 = arith.constant 0 : index
    %403 = vector.load %arg4[%c45, %c0_280, %c0_281, %c0_282] : memref<75x3x9x9xf32, #tpu.memory_space<vmem>>, vector<1x3x9x9xf32>
    %404 = vector.shape_cast %403 : vector<1x3x9x9xf32> to vector<3x9x9xf32>
    %405 = vector.broadcast %402 : vector<1x9x9xf32> to vector<3x9x9xf32>
    %406 = arith.mulf %405, %404 : vector<3x9x9xf32>
    %407 = arith.addf %400, %406 : vector<3x9x9xf32>
    %c17_283 = arith.constant 17 : index
    %c1_284 = arith.constant 1 : index
    %408 = vector.load %arg11[%c17_283, %c1_284] : memref<39x13xf32, #tpu.memory_space<vmem>>, vector<9x9xf32>
    %409 = vector.shape_cast %408 : vector<9x9xf32> to vector<1x9x9xf32>
    %c46 = arith.constant 46 : index
    %c0_285 = arith.constant 0 : index
    %c0_286 = arith.constant 0 : index
    %c0_287 = arith.constant 0 : index
    %410 = vector.load %arg4[%c46, %c0_285, %c0_286, %c0_287] : memref<75x3x9x9xf32, #tpu.memory_space<vmem>>, vector<1x3x9x9xf32>
    %411 = vector.shape_cast %410 : vector<1x3x9x9xf32> to vector<3x9x9xf32>
    %412 = vector.broadcast %409 : vector<1x9x9xf32> to vector<3x9x9xf32>
    %413 = arith.mulf %412, %411 : vector<3x9x9xf32>
    %414 = arith.addf %407, %413 : vector<3x9x9xf32>
    %c17_288 = arith.constant 17 : index
    %c2_289 = arith.constant 2 : index
    %415 = vector.load %arg11[%c17_288, %c2_289] : memref<39x13xf32, #tpu.memory_space<vmem>>, vector<9x9xf32>
    %416 = vector.shape_cast %415 : vector<9x9xf32> to vector<1x9x9xf32>
    %c47 = arith.constant 47 : index
    %c0_290 = arith.constant 0 : index
    %c0_291 = arith.constant 0 : index
    %c0_292 = arith.constant 0 : index
    %417 = vector.load %arg4[%c47, %c0_290, %c0_291, %c0_292] : memref<75x3x9x9xf32, #tpu.memory_space<vmem>>, vector<1x3x9x9xf32>
    %418 = vector.shape_cast %417 : vector<1x3x9x9xf32> to vector<3x9x9xf32>
    %419 = vector.broadcast %416 : vector<1x9x9xf32> to vector<3x9x9xf32>
    %420 = arith.mulf %419, %418 : vector<3x9x9xf32>
    %421 = arith.addf %414, %420 : vector<3x9x9xf32>
    %c17_293 = arith.constant 17 : index
    %c3_294 = arith.constant 3 : index
    %422 = vector.load %arg11[%c17_293, %c3_294] : memref<39x13xf32, #tpu.memory_space<vmem>>, vector<9x9xf32>
    %423 = vector.shape_cast %422 : vector<9x9xf32> to vector<1x9x9xf32>
    %c48 = arith.constant 48 : index
    %c0_295 = arith.constant 0 : index
    %c0_296 = arith.constant 0 : index
    %c0_297 = arith.constant 0 : index
    %424 = vector.load %arg4[%c48, %c0_295, %c0_296, %c0_297] : memref<75x3x9x9xf32, #tpu.memory_space<vmem>>, vector<1x3x9x9xf32>
    %425 = vector.shape_cast %424 : vector<1x3x9x9xf32> to vector<3x9x9xf32>
    %426 = vector.broadcast %423 : vector<1x9x9xf32> to vector<3x9x9xf32>
    %427 = arith.mulf %426, %425 : vector<3x9x9xf32>
    %428 = arith.addf %421, %427 : vector<3x9x9xf32>
    %c17_298 = arith.constant 17 : index
    %c4_299 = arith.constant 4 : index
    %429 = vector.load %arg11[%c17_298, %c4_299] : memref<39x13xf32, #tpu.memory_space<vmem>>, vector<9x9xf32>
    %430 = vector.shape_cast %429 : vector<9x9xf32> to vector<1x9x9xf32>
    %c49 = arith.constant 49 : index
    %c0_300 = arith.constant 0 : index
    %c0_301 = arith.constant 0 : index
    %c0_302 = arith.constant 0 : index
    %431 = vector.load %arg4[%c49, %c0_300, %c0_301, %c0_302] : memref<75x3x9x9xf32, #tpu.memory_space<vmem>>, vector<1x3x9x9xf32>
    %432 = vector.shape_cast %431 : vector<1x3x9x9xf32> to vector<3x9x9xf32>
    %433 = vector.broadcast %430 : vector<1x9x9xf32> to vector<3x9x9xf32>
    %434 = arith.mulf %433, %432 : vector<3x9x9xf32>
    %435 = arith.addf %428, %434 : vector<3x9x9xf32>
    %c26_303 = arith.constant 26 : index
    %c0_304 = arith.constant 0 : index
    %436 = vector.load %arg11[%c26_303, %c0_304] : memref<39x13xf32, #tpu.memory_space<vmem>>, vector<9x9xf32>
    %437 = vector.shape_cast %436 : vector<9x9xf32> to vector<1x9x9xf32>
    %c50 = arith.constant 50 : index
    %c0_305 = arith.constant 0 : index
    %c0_306 = arith.constant 0 : index
    %c0_307 = arith.constant 0 : index
    %438 = vector.load %arg4[%c50, %c0_305, %c0_306, %c0_307] : memref<75x3x9x9xf32, #tpu.memory_space<vmem>>, vector<1x3x9x9xf32>
    %439 = vector.shape_cast %438 : vector<1x3x9x9xf32> to vector<3x9x9xf32>
    %440 = vector.broadcast %437 : vector<1x9x9xf32> to vector<3x9x9xf32>
    %441 = arith.mulf %440, %439 : vector<3x9x9xf32>
    %c26_308 = arith.constant 26 : index
    %c1_309 = arith.constant 1 : index
    %442 = vector.load %arg11[%c26_308, %c1_309] : memref<39x13xf32, #tpu.memory_space<vmem>>, vector<9x9xf32>
    %443 = vector.shape_cast %442 : vector<9x9xf32> to vector<1x9x9xf32>
    %c51 = arith.constant 51 : index
    %c0_310 = arith.constant 0 : index
    %c0_311 = arith.constant 0 : index
    %c0_312 = arith.constant 0 : index
    %444 = vector.load %arg4[%c51, %c0_310, %c0_311, %c0_312] : memref<75x3x9x9xf32, #tpu.memory_space<vmem>>, vector<1x3x9x9xf32>
    %445 = vector.shape_cast %444 : vector<1x3x9x9xf32> to vector<3x9x9xf32>
    %446 = vector.broadcast %443 : vector<1x9x9xf32> to vector<3x9x9xf32>
    %447 = arith.mulf %446, %445 : vector<3x9x9xf32>
    %448 = arith.addf %441, %447 : vector<3x9x9xf32>
    %c26_313 = arith.constant 26 : index
    %c2_314 = arith.constant 2 : index
    %449 = vector.load %arg11[%c26_313, %c2_314] : memref<39x13xf32, #tpu.memory_space<vmem>>, vector<9x9xf32>
    %450 = vector.shape_cast %449 : vector<9x9xf32> to vector<1x9x9xf32>
    %c52 = arith.constant 52 : index
    %c0_315 = arith.constant 0 : index
    %c0_316 = arith.constant 0 : index
    %c0_317 = arith.constant 0 : index
    %451 = vector.load %arg4[%c52, %c0_315, %c0_316, %c0_317] : memref<75x3x9x9xf32, #tpu.memory_space<vmem>>, vector<1x3x9x9xf32>
    %452 = vector.shape_cast %451 : vector<1x3x9x9xf32> to vector<3x9x9xf32>
    %453 = vector.broadcast %450 : vector<1x9x9xf32> to vector<3x9x9xf32>
    %454 = arith.mulf %453, %452 : vector<3x9x9xf32>
    %455 = arith.addf %448, %454 : vector<3x9x9xf32>
    %c26_318 = arith.constant 26 : index
    %c3_319 = arith.constant 3 : index
    %456 = vector.load %arg11[%c26_318, %c3_319] : memref<39x13xf32, #tpu.memory_space<vmem>>, vector<9x9xf32>
    %457 = vector.shape_cast %456 : vector<9x9xf32> to vector<1x9x9xf32>
    %c53 = arith.constant 53 : index
    %c0_320 = arith.constant 0 : index
    %c0_321 = arith.constant 0 : index
    %c0_322 = arith.constant 0 : index
    %458 = vector.load %arg4[%c53, %c0_320, %c0_321, %c0_322] : memref<75x3x9x9xf32, #tpu.memory_space<vmem>>, vector<1x3x9x9xf32>
    %459 = vector.shape_cast %458 : vector<1x3x9x9xf32> to vector<3x9x9xf32>
    %460 = vector.broadcast %457 : vector<1x9x9xf32> to vector<3x9x9xf32>
    %461 = arith.mulf %460, %459 : vector<3x9x9xf32>
    %462 = arith.addf %455, %461 : vector<3x9x9xf32>
    %c26_323 = arith.constant 26 : index
    %c4_324 = arith.constant 4 : index
    %463 = vector.load %arg11[%c26_323, %c4_324] : memref<39x13xf32, #tpu.memory_space<vmem>>, vector<9x9xf32>
    %464 = vector.shape_cast %463 : vector<9x9xf32> to vector<1x9x9xf32>
    %c54 = arith.constant 54 : index
    %c0_325 = arith.constant 0 : index
    %c0_326 = arith.constant 0 : index
    %c0_327 = arith.constant 0 : index
    %465 = vector.load %arg4[%c54, %c0_325, %c0_326, %c0_327] : memref<75x3x9x9xf32, #tpu.memory_space<vmem>>, vector<1x3x9x9xf32>
    %466 = vector.shape_cast %465 : vector<1x3x9x9xf32> to vector<3x9x9xf32>
    %467 = vector.broadcast %464 : vector<1x9x9xf32> to vector<3x9x9xf32>
    %468 = arith.mulf %467, %466 : vector<3x9x9xf32>
    %469 = arith.addf %462, %468 : vector<3x9x9xf32>
    %c27_328 = arith.constant 27 : index
    %c0_329 = arith.constant 0 : index
    %470 = vector.load %arg11[%c27_328, %c0_329] : memref<39x13xf32, #tpu.memory_space<vmem>>, vector<9x9xf32>
    %471 = vector.shape_cast %470 : vector<9x9xf32> to vector<1x9x9xf32>
    %c55 = arith.constant 55 : index
    %c0_330 = arith.constant 0 : index
    %c0_331 = arith.constant 0 : index
    %c0_332 = arith.constant 0 : index
    %472 = vector.load %arg4[%c55, %c0_330, %c0_331, %c0_332] : memref<75x3x9x9xf32, #tpu.memory_space<vmem>>, vector<1x3x9x9xf32>
    %473 = vector.shape_cast %472 : vector<1x3x9x9xf32> to vector<3x9x9xf32>
    %474 = vector.broadcast %471 : vector<1x9x9xf32> to vector<3x9x9xf32>
    %475 = arith.mulf %474, %473 : vector<3x9x9xf32>
    %476 = arith.addf %469, %475 : vector<3x9x9xf32>
    %c27_333 = arith.constant 27 : index
    %c1_334 = arith.constant 1 : index
    %477 = vector.load %arg11[%c27_333, %c1_334] : memref<39x13xf32, #tpu.memory_space<vmem>>, vector<9x9xf32>
    %478 = vector.shape_cast %477 : vector<9x9xf32> to vector<1x9x9xf32>
    %c56 = arith.constant 56 : index
    %c0_335 = arith.constant 0 : index
    %c0_336 = arith.constant 0 : index
    %c0_337 = arith.constant 0 : index
    %479 = vector.load %arg4[%c56, %c0_335, %c0_336, %c0_337] : memref<75x3x9x9xf32, #tpu.memory_space<vmem>>, vector<1x3x9x9xf32>
    %480 = vector.shape_cast %479 : vector<1x3x9x9xf32> to vector<3x9x9xf32>
    %481 = vector.broadcast %478 : vector<1x9x9xf32> to vector<3x9x9xf32>
    %482 = arith.mulf %481, %480 : vector<3x9x9xf32>
    %483 = arith.addf %476, %482 : vector<3x9x9xf32>
    %c27_338 = arith.constant 27 : index
    %c2_339 = arith.constant 2 : index
    %484 = vector.load %arg11[%c27_338, %c2_339] : memref<39x13xf32, #tpu.memory_space<vmem>>, vector<9x9xf32>
    %485 = vector.shape_cast %484 : vector<9x9xf32> to vector<1x9x9xf32>
    %c57 = arith.constant 57 : index
    %c0_340 = arith.constant 0 : index
    %c0_341 = arith.constant 0 : index
    %c0_342 = arith.constant 0 : index
    %486 = vector.load %arg4[%c57, %c0_340, %c0_341, %c0_342] : memref<75x3x9x9xf32, #tpu.memory_space<vmem>>, vector<1x3x9x9xf32>
    %487 = vector.shape_cast %486 : vector<1x3x9x9xf32> to vector<3x9x9xf32>
    %488 = vector.broadcast %485 : vector<1x9x9xf32> to vector<3x9x9xf32>
    %489 = arith.mulf %488, %487 : vector<3x9x9xf32>
    %490 = arith.addf %483, %489 : vector<3x9x9xf32>
    %c27_343 = arith.constant 27 : index
    %c3_344 = arith.constant 3 : index
    %491 = vector.load %arg11[%c27_343, %c3_344] : memref<39x13xf32, #tpu.memory_space<vmem>>, vector<9x9xf32>
    %492 = vector.shape_cast %491 : vector<9x9xf32> to vector<1x9x9xf32>
    %c58 = arith.constant 58 : index
    %c0_345 = arith.constant 0 : index
    %c0_346 = arith.constant 0 : index
    %c0_347 = arith.constant 0 : index
    %493 = vector.load %arg4[%c58, %c0_345, %c0_346, %c0_347] : memref<75x3x9x9xf32, #tpu.memory_space<vmem>>, vector<1x3x9x9xf32>
    %494 = vector.shape_cast %493 : vector<1x3x9x9xf32> to vector<3x9x9xf32>
    %495 = vector.broadcast %492 : vector<1x9x9xf32> to vector<3x9x9xf32>
    %496 = arith.mulf %495, %494 : vector<3x9x9xf32>
    %497 = arith.addf %490, %496 : vector<3x9x9xf32>
    %c27_348 = arith.constant 27 : index
    %c4_349 = arith.constant 4 : index
    %498 = vector.load %arg11[%c27_348, %c4_349] : memref<39x13xf32, #tpu.memory_space<vmem>>, vector<9x9xf32>
    %499 = vector.shape_cast %498 : vector<9x9xf32> to vector<1x9x9xf32>
    %c59 = arith.constant 59 : index
    %c0_350 = arith.constant 0 : index
    %c0_351 = arith.constant 0 : index
    %c0_352 = arith.constant 0 : index
    %500 = vector.load %arg4[%c59, %c0_350, %c0_351, %c0_352] : memref<75x3x9x9xf32, #tpu.memory_space<vmem>>, vector<1x3x9x9xf32>
    %501 = vector.shape_cast %500 : vector<1x3x9x9xf32> to vector<3x9x9xf32>
    %502 = vector.broadcast %499 : vector<1x9x9xf32> to vector<3x9x9xf32>
    %503 = arith.mulf %502, %501 : vector<3x9x9xf32>
    %504 = arith.addf %497, %503 : vector<3x9x9xf32>
    %c28_353 = arith.constant 28 : index
    %c0_354 = arith.constant 0 : index
    %505 = vector.load %arg11[%c28_353, %c0_354] : memref<39x13xf32, #tpu.memory_space<vmem>>, vector<9x9xf32>
    %506 = vector.shape_cast %505 : vector<9x9xf32> to vector<1x9x9xf32>
    %c60 = arith.constant 60 : index
    %c0_355 = arith.constant 0 : index
    %c0_356 = arith.constant 0 : index
    %c0_357 = arith.constant 0 : index
    %507 = vector.load %arg4[%c60, %c0_355, %c0_356, %c0_357] : memref<75x3x9x9xf32, #tpu.memory_space<vmem>>, vector<1x3x9x9xf32>
    %508 = vector.shape_cast %507 : vector<1x3x9x9xf32> to vector<3x9x9xf32>
    %509 = vector.broadcast %506 : vector<1x9x9xf32> to vector<3x9x9xf32>
    %510 = arith.mulf %509, %508 : vector<3x9x9xf32>
    %511 = arith.addf %504, %510 : vector<3x9x9xf32>
    %c28_358 = arith.constant 28 : index
    %c1_359 = arith.constant 1 : index
    %512 = vector.load %arg11[%c28_358, %c1_359] : memref<39x13xf32, #tpu.memory_space<vmem>>, vector<9x9xf32>
    %513 = vector.shape_cast %512 : vector<9x9xf32> to vector<1x9x9xf32>
    %c61 = arith.constant 61 : index
    %c0_360 = arith.constant 0 : index
    %c0_361 = arith.constant 0 : index
    %c0_362 = arith.constant 0 : index
    %514 = vector.load %arg4[%c61, %c0_360, %c0_361, %c0_362] : memref<75x3x9x9xf32, #tpu.memory_space<vmem>>, vector<1x3x9x9xf32>
    %515 = vector.shape_cast %514 : vector<1x3x9x9xf32> to vector<3x9x9xf32>
    %516 = vector.broadcast %513 : vector<1x9x9xf32> to vector<3x9x9xf32>
    %517 = arith.mulf %516, %515 : vector<3x9x9xf32>
    %518 = arith.addf %511, %517 : vector<3x9x9xf32>
    %c28_363 = arith.constant 28 : index
    %c2_364 = arith.constant 2 : index
    %519 = vector.load %arg11[%c28_363, %c2_364] : memref<39x13xf32, #tpu.memory_space<vmem>>, vector<9x9xf32>
    %520 = vector.shape_cast %519 : vector<9x9xf32> to vector<1x9x9xf32>
    %c62 = arith.constant 62 : index
    %c0_365 = arith.constant 0 : index
    %c0_366 = arith.constant 0 : index
    %c0_367 = arith.constant 0 : index
    %521 = vector.load %arg4[%c62, %c0_365, %c0_366, %c0_367] : memref<75x3x9x9xf32, #tpu.memory_space<vmem>>, vector<1x3x9x9xf32>
    %522 = vector.shape_cast %521 : vector<1x3x9x9xf32> to vector<3x9x9xf32>
    %523 = vector.broadcast %520 : vector<1x9x9xf32> to vector<3x9x9xf32>
    %524 = arith.mulf %523, %522 : vector<3x9x9xf32>
    %525 = arith.addf %518, %524 : vector<3x9x9xf32>
    %c28_368 = arith.constant 28 : index
    %c3_369 = arith.constant 3 : index
    %526 = vector.load %arg11[%c28_368, %c3_369] : memref<39x13xf32, #tpu.memory_space<vmem>>, vector<9x9xf32>
    %527 = vector.shape_cast %526 : vector<9x9xf32> to vector<1x9x9xf32>
    %c63 = arith.constant 63 : index
    %c0_370 = arith.constant 0 : index
    %c0_371 = arith.constant 0 : index
    %c0_372 = arith.constant 0 : index
    %528 = vector.load %arg4[%c63, %c0_370, %c0_371, %c0_372] : memref<75x3x9x9xf32, #tpu.memory_space<vmem>>, vector<1x3x9x9xf32>
    %529 = vector.shape_cast %528 : vector<1x3x9x9xf32> to vector<3x9x9xf32>
    %530 = vector.broadcast %527 : vector<1x9x9xf32> to vector<3x9x9xf32>
    %531 = arith.mulf %530, %529 : vector<3x9x9xf32>
    %532 = arith.addf %525, %531 : vector<3x9x9xf32>
    %c28_373 = arith.constant 28 : index
    %c4_374 = arith.constant 4 : index
    %533 = vector.load %arg11[%c28_373, %c4_374] : memref<39x13xf32, #tpu.memory_space<vmem>>, vector<9x9xf32>
    %534 = vector.shape_cast %533 : vector<9x9xf32> to vector<1x9x9xf32>
    %c64 = arith.constant 64 : index
    %c0_375 = arith.constant 0 : index
    %c0_376 = arith.constant 0 : index
    %c0_377 = arith.constant 0 : index
    %535 = vector.load %arg4[%c64, %c0_375, %c0_376, %c0_377] : memref<75x3x9x9xf32, #tpu.memory_space<vmem>>, vector<1x3x9x9xf32>
    %536 = vector.shape_cast %535 : vector<1x3x9x9xf32> to vector<3x9x9xf32>
    %537 = vector.broadcast %534 : vector<1x9x9xf32> to vector<3x9x9xf32>
    %538 = arith.mulf %537, %536 : vector<3x9x9xf32>
    %539 = arith.addf %532, %538 : vector<3x9x9xf32>
    %c29_378 = arith.constant 29 : index
    %c0_379 = arith.constant 0 : index
    %540 = vector.load %arg11[%c29_378, %c0_379] : memref<39x13xf32, #tpu.memory_space<vmem>>, vector<9x9xf32>
    %541 = vector.shape_cast %540 : vector<9x9xf32> to vector<1x9x9xf32>
    %c65 = arith.constant 65 : index
    %c0_380 = arith.constant 0 : index
    %c0_381 = arith.constant 0 : index
    %c0_382 = arith.constant 0 : index
    %542 = vector.load %arg4[%c65, %c0_380, %c0_381, %c0_382] : memref<75x3x9x9xf32, #tpu.memory_space<vmem>>, vector<1x3x9x9xf32>
    %543 = vector.shape_cast %542 : vector<1x3x9x9xf32> to vector<3x9x9xf32>
    %544 = vector.broadcast %541 : vector<1x9x9xf32> to vector<3x9x9xf32>
    %545 = arith.mulf %544, %543 : vector<3x9x9xf32>
    %546 = arith.addf %539, %545 : vector<3x9x9xf32>
    %c29_383 = arith.constant 29 : index
    %c1_384 = arith.constant 1 : index
    %547 = vector.load %arg11[%c29_383, %c1_384] : memref<39x13xf32, #tpu.memory_space<vmem>>, vector<9x9xf32>
    %548 = vector.shape_cast %547 : vector<9x9xf32> to vector<1x9x9xf32>
    %c66 = arith.constant 66 : index
    %c0_385 = arith.constant 0 : index
    %c0_386 = arith.constant 0 : index
    %c0_387 = arith.constant 0 : index
    %549 = vector.load %arg4[%c66, %c0_385, %c0_386, %c0_387] : memref<75x3x9x9xf32, #tpu.memory_space<vmem>>, vector<1x3x9x9xf32>
    %550 = vector.shape_cast %549 : vector<1x3x9x9xf32> to vector<3x9x9xf32>
    %551 = vector.broadcast %548 : vector<1x9x9xf32> to vector<3x9x9xf32>
    %552 = arith.mulf %551, %550 : vector<3x9x9xf32>
    %553 = arith.addf %546, %552 : vector<3x9x9xf32>
    %c29_388 = arith.constant 29 : index
    %c2_389 = arith.constant 2 : index
    %554 = vector.load %arg11[%c29_388, %c2_389] : memref<39x13xf32, #tpu.memory_space<vmem>>, vector<9x9xf32>
    %555 = vector.shape_cast %554 : vector<9x9xf32> to vector<1x9x9xf32>
    %c67 = arith.constant 67 : index
    %c0_390 = arith.constant 0 : index
    %c0_391 = arith.constant 0 : index
    %c0_392 = arith.constant 0 : index
    %556 = vector.load %arg4[%c67, %c0_390, %c0_391, %c0_392] : memref<75x3x9x9xf32, #tpu.memory_space<vmem>>, vector<1x3x9x9xf32>
    %557 = vector.shape_cast %556 : vector<1x3x9x9xf32> to vector<3x9x9xf32>
    %558 = vector.broadcast %555 : vector<1x9x9xf32> to vector<3x9x9xf32>
    %559 = arith.mulf %558, %557 : vector<3x9x9xf32>
    %560 = arith.addf %553, %559 : vector<3x9x9xf32>
    %c29_393 = arith.constant 29 : index
    %c3_394 = arith.constant 3 : index
    %561 = vector.load %arg11[%c29_393, %c3_394] : memref<39x13xf32, #tpu.memory_space<vmem>>, vector<9x9xf32>
    %562 = vector.shape_cast %561 : vector<9x9xf32> to vector<1x9x9xf32>
    %c68 = arith.constant 68 : index
    %c0_395 = arith.constant 0 : index
    %c0_396 = arith.constant 0 : index
    %c0_397 = arith.constant 0 : index
    %563 = vector.load %arg4[%c68, %c0_395, %c0_396, %c0_397] : memref<75x3x9x9xf32, #tpu.memory_space<vmem>>, vector<1x3x9x9xf32>
    %564 = vector.shape_cast %563 : vector<1x3x9x9xf32> to vector<3x9x9xf32>
    %565 = vector.broadcast %562 : vector<1x9x9xf32> to vector<3x9x9xf32>
    %566 = arith.mulf %565, %564 : vector<3x9x9xf32>
    %567 = arith.addf %560, %566 : vector<3x9x9xf32>
    %c29_398 = arith.constant 29 : index
    %c4_399 = arith.constant 4 : index
    %568 = vector.load %arg11[%c29_398, %c4_399] : memref<39x13xf32, #tpu.memory_space<vmem>>, vector<9x9xf32>
    %569 = vector.shape_cast %568 : vector<9x9xf32> to vector<1x9x9xf32>
    %c69 = arith.constant 69 : index
    %c0_400 = arith.constant 0 : index
    %c0_401 = arith.constant 0 : index
    %c0_402 = arith.constant 0 : index
    %570 = vector.load %arg4[%c69, %c0_400, %c0_401, %c0_402] : memref<75x3x9x9xf32, #tpu.memory_space<vmem>>, vector<1x3x9x9xf32>
    %571 = vector.shape_cast %570 : vector<1x3x9x9xf32> to vector<3x9x9xf32>
    %572 = vector.broadcast %569 : vector<1x9x9xf32> to vector<3x9x9xf32>
    %573 = arith.mulf %572, %571 : vector<3x9x9xf32>
    %574 = arith.addf %567, %573 : vector<3x9x9xf32>
    %c30_403 = arith.constant 30 : index
    %c0_404 = arith.constant 0 : index
    %575 = vector.load %arg11[%c30_403, %c0_404] : memref<39x13xf32, #tpu.memory_space<vmem>>, vector<9x9xf32>
    %576 = vector.shape_cast %575 : vector<9x9xf32> to vector<1x9x9xf32>
    %c70 = arith.constant 70 : index
    %c0_405 = arith.constant 0 : index
    %c0_406 = arith.constant 0 : index
    %c0_407 = arith.constant 0 : index
    %577 = vector.load %arg4[%c70, %c0_405, %c0_406, %c0_407] : memref<75x3x9x9xf32, #tpu.memory_space<vmem>>, vector<1x3x9x9xf32>
    %578 = vector.shape_cast %577 : vector<1x3x9x9xf32> to vector<3x9x9xf32>
    %579 = vector.broadcast %576 : vector<1x9x9xf32> to vector<3x9x9xf32>
    %580 = arith.mulf %579, %578 : vector<3x9x9xf32>
    %581 = arith.addf %574, %580 : vector<3x9x9xf32>
    %c30_408 = arith.constant 30 : index
    %c1_409 = arith.constant 1 : index
    %582 = vector.load %arg11[%c30_408, %c1_409] : memref<39x13xf32, #tpu.memory_space<vmem>>, vector<9x9xf32>
    %583 = vector.shape_cast %582 : vector<9x9xf32> to vector<1x9x9xf32>
    %c71 = arith.constant 71 : index
    %c0_410 = arith.constant 0 : index
    %c0_411 = arith.constant 0 : index
    %c0_412 = arith.constant 0 : index
    %584 = vector.load %arg4[%c71, %c0_410, %c0_411, %c0_412] : memref<75x3x9x9xf32, #tpu.memory_space<vmem>>, vector<1x3x9x9xf32>
    %585 = vector.shape_cast %584 : vector<1x3x9x9xf32> to vector<3x9x9xf32>
    %586 = vector.broadcast %583 : vector<1x9x9xf32> to vector<3x9x9xf32>
    %587 = arith.mulf %586, %585 : vector<3x9x9xf32>
    %588 = arith.addf %581, %587 : vector<3x9x9xf32>
    %c30_413 = arith.constant 30 : index
    %c2_414 = arith.constant 2 : index
    %589 = vector.load %arg11[%c30_413, %c2_414] : memref<39x13xf32, #tpu.memory_space<vmem>>, vector<9x9xf32>
    %590 = vector.shape_cast %589 : vector<9x9xf32> to vector<1x9x9xf32>
    %c72 = arith.constant 72 : index
    %c0_415 = arith.constant 0 : index
    %c0_416 = arith.constant 0 : index
    %c0_417 = arith.constant 0 : index
    %591 = vector.load %arg4[%c72, %c0_415, %c0_416, %c0_417] : memref<75x3x9x9xf32, #tpu.memory_space<vmem>>, vector<1x3x9x9xf32>
    %592 = vector.shape_cast %591 : vector<1x3x9x9xf32> to vector<3x9x9xf32>
    %593 = vector.broadcast %590 : vector<1x9x9xf32> to vector<3x9x9xf32>
    %594 = arith.mulf %593, %592 : vector<3x9x9xf32>
    %595 = arith.addf %588, %594 : vector<3x9x9xf32>
    %c30_418 = arith.constant 30 : index
    %c3_419 = arith.constant 3 : index
    %596 = vector.load %arg11[%c30_418, %c3_419] : memref<39x13xf32, #tpu.memory_space<vmem>>, vector<9x9xf32>
    %597 = vector.shape_cast %596 : vector<9x9xf32> to vector<1x9x9xf32>
    %c73 = arith.constant 73 : index
    %c0_420 = arith.constant 0 : index
    %c0_421 = arith.constant 0 : index
    %c0_422 = arith.constant 0 : index
    %598 = vector.load %arg4[%c73, %c0_420, %c0_421, %c0_422] : memref<75x3x9x9xf32, #tpu.memory_space<vmem>>, vector<1x3x9x9xf32>
    %599 = vector.shape_cast %598 : vector<1x3x9x9xf32> to vector<3x9x9xf32>
    %600 = vector.broadcast %597 : vector<1x9x9xf32> to vector<3x9x9xf32>
    %601 = arith.mulf %600, %599 : vector<3x9x9xf32>
    %602 = arith.addf %595, %601 : vector<3x9x9xf32>
    %c30_423 = arith.constant 30 : index
    %c4_424 = arith.constant 4 : index
    %603 = vector.load %arg11[%c30_423, %c4_424] : memref<39x13xf32, #tpu.memory_space<vmem>>, vector<9x9xf32>
    %604 = vector.shape_cast %603 : vector<9x9xf32> to vector<1x9x9xf32>
    %c74 = arith.constant 74 : index
    %c0_425 = arith.constant 0 : index
    %c0_426 = arith.constant 0 : index
    %c0_427 = arith.constant 0 : index
    %605 = vector.load %arg4[%c74, %c0_425, %c0_426, %c0_427] : memref<75x3x9x9xf32, #tpu.memory_space<vmem>>, vector<1x3x9x9xf32>
    %606 = vector.shape_cast %605 : vector<1x3x9x9xf32> to vector<3x9x9xf32>
    %607 = vector.broadcast %604 : vector<1x9x9xf32> to vector<3x9x9xf32>
    %608 = arith.mulf %607, %606 : vector<3x9x9xf32>
    %609 = arith.addf %602, %608 : vector<3x9x9xf32>
    %610 = arith.addf %261, %435 : vector<3x9x9xf32>
    %611 = arith.addf %610, %609 : vector<3x9x9xf32>
    %cst_428 = arith.constant 0.000000e+00 : f32
    %612 = vector.broadcast %cst_428 : f32 to vector<3x9x9xf32>
    %613 = arith.maximumf %611, %612 : vector<3x9x9xf32>
    %614 = vector.extract_strided_slice %613 {offsets = [0, 0, 0], sizes = [1, 9, 9], strides = [1, 1, 1]} : vector<3x9x9xf32> to vector<1x9x9xf32>
    %615 = vector.shape_cast %614 : vector<1x9x9xf32> to vector<9x9xf32>
    %616 = vector.extract_strided_slice %613 {offsets = [1, 0, 0], sizes = [1, 9, 9], strides = [1, 1, 1]} : vector<3x9x9xf32> to vector<1x9x9xf32>
    %617 = vector.shape_cast %616 : vector<1x9x9xf32> to vector<9x9xf32>
    %618 = vector.extract_strided_slice %613 {offsets = [2, 0, 0], sizes = [1, 9, 9], strides = [1, 1, 1]} : vector<3x9x9xf32> to vector<1x9x9xf32>
    %619 = vector.shape_cast %618 : vector<1x9x9xf32> to vector<9x9xf32>
    %620 = tpu.concatenate %615, %617, %619 in 0 : vector<9x9xf32>, vector<9x9xf32>, vector<9x9xf32> -> vector<27x9xf32>
    %621 = vector.extract_strided_slice %620 {offsets = [0, 0], sizes = [27, 8], strides = [1, 1]} : vector<27x9xf32> to vector<27x8xf32>
    %622 = vector.extract_strided_slice %620 {offsets = [0, 1], sizes = [27, 8], strides = [1, 1]} : vector<27x9xf32> to vector<27x8xf32>
    %623 = arith.maximumf %621, %622 : vector<27x8xf32>
    %c0_429 = arith.constant 0 : index
    %c0_430 = arith.constant 0 : index
    %624 = vector.load %arg8[%c0_429, %c0_430] : memref<8x4xf32, #tpu.memory_space<vmem>>, vector<8x4xf32>
    %cst_431 = arith.constant dense<0.000000e+00> : vector<27x4xf32>
    %625 = tpu.matmul %623, %624, %cst_431 {dimension_numbers = #tpu.dot_dimension_numbers<[1], [0], [0], [1], [0, 0, 1, 1], [], []>} : vector<27x8xf32>, vector<8x4xf32>, vector<27x4xf32> -> vector<27x4xf32>
    %626 = vector.extract_strided_slice %625 {offsets = [0, 0], sizes = [26, 4], strides = [1, 1]} : vector<27x4xf32> to vector<26x4xf32>
    %627 = vector.extract_strided_slice %625 {offsets = [1, 0], sizes = [26, 4], strides = [1, 1]} : vector<27x4xf32> to vector<26x4xf32>
    %628 = arith.maximumf %626, %627 : vector<26x4xf32>
    %c0_432 = arith.constant 0 : index
    %c0_433 = arith.constant 0 : index
    %629 = vector.load %arg9[%c0_432, %c0_433] : memref<12x26xf32, #tpu.memory_space<vmem>>, vector<12x26xf32>
    %cst_434 = arith.constant dense<0.000000e+00> : vector<12x4xf32>
    %630 = tpu.matmul %629, %628, %cst_434 {dimension_numbers = #tpu.dot_dimension_numbers<[1], [0], [0], [1], [0, 0, 1, 1], [], []>} : vector<12x26xf32>, vector<26x4xf32>, vector<12x4xf32> -> vector<12x4xf32>
    %c0_435 = arith.constant 0 : index
    %c0_436 = arith.constant 0 : index
    %c0_437 = arith.constant 0 : index
    %631 = vector.load %arg10[%c0_435, %c0_436, %c0_437] : memref<1x12x4xf32, #tpu.memory_space<vmem>>, vector<1x12x4xf32>
    %632 = vector.shape_cast %631 : vector<1x12x4xf32> to vector<12x4xf32>
    %633 = vector.shape_cast %630 : vector<12x4xf32> to vector<1x12x4xf32>
    tpu.vector_store %arg10[%c0_435, %c0_436, %c0_437], %633 {strides = array<i32>} : memref<1x12x4xf32, #tpu.memory_space<vmem>>, vector<1x12x4xf32>,
    return
  }
  func.func @transform_0(%arg0: i32) -> (i32, i32, i32) {
    %c0_i32 = arith.constant 0 : i32
    %c0_i32_0 = arith.constant 0 : i32
    %c0_i32_1 = arith.constant 0 : i32
    return %arg0, %c0_i32, %c0_i32_0 : i32, i32, i32
  }
  func.func @transform_1(%arg0: i32) -> (i32, i32, i32, i32) {
    %c0_i32 = arith.constant 0 : i32
    %c0_i32_0 = arith.constant 0 : i32
    %c0_i32_1 = arith.constant 0 : i32
    %c0_i32_2 = arith.constant 0 : i32
    %c0_i32_3 = arith.constant 0 : i32
    return %c0_i32, %c0_i32_0, %c0_i32_1, %c0_i32_2 : i32, i32, i32, i32
  }
  func.func @transform_2(%arg0: i32) -> (i32, i32, i32) {
    %c0_i32 = arith.constant 0 : i32
    %c0_i32_0 = arith.constant 0 : i32
    %c0_i32_1 = arith.constant 0 : i32
    %c0_i32_2 = arith.constant 0 : i32
    return %c0_i32, %c0_i32_0, %c0_i32_1 : i32, i32, i32
  }
  func.func @transform_3(%arg0: i32) -> (i32, i32, i32, i32) {
    %c0_i32 = arith.constant 0 : i32
    %c0_i32_0 = arith.constant 0 : i32
    %c0_i32_1 = arith.constant 0 : i32
    %c0_i32_2 = arith.constant 0 : i32
    %c0_i32_3 = arith.constant 0 : i32
    return %c0_i32, %c0_i32_0, %c0_i32_1, %c0_i32_2 : i32, i32, i32, i32
  }
  func.func @transform_4(%arg0: i32) -> (i32, i32, i32) {
    %c0_i32 = arith.constant 0 : i32
    %c0_i32_0 = arith.constant 0 : i32
    %c0_i32_1 = arith.constant 0 : i32
    %c0_i32_2 = arith.constant 0 : i32
    return %c0_i32, %c0_i32_0, %c0_i32_1 : i32, i32, i32
  }
  func.func @transform_5(%arg0: i32) -> (i32, i32) {
    %c0_i32 = arith.constant 0 : i32
    %c0_i32_0 = arith.constant 0 : i32
    %c0_i32_1 = arith.constant 0 : i32
    return %c0_i32, %c0_i32_0 : i32, i32
  }
  func.func @transform_6(%arg0: i32) -> (i32, i32) {
    %c0_i32 = arith.constant 0 : i32
    %c0_i32_0 = arith.constant 0 : i32
    %c0_i32_1 = arith.constant 0 : i32
    return %c0_i32, %c0_i32_0 : i32, i32
  }
  func.func @transform_7(%arg0: i32) -> (i32, i32) {
    %c0_i32 = arith.constant 0 : i32
    %c0_i32_0 = arith.constant 0 : i32
    %c0_i32_1 = arith.constant 0 : i32
    return %c0_i32, %c0_i32_0 : i32, i32
  }
  func.func @transform_8(%arg0: i32) -> (i32, i32) {
    %c0_i32 = arith.constant 0 : i32
    %c0_i32_0 = arith.constant 0 : i32
    %c0_i32_1 = arith.constant 0 : i32
    return %c0_i32, %c0_i32_0 : i32, i32
  }
  func.func @transform_9(%arg0: i32) -> (i32, i32, i32) {
    %c0_i32 = arith.constant 0 : i32
    %c0_i32_0 = arith.constant 0 : i32
    %c0_i32_1 = arith.constant 0 : i32
    return %arg0, %c0_i32, %c0_i32_0 : i32, i32, i32
  }
}

</mosaic_0001>

<llo_original>
// kernel: forward.3
$region0: #{forward.3}
  #allocation0 [shape = 'u32[]', space=smem, size = 0x4, offset = 0x4, fixed_abs, tag = 'smem constant byte address 0x4 - core index']
  #allocation1 [shape = 'u32[144,128]{1,0:T(1,128)}', space=vmem, size = 0x12000, scoped, tag = 'internal scratch']
  %s0 = inlined_call_operand.vmem [shape: f32[2,48], index: 0, kind: input, shape index: {}]
  %s1 = inlined_call_operand.vmem [shape: f32[48,164], index: 1, kind: input, shape index: {}]
  %s2 = inlined_call_operand.vmem [shape: f32[1,164], index: 2, kind: input, shape index: {}]
  %s3 = inlined_call_operand.vmem [shape: f32[164,10], index: 3, kind: input, shape index: {}]
  %s4 = inlined_call_operand.vmem [shape: f32[1,10], index: 4, kind: input, shape index: {}]
  %s5 = inlined_call_operand.hbm [shape: f32[2,10], index: 5, kind: output, shape index: {}]
  %s6 = sld [smem:[#allocation0]]
  $region30: #{forward.3} parent=0
    _
  %s8 = ssub.s32 1, %s6
  %s9 = scalar_select 0, %s8, %s6
  $region1: #{forward.3} parent=0
    #allocation2 [shape = 'u8[1024]{0}', space=vmem, size = 0x400, scoped, tag = 'output window, operand 0, single buffered']
    #allocation3 [shape = 's32[1]{0}', space=sflag, size = 0x4, scoped, tag = 'scoped memory for forward.3']
    %10 = vsyncpa [#allocation3], 0
    // Predicated region
    $region2: #{forward.3} parent=1 // pred_check
      _
    $region3: #{forward.3} parent=1 // pred_check_branch
      %12 = sbr.rel (0) target = $region5
    $region4: #{forward.3} parent=1 // pred_region
      _
    $region5: #{forward.3} parent=1 // pred_fallthru
      _
    // Predicated region
    $region6: #{forward.3} parent=1 // pred_check
      _
    $region7: #{forward.3} parent=1 // pred_check_branch
      %14 = sbr.rel (0) target = $region9
    $region8: #{forward.3} parent=1 // pred_region
      _
    $region9: #{forward.3} parent=1 // pred_fallthru
      _
    // Predicated region
    $region10: #{forward.3} parent=1 // pred_check
      _
    $region11: #{forward.3} parent=1 // pred_check_branch
      %16 = sbr.rel (0) target = $region13
    $region12: #{forward.3} parent=1 // pred_region
      _
    $region13: #{forward.3} parent=1 // pred_fallthru
      _
    // Predicated region
    $region14: #{forward.3} parent=1 // pred_check
      _
    $region15: #{forward.3} parent=1 // pred_check_branch
      %18 = sbr.rel (0) target = $region17
    $region16: #{forward.3} parent=1 // pred_region
      _
    $region17: #{forward.3} parent=1 // pred_fallthru
      _
    // Predicated region
    $region18: #{forward.3} parent=1 // pred_check
      _
    $region19: #{forward.3} parent=1 // pred_check_branch
      %20 = sbr.rel (0) target = $region21
    $region20: #{forward.3} parent=1 // pred_region
      _
    $region21: #{forward.3} parent=1 // pred_fallthru
      _
    %v21 = vld [vmem:[%s0] sm:$0x3]
    %v22 = vld [vmem:[%s1] sm:$0xff]
    %v23 = vld [vmem:[%s1 + $0x8] sm:$0xff]
    %v24 = vld [vmem:[%s1 + $0x10] sm:$0xff]
    %v25 = vld [vmem:[%s1 + $0x18] sm:$0xff]
    %v26 = vld [vmem:[%s1 + $0x20] sm:$0xff]
    %v27 = vld [vmem:[%s1 + $0x28] sm:$0xff]
    %v28 = vld [vmem:[%s1 + $0x30] sm:$0xff]
    %v29 = vld [vmem:[%s1 + $0x38] sm:$0xff]
    %v30 = vld [vmem:[%s1 + $0x40] sm:$0xff]
    %v31 = vld [vmem:[%s1 + $0x48] sm:$0xff]
    %v32 = vld [vmem:[%s1 + $0x50] sm:$0xff]
    %v33 = vld [vmem:[%s1 + $0x58] sm:$0xff]
    %v34 = vld [vmem:[%s2] sm:$0x3]
    %v36 = vlaneseq
    %v37 = vshrl.u32 %v36, 7
    %v38 = vsub.s32 0, %v37
    %v39 = vrot.slane %v34, %v38
    %v40 = vlaneseq
    %v41 = vshrl.u32 %v40, 7
    %v42 = vsub.s32 1, %v41
    %v43 = vrot.slane %v34, %v42
    %vm46 = vcmask 392192
    %v48 = vsel %vm46, %v21, 0
    %50 = vmatprep.subr.mxu0 0.0
    %51 = vmatpush1.msra.mxu0 0.0
    %52 = vmatprep.subr.mxu0 0.0
    %53 = vmatpush1.msra.mxu0 0.0
    %54 = vmatprep.subr.mxu0 0.0
    %55 = vmatpush1.msra.mxu0 0.0
    %56 = vmatprep.subr.mxu0 0.0
    %57 = vmatpush1.msra.mxu0 0.0
    %58 = vmatprep.subr.mxu0 0.0
    %59 = vmatpush1.msra.mxu0 0.0
    %60 = vmatprep.subr.mxu0 0.0
    %61 = vmatpush1.msra.mxu0 0.0
    %62 = vmatprep.subr.mxu0 0.0
    %63 = vmatpush1.msra.mxu0 0.0
    %64 = vmatprep.subr.mxu0 0.0
    %65 = vmatpush1.msra.mxu0 0.0
    %66 = vmatprep.subr.mxu0 0.0
    %67 = vmatpush1.msra.mxu0 0.0
    %68 = vmatprep.subr.mxu0 0.0
    %69 = vmatpush1.msra.mxu0 0.0
    %70 = vmatprep.subr.mxu0 %v33
    %71 = vmatpush1.msra.mxu0 %v32
    %72 = vmatprep.subr.mxu0 %v31
    %73 = vmatpush1.msra.mxu0 %v30
    %74 = vmatprep.subr.mxu0 %v29
    %75 = vmatpush1.msra.mxu0 %v28
    %76 = vmatprep.subr.mxu0 %v27
    %77 = vmatpush1.msra.mxu0 %v26
    %78 = vmatprep.subr.mxu0 %v25
    %79 = vmatpush1.msra.mxu0 %v24
    %80 = vmatprep.subr.mxu0 %v23
    %81 = vmatpush1.msra.mxu0 %v22
    %82 = vmatprep.subr.mxu0 0.0
    %83 = vmatpush2.msra.mxu0 0.0
    %84 = vmatprep.subr.mxu0 0.0
    %85 = vmatpush2.msra.mxu0 0.0
    %86 = vmatprep.subr.mxu0 0.0
    %87 = vmatpush2.msra.mxu0 0.0
    %88 = vmatprep.subr.mxu0 0.0
    %89 = vmatpush2.msra.mxu0 0.0
    %90 = vmatprep.subr.mxu0 0.0
    %91 = vmatpush2.msra.mxu0 0.0
    %92 = vmatprep.subr.mxu0 0.0
    %93 = vmatpush2.msra.mxu0 0.0
    %94 = vmatprep.subr.mxu0 0.0
    %95 = vmatpush2.msra.mxu0 0.0
    %96 = vmatprep.subr.mxu0 0.0
    %97 = vmatpush2.msra.mxu0 0.0
    %98 = vmatprep.subr.mxu0 0.0
    %99 = vmatpush2.msra.mxu0 0.0
    %100 = vmatprep.subr.mxu0 0.0
    %101 = vmatpush2.msra.mxu0 0.0
    %102 = vmatprep.subr.mxu0 0.0
    %103 = vmatpush2.msra.mxu0 0.0
    %104 = vmatprep.subr.mxu0 0.0
    %105 = vmatpush2.msra.mxu0 0.0
    %106 = vmatprep.subr.mxu0 0.0
    %107 = vmatpush2.msra.mxu0 0.0
    %108 = vmatprep.subr.mxu0 0.0
    %109 = vmatpush2.msra.mxu0 0.0
    %110 = vmatprep.subr.mxu0 0.0
    %111 = vmatpush2.msra.mxu0 0.0
    %112 = vmatprep.subr.mxu0 0.0
    %113 = vmatpush2.msra.mxu0 0.0
    %114 = vmatprep.mubr.f32.mxu0 0.0
    %115 = vmatmul.mubr.f32.gmra.mxu0 %v48
    %v116 = vpop.f32.mrf.mxu0
    %v117 = vadd.f32 %v39, %v116
    %v118 = vpop.f32.mrf.mxu0
    %v119 = vadd.f32 %v43, %v118
    %120 = vdwg.mxu0
    %v121 = vmax.f32 %v117, 0.0
    %v122 = vmax.f32 %v119, 0.0
    %v123 = vld [vmem:[%s3] sm:$0xff]
    %v124 = vld [vmem:[%s3 + $0x8] sm:$0xff]
    %v125 = vld [vmem:[%s3 + $0x10] sm:$0xff]
    %v126 = vld [vmem:[%s3 + $0x18] sm:$0xff]
    %v127 = vld [vmem:[%s3 + $0x20] sm:$0xff]
    %v128 = vld [vmem:[%s3 + $0x28] sm:$0xff]
    %v129 = vld [vmem:[%s3 + $0x30] sm:$0xff]
    %v130 = vld [vmem:[%s3 + $0x38] sm:$0xff]
    %v131 = vld [vmem:[%s3 + $0x40] sm:$0xff]
    %v132 = vld [vmem:[%s3 + $0x48] sm:$0xff]
    %v133 = vld [vmem:[%s3 + $0x50] sm:$0xff]
    %v134 = vld [vmem:[%s3 + $0x58] sm:$0xff]
    %v135 = vld [vmem:[%s3 + $0x60] sm:$0xff]
    %v136 = vld [vmem:[%s3 + $0x68] sm:$0xff]
    %v137 = vld [vmem:[%s3 + $0x70] sm:$0xff]
    %v138 = vld [vmem:[%s3 + $0x78] sm:$0xff]
    %v139 = vld [vmem:[%s3 + $0x80] sm:$0xff]
    %v140 = vld [vmem:[%s3 + $0x88] sm:$0xff]
    %v141 = vld [vmem:[%s3 + $0x90] sm:$0xff]
    %v142 = vld [vmem:[%s3 + $0x98] sm:$0xff]
    %v143 = vld [vmem:[%s3 + $0xa0] sm:$0xf]
    %v144 = vld [vmem:[%s4] sm:$0x1]
    %v146 = vlaneseq
    %v147 = vshrl.u32 %v146, 7
    %v148 = vsub.s32 0, %v147
    %v149 = vrot.slane %v144, %v148
    %vm151 = vcmask 293888
    %v153 = vsel %vm151, %v122, 0
    %vm155 = vcmask 1043456
    %v157 = vsel %vm155, %v143, 0
    %159 = vmatprep.subr.mxu0 0.0
    %160 = vmatpush1.msra.mxu0 %v138
    %161 = vmatprep.subr.mxu0 0.0
    %162 = vmatpush1.msra.mxu0 %v137
    %163 = vmatprep.subr.mxu0 0.0
    %164 = vmatpush1.msra.mxu0 %v136
    %165 = vmatprep.subr.mxu0 0.0
    %166 = vmatpush1.msra.mxu0 %v135
    %167 = vmatprep.subr.mxu0 0.0
    %168 = vmatpush1.msra.mxu0 %v134
    %169 = vmatprep.subr.mxu0 0.0
    %170 = vmatpush1.msra.mxu0 %v133
    %171 = vmatprep.subr.mxu0 0.0
    %172 = vmatpush1.msra.mxu0 %v132
    %173 = vmatprep.subr.mxu0 0.0
    %174 = vmatpush1.msra.mxu0 %v131
    %175 = vmatprep.subr.mxu0 0.0
    %176 = vmatpush1.msra.mxu0 %v130
    %177 = vmatprep.subr.mxu0 0.0
    %178 = vmatpush1.msra.mxu0 %v129
    %179 = vmatprep.subr.mxu0 0.0
    %180 = vmatpush1.msra.mxu0 %v128
    %181 = vmatprep.subr.mxu0 0.0
    %182 = vmatpush1.msra.mxu0 %v127
    %183 = vmatprep.subr.mxu0 0.0
    %184 = vmatpush1.msra.mxu0 %v126
    %185 = vmatprep.subr.mxu0 0.0
    %186 = vmatpush1.msra.mxu0 %v125
    %187 = vmatprep.subr.mxu0 0.0
    %188 = vmatpush1.msra.mxu0 %v124
    %189 = vmatprep.subr.mxu0 0.0
    %190 = vmatpush1.msra.mxu0 %v123
    %191 = vmatprep.subr.mxu0 0.0
    %192 = vmatpush2.msra.mxu0 0.0
    %193 = vmatprep.subr.mxu0 0.0
    %194 = vmatpush2.msra.mxu0 0.0
    %195 = vmatprep.subr.mxu0 0.0
    %196 = vmatpush2.msra.mxu0 0.0
    %197 = vmatprep.subr.mxu0 0.0
    %198 = vmatpush2.msra.mxu0 0.0
    %199 = vmatprep.subr.mxu0 0.0
    %200 = vmatpush2.msra.mxu0 0.0
    %201 = vmatprep.subr.mxu0 0.0
    %202 = vmatpush2.msra.mxu0 0.0
    %203 = vmatprep.subr.mxu0 0.0
    %204 = vmatpush2.msra.mxu0 0.0
    %205 = vmatprep.subr.mxu0 0.0
    %206 = vmatpush2.msra.mxu0 0.0
    %207 = vmatprep.subr.mxu0 0.0
    %208 = vmatpush2.msra.mxu0 0.0
    %209 = vmatprep.subr.mxu0 0.0
    %210 = vmatpush2.msra.mxu0 0.0
    %211 = vmatprep.subr.mxu0 0.0
    %212 = vmatpush2.msra.mxu0 0.0
    %213 = vmatprep.subr.mxu0 0.0
    %214 = vmatpush2.msra.mxu0 %v157
    %215 = vmatprep.subr.mxu0 0.0
    %216 = vmatpush2.msra.mxu0 %v142
    %217 = vmatprep.subr.mxu0 0.0
    %218 = vmatpush2.msra.mxu0 %v141
    %219 = vmatprep.subr.mxu0 0.0
    %220 = vmatpush2.msra.mxu0 %v140
    %221 = vmatprep.subr.mxu0 0.0
    %222 = vmatpush2.msra.mxu0 %v139
    %223 = vmatprep.mubr.f32.mxu0 %v153
    %224 = vmatmul.mubr.f32.gmra.mxu0 %v121
    %v225 = vpop.f32.mrf.mxu0
    %v226 = vadd.f32 %v149, %v225
    %v227 = vpop.f32.mrf.mxu0
    %228 = vdwg.mxu0
    %vm229 = vcmask 74752
    %v230 = vsel %vm229, %v226, -inf
    %231 = vmax.xlane.f32.xlu0 %v230
    %v232 = vpop.xlane.xlu0 %231
    %v233 = vsub.f32 %v226, %v232
    %v234 = vmul.f32 %v233, 1.442695
    %v235 = vpow.pop %v234
    %v236 = vsel %vm229, %v235, 0.0
    %237 = vadd.xlane.f32.xlu0 %v236
    %v238 = vpop.xlane.xlu0 %237
    %v239 = vrcp.pop %v238
    %v240 = vmul.f32 %v235, %v239
    %241 = vst.msk [vmem:[#allocation2] sm:$0x3] %vm229, %v240
    // Predicated region
    $region22: #{forward.3} parent=1 // pred_check
      _
    $region23: #{forward.3} parent=1 // pred_check_branch
      %243 = sbr.rel (0) target = $region25
    $region24: #{forward.3} parent=1 // pred_region
      %s245 = ssub.s32 32, 32
      %246 = vsyncadd [#allocation3], %s245
      %s248 = sshll.u32 [#allocation2], 4
      %s249 = int_to_ptr.vmem [resolvable:$true] %s248
      %251 = dma.vmem_to_hbm [thread:$0]  %s249, 32, %s5, [#allocation3]
    $region25: #{forward.3} parent=1 // pred_fallthru
      _
    // Predicated region
    $region26: #{forward.3} parent=1 // pred_check
      _
    $region27: #{forward.3} parent=1 // pred_check_branch
      %253 = sbr.rel (0) target = $region29
    $region28: #{forward.3} parent=1 // pred_region
      %254 = dma.done [#allocation3], 32
    $region29: #{forward.3} parent=1 // pred_fallthru
      _
    %255 = vsyncpa [#allocation3], 1

// kernel: forward.2
$region0: #{forward.2}
  #allocation0 [shape = 'u32[]', space=smem, size = 0x4, offset = 0x4, fixed_abs, tag = 'smem constant byte address 0x4 - core index']
  #allocation1 [shape = 'u32[144,128]{1,0:T(1,128)}', space=vmem, size = 0x12000, scoped, tag = 'internal scratch']
  #allocation2 [shape = 'f32[39,13]{1,0:T(8,128)}', space=vmem, size = 0x5000, scoped, tag = 'scratch operand']
  %s0 = inlined_call_operand.vmem [shape: f32[2,28,28], index: 0, kind: input, shape index: {}]
  %s1 = inlined_call_operand.vmem [shape: f32[9,3,26,26], index: 1, kind: input, shape index: {}]
  %s2 = inlined_call_operand.vmem [shape: f32[3,26,26], index: 2, kind: input, shape index: {}]
  %s3 = inlined_call_operand.vmem [shape: f32[75,3,9,9], index: 3, kind: input, shape index: {}]
  %s4 = inlined_call_operand.vmem [shape: f32[3,9,9], index: 4, kind: input, shape index: {}]
  %s5 = inlined_call_operand.vmem [shape: f32[25,13], index: 5, kind: input, shape index: {}]
  %s6 = inlined_call_operand.vmem [shape: f32[39,77], index: 6, kind: input, shape index: {}]
  %s7 = inlined_call_operand.vmem [shape: f32[8,4], index: 7, kind: input, shape index: {}]
  %s8 = inlined_call_operand.vmem [shape: f32[12,26], index: 8, kind: input, shape index: {}]
  %s9 = inlined_call_operand.vmem [shape: f32[2,12,4], index: 9, kind: output, shape index: {}]
  %s10 = sld [smem:[#allocation0]]
  $region69: #{forward.2} parent=0
    _
  %s12 = ssub.s32 1, %s10
  %s13 = scalar_select 0, %s12, %s10
  loop: start=0, step=1, limit=4
  $region2: #{forward.2} parent=0 // loop_pre_header
    _
  $region3: #{forward.2} parent=0 // loop_header
    %s15 = sphi 0, %s19
    %p16 = scmp.ge.s32.totalorder %s15, 4
    %s25 = sphi 0, %s27
    %s28 = sphi 0, %s25
    %s29 = sphi 0, %s28
    %s45 = sphi 0, %s29
    %s49 = sphi 0, %s49
    %s51 = sphi 0, %s49
    %s52 = sphi 0, %s51
    %s66 = sphi 0, %s52
    %s70 = sphi 0, %s70
    %s72 = sphi 0, %s70
    %s73 = sphi 0, %s72
    %s87 = sphi 0, %s73
    %s91 = sphi 0, %s91
    %s93 = sphi 0, %s91
    %s94 = sphi 0, %s93
    %s108 = sphi 0, %s94
    %s112 = sphi 0, %s112
    %s114 = sphi 0, %s112
    %s115 = sphi 0, %s114
    %s129 = sphi 0, %s115
    %s133 = sphi 0, %s133
    %s135 = sphi 0, %s133
    %s136 = sphi 0, %s135
    %s150 = sphi 0, %s136
    %s154 = sphi 0, %s154
    %s156 = sphi 0, %s154
    %s157 = sphi 0, %s156
    %s171 = sphi 0, %s157
    %s175 = sphi 0, %s175
    %s177 = sphi 0, %s175
    %s178 = sphi 0, %s177
    %s192 = sphi 0, %s178
    %s196 = sphi 0, %s196
    %s198 = sphi 0, %s196
    %s199 = sphi 0, %s198
    %s213 = sphi 0, %s199
    %s219 = sphi 0, %s221
    %s222 = sphi 0, %s219
    %s223 = sphi 0, %s222
    %s239 = sphi 0, %s223
  $region4: #{forward.2} parent=0 // loop_header_branch
    %18 = sbr.rel (%p16) target = $region8
  $region5: #{forward.2} parent=0 // loop_body
    %s20 = ssub.s32 %s15, 1
    %s21 = ssub.s32 %s15, 2
    %s22 = sadd.s32 %s15, 1
    %s23 = ssub.s32 %s15, %s22
    %p24 = scmp.eq.s32.totalorder %s23, 0
    %s26 = sadd.s32 %s25, 1
    %s27 = scalar_select %p24, %s25, %s26
    %p30 = pneg %p24
    %p31 = scmp.eq.s32.totalorder %s15, 1
    %p32 = por %p30, %p31
    %p33 = scmp.ne.s32.totalorder %s25, %s28
    %p34 = scmp.eq.s32.totalorder %s15, 0
    %p35 = por %p33, %p34
    %p36 = scmp.ne.s32.totalorder %s25, %s28
    %p37 = scmp.eq.s32.totalorder %s20, 1
    %p38 = por %p36, %p37
    %p39 = scmp.ne.s32.totalorder %s28, %s29
    %p40 = scmp.eq.s32.totalorder %s20, 0
    %p41 = por %p39, %p40
    %p42 = scmp.ne.s32.totalorder %s28, %s29
    %p43 = scmp.eq.s32.totalorder %s21, 1
    %p44 = por %p42, %p43
    %p46 = scmp.ne.s32.totalorder %s29, %s45
    %p47 = scmp.eq.s32.totalorder %s21, 0
    %p48 = por %p46, %p47
    %s50 = sadd.s32 %s49, 1
    %p53 = scmp.eq.s32.totalorder %s15, 1
    %p54 = scmp.ne.s32.totalorder %s49, %s51
    %p55 = scmp.eq.s32.totalorder %s15, 0
    %p56 = por %p54, %p55
    %p57 = scmp.ne.s32.totalorder %s49, %s51
    %p58 = scmp.eq.s32.totalorder %s20, 1
    %p59 = por %p57, %p58
    %p60 = scmp.ne.s32.totalorder %s51, %s52
    %p61 = scmp.eq.s32.totalorder %s20, 0
    %p62 = por %p60, %p61
    %p63 = scmp.ne.s32.totalorder %s51, %s52
    %p64 = scmp.eq.s32.totalorder %s21, 1
    %p65 = por %p63, %p64
    %p67 = scmp.ne.s32.totalorder %s52, %s66
    %p68 = scmp.eq.s32.totalorder %s21, 0
    %p69 = por %p67, %p68
    %s71 = sadd.s32 %s70, 1
    %p74 = scmp.eq.s32.totalorder %s15, 1
    %p75 = scmp.ne.s32.totalorder %s70, %s72
    %p76 = scmp.eq.s32.totalorder %s15, 0
    %p77 = por %p75, %p76
    %p78 = scmp.ne.s32.totalorder %s70, %s72
    %p79 = scmp.eq.s32.totalorder %s20, 1
    %p80 = por %p78, %p79
    %p81 = scmp.ne.s32.totalorder %s72, %s73
    %p82 = scmp.eq.s32.totalorder %s20, 0
    %p83 = por %p81, %p82
    %p84 = scmp.ne.s32.totalorder %s72, %s73
    %p85 = scmp.eq.s32.totalorder %s21, 1
    %p86 = por %p84, %p85
    %p88 = scmp.ne.s32.totalorder %s73, %s87
    %p89 = scmp.eq.s32.totalorder %s21, 0
    %p90 = por %p88, %p89
    %s92 = sadd.s32 %s91, 1
    %p95 = scmp.eq.s32.totalorder %s15, 1
    %p96 = scmp.ne.s32.totalorder %s91, %s93
    %p97 = scmp.eq.s32.totalorder %s15, 0
    %p98 = por %p96, %p97
    %p99 = scmp.ne.s32.totalorder %s91, %s93
    %p100 = scmp.eq.s32.totalorder %s20, 1
    %p101 = por %p99, %p100
    %p102 = scmp.ne.s32.totalorder %s93, %s94
    %p103 = scmp.eq.s32.totalorder %s20, 0
    %p104 = por %p102, %p103
    %p105 = scmp.ne.s32.totalorder %s93, %s94
    %p106 = scmp.eq.s32.totalorder %s21, 1
    %p107 = por %p105, %p106
    %p109 = scmp.ne.s32.totalorder %s94, %s108
    %p110 = scmp.eq.s32.totalorder %s21, 0
    %p111 = por %p109, %p110
    %s113 = sadd.s32 %s112, 1
    %p116 = scmp.eq.s32.totalorder %s15, 1
    %p117 = scmp.ne.s32.totalorder %s112, %s114
    %p118 = scmp.eq.s32.totalorder %s15, 0
    %p119 = por %p117, %p118
    %p120 = scmp.ne.s32.totalorder %s112, %s114
    %p121 = scmp.eq.s32.totalorder %s20, 1
    %p122 = por %p120, %p121
    %p123 = scmp.ne.s32.totalorder %s114, %s115
    %p124 = scmp.eq.s32.totalorder %s20, 0
    %p125 = por %p123, %p124
    %p126 = scmp.ne.s32.totalorder %s114, %s115
    %p127 = scmp.eq.s32.totalorder %s21, 1
    %p128 = por %p126, %p127
    %p130 = scmp.ne.s32.totalorder %s115, %s129
    %p131 = scmp.eq.s32.totalorder %s21, 0
    %p132 = por %p130, %p131
    %s134 = sadd.s32 %s133, 1
    %p137 = scmp.eq.s32.totalorder %s15, 1
    %p138 = scmp.ne.s32.totalorder %s133, %s135
    %p139 = scmp.eq.s32.totalorder %s15, 0
    %p140 = por %p138, %p139
    %p141 = scmp.ne.s32.totalorder %s133, %s135
    %p142 = scmp.eq.s32.totalorder %s20, 1
    %p143 = por %p141, %p142
    %p144 = scmp.ne.s32.totalorder %s135, %s136
    %p145 = scmp.eq.s32.totalorder %s20, 0
    %p146 = por %p144, %p145
    %p147 = scmp.ne.s32.totalorder %s135, %s136
    %p148 = scmp.eq.s32.totalorder %s21, 1
    %p149 = por %p147, %p148
    %p151 = scmp.ne.s32.totalorder %s136, %s150
    %p152 = scmp.eq.s32.totalorder %s21, 0
    %p153 = por %p151, %p152
    %s155 = sadd.s32 %s154, 1
    %p158 = scmp.eq.s32.totalorder %s15, 1
    %p159 = scmp.ne.s32.totalorder %s154, %s156
    %p160 = scmp.eq.s32.totalorder %s15, 0
    %p161 = por %p159, %p160
    %p162 = scmp.ne.s32.totalorder %s154, %s156
    %p163 = scmp.eq.s32.totalorder %s20, 1
    %p164 = por %p162, %p163
    %p165 = scmp.ne.s32.totalorder %s156, %s157
    %p166 = scmp.eq.s32.totalorder %s20, 0
    %p167 = por %p165, %p166
    %p168 = scmp.ne.s32.totalorder %s156, %s157
    %p169 = scmp.eq.s32.totalorder %s21, 1
    %p170 = por %p168, %p169
    %p172 = scmp.ne.s32.totalorder %s157, %s171
    %p173 = scmp.eq.s32.totalorder %s21, 0
    %p174 = por %p172, %p173
    %s176 = sadd.s32 %s175, 1
    %p179 = scmp.eq.s32.totalorder %s15, 1
    %p180 = scmp.ne.s32.totalorder %s175, %s177
    %p181 = scmp.eq.s32.totalorder %s15, 0
    %p182 = por %p180, %p181
    %p183 = scmp.ne.s32.totalorder %s175, %s177
    %p184 = scmp.eq.s32.totalorder %s20, 1
    %p185 = por %p183, %p184
    %p186 = scmp.ne.s32.totalorder %s177, %s178
    %p187 = scmp.eq.s32.totalorder %s20, 0
    %p188 = por %p186, %p187
    %p189 = scmp.ne.s32.totalorder %s177, %s178
    %p190 = scmp.eq.s32.totalorder %s21, 1
    %p191 = por %p189, %p190
    %p193 = scmp.ne.s32.totalorder %s178, %s192
    %p194 = scmp.eq.s32.totalorder %s21, 0
    %p195 = por %p193, %p194
    %s197 = sadd.s32 %s196, 1
    %p200 = scmp.eq.s32.totalorder %s15, 1
    %p201 = scmp.ne.s32.totalorder %s196, %s198
    %p202 = scmp.eq.s32.totalorder %s15, 0
    %p203 = por %p201, %p202
    %p204 = scmp.ne.s32.totalorder %s196, %s198
    %p205 = scmp.eq.s32.totalorder %s20, 1
    %p206 = por %p204, %p205
    %p207 = scmp.ne.s32.totalorder %s198, %s199
    %p208 = scmp.eq.s32.totalorder %s20, 0
    %p209 = por %p207, %p208
    %p210 = scmp.ne.s32.totalorder %s198, %s199
    %p211 = scmp.eq.s32.totalorder %s21, 1
    %p212 = por %p210, %p211
    %p214 = scmp.ne.s32.totalorder %s199, %s213
    %p215 = scmp.eq.s32.totalorder %s21, 0
    %p216 = por %p214, %p215
    %s217 = ssub.s32 %s15, %s22
    %p218 = scmp.eq.s32.totalorder %s217, 0
    %s220 = sadd.s32 %s219, 1
    %s221 = scalar_select %p218, %s219, %s220
    %p224 = pneg %p218
    %p225 = scmp.eq.s32.totalorder %s15, 1
    %p226 = por %p224, %p225
    %p227 = scmp.ne.s32.totalorder %s219, %s222
    %p228 = scmp.eq.s32.totalorder %s15, 0
    %p229 = por %p227, %p228
    %p230 = scmp.ne.s32.totalorder %s219, %s222
    %p231 = scmp.eq.s32.totalorder %s20, 1
    %p232 = por %p230, %p231
    %p233 = scmp.ne.s32.totalorder %s222, %s223
    %p234 = scmp.eq.s32.totalorder %s20, 0
    %p235 = por %p233, %p234
    %p236 = scmp.ne.s32.totalorder %s222, %s223
    %p237 = scmp.eq.s32.totalorder %s21, 1
    %p238 = por %p236, %p237
    %p240 = scmp.ne.s32.totalorder %s223, %s239
    %p241 = scmp.eq.s32.totalorder %s21, 0
    %p242 = por %p240, %p241
    %p243 = scmp.le.s32.totalorder 1, %s15
    %p244 = scmp.lt.s32.totalorder %s15, 3
    %p245 = pnand %p243, %p244
    %p246 = pneg %p245
    // Predicated region
    $region9: #{forward.2} parent=5 // pred_check
      _
    $region10: #{forward.2} parent=5 // pred_check_branch
      %248 = sbr.rel (%p245) target = $region12
    $region11: #{forward.2} parent=5 // pred_region
      %s249 = ssub.s32 %s15, 1
      // Predicated region
      $region13: #{forward.2} parent=11 // pred_check
        %p250 = pneg %p62
      $region14: #{forward.2} parent=11 // pred_check_branch
        %252 = sbr.rel (%p250) target = $region16
      $region15: #{forward.2} parent=11 // pred_region
        _
      $region16: #{forward.2} parent=11 // pred_fallthru
        _
      // Predicated region
      $region17: #{forward.2} parent=11 // pred_check
        %p253 = pneg %p83
      $region18: #{forward.2} parent=11 // pred_check_branch
        %255 = sbr.rel (%p253) target = $region20
      $region19: #{forward.2} parent=11 // pred_region
        _
      $region20: #{forward.2} parent=11 // pred_fallthru
        _
      // Predicated region
      $region21: #{forward.2} parent=11 // pred_check
        %p256 = pneg %p104
      $region22: #{forward.2} parent=11 // pred_check_branch
        %258 = sbr.rel (%p256) target = $region24
      $region23: #{forward.2} parent=11 // pred_region
        _
      $region24: #{forward.2} parent=11 // pred_fallthru
        _
      // Predicated region
      $region25: #{forward.2} parent=11 // pred_check
        %p259 = pneg %p125
      $region26: #{forward.2} parent=11 // pred_check_branch
        %261 = sbr.rel (%p259) target = $region28
      $region27: #{forward.2} parent=11 // pred_region
        _
      $region28: #{forward.2} parent=11 // pred_fallthru
        _
      // Predicated region
      $region29: #{forward.2} parent=11 // pred_check
        %p262 = pneg %p146
      $region30: #{forward.2} parent=11 // pred_check_branch
        %264 = sbr.rel (%p262) target = $region32
      $region31: #{forward.2} parent=11 // pred_region
        _
      $region32: #{forward.2} parent=11 // pred_fallthru
        _
      // Predicated region
      $region33: #{forward.2} parent=11 // pred_check
        %p265 = pneg %p167
      $region34: #{forward.2} parent=11 // pred_check_branch
        %267 = sbr.rel (%p265) target = $region36
      $region35: #{forward.2} parent=11 // pred_region
        _
      $region36: #{forward.2} parent=11 // pred_fallthru
        _
      // Predicated region
      $region37: #{forward.2} parent=11 // pred_check
        %p268 = pneg %p188
      $region38: #{forward.2} parent=11 // pred_check_branch
        %270 = sbr.rel (%p268) target = $region40
      $region39: #{forward.2} parent=11 // pred_region
        _
      $region40: #{forward.2} parent=11 // pred_fallthru
        _
      // Predicated region
      $region41: #{forward.2} parent=11 // pred_check
        %p271 = pneg %p209
      $region42: #{forward.2} parent=11 // pred_check_branch
        %273 = sbr.rel (%p271) target = $region44
      $region43: #{forward.2} parent=11 // pred_region
        _
      $region44: #{forward.2} parent=11 // pred_fallthru
        _
    $region12: #{forward.2} parent=5 // pred_fallthru
      _
    %p274 = scmp.lt.s32.totalorder %s15, 2
    // Predicated region
    $region45: #{forward.2} parent=5 // pred_check
      %p275 = pneg %p274
    $region46: #{forward.2} parent=5 // pred_check_branch
      %277 = sbr.rel (%p275) target = $region48
    $region47: #{forward.2} parent=5 // pred_region
      // Predicated region
      $region49: #{forward.2} parent=47 // pred_check
        %p278 = pneg %p35
      $region50: #{forward.2} parent=47 // pred_check_branch
        %280 = sbr.rel (%p278) target = $region52
      $region51: #{forward.2} parent=47 // pred_region
        %p281 = scmp.lt.s32.totalorder %s15, 1
        %s282 = scalar_select %p281, %s15, 1
        %s283 = smul.addr %s282, 4
        %s284 = smul.addr %s283, 8
        %s285 = scalar_lea.vmem %s0, %s284
      $region52: #{forward.2} parent=47 // pred_fallthru
        _
    $region48: #{forward.2} parent=5 // pred_fallthru
      _
    %p286 = scmp.le.s32.totalorder 1, %s15
    %p287 = scmp.lt.s32.totalorder %s15, 3
    %p288 = pnand %p286, %p287
    %p289 = pneg %p288
    // Predicated region
    $region53: #{forward.2} parent=5 // pred_check
      _
    $region54: #{forward.2} parent=5 // pred_check_branch
      %291 = sbr.rel (%p288) target = $region56
    $region55: #{forward.2} parent=5 // pred_region
      %s292 = ssub.s32 %s15, 1
      %p293 = scmp.lt.s32.totalorder %s20, 1
      %s294 = scalar_select %p293, %s20, 1
      %s295 = smul.addr %s294, 4
      %s296 = smul.addr %s295, 8
      %s297 = scalar_lea.vmem %s0, %s296
      %p298 = pneg %p41
      %p299 = pneg %p38
      %p300 = pneg %p62
      %p301 = pneg %p59
      %p302 = pneg %p83
      %p303 = pneg %p80
      %p304 = pneg %p104
      %p305 = pneg %p101
      %p306 = pneg %p125
      %p307 = pneg %p122
      %p308 = pneg %p146
      %p309 = pneg %p143
      %p310 = pneg %p167
      %p311 = pneg %p164
      %p312 = pneg %p188
      %p313 = pneg %p185
      %p314 = pneg %p209
      %p315 = pneg %p206
      %p316 = pneg %p235
      %p317 = pneg %p232
      %p318 = scmp.lt.s32.totalorder %s20, 1
      %s319 = scalar_select %p318, %s20, 1
      %s320 = smul.addr %s319, 2
      %s321 = smul.addr %s320, 8
      %s322 = scalar_lea.vmem %s9, %s321
      %p323 = scmp.lt.s32.totalorder %s20, 1
      %s324 = scalar_select %p323, %s20, 1
      %s325 = smul.addr %s324, 4
      %s326 = smul.addr %s325, 8
      %s327 = scalar_lea.vmem %s0, %s326
      %p328 = scmp.lt.s32.totalorder %s20, 1
      %s329 = scalar_select %p328, %s20, 1
      %s330 = smul.addr %s329, 2
      %s331 = smul.addr %s330, 8
      %s332 = scalar_lea.vmem %s9, %s331
      %v333 = vld [vmem:[%s327] sm:$0xff]
      %v334 = vld [vmem:[%s327 + $0x8] sm:$0xff]
      %v335 = vld [vmem:[%s327 + $0x10] sm:$0xff]
      %v336 = vld [vmem:[%s327 + $0x18] sm:$0xf]
      %v337 = vld [vmem:[%s2] sm:$0xff]
      %v338 = vld [vmem:[%s2 + $0x8] sm:$0xff]
      %v339 = vld [vmem:[%s2 + $0x10] sm:$0xff]
      %v340 = vld [vmem:[%s2 + $0x18] sm:$0x3]
      %v341 = vld [vmem:[%s2 + $0x20] sm:$0xff]
      %v342 = vld [vmem:[%s2 + $0x28] sm:$0xff]
      %v343 = vld [vmem:[%s2 + $0x30] sm:$0xff]
      %v344 = vld [vmem:[%s2 + $0x38] sm:$0x3]
      %v345 = vld [vmem:[%s2 + $0x40] sm:$0xff]
      %v346 = vld [vmem:[%s2 + $0x48] sm:$0xff]
      %v347 = vld [vmem:[%s2 + $0x50] sm:$0xff]
      %v348 = vld [vmem:[%s2 + $0x58] sm:$0x3]
      %v349 = vld [vmem:[%s1] sm:$0xff]
      %v350 = vld [vmem:[%s1 + $0x8] sm:$0xff]
      %v351 = vld [vmem:[%s1 + $0x10] sm:$0xff]
      %v352 = vld [vmem:[%s1 + $0x18] sm:$0x3]
      %v353 = vld [vmem:[%s1 + $0x20] sm:$0xff]
      %v354 = vld [vmem:[%s1 + $0x28] sm:$0xff]
      %v355 = vld [vmem:[%s1 + $0x30] sm:$0xff]
      %v356 = vld [vmem:[%s1 + $0x38] sm:$0x3]
      %v357 = vld [vmem:[%s1 + $0x40] sm:$0xff]
      %v358 = vld [vmem:[%s1 + $0x48] sm:$0xff]
      %v359 = vld [vmem:[%s1 + $0x50] sm:$0xff]
      %v360 = vld [vmem:[%s1 + $0x58] sm:$0x3]
      %v361 = vmul.f32 %v333, %v349
      %v362 = vmul.f32 %v334, %v350
      %v363 = vmul.f32 %v335, %v351
      %v364 = vmul.f32 %v336, %v352
      %v365 = vmul.f32 %v333, %v353
      %v366 = vmul.f32 %v334, %v354
      %v367 = vmul.f32 %v335, %v355
      %v368 = vmul.f32 %v336, %v356
      %v369 = vmul.f32 %v333, %v357
      %v370 = vmul.f32 %v334, %v358
      %v371 = vmul.f32 %v335, %v359
      %v372 = vmul.f32 %v336, %v360
      %v373 = vadd.f32 %v337, %v361
      %v374 = vadd.f32 %v338, %v362
      %v375 = vadd.f32 %v339, %v363
      %v376 = vadd.f32 %v340, %v364
      %v377 = vadd.f32 %v341, %v365
      %v378 = vadd.f32 %v342, %v366
      %v379 = vadd.f32 %v343, %v367
      %v380 = vadd.f32 %v344, %v368
      %v381 = vadd.f32 %v345, %v369
      %v382 = vadd.f32 %v346, %v370
      %v383 = vadd.f32 %v347, %v371
      %v384 = vadd.f32 %v348, %v372
      %s385 = scalar_lea.vmem %s1, 96
      %v386 = vld [vmem:[%s385] sm:$0xff]
      %v387 = vld [vmem:[%s385 + $0x8] sm:$0xff]
      %v388 = vld [vmem:[%s385 + $0x10] sm:$0xff]
      %v389 = vld [vmem:[%s385 + $0x18] sm:$0x3]
      %v390 = vld [vmem:[%s385 + $0x20] sm:$0xff]
      %v391 = vld [vmem:[%s385 + $0x28] sm:$0xff]
      %v392 = vld [vmem:[%s385 + $0x30] sm:$0xff]
      %v393 = vld [vmem:[%s385 + $0x38] sm:$0x3]
      %v394 = vld [vmem:[%s385 + $0x40] sm:$0xff]
      %v395 = vld [vmem:[%s385 + $0x48] sm:$0xff]
      %v396 = vld [vmem:[%s385 + $0x50] sm:$0xff]
      %v397 = vld [vmem:[%s385 + $0x58] sm:$0x3]
      %410 = vrot.lane.b32.xlu0 %v386, 1
      %v411 = vpop.permute.xlu0 %410
      %412 = vrot.lane.b32.xlu0 %v387, 1
      %v413 = vpop.permute.xlu0 %412
      %414 = vrot.lane.b32.xlu0 %v388, 1
      %v415 = vpop.permute.xlu0 %414
      %416 = vrot.lane.b32.xlu0 %v389, 1
      %v417 = vpop.permute.xlu0 %416
      %418 = vrot.lane.b32.xlu0 %v390, 1
      %v419 = vpop.permute.xlu0 %418
      %420 = vrot.lane.b32.xlu0 %v391, 1
      %v421 = vpop.permute.xlu0 %420
      %422 = vrot.lane.b32.xlu0 %v392, 1
      %v423 = vpop.permute.xlu0 %422
      %424 = vrot.lane.b32.xlu0 %v393, 1
      %v425 = vpop.permute.xlu0 %424
      %426 = vrot.lane.b32.xlu0 %v394, 1
      %v427 = vpop.permute.xlu0 %426
      %428 = vrot.lane.b32.xlu0 %v395, 1
      %v429 = vpop.permute.xlu0 %428
      %430 = vrot.lane.b32.xlu0 %v396, 1
      %v431 = vpop.permute.xlu0 %430
      %432 = vrot.lane.b32.xlu0 %v397, 1
      %v433 = vpop.permute.xlu0 %432
      %v446 = vmul.f32 %v333, %v411
      %v447 = vmul.f32 %v334, %v413
      %v448 = vmul.f32 %v335, %v415
      %v449 = vmul.f32 %v336, %v417
      %v450 = vmul.f32 %v333, %v419
      %v451 = vmul.f32 %v334, %v421
      %v452 = vmul.f32 %v335, %v423
      %v453 = vmul.f32 %v336, %v425
      %v454 = vmul.f32 %v333, %v427
      %v455 = vmul.f32 %v334, %v429
      %v456 = vmul.f32 %v335, %v431
      %v457 = vmul.f32 %v336, %v433
      %470 = vrot.lane.b32.xlu0 %v446, 127
      %v471 = vpop.permute.xlu0 %470
      %472 = vrot.lane.b32.xlu0 %v447, 127
      %v473 = vpop.permute.xlu0 %472
      %474 = vrot.lane.b32.xlu0 %v448, 127
      %v475 = vpop.permute.xlu0 %474
      %476 = vrot.lane.b32.xlu0 %v449, 127
      %v477 = vpop.permute.xlu0 %476
      %478 = vrot.lane.b32.xlu0 %v450, 127
      %v479 = vpop.permute.xlu0 %478
      %480 = vrot.lane.b32.xlu0 %v451, 127
      %v481 = vpop.permute.xlu0 %480
      %482 = vrot.lane.b32.xlu0 %v452, 127
      %v483 = vpop.permute.xlu0 %482
      %484 = vrot.lane.b32.xlu0 %v453, 127
      %v485 = vpop.permute.xlu0 %484
      %486 = vrot.lane.b32.xlu0 %v454, 127
      %v487 = vpop.permute.xlu0 %486
      %488 = vrot.lane.b32.xlu0 %v455, 127
      %v489 = vpop.permute.xlu0 %488
      %490 = vrot.lane.b32.xlu0 %v456, 127
      %v491 = vpop.permute.xlu0 %490
      %492 = vrot.lane.b32.xlu0 %v457, 127
      %v493 = vpop.permute.xlu0 %492
      %v506 = vadd.f32 %v373, %v471
      %v507 = vadd.f32 %v374, %v473
      %v508 = vadd.f32 %v375, %v475
      %v509 = vadd.f32 %v376, %v477
      %v510 = vadd.f32 %v377, %v479
      %v511 = vadd.f32 %v378, %v481
      %v512 = vadd.f32 %v379, %v483
      %v513 = vadd.f32 %v380, %v485
      %v514 = vadd.f32 %v381, %v487
      %v515 = vadd.f32 %v382, %v489
      %v516 = vadd.f32 %v383, %v491
      %v517 = vadd.f32 %v384, %v493
      %s518 = scalar_lea.vmem %s1, 192
      %v519 = vld [vmem:[%s518] sm:$0xff]
      %v520 = vld [vmem:[%s518 + $0x8] sm:$0xff]
      %v521 = vld [vmem:[%s518 + $0x10] sm:$0xff]
      %v522 = vld [vmem:[%s518 + $0x18] sm:$0x3]
      %v523 = vld [vmem:[%s518 + $0x20] sm:$0xff]
      %v524 = vld [vmem:[%s518 + $0x28] sm:$0xff]
      %v525 = vld [vmem:[%s518 + $0x30] sm:$0xff]
      %v526 = vld [vmem:[%s518 + $0x38] sm:$0x3]
      %v527 = vld [vmem:[%s518 + $0x40] sm:$0xff]
      %v528 = vld [vmem:[%s518 + $0x48] sm:$0xff]
      %v529 = vld [vmem:[%s518 + $0x50] sm:$0xff]
      %v530 = vld [vmem:[%s518 + $0x58] sm:$0x3]
      %543 = vrot.lane.b32.xlu0 %v519, 2
      %v544 = vpop.permute.xlu0 %543
      %545 = vrot.lane.b32.xlu0 %v520, 2
      %v546 = vpop.permute.xlu0 %545
      %547 = vrot.lane.b32.xlu0 %v521, 2
      %v548 = vpop.permute.xlu0 %547
      %549 = vrot.lane.b32.xlu0 %v522, 2
      %v550 = vpop.permute.xlu0 %549
      %551 = vrot.lane.b32.xlu0 %v523, 2
      %v552 = vpop.permute.xlu0 %551
      %553 = vrot.lane.b32.xlu0 %v524, 2
      %v554 = vpop.permute.xlu0 %553
      %555 = vrot.lane.b32.xlu0 %v525, 2
      %v556 = vpop.permute.xlu0 %555
      %557 = vrot.lane.b32.xlu0 %v526, 2
      %v558 = vpop.permute.xlu0 %557
      %559 = vrot.lane.b32.xlu0 %v527, 2
      %v560 = vpop.permute.xlu0 %559
      %561 = vrot.lane.b32.xlu0 %v528, 2
      %v562 = vpop.permute.xlu0 %561
      %563 = vrot.lane.b32.xlu0 %v529, 2
      %v564 = vpop.permute.xlu0 %563
      %565 = vrot.lane.b32.xlu0 %v530, 2
      %v566 = vpop.permute.xlu0 %565
      %v579 = vmul.f32 %v333, %v544
      %v580 = vmul.f32 %v334, %v546
      %v581 = vmul.f32 %v335, %v548
      %v582 = vmul.f32 %v336, %v550
      %v583 = vmul.f32 %v333, %v552
      %v584 = vmul.f32 %v334, %v554
      %v585 = vmul.f32 %v335, %v556
      %v586 = vmul.f32 %v336, %v558
      %v587 = vmul.f32 %v333, %v560
      %v588 = vmul.f32 %v334, %v562
      %v589 = vmul.f32 %v335, %v564
      %v590 = vmul.f32 %v336, %v566
      %603 = vrot.lane.b32.xlu0 %v579, 126
      %v604 = vpop.permute.xlu0 %603
      %605 = vrot.lane.b32.xlu0 %v580, 126
      %v606 = vpop.permute.xlu0 %605
      %607 = vrot.lane.b32.xlu0 %v581, 126
      %v608 = vpop.permute.xlu0 %607
      %609 = vrot.lane.b32.xlu0 %v582, 126
      %v610 = vpop.permute.xlu0 %609
      %611 = vrot.lane.b32.xlu0 %v583, 126
      %v612 = vpop.permute.xlu0 %611
      %613 = vrot.lane.b32.xlu0 %v584, 126
      %v614 = vpop.permute.xlu0 %613
      %615 = vrot.lane.b32.xlu0 %v585, 126
      %v616 = vpop.permute.xlu0 %615
      %617 = vrot.lane.b32.xlu0 %v586, 126
      %v618 = vpop.permute.xlu0 %617
      %619 = vrot.lane.b32.xlu0 %v587, 126
      %v620 = vpop.permute.xlu0 %619
      %621 = vrot.lane.b32.xlu0 %v588, 126
      %v622 = vpop.permute.xlu0 %621
      %623 = vrot.lane.b32.xlu0 %v589, 126
      %v624 = vpop.permute.xlu0 %623
      %625 = vrot.lane.b32.xlu0 %v590, 126
      %v626 = vpop.permute.xlu0 %625
      %v639 = vadd.f32 %v506, %v604
      %v640 = vadd.f32 %v507, %v606
      %v641 = vadd.f32 %v508, %v608
      %v642 = vadd.f32 %v509, %v610
      %v643 = vadd.f32 %v510, %v612
      %v644 = vadd.f32 %v511, %v614
      %v645 = vadd.f32 %v512, %v616
      %v646 = vadd.f32 %v513, %v618
      %v647 = vadd.f32 %v514, %v620
      %v648 = vadd.f32 %v515, %v622
      %v649 = vadd.f32 %v516, %v624
      %v650 = vadd.f32 %v517, %v626
      %s651 = scalar_lea.vmem %s1, 288
      %v652 = vld [vmem:[%s651] sm:$0xff]
      %v653 = vld [vmem:[%s651 + $0x8] sm:$0xff]
      %v654 = vld [vmem:[%s651 + $0x10] sm:$0xff]
      %v655 = vld [vmem:[%s651 + $0x18] sm:$0x3]
      %v656 = vld [vmem:[%s651 + $0x20] sm:$0xff]
      %v657 = vld [vmem:[%s651 + $0x28] sm:$0xff]
      %v658 = vld [vmem:[%s651 + $0x30] sm:$0xff]
      %v659 = vld [vmem:[%s651 + $0x38] sm:$0x3]
      %v660 = vld [vmem:[%s651 + $0x40] sm:$0xff]
      %v661 = vld [vmem:[%s651 + $0x48] sm:$0xff]
      %v662 = vld [vmem:[%s651 + $0x50] sm:$0xff]
      %v663 = vld [vmem:[%s651 + $0x58] sm:$0x3]
      %vm676 = vcmask 1040384
      %v677 = vrot.slane %v652, 7
      %v678 = vrot.slane %v653, 7
      %v679 = vsel %vm676, %v677, %v678
      %v680 = vrot.slane %v654, 7
      %v681 = vsel %vm676, %v678, %v680
      %v682 = vrot.slane %v655, 7
      %v683 = vsel %vm676, %v680, %v682
      %v684 = vrot.slane %v656, 7
      %v685 = vrot.slane %v657, 7
      %v686 = vsel %vm676, %v684, %v685
      %v687 = vrot.slane %v658, 7
      %v688 = vsel %vm676, %v685, %v687
      %v689 = vrot.slane %v659, 7
      %v690 = vsel %vm676, %v687, %v689
      %v691 = vrot.slane %v660, 7
      %v692 = vrot.slane %v661, 7
      %v693 = vsel %vm676, %v691, %v692
      %v694 = vrot.slane %v662, 7
      %v695 = vsel %vm676, %v692, %v694
      %v696 = vrot.slane %v663, 7
      %v697 = vsel %vm676, %v694, %v696
      %v710 = vmul.f32 %v333, %v677
      %v711 = vmul.f32 %v334, %v679
      %v712 = vmul.f32 %v335, %v681
      %v713 = vmul.f32 %v336, %v683
      %v714 = vmul.f32 %v333, %v684
      %v715 = vmul.f32 %v334, %v686
      %v716 = vmul.f32 %v335, %v688
      %v717 = vmul.f32 %v336, %v690
      %v718 = vmul.f32 %v333, %v691
      %v719 = vmul.f32 %v334, %v693
      %v720 = vmul.f32 %v335, %v695
      %v721 = vmul.f32 %v336, %v697
      %s722 = scalar_lea.vmem %s1, 384
      %v723 = vld [vmem:[%s722] sm:$0xff]
      %v724 = vld [vmem:[%s722 + $0x8] sm:$0xff]
      %v725 = vld [vmem:[%s722 + $0x10] sm:$0xff]
      %v726 = vld [vmem:[%s722 + $0x18] sm:$0x3]
      %v727 = vld [vmem:[%s722 + $0x20] sm:$0xff]
      %v728 = vld [vmem:[%s722 + $0x28] sm:$0xff]
      %v729 = vld [vmem:[%s722 + $0x30] sm:$0xff]
      %v730 = vld [vmem:[%s722 + $0x38] sm:$0x3]
      %v731 = vld [vmem:[%s722 + $0x40] sm:$0xff]
      %v732 = vld [vmem:[%s722 + $0x48] sm:$0xff]
      %v733 = vld [vmem:[%s722 + $0x50] sm:$0xff]
      %v734 = vld [vmem:[%s722 + $0x58] sm:$0x3]
      %v747 = vrot.slane %v723, 7
      %v748 = vrot.slane %v724, 7
      %v749 = vsel %vm676, %v747, %v748
      %v750 = vrot.slane %v725, 7
      %v751 = vsel %vm676, %v748, %v750
      %v752 = vrot.slane %v726, 7
      %v753 = vsel %vm676, %v750, %v752
      %v754 = vrot.slane %v727, 7
      %v755 = vrot.slane %v728, 7
      %v756 = vsel %vm676, %v754, %v755
      %v757 = vrot.slane %v729, 7
      %v758 = vsel %vm676, %v755, %v757
      %v759 = vrot.slane %v730, 7
      %v760 = vsel %vm676, %v757, %v759
      %v761 = vrot.slane %v731, 7
      %v762 = vrot.slane %v732, 7
      %v763 = vsel %vm676, %v761, %v762
      %v764 = vrot.slane %v733, 7
      %v765 = vsel %vm676, %v762, %v764
      %v766 = vrot.slane %v734, 7
      %v767 = vsel %vm676, %v764, %v766
      %768 = vrot.lane.b32.xlu0 %v747, 1
      %v769 = vpop.permute.xlu0 %768
      %770 = vrot.lane.b32.xlu0 %v749, 1
      %v771 = vpop.permute.xlu0 %770
      %772 = vrot.lane.b32.xlu0 %v751, 1
      %v773 = vpop.permute.xlu0 %772
      %774 = vrot.lane.b32.xlu0 %v753, 1
      %v775 = vpop.permute.xlu0 %774
      %776 = vrot.lane.b32.xlu0 %v754, 1
      %v777 = vpop.permute.xlu0 %776
      %778 = vrot.lane.b32.xlu0 %v756, 1
      %v779 = vpop.permute.xlu0 %778
      %780 = vrot.lane.b32.xlu0 %v758, 1
      %v781 = vpop.permute.xlu0 %780
      %782 = vrot.lane.b32.xlu0 %v760, 1
      %v783 = vpop.permute.xlu0 %782
      %784 = vrot.lane.b32.xlu0 %v761, 1
      %v785 = vpop.permute.xlu0 %784
      %786 = vrot.lane.b32.xlu0 %v763, 1
      %v787 = vpop.permute.xlu0 %786
      %788 = vrot.lane.b32.xlu0 %v765, 1
      %v789 = vpop.permute.xlu0 %788
      %790 = vrot.lane.b32.xlu0 %v767, 1
      %v791 = vpop.permute.xlu0 %790
      %v804 = vmul.f32 %v333, %v769
      %v805 = vmul.f32 %v334, %v771
      %v806 = vmul.f32 %v335, %v773
      %v807 = vmul.f32 %v336, %v775
      %v808 = vmul.f32 %v333, %v777
      %v809 = vmul.f32 %v334, %v779
      %v810 = vmul.f32 %v335, %v781
      %v811 = vmul.f32 %v336, %v783
      %v812 = vmul.f32 %v333, %v785
      %v813 = vmul.f32 %v334, %v787
      %v814 = vmul.f32 %v335, %v789
      %v815 = vmul.f32 %v336, %v791
      %828 = vrot.lane.b32.xlu0 %v804, 127
      %v829 = vpop.permute.xlu0 %828
      %830 = vrot.lane.b32.xlu0 %v805, 127
      %v831 = vpop.permute.xlu0 %830
      %832 = vrot.lane.b32.xlu0 %v806, 127
      %v833 = vpop.permute.xlu0 %832
      %834 = vrot.lane.b32.xlu0 %v807, 127
      %v835 = vpop.permute.xlu0 %834
      %836 = vrot.lane.b32.xlu0 %v808, 127
      %v837 = vpop.permute.xlu0 %836
      %838 = vrot.lane.b32.xlu0 %v809, 127
      %v839 = vpop.permute.xlu0 %838
      %840 = vrot.lane.b32.xlu0 %v810, 127
      %v841 = vpop.permute.xlu0 %840
      %842 = vrot.lane.b32.xlu0 %v811, 127
      %v843 = vpop.permute.xlu0 %842
      %844 = vrot.lane.b32.xlu0 %v812, 127
      %v845 = vpop.permute.xlu0 %844
      %846 = vrot.lane.b32.xlu0 %v813, 127
      %v847 = vpop.permute.xlu0 %846
      %848 = vrot.lane.b32.xlu0 %v814, 127
      %v849 = vpop.permute.xlu0 %848
      %850 = vrot.lane.b32.xlu0 %v815, 127
      %v851 = vpop.permute.xlu0 %850
      %v864 = vadd.f32 %v710, %v829
      %v865 = vadd.f32 %v711, %v831
      %v866 = vadd.f32 %v712, %v833
      %v867 = vadd.f32 %v713, %v835
      %v868 = vadd.f32 %v714, %v837
      %v869 = vadd.f32 %v715, %v839
      %v870 = vadd.f32 %v716, %v841
      %v871 = vadd.f32 %v717, %v843
      %v872 = vadd.f32 %v718, %v845
      %v873 = vadd.f32 %v719, %v847
      %v874 = vadd.f32 %v720, %v849
      %v875 = vadd.f32 %v721, %v851
      %s876 = scalar_lea.vmem %s1, 480
      %v877 = vld [vmem:[%s876] sm:$0xff]
      %v878 = vld [vmem:[%s876 + $0x8] sm:$0xff]
      %v879 = vld [vmem:[%s876 + $0x10] sm:$0xff]
      %v880 = vld [vmem:[%s876 + $0x18] sm:$0x3]
      %v881 = vld [vmem:[%s876 + $0x20] sm:$0xff]
      %v882 = vld [vmem:[%s876 + $0x28] sm:$0xff]
      %v883 = vld [vmem:[%s876 + $0x30] sm:$0xff]
      %v884 = vld [vmem:[%s876 + $0x38] sm:$0x3]
      %v885 = vld [vmem:[%s876 + $0x40] sm:$0xff]
      %v886 = vld [vmem:[%s876 + $0x48] sm:$0xff]
      %v887 = vld [vmem:[%s876 + $0x50] sm:$0xff]
      %v888 = vld [vmem:[%s876 + $0x58] sm:$0x3]
      %v901 = vrot.slane %v877, 7
      %v902 = vrot.slane %v878, 7
      %v903 = vsel %vm676, %v901, %v902
      %v904 = vrot.slane %v879, 7
      %v905 = vsel %vm676, %v902, %v904
      %v906 = vrot.slane %v880, 7
      %v907 = vsel %vm676, %v904, %v906
      %v908 = vrot.slane %v881, 7
      %v909 = vrot.slane %v882, 7
      %v910 = vsel %vm676, %v908, %v909
      %v911 = vrot.slane %v883, 7
      %v912 = vsel %vm676, %v909, %v911
      %v913 = vrot.slane %v884, 7
      %v914 = vsel %vm676, %v911, %v913
      %v915 = vrot.slane %v885, 7
      %v916 = vrot.slane %v886, 7
      %v917 = vsel %vm676, %v915, %v916
      %v918 = vrot.slane %v887, 7
      %v919 = vsel %vm676, %v916, %v918
      %v920 = vrot.slane %v888, 7
      %v921 = vsel %vm676, %v918, %v920
      %922 = vrot.lane.b32.xlu0 %v901, 2
      %v923 = vpop.permute.xlu0 %922
      %924 = vrot.lane.b32.xlu0 %v903, 2
      %v925 = vpop.permute.xlu0 %924
      %926 = vrot.lane.b32.xlu0 %v905, 2
      %v927 = vpop.permute.xlu0 %926
      %928 = vrot.lane.b32.xlu0 %v907, 2
      %v929 = vpop.permute.xlu0 %928
      %930 = vrot.lane.b32.xlu0 %v908, 2
      %v931 = vpop.permute.xlu0 %930
      %932 = vrot.lane.b32.xlu0 %v910, 2
      %v933 = vpop.permute.xlu0 %932
      %934 = vrot.lane.b32.xlu0 %v912, 2
      %v935 = vpop.permute.xlu0 %934
      %936 = vrot.lane.b32.xlu0 %v914, 2
      %v937 = vpop.permute.xlu0 %936
      %938 = vrot.lane.b32.xlu0 %v915, 2
      %v939 = vpop.permute.xlu0 %938
      %940 = vrot.lane.b32.xlu0 %v917, 2
      %v941 = vpop.permute.xlu0 %940
      %942 = vrot.lane.b32.xlu0 %v919, 2
      %v943 = vpop.permute.xlu0 %942
      %944 = vrot.lane.b32.xlu0 %v921, 2
      %v945 = vpop.permute.xlu0 %944
      %v958 = vmul.f32 %v333, %v923
      %v959 = vmul.f32 %v334, %v925
      %v960 = vmul.f32 %v335, %v927
      %v961 = vmul.f32 %v336, %v929
      %v962 = vmul.f32 %v333, %v931
      %v963 = vmul.f32 %v334, %v933
      %v964 = vmul.f32 %v335, %v935
      %v965 = vmul.f32 %v336, %v937
      %v966 = vmul.f32 %v333, %v939
      %v967 = vmul.f32 %v334, %v941
      %v968 = vmul.f32 %v335, %v943
      %v969 = vmul.f32 %v336, %v945
      %982 = vrot.lane.b32.xlu0 %v958, 126
      %v983 = vpop.permute.xlu0 %982
      %984 = vrot.lane.b32.xlu0 %v959, 126
      %v985 = vpop.permute.xlu0 %984
      %986 = vrot.lane.b32.xlu0 %v960, 126
      %v987 = vpop.permute.xlu0 %986
      %988 = vrot.lane.b32.xlu0 %v961, 126
      %v989 = vpop.permute.xlu0 %988
      %990 = vrot.lane.b32.xlu0 %v962, 126
      %v991 = vpop.permute.xlu0 %990
      %992 = vrot.lane.b32.xlu0 %v963, 126
      %v993 = vpop.permute.xlu0 %992
      %994 = vrot.lane.b32.xlu0 %v964, 126
      %v995 = vpop.permute.xlu0 %994
      %996 = vrot.lane.b32.xlu0 %v965, 126
      %v997 = vpop.permute.xlu0 %996
      %998 = vrot.lane.b32.xlu0 %v966, 126
      %v999 = vpop.permute.xlu0 %998
      %1000 = vrot.lane.b32.xlu0 %v967, 126
      %v1001 = vpop.permute.xlu0 %1000
      %1002 = vrot.lane.b32.xlu0 %v968, 126
      %v1003 = vpop.permute.xlu0 %1002
      %1004 = vrot.lane.b32.xlu0 %v969, 126
      %v1005 = vpop.permute.xlu0 %1004
      %v1018 = vadd.f32 %v864, %v983
      %v1019 = vadd.f32 %v865, %v985
      %v1020 = vadd.f32 %v866, %v987
      %v1021 = vadd.f32 %v867, %v989
      %v1022 = vadd.f32 %v868, %v991
      %v1023 = vadd.f32 %v869, %v993
      %v1024 = vadd.f32 %v870, %v995
      %v1025 = vadd.f32 %v871, %v997
      %v1026 = vadd.f32 %v872, %v999
      %v1027 = vadd.f32 %v873, %v1001
      %v1028 = vadd.f32 %v874, %v1003
      %v1029 = vadd.f32 %v875, %v1005
      %s1030 = scalar_lea.vmem %s1, 576
      %v1031 = vld [vmem:[%s1030] sm:$0xff]
      %v1032 = vld [vmem:[%s1030 + $0x8] sm:$0xff]
      %v1033 = vld [vmem:[%s1030 + $0x10] sm:$0xff]
      %v1034 = vld [vmem:[%s1030 + $0x18] sm:$0x3]
      %v1035 = vld [vmem:[%s1030 + $0x20] sm:$0xff]
      %v1036 = vld [vmem:[%s1030 + $0x28] sm:$0xff]
      %v1037 = vld [vmem:[%s1030 + $0x30] sm:$0xff]
      %v1038 = vld [vmem:[%s1030 + $0x38] sm:$0x3]
      %v1039 = vld [vmem:[%s1030 + $0x40] sm:$0xff]
      %v1040 = vld [vmem:[%s1030 + $0x48] sm:$0xff]
      %v1041 = vld [vmem:[%s1030 + $0x50] sm:$0xff]
      %v1042 = vld [vmem:[%s1030 + $0x58] sm:$0x3]
      %vm1055 = vcmask 1041408
      %v1056 = vrot.slane %v1031, 6
      %v1057 = vrot.slane %v1032, 6
      %v1058 = vsel %vm1055, %v1056, %v1057
      %v1059 = vrot.slane %v1033, 6
      %v1060 = vsel %vm1055, %v1057, %v1059
      %v1061 = vrot.slane %v1034, 6
      %v1062 = vsel %vm1055, %v1059, %v1061
      %v1063 = vrot.slane %v1035, 6
      %v1064 = vrot.slane %v1036, 6
      %v1065 = vsel %vm1055, %v1063, %v1064
      %v1066 = vrot.slane %v1037, 6
      %v1067 = vsel %vm1055, %v1064, %v1066
      %v1068 = vrot.slane %v1038, 6
      %v1069 = vsel %vm1055, %v1066, %v1068
      %v1070 = vrot.slane %v1039, 6
      %v1071 = vrot.slane %v1040, 6
      %v1072 = vsel %vm1055, %v1070, %v1071
      %v1073 = vrot.slane %v1041, 6
      %v1074 = vsel %vm1055, %v1071, %v1073
      %v1075 = vrot.slane %v1042, 6
      %v1076 = vsel %vm1055, %v1073, %v1075
      %v1089 = vmul.f32 %v333, %v1056
      %v1090 = vmul.f32 %v334, %v1058
      %v1091 = vmul.f32 %v335, %v1060
      %v1092 = vmul.f32 %v336, %v1062
      %v1093 = vmul.f32 %v333, %v1063
      %v1094 = vmul.f32 %v334, %v1065
      %v1095 = vmul.f32 %v335, %v1067
      %v1096 = vmul.f32 %v336, %v1069
      %v1097 = vmul.f32 %v333, %v1070
      %v1098 = vmul.f32 %v334, %v1072
      %v1099 = vmul.f32 %v335, %v1074
      %v1100 = vmul.f32 %v336, %v1076
      %s1101 = scalar_lea.vmem %s1, 672
      %v1102 = vld [vmem:[%s1101] sm:$0xff]
      %v1103 = vld [vmem:[%s1101 + $0x8] sm:$0xff]
      %v1104 = vld [vmem:[%s1101 + $0x10] sm:$0xff]
      %v1105 = vld [vmem:[%s1101 + $0x18] sm:$0x3]
      %v1106 = vld [vmem:[%s1101 + $0x20] sm:$0xff]
      %v1107 = vld [vmem:[%s1101 + $0x28] sm:$0xff]
      %v1108 = vld [vmem:[%s1101 + $0x30] sm:$0xff]
      %v1109 = vld [vmem:[%s1101 + $0x38] sm:$0x3]
      %v1110 = vld [vmem:[%s1101 + $0x40] sm:$0xff]
      %v1111 = vld [vmem:[%s1101 + $0x48] sm:$0xff]
      %v1112 = vld [vmem:[%s1101 + $0x50] sm:$0xff]
      %v1113 = vld [vmem:[%s1101 + $0x58] sm:$0x3]
      %v1126 = vrot.slane %v1102, 6
      %v1127 = vrot.slane %v1103, 6
      %v1128 = vsel %vm1055, %v1126, %v1127
      %v1129 = vrot.slane %v1104, 6
      %v1130 = vsel %vm1055, %v1127, %v1129
      %v1131 = vrot.slane %v1105, 6
      %v1132 = vsel %vm1055, %v1129, %v1131
      %v1133 = vrot.slane %v1106, 6
      %v1134 = vrot.slane %v1107, 6
      %v1135 = vsel %vm1055, %v1133, %v1134
      %v1136 = vrot.slane %v1108, 6
      %v1137 = vsel %vm1055, %v1134, %v1136
      %v1138 = vrot.slane %v1109, 6
      %v1139 = vsel %vm1055, %v1136, %v1138
      %v1140 = vrot.slane %v1110, 6
      %v1141 = vrot.slane %v1111, 6
      %v1142 = vsel %vm1055, %v1140, %v1141
      %v1143 = vrot.slane %v1112, 6
      %v1144 = vsel %vm1055, %v1141, %v1143
      %v1145 = vrot.slane %v1113, 6
      %v1146 = vsel %vm1055, %v1143, %v1145
      %1147 = vrot.lane.b32.xlu0 %v1126, 1
      %v1148 = vpop.permute.xlu0 %1147
      %1149 = vrot.lane.b32.xlu0 %v1128, 1
      %v1150 = vpop.permute.xlu0 %1149
      %1151 = vrot.lane.b32.xlu0 %v1130, 1
      %v1152 = vpop.permute.xlu0 %1151
      %1153 = vrot.lane.b32.xlu0 %v1132, 1
      %v1154 = vpop.permute.xlu0 %1153
      %1155 = vrot.lane.b32.xlu0 %v1133, 1
      %v1156 = vpop.permute.xlu0 %1155
      %1157 = vrot.lane.b32.xlu0 %v1135, 1
      %v1158 = vpop.permute.xlu0 %1157
      %1159 = vrot.lane.b32.xlu0 %v1137, 1
      %v1160 = vpop.permute.xlu0 %1159
      %1161 = vrot.lane.b32.xlu0 %v1139, 1
      %v1162 = vpop.permute.xlu0 %1161
      %1163 = vrot.lane.b32.xlu0 %v1140, 1
      %v1164 = vpop.permute.xlu0 %1163
      %1165 = vrot.lane.b32.xlu0 %v1142, 1
      %v1166 = vpop.permute.xlu0 %1165
      %1167 = vrot.lane.b32.xlu0 %v1144, 1
      %v1168 = vpop.permute.xlu0 %1167
      %1169 = vrot.lane.b32.xlu0 %v1146, 1
      %v1170 = vpop.permute.xlu0 %1169
      %v1183 = vmul.f32 %v333, %v1148
      %v1184 = vmul.f32 %v334, %v1150
      %v1185 = vmul.f32 %v335, %v1152
      %v1186 = vmul.f32 %v336, %v1154
      %v1187 = vmul.f32 %v333, %v1156
      %v1188 = vmul.f32 %v334, %v1158
      %v1189 = vmul.f32 %v335, %v1160
      %v1190 = vmul.f32 %v336, %v1162
      %v1191 = vmul.f32 %v333, %v1164
      %v1192 = vmul.f32 %v334, %v1166
      %v1193 = vmul.f32 %v335, %v1168
      %v1194 = vmul.f32 %v336, %v1170
      %1207 = vrot.lane.b32.xlu0 %v1183, 127
      %v1208 = vpop.permute.xlu0 %1207
      %1209 = vrot.lane.b32.xlu0 %v1184, 127
      %v1210 = vpop.permute.xlu0 %1209
      %1211 = vrot.lane.b32.xlu0 %v1185, 127
      %v1212 = vpop.permute.xlu0 %1211
      %1213 = vrot.lane.b32.xlu0 %v1186, 127
      %v1214 = vpop.permute.xlu0 %1213
      %1215 = vrot.lane.b32.xlu0 %v1187, 127
      %v1216 = vpop.permute.xlu0 %1215
      %1217 = vrot.lane.b32.xlu0 %v1188, 127
      %v1218 = vpop.permute.xlu0 %1217
      %1219 = vrot.lane.b32.xlu0 %v1189, 127
      %v1220 = vpop.permute.xlu0 %1219
      %1221 = vrot.lane.b32.xlu0 %v1190, 127
      %v1222 = vpop.permute.xlu0 %1221
      %1223 = vrot.lane.b32.xlu0 %v1191, 127
      %v1224 = vpop.permute.xlu0 %1223
      %1225 = vrot.lane.b32.xlu0 %v1192, 127
      %v1226 = vpop.permute.xlu0 %1225
      %1227 = vrot.lane.b32.xlu0 %v1193, 127
      %v1228 = vpop.permute.xlu0 %1227
      %1229 = vrot.lane.b32.xlu0 %v1194, 127
      %v1230 = vpop.permute.xlu0 %1229
      %v1243 = vadd.f32 %v1089, %v1208
      %v1244 = vadd.f32 %v1090, %v1210
      %v1245 = vadd.f32 %v1091, %v1212
      %v1246 = vadd.f32 %v1092, %v1214
      %v1247 = vadd.f32 %v1093, %v1216
      %v1248 = vadd.f32 %v1094, %v1218
      %v1249 = vadd.f32 %v1095, %v1220
      %v1250 = vadd.f32 %v1096, %v1222
      %v1251 = vadd.f32 %v1097, %v1224
      %v1252 = vadd.f32 %v1098, %v1226
      %v1253 = vadd.f32 %v1099, %v1228
      %v1254 = vadd.f32 %v1100, %v1230
      %s1255 = scalar_lea.vmem %s1, 768
      %v1256 = vld [vmem:[%s1255] sm:$0xff]
      %v1257 = vld [vmem:[%s1255 + $0x8] sm:$0xff]
      %v1258 = vld [vmem:[%s1255 + $0x10] sm:$0xff]
      %v1259 = vld [vmem:[%s1255 + $0x18] sm:$0x3]
      %v1260 = vld [vmem:[%s1255 + $0x20] sm:$0xff]
      %v1261 = vld [vmem:[%s1255 + $0x28] sm:$0xff]
      %v1262 = vld [vmem:[%s1255 + $0x30] sm:$0xff]
      %v1263 = vld [vmem:[%s1255 + $0x38] sm:$0x3]
      %v1264 = vld [vmem:[%s1255 + $0x40] sm:$0xff]
      %v1265 = vld [vmem:[%s1255 + $0x48] sm:$0xff]
      %v1266 = vld [vmem:[%s1255 + $0x50] sm:$0xff]
      %v1267 = vld [vmem:[%s1255 + $0x58] sm:$0x3]
      %v1280 = vrot.slane %v1256, 6
      %v1281 = vrot.slane %v1257, 6
      %v1282 = vsel %vm1055, %v1280, %v1281
      %v1283 = vrot.slane %v1258, 6
      %v1284 = vsel %vm1055, %v1281, %v1283
      %v1285 = vrot.slane %v1259, 6
      %v1286 = vsel %vm1055, %v1283, %v1285
      %v1287 = vrot.slane %v1260, 6
      %v1288 = vrot.slane %v1261, 6
      %v1289 = vsel %vm1055, %v1287, %v1288
      %v1290 = vrot.slane %v1262, 6
      %v1291 = vsel %vm1055, %v1288, %v1290
      %v1292 = vrot.slane %v1263, 6
      %v1293 = vsel %vm1055, %v1290, %v1292
      %v1294 = vrot.slane %v1264, 6
      %v1295 = vrot.slane %v1265, 6
      %v1296 = vsel %vm1055, %v1294, %v1295
      %v1297 = vrot.slane %v1266, 6
      %v1298 = vsel %vm1055, %v1295, %v1297
      %v1299 = vrot.slane %v1267, 6
      %v1300 = vsel %vm1055, %v1297, %v1299
      %1301 = vrot.lane.b32.xlu0 %v1280, 2
      %v1302 = vpop.permute.xlu0 %1301
      %1303 = vrot.lane.b32.xlu0 %v1282, 2
      %v1304 = vpop.permute.xlu0 %1303
      %1305 = vrot.lane.b32.xlu0 %v1284, 2
      %v1306 = vpop.permute.xlu0 %1305
      %1307 = vrot.lane.b32.xlu0 %v1286, 2
      %v1308 = vpop.permute.xlu0 %1307
      %1309 = vrot.lane.b32.xlu0 %v1287, 2
      %v1310 = vpop.permute.xlu0 %1309
      %1311 = vrot.lane.b32.xlu0 %v1289, 2
      %v1312 = vpop.permute.xlu0 %1311
      %1313 = vrot.lane.b32.xlu0 %v1291, 2
      %v1314 = vpop.permute.xlu0 %1313
      %1315 = vrot.lane.b32.xlu0 %v1293, 2
      %v1316 = vpop.permute.xlu0 %1315
      %1317 = vrot.lane.b32.xlu0 %v1294, 2
      %v1318 = vpop.permute.xlu0 %1317
      %1319 = vrot.lane.b32.xlu0 %v1296, 2
      %v1320 = vpop.permute.xlu0 %1319
      %1321 = vrot.lane.b32.xlu0 %v1298, 2
      %v1322 = vpop.permute.xlu0 %1321
      %1323 = vrot.lane.b32.xlu0 %v1300, 2
      %v1324 = vpop.permute.xlu0 %1323
      %v1337 = vmul.f32 %v333, %v1302
      %v1338 = vmul.f32 %v334, %v1304
      %v1339 = vmul.f32 %v335, %v1306
      %v1340 = vmul.f32 %v336, %v1308
      %v1341 = vmul.f32 %v333, %v1310
      %v1342 = vmul.f32 %v334, %v1312
      %v1343 = vmul.f32 %v335, %v1314
      %v1344 = vmul.f32 %v336, %v1316
      %v1345 = vmul.f32 %v333, %v1318
      %v1346 = vmul.f32 %v334, %v1320
      %v1347 = vmul.f32 %v335, %v1322
      %v1348 = vmul.f32 %v336, %v1324
      %1361 = vrot.lane.b32.xlu0 %v1337, 126
      %v1362 = vpop.permute.xlu0 %1361
      %1363 = vrot.lane.b32.xlu0 %v1338, 126
      %v1364 = vpop.permute.xlu0 %1363
      %1365 = vrot.lane.b32.xlu0 %v1339, 126
      %v1366 = vpop.permute.xlu0 %1365
      %1367 = vrot.lane.b32.xlu0 %v1340, 126
      %v1368 = vpop.permute.xlu0 %1367
      %1369 = vrot.lane.b32.xlu0 %v1341, 126
      %v1370 = vpop.permute.xlu0 %1369
      %1371 = vrot.lane.b32.xlu0 %v1342, 126
      %v1372 = vpop.permute.xlu0 %1371
      %1373 = vrot.lane.b32.xlu0 %v1343, 126
      %v1374 = vpop.permute.xlu0 %1373
      %1375 = vrot.lane.b32.xlu0 %v1344, 126
      %v1376 = vpop.permute.xlu0 %1375
      %1377 = vrot.lane.b32.xlu0 %v1345, 126
      %v1378 = vpop.permute.xlu0 %1377
      %1379 = vrot.lane.b32.xlu0 %v1346, 126
      %v1380 = vpop.permute.xlu0 %1379
      %1381 = vrot.lane.b32.xlu0 %v1347, 126
      %v1382 = vpop.permute.xlu0 %1381
      %1383 = vrot.lane.b32.xlu0 %v1348, 126
      %v1384 = vpop.permute.xlu0 %1383
      %v1397 = vadd.f32 %v1243, %v1362
      %v1398 = vadd.f32 %v1244, %v1364
      %v1399 = vadd.f32 %v1245, %v1366
      %v1400 = vadd.f32 %v1246, %v1368
      %v1401 = vadd.f32 %v1247, %v1370
      %v1402 = vadd.f32 %v1248, %v1372
      %v1403 = vadd.f32 %v1249, %v1374
      %v1404 = vadd.f32 %v1250, %v1376
      %v1405 = vadd.f32 %v1251, %v1378
      %v1406 = vadd.f32 %v1252, %v1380
      %v1407 = vadd.f32 %v1253, %v1382
      %v1408 = vadd.f32 %v1254, %v1384
      %vm1421 = vcmask 1046528
      %v1422 = vrot.slane %v1018, 1
      %v1423 = vrot.slane %v1019, 1
      %v1424 = vsel %vm1421, %v1422, %v1423
      %v1425 = vrot.slane %v1020, 1
      %v1426 = vsel %vm1421, %v1423, %v1425
      %v1427 = vrot.slane %v1021, 1
      %v1428 = vsel %vm1421, %v1425, %v1427
      %v1429 = vrot.slane %v1022, 1
      %v1430 = vrot.slane %v1023, 1
      %v1431 = vsel %vm1421, %v1429, %v1430
      %v1432 = vrot.slane %v1024, 1
      %v1433 = vsel %vm1421, %v1430, %v1432
      %v1434 = vrot.slane %v1025, 1
      %v1435 = vsel %vm1421, %v1432, %v1434
      %v1436 = vrot.slane %v1026, 1
      %v1437 = vrot.slane %v1027, 1
      %v1438 = vsel %vm1421, %v1436, %v1437
      %v1439 = vrot.slane %v1028, 1
      %v1440 = vsel %vm1421, %v1437, %v1439
      %v1441 = vrot.slane %v1029, 1
      %v1442 = vsel %vm1421, %v1439, %v1441
      %v1455 = vadd.f32 %v639, %v1424
      %v1456 = vadd.f32 %v640, %v1426
      %v1457 = vadd.f32 %v641, %v1428
      %v1458 = vadd.f32 %v642, %v1427
      %v1459 = vadd.f32 %v643, %v1431
      %v1460 = vadd.f32 %v644, %v1433
      %v1461 = vadd.f32 %v645, %v1435
      %v1462 = vadd.f32 %v646, %v1434
      %v1463 = vadd.f32 %v647, %v1438
      %v1464 = vadd.f32 %v648, %v1440
      %v1465 = vadd.f32 %v649, %v1442
      %v1466 = vadd.f32 %v650, %v1441
      %vm1479 = vcmask 1045504
      %v1480 = vrot.slane %v1397, 2
      %v1481 = vrot.slane %v1398, 2
      %v1482 = vsel %vm1479, %v1480, %v1481
      %v1483 = vrot.slane %v1399, 2
      %v1484 = vsel %vm1479, %v1481, %v1483
      %v1485 = vrot.slane %v1400, 2
      %v1486 = vsel %vm1479, %v1483, %v1485
      %v1487 = vrot.slane %v1401, 2
      %v1488 = vrot.slane %v1402, 2
      %v1489 = vsel %vm1479, %v1487, %v1488
      %v1490 = vrot.slane %v1403, 2
      %v1491 = vsel %vm1479, %v1488, %v1490
      %v1492 = vrot.slane %v1404, 2
      %v1493 = vsel %vm1479, %v1490, %v1492
      %v1494 = vrot.slane %v1405, 2
      %v1495 = vrot.slane %v1406, 2
      %v1496 = vsel %vm1479, %v1494, %v1495
      %v1497 = vrot.slane %v1407, 2
      %v1498 = vsel %vm1479, %v1495, %v1497
      %v1499 = vrot.slane %v1408, 2
      %v1500 = vsel %vm1479, %v1497, %v1499
      %v1513 = vadd.f32 %v1455, %v1482
      %v1514 = vadd.f32 %v1456, %v1484
      %v1515 = vadd.f32 %v1457, %v1486
      %v1516 = vadd.f32 %v1458, %v1485
      %v1517 = vadd.f32 %v1459, %v1489
      %v1518 = vadd.f32 %v1460, %v1491
      %v1519 = vadd.f32 %v1461, %v1493
      %v1520 = vadd.f32 %v1462, %v1492
      %v1521 = vadd.f32 %v1463, %v1496
      %v1522 = vadd.f32 %v1464, %v1498
      %v1523 = vadd.f32 %v1465, %v1500
      %v1524 = vadd.f32 %v1466, %v1499
      %v1525 = vmax.f32 %v1513, 0.0
      %v1526 = vmax.f32 %v1514, 0.0
      %v1527 = vmax.f32 %v1515, 0.0
      %v1528 = vmax.f32 %v1516, 0.0
      %v1529 = vmax.f32 %v1517, 0.0
      %v1530 = vmax.f32 %v1518, 0.0
      %v1531 = vmax.f32 %v1519, 0.0
      %v1532 = vmax.f32 %v1520, 0.0
      %v1533 = vmax.f32 %v1521, 0.0
      %v1534 = vmax.f32 %v1522, 0.0
      %v1535 = vmax.f32 %v1523, 0.0
      %v1536 = vmax.f32 %v1524, 0.0
      %v1541 = vrot.slane %v1529, 6
      %v1542 = vrot.slane %v1530, 6
      %v1543 = vsel %vm1055, %v1541, %v1542
      %v1544 = vrot.slane %v1531, 6
      %v1545 = vsel %vm1055, %v1542, %v1544
      %v1546 = vrot.slane %v1532, 6
      %v1547 = vsel %vm1055, %v1544, %v1546
      %vm1556 = vcmask 1043456
      %v1557 = vrot.slane %v1533, 4
      %v1558 = vrot.slane %v1534, 4
      %v1559 = vsel %vm1556, %v1557, %v1558
      %v1560 = vrot.slane %v1535, 4
      %v1561 = vsel %vm1556, %v1558, %v1560
      %v1562 = vrot.slane %v1536, 4
      %v1563 = vsel %vm1556, %v1560, %v1562
      %v1568 = vsel %vm1055, %v1528, %v1541
      %v1569 = vsel %vm1556, %v1547, %v1557
      %1575 = vrot.lane.b32.xlu0 %v1525, 127
      %v1576 = vpop.permute.xlu0 %1575
      %1577 = vrot.lane.b32.xlu0 %v1526, 127
      %v1578 = vpop.permute.xlu0 %1577
      %1579 = vrot.lane.b32.xlu0 %v1527, 127
      %v1580 = vpop.permute.xlu0 %1579
      %1581 = vrot.lane.b32.xlu0 %v1568, 127
      %v1582 = vpop.permute.xlu0 %1581
      %1583 = vrot.lane.b32.xlu0 %v1543, 127
      %v1584 = vpop.permute.xlu0 %1583
      %1585 = vrot.lane.b32.xlu0 %v1545, 127
      %v1586 = vpop.permute.xlu0 %1585
      %1587 = vrot.lane.b32.xlu0 %v1569, 127
      %v1588 = vpop.permute.xlu0 %1587
      %1589 = vrot.lane.b32.xlu0 %v1559, 127
      %v1590 = vpop.permute.xlu0 %1589
      %1591 = vrot.lane.b32.xlu0 %v1561, 127
      %v1592 = vpop.permute.xlu0 %1591
      %1593 = vrot.lane.b32.xlu0 %v1563, 127
      %v1594 = vpop.permute.xlu0 %1593
      %v1605 = vmax.f32 %v1525, %v1576
      %v1606 = vmax.f32 %v1526, %v1578
      %v1607 = vmax.f32 %v1527, %v1580
      %v1608 = vmax.f32 %v1568, %v1582
      %v1609 = vmax.f32 %v1543, %v1584
      %v1610 = vmax.f32 %v1545, %v1586
      %v1611 = vmax.f32 %v1569, %v1588
      %v1612 = vmax.f32 %v1559, %v1590
      %v1613 = vmax.f32 %v1561, %v1592
      %v1614 = vmax.f32 %v1563, %v1594
      %v1615 = vld [vmem:[%s5] sm:$0xff]
      %v1616 = vld [vmem:[%s5 + $0x8] sm:$0xff]
      %v1617 = vld [vmem:[%s5 + $0x10] sm:$0xff]
      %v1618 = vld [vmem:[%s5 + $0x18] sm:$0x1]
      %vm1619 = vcmask 203776
      %v1621 = vsel %vm1619, %v1605, 0
      %v1624 = vsel %vm1619, %v1606, 0
      %v1627 = vsel %vm1619, %v1607, 0
      %v1630 = vsel %vm1619, %v1608, 0
      %v1633 = vsel %vm1619, %v1609, 0
      %v1636 = vsel %vm1619, %v1610, 0
      %v1639 = vsel %vm1619, %v1611, 0
      %v1642 = vsel %vm1619, %v1612, 0
      %v1645 = vsel %vm1619, %v1613, 0
      %v1648 = vsel %vm1619, %v1614, 0
      %v1651 = vsel %vm676, %v1618, 0
      %1653 = vmatprep.subr.mxu0 0.0
      %1654 = vmatpush1.msra.mxu0 0.0
      %1655 = vmatprep.subr.mxu0 0.0
      %1656 = vmatpush1.msra.mxu0 0.0
      %1657 = vmatprep.subr.mxu0 0.0
      %1658 = vmatpush1.msra.mxu0 0.0
      %1659 = vmatprep.subr.mxu0 0.0
      %1660 = vmatpush1.msra.mxu0 0.0
      %1661 = vmatprep.subr.mxu0 0.0
      %1662 = vmatpush1.msra.mxu0 0.0
      %1663 = vmatprep.subr.mxu0 0.0
      %1664 = vmatpush1.msra.mxu0 0.0
      %1665 = vmatprep.subr.mxu0 0.0
      %1666 = vmatpush1.msra.mxu0 0.0
      %1667 = vmatprep.subr.mxu0 0.0
      %1668 = vmatpush1.msra.mxu0 0.0
      %1669 = vmatprep.subr.mxu0 0.0
      %1670 = vmatpush1.msra.mxu0 0.0
      %1671 = vmatprep.subr.mxu0 0.0
      %1672 = vmatpush1.msra.mxu0 0.0
      %1673 = vmatprep.subr.mxu0 0.0
      %1674 = vmatpush1.msra.mxu0 0.0
      %1675 = vmatprep.subr.mxu0 0.0
      %1676 = vmatpush1.msra.mxu0 0.0
      %1677 = vmatprep.subr.mxu0 0.0
      %1678 = vmatpush1.msra.mxu0 %v1651
      %1679 = vmatprep.subr.mxu0 0.0
      %1680 = vmatpush1.msra.mxu0 %v1617
      %1681 = vmatprep.subr.mxu0 0.0
      %1682 = vmatpush1.msra.mxu0 %v1616
      %1683 = vmatprep.subr.mxu0 0.0
      %1684 = vmatpush1.msra.mxu0 %v1615
      %1685 = vmatprep.subr.mxu0 0.0
      %1686 = vmatpush2.msra.mxu0 0.0
      %1687 = vmatprep.subr.mxu0 0.0
      %1688 = vmatpush2.msra.mxu0 0.0
      %1689 = vmatprep.subr.mxu0 0.0
      %1690 = vmatpush2.msra.mxu0 0.0
      %1691 = vmatprep.subr.mxu0 0.0
      %1692 = vmatpush2.msra.mxu0 0.0
      %1693 = vmatprep.subr.mxu0 0.0
      %1694 = vmatpush2.msra.mxu0 0.0
      %1695 = vmatprep.subr.mxu0 0.0
      %1696 = vmatpush2.msra.mxu0 0.0
      %1697 = vmatprep.subr.mxu0 0.0
      %1698 = vmatpush2.msra.mxu0 0.0
      %1699 = vmatprep.subr.mxu0 0.0
      %1700 = vmatpush2.msra.mxu0 0.0
      %1701 = vmatprep.subr.mxu0 0.0
      %1702 = vmatpush2.msra.mxu0 0.0
      %1703 = vmatprep.subr.mxu0 0.0
      %1704 = vmatpush2.msra.mxu0 0.0
      %1705 = vmatprep.subr.mxu0 0.0
      %1706 = vmatpush2.msra.mxu0 0.0
      %1707 = vmatprep.subr.mxu0 0.0
      %1708 = vmatpush2.msra.mxu0 0.0
      %1709 = vmatprep.subr.mxu0 0.0
      %1710 = vmatpush2.msra.mxu0 0.0
      %1711 = vmatprep.subr.mxu0 0.0
      %1712 = vmatpush2.msra.mxu0 0.0
      %1713 = vmatprep.subr.mxu0 0.0
      %1714 = vmatpush2.msra.mxu0 0.0
      %1715 = vmatprep.subr.mxu0 0.0
      %1716 = vmatpush2.msra.mxu0 0.0
      %1717 = vmatprep.mubr.f32.mxu0 0.0
      %1718 = vmatmul.mubr.f32.gmra.mxu0 %v1621
      %v1719 = vpop.f32.mrf.mxu0
      %v1720 = vadd.f32 0.0, %v1719
      %v1721 = vpop.f32.mrf.mxu0
      %1722 = vmatprep.mubr.f32.mxu0 0.0
      %1723 = vmatmul.mubr.f32.gmra.mxu0 %v1624
      %v1724 = vpop.f32.mrf.mxu0
      %v1725 = vadd.f32 0.0, %v1724
      %v1726 = vpop.f32.mrf.mxu0
      %1727 = vmatprep.mubr.f32.mxu0 0.0
      %1728 = vmatmul.mubr.f32.gmra.mxu0 %v1627
      %v1729 = vpop.f32.mrf.mxu0
      %v1730 = vadd.f32 0.0, %v1729
      %v1731 = vpop.f32.mrf.mxu0
      %1732 = vmatprep.mubr.f32.mxu0 0.0
      %1733 = vmatmul.mubr.f32.gmra.mxu0 %v1630
      %v1734 = vpop.f32.mrf.mxu0
      %v1735 = vadd.f32 0.0, %v1734
      %v1736 = vpop.f32.mrf.mxu0
      %1737 = vmatprep.mubr.f32.mxu0 0.0
      %1738 = vmatmul.mubr.f32.gmra.mxu0 %v1633
      %v1739 = vpop.f32.mrf.mxu0
      %v1740 = vadd.f32 0.0, %v1739
      %v1741 = vpop.f32.mrf.mxu0
      %1742 = vmatprep.mubr.f32.mxu0 0.0
      %1743 = vmatmul.mubr.f32.gmra.mxu0 %v1636
      %v1744 = vpop.f32.mrf.mxu0
      %v1745 = vadd.f32 0.0, %v1744
      %v1746 = vpop.f32.mrf.mxu0
      %1747 = vmatprep.mubr.f32.mxu0 0.0
      %1748 = vmatmul.mubr.f32.gmra.mxu0 %v1639
      %v1749 = vpop.f32.mrf.mxu0
      %v1750 = vadd.f32 0.0, %v1749
      %v1751 = vpop.f32.mrf.mxu0
      %1752 = vmatprep.mubr.f32.mxu0 0.0
      %1753 = vmatmul.mubr.f32.gmra.mxu0 %v1642
      %v1754 = vpop.f32.mrf.mxu0
      %v1755 = vadd.f32 0.0, %v1754
      %v1756 = vpop.f32.mrf.mxu0
      %1757 = vmatprep.mubr.f32.mxu0 0.0
      %1758 = vmatmul.mubr.f32.gmra.mxu0 %v1645
      %v1759 = vpop.f32.mrf.mxu0
      %v1760 = vadd.f32 0.0, %v1759
      %v1761 = vpop.f32.mrf.mxu0
      %1762 = vmatprep.mubr.f32.mxu0 0.0
      %1763 = vmatmul.mubr.f32.gmra.mxu0 %v1648
      %v1764 = vpop.f32.mrf.mxu0
      %v1765 = vadd.f32 0.0, %v1764
      %v1766 = vpop.f32.mrf.mxu0
      %1767 = vdwg.mxu0
      %v1778 = vrot.slane %v1720, 1
      %v1779 = vrot.slane %v1725, 1
      %v1780 = vsel %vm1421, %v1778, %v1779
      %v1781 = vrot.slane %v1730, 1
      %v1782 = vsel %vm1421, %v1779, %v1781
      %v1783 = vrot.slane %v1735, 1
      %v1784 = vsel %vm1421, %v1781, %v1783
      %v1785 = vrot.slane %v1740, 1
      %v1786 = vsel %vm1421, %v1783, %v1785
      %v1787 = vrot.slane %v1745, 1
      %v1788 = vsel %vm1421, %v1785, %v1787
      %v1789 = vrot.slane %v1750, 1
      %v1790 = vsel %vm1421, %v1787, %v1789
      %v1791 = vrot.slane %v1755, 1
      %v1792 = vsel %vm1421, %v1789, %v1791
      %v1793 = vrot.slane %v1760, 1
      %v1794 = vsel %vm1421, %v1791, %v1793
      %v1795 = vrot.slane %v1765, 1
      %v1796 = vsel %vm1421, %v1793, %v1795
      %v1807 = vmax.f32 %v1720, %v1780
      %v1808 = vmax.f32 %v1725, %v1782
      %v1809 = vmax.f32 %v1730, %v1784
      %v1810 = vmax.f32 %v1735, %v1786
      %v1811 = vmax.f32 %v1740, %v1788
      %v1812 = vmax.f32 %v1745, %v1790
      %v1813 = vmax.f32 %v1750, %v1792
      %v1814 = vmax.f32 %v1755, %v1794
      %v1815 = vmax.f32 %v1760, %v1796
      %v1816 = vmax.f32 %v1765, %v1795
      %v1817 = vld [vmem:[%s6] sm:$0xff]
      %v1818 = vld [vmem:[%s6 + $0x8] sm:$0xff]
      %v1819 = vld [vmem:[%s6 + $0x10] sm:$0xff]
      %v1820 = vld [vmem:[%s6 + $0x18] sm:$0xff]
      %v1821 = vld [vmem:[%s6 + $0x20] sm:$0x7f]
      %vm1822 = vcmask 629760
      %v1824 = vsel %vm1822, %v1817, 0
      %v1827 = vsel %vm1822, %v1818, 0
      %v1830 = vsel %vm1822, %v1819, 0
      %v1833 = vsel %vm1822, %v1820, 0
      %v1836 = vsel %vm1822, %v1821, 0
      %vm1838 = vcmask 1044480
      %v1840 = vsel %vm1838, %v1816, 0
      %1842 = vmatprep.subr.mxu0 0.0
      %1843 = vmatpush1.msra.mxu0 0.0
      %1844 = vmatprep.subr.mxu0 0.0
      %1845 = vmatpush1.msra.mxu0 0.0
      %1846 = vmatprep.subr.mxu0 0.0
      %1847 = vmatpush1.msra.mxu0 0.0
      %1848 = vmatprep.subr.mxu0 0.0
      %1849 = vmatpush1.msra.mxu0 0.0
      %1850 = vmatprep.subr.mxu0 0.0
      %1851 = vmatpush1.msra.mxu0 0.0
      %1852 = vmatprep.subr.mxu0 0.0
      %1853 = vmatpush1.msra.mxu0 0.0
      %1854 = vmatprep.subr.mxu0 0.0
      %1855 = vmatpush1.msra.mxu0 %v1840
      %1856 = vmatprep.subr.mxu0 0.0
      %1857 = vmatpush1.msra.mxu0 %v1815
      %1858 = vmatprep.subr.mxu0 0.0
      %1859 = vmatpush1.msra.mxu0 %v1814
      %1860 = vmatprep.subr.mxu0 0.0
      %1861 = vmatpush1.msra.mxu0 %v1813
      %1862 = vmatprep.subr.mxu0 0.0
      %1863 = vmatpush1.msra.mxu0 %v1812
      %1864 = vmatprep.subr.mxu0 0.0
      %1865 = vmatpush1.msra.mxu0 %v1811
      %1866 = vmatprep.subr.mxu0 0.0
      %1867 = vmatpush1.msra.mxu0 %v1810
      %1868 = vmatprep.subr.mxu0 0.0
      %1869 = vmatpush1.msra.mxu0 %v1809
      %1870 = vmatprep.subr.mxu0 0.0
      %1871 = vmatpush1.msra.mxu0 %v1808
      %1872 = vmatprep.subr.mxu0 0.0
      %1873 = vmatpush1.msra.mxu0 %v1807
      %1874 = vmatprep.subr.mxu0 0.0
      %1875 = vmatpush2.msra.mxu0 0.0
      %1876 = vmatprep.subr.mxu0 0.0
      %1877 = vmatpush2.msra.mxu0 0.0
      %1878 = vmatprep.subr.mxu0 0.0
      %1879 = vmatpush2.msra.mxu0 0.0
      %1880 = vmatprep.subr.mxu0 0.0
      %1881 = vmatpush2.msra.mxu0 0.0
      %1882 = vmatprep.subr.mxu0 0.0
      %1883 = vmatpush2.msra.mxu0 0.0
      %1884 = vmatprep.subr.mxu0 0.0
      %1885 = vmatpush2.msra.mxu0 0.0
      %1886 = vmatprep.subr.mxu0 0.0
      %1887 = vmatpush2.msra.mxu0 0.0
      %1888 = vmatprep.subr.mxu0 0.0
      %1889 = vmatpush2.msra.mxu0 0.0
      %1890 = vmatprep.subr.mxu0 0.0
      %1891 = vmatpush2.msra.mxu0 0.0
      %1892 = vmatprep.subr.mxu0 0.0
      %1893 = vmatpush2.msra.mxu0 0.0
      %1894 = vmatprep.subr.mxu0 0.0
      %1895 = vmatpush2.msra.mxu0 0.0
      %1896 = vmatprep.subr.mxu0 0.0
      %1897 = vmatpush2.msra.mxu0 0.0
      %1898 = vmatprep.subr.mxu0 0.0
      %1899 = vmatpush2.msra.mxu0 0.0
      %1900 = vmatprep.subr.mxu0 0.0
      %1901 = vmatpush2.msra.mxu0 0.0
      %1902 = vmatprep.subr.mxu0 0.0
      %1903 = vmatpush2.msra.mxu0 0.0
      %1904 = vmatprep.subr.mxu0 0.0
      %1905 = vmatpush2.msra.mxu0 0.0
      %1906 = vmatprep.mubr.f32.mxu0 0.0
      %1907 = vmatmul.mubr.f32.gmra.mxu0 %v1824
      %v1908 = vpop.f32.mrf.mxu0
      %v1909 = vadd.f32 0.0, %v1908
      %v1910 = vpop.f32.mrf.mxu0
      %1911 = vmatprep.mubr.f32.mxu0 0.0
      %1912 = vmatmul.mubr.f32.gmra.mxu0 %v1827
      %v1913 = vpop.f32.mrf.mxu0
      %v1914 = vadd.f32 0.0, %v1913
      %v1915 = vpop.f32.mrf.mxu0
      %1916 = vmatprep.mubr.f32.mxu0 0.0
      %1917 = vmatmul.mubr.f32.gmra.mxu0 %v1830
      %v1918 = vpop.f32.mrf.mxu0
      %v1919 = vadd.f32 0.0, %v1918
      %v1920 = vpop.f32.mrf.mxu0
      %1921 = vmatprep.mubr.f32.mxu0 0.0
      %1922 = vmatmul.mubr.f32.gmra.mxu0 %v1833
      %v1923 = vpop.f32.mrf.mxu0
      %v1924 = vadd.f32 0.0, %v1923
      %v1925 = vpop.f32.mrf.mxu0
      %1926 = vmatprep.mubr.f32.mxu0 0.0
      %1927 = vmatmul.mubr.f32.gmra.mxu0 %v1836
      %v1928 = vpop.f32.mrf.mxu0
      %v1929 = vadd.f32 0.0, %v1928
      %v1930 = vpop.f32.mrf.mxu0
      %1931 = vdwg.mxu0
      %vm1932 = vcmask 105472
      %1933 = vst.msk [vmem:[#allocation2] sm:$0xff] %vm1932, %v1909
      %1934 = vst.msk [vmem:[#allocation2 + $0x8] sm:$0xff] %vm1932, %v1914
      %1935 = vst.msk [vmem:[#allocation2 + $0x10] sm:$0xff] %vm1932, %v1919
      %1936 = vst.msk [vmem:[#allocation2 + $0x18] sm:$0xff] %vm1932, %v1924
      %vm1937 = vcmask 104448
      %1938 = vst.msk [vmem:[#allocation2 + $0x20] sm:$0x7f] %vm1937, %v1929
      %v1939 = vld [vmem:[%s4] sm:$0xff]
      %v1940 = vld [vmem:[%s4 + $0x8] sm:$0x1]
      %v1941 = vld [vmem:[%s4 + $0x10] sm:$0xff]
      %v1942 = vld [vmem:[%s4 + $0x18] sm:$0x1]
      %v1943 = vld [vmem:[%s4 + $0x20] sm:$0xff]
      %v1944 = vld [vmem:[%s4 + $0x28] sm:$0x1]
      %v1945 = vld [vmem:[#allocation2] sm:$0xff]
      %v1946 = vld [vmem:[#allocation2 + $0x8] sm:$0x1]
      %v1947 = vld [vmem:[%s3] sm:$0xff]
      %v1948 = vld [vmem:[%s3 + $0x8] sm:$0x1]
      %v1949 = vld [vmem:[%s3 + $0x10] sm:$0xff]
      %v1950 = vld [vmem:[%s3 + $0x18] sm:$0x1]
      %v1951 = vld [vmem:[%s3 + $0x20] sm:$0xff]
      %v1952 = vld [vmem:[%s3 + $0x28] sm:$0x1]
      %v1953 = vmul.f32 %v1945, %v1947
      %v1954 = vmul.f32 %v1946, %v1948
      %v1955 = vmul.f32 %v1945, %v1949
      %v1956 = vmul.f32 %v1946, %v1950
      %v1957 = vmul.f32 %v1945, %v1951
      %v1958 = vmul.f32 %v1946, %v1952
      %v1959 = vadd.f32 %v1939, %v1953
      %v1960 = vadd.f32 %v1940, %v1954
      %v1961 = vadd.f32 %v1941, %v1955
      %v1962 = vadd.f32 %v1942, %v1956
      %v1963 = vadd.f32 %v1943, %v1957
      %v1964 = vadd.f32 %v1944, %v1958
      %s1965 = scalar_lea.vmem %s3, 48
      %v1966 = vld [vmem:[%s1965] sm:$0xff]
      %v1967 = vld [vmem:[%s1965 + $0x8] sm:$0x1]
      %v1968 = vld [vmem:[%s1965 + $0x10] sm:$0xff]
      %v1969 = vld [vmem:[%s1965 + $0x18] sm:$0x1]
      %v1970 = vld [vmem:[%s1965 + $0x20] sm:$0xff]
      %v1971 = vld [vmem:[%s1965 + $0x28] sm:$0x1]
      %1978 = vrot.lane.b32.xlu0 %v1966, 1
      %v1979 = vpop.permute.xlu0 %1978
      %1980 = vrot.lane.b32.xlu0 %v1967, 1
      %v1981 = vpop.permute.xlu0 %1980
      %1982 = vrot.lane.b32.xlu0 %v1968, 1
      %v1983 = vpop.permute.xlu0 %1982
      %1984 = vrot.lane.b32.xlu0 %v1969, 1
      %v1985 = vpop.permute.xlu0 %1984
      %1986 = vrot.lane.b32.xlu0 %v1970, 1
      %v1987 = vpop.permute.xlu0 %1986
      %1988 = vrot.lane.b32.xlu0 %v1971, 1
      %v1989 = vpop.permute.xlu0 %1988
      %v1996 = vmul.f32 %v1945, %v1979
      %v1997 = vmul.f32 %v1946, %v1981
      %v1998 = vmul.f32 %v1945, %v1983
      %v1999 = vmul.f32 %v1946, %v1985
      %v2000 = vmul.f32 %v1945, %v1987
      %v2001 = vmul.f32 %v1946, %v1989
      %2008 = vrot.lane.b32.xlu0 %v1996, 127
      %v2009 = vpop.permute.xlu0 %2008
      %2010 = vrot.lane.b32.xlu0 %v1997, 127
      %v2011 = vpop.permute.xlu0 %2010
      %2012 = vrot.lane.b32.xlu0 %v1998, 127
      %v2013 = vpop.permute.xlu0 %2012
      %2014 = vrot.lane.b32.xlu0 %v1999, 127
      %v2015 = vpop.permute.xlu0 %2014
      %2016 = vrot.lane.b32.xlu0 %v2000, 127
      %v2017 = vpop.permute.xlu0 %2016
      %2018 = vrot.lane.b32.xlu0 %v2001, 127
      %v2019 = vpop.permute.xlu0 %2018
      %v2026 = vadd.f32 %v1959, %v2009
      %v2027 = vadd.f32 %v1960, %v2011
      %v2028 = vadd.f32 %v1961, %v2013
      %v2029 = vadd.f32 %v1962, %v2015
      %v2030 = vadd.f32 %v1963, %v2017
      %v2031 = vadd.f32 %v1964, %v2019
      %s2032 = scalar_lea.vmem %s3, 96
      %v2033 = vld [vmem:[%s2032] sm:$0xff]
      %v2034 = vld [vmem:[%s2032 + $0x8] sm:$0x1]
      %v2035 = vld [vmem:[%s2032 + $0x10] sm:$0xff]
      %v2036 = vld [vmem:[%s2032 + $0x18] sm:$0x1]
      %v2037 = vld [vmem:[%s2032 + $0x20] sm:$0xff]
      %v2038 = vld [vmem:[%s2032 + $0x28] sm:$0x1]
      %2045 = vrot.lane.b32.xlu0 %v2033, 2
      %v2046 = vpop.permute.xlu0 %2045
      %2047 = vrot.lane.b32.xlu0 %v2034, 2
      %v2048 = vpop.permute.xlu0 %2047
      %2049 = vrot.lane.b32.xlu0 %v2035, 2
      %v2050 = vpop.permute.xlu0 %2049
      %2051 = vrot.lane.b32.xlu0 %v2036, 2
      %v2052 = vpop.permute.xlu0 %2051
      %2053 = vrot.lane.b32.xlu0 %v2037, 2
      %v2054 = vpop.permute.xlu0 %2053
      %2055 = vrot.lane.b32.xlu0 %v2038, 2
      %v2056 = vpop.permute.xlu0 %2055
      %v2063 = vmul.f32 %v1945, %v2046
      %v2064 = vmul.f32 %v1946, %v2048
      %v2065 = vmul.f32 %v1945, %v2050
      %v2066 = vmul.f32 %v1946, %v2052
      %v2067 = vmul.f32 %v1945, %v2054
      %v2068 = vmul.f32 %v1946, %v2056
      %2075 = vrot.lane.b32.xlu0 %v2063, 126
      %v2076 = vpop.permute.xlu0 %2075
      %2077 = vrot.lane.b32.xlu0 %v2064, 126
      %v2078 = vpop.permute.xlu0 %2077
      %2079 = vrot.lane.b32.xlu0 %v2065, 126
      %v2080 = vpop.permute.xlu0 %2079
      %2081 = vrot.lane.b32.xlu0 %v2066, 126
      %v2082 = vpop.permute.xlu0 %2081
      %2083 = vrot.lane.b32.xlu0 %v2067, 126
      %v2084 = vpop.permute.xlu0 %2083
      %2085 = vrot.lane.b32.xlu0 %v2068, 126
      %v2086 = vpop.permute.xlu0 %2085
      %v2093 = vadd.f32 %v2026, %v2076
      %v2094 = vadd.f32 %v2027, %v2078
      %v2095 = vadd.f32 %v2028, %v2080
      %v2096 = vadd.f32 %v2029, %v2082
      %v2097 = vadd.f32 %v2030, %v2084
      %v2098 = vadd.f32 %v2031, %v2086
      %s2099 = scalar_lea.vmem %s3, 144
      %v2100 = vld [vmem:[%s2099] sm:$0xff]
      %v2101 = vld [vmem:[%s2099 + $0x8] sm:$0x1]
      %v2102 = vld [vmem:[%s2099 + $0x10] sm:$0xff]
      %v2103 = vld [vmem:[%s2099 + $0x18] sm:$0x1]
      %v2104 = vld [vmem:[%s2099 + $0x20] sm:$0xff]
      %v2105 = vld [vmem:[%s2099 + $0x28] sm:$0x1]
      %2112 = vrot.lane.b32.xlu0 %v2100, 3
      %v2113 = vpop.permute.xlu0 %2112
      %2114 = vrot.lane.b32.xlu0 %v2101, 3
      %v2115 = vpop.permute.xlu0 %2114
      %2116 = vrot.lane.b32.xlu0 %v2102, 3
      %v2117 = vpop.permute.xlu0 %2116
      %2118 = vrot.lane.b32.xlu0 %v2103, 3
      %v2119 = vpop.permute.xlu0 %2118
      %2120 = vrot.lane.b32.xlu0 %v2104, 3
      %v2121 = vpop.permute.xlu0 %2120
      %2122 = vrot.lane.b32.xlu0 %v2105, 3
      %v2123 = vpop.permute.xlu0 %2122
      %v2130 = vmul.f32 %v1945, %v2113
      %v2131 = vmul.f32 %v1946, %v2115
      %v2132 = vmul.f32 %v1945, %v2117
      %v2133 = vmul.f32 %v1946, %v2119
      %v2134 = vmul.f32 %v1945, %v2121
      %v2135 = vmul.f32 %v1946, %v2123
      %2142 = vrot.lane.b32.xlu0 %v2130, 125
      %v2143 = vpop.permute.xlu0 %2142
      %2144 = vrot.lane.b32.xlu0 %v2131, 125
      %v2145 = vpop.permute.xlu0 %2144
      %2146 = vrot.lane.b32.xlu0 %v2132, 125
      %v2147 = vpop.permute.xlu0 %2146
      %2148 = vrot.lane.b32.xlu0 %v2133, 125
      %v2149 = vpop.permute.xlu0 %2148
      %2150 = vrot.lane.b32.xlu0 %v2134, 125
      %v2151 = vpop.permute.xlu0 %2150
      %2152 = vrot.lane.b32.xlu0 %v2135, 125
      %v2153 = vpop.permute.xlu0 %2152
      %v2160 = vadd.f32 %v2093, %v2143
      %v2161 = vadd.f32 %v2094, %v2145
      %v2162 = vadd.f32 %v2095, %v2147
      %v2163 = vadd.f32 %v2096, %v2149
      %v2164 = vadd.f32 %v2097, %v2151
      %v2165 = vadd.f32 %v2098, %v2153
      %s2166 = scalar_lea.vmem %s3, 192
      %v2167 = vld [vmem:[%s2166] sm:$0xff]
      %v2168 = vld [vmem:[%s2166 + $0x8] sm:$0x1]
      %v2169 = vld [vmem:[%s2166 + $0x10] sm:$0xff]
      %v2170 = vld [vmem:[%s2166 + $0x18] sm:$0x1]
      %v2171 = vld [vmem:[%s2166 + $0x20] sm:$0xff]
      %v2172 = vld [vmem:[%s2166 + $0x28] sm:$0x1]
      %2179 = vrot.lane.b32.xlu0 %v2167, 4
      %v2180 = vpop.permute.xlu0 %2179
      %2181 = vrot.lane.b32.xlu0 %v2168, 4
      %v2182 = vpop.permute.xlu0 %2181
      %2183 = vrot.lane.b32.xlu0 %v2169, 4
      %v2184 = vpop.permute.xlu0 %2183
      %2185 = vrot.lane.b32.xlu0 %v2170, 4
      %v2186 = vpop.permute.xlu0 %2185
      %2187 = vrot.lane.b32.xlu0 %v2171, 4
      %v2188 = vpop.permute.xlu0 %2187
      %2189 = vrot.lane.b32.xlu0 %v2172, 4
      %v2190 = vpop.permute.xlu0 %2189
      %v2197 = vmul.f32 %v1945, %v2180
      %v2198 = vmul.f32 %v1946, %v2182
      %v2199 = vmul.f32 %v1945, %v2184
      %v2200 = vmul.f32 %v1946, %v2186
      %v2201 = vmul.f32 %v1945, %v2188
      %v2202 = vmul.f32 %v1946, %v2190
      %2209 = vrot.lane.b32.xlu0 %v2197, 124
      %v2210 = vpop.permute.xlu0 %2209
      %2211 = vrot.lane.b32.xlu0 %v2198, 124
      %v2212 = vpop.permute.xlu0 %2211
      %2213 = vrot.lane.b32.xlu0 %v2199, 124
      %v2214 = vpop.permute.xlu0 %2213
      %2215 = vrot.lane.b32.xlu0 %v2200, 124
      %v2216 = vpop.permute.xlu0 %2215
      %2217 = vrot.lane.b32.xlu0 %v2201, 124
      %v2218 = vpop.permute.xlu0 %2217
      %2219 = vrot.lane.b32.xlu0 %v2202, 124
      %v2220 = vpop.permute.xlu0 %2219
      %v2227 = vadd.f32 %v2160, %v2210
      %v2228 = vadd.f32 %v2161, %v2212
      %v2229 = vadd.f32 %v2162, %v2214
      %v2230 = vadd.f32 %v2163, %v2216
      %v2231 = vadd.f32 %v2164, %v2218
      %v2232 = vadd.f32 %v2165, %v2220
      %v2233 = vld [vmem:[#allocation2 + $0x1] sm:$0xff]
      %v2234 = vld [vmem:[#allocation2 + $0x9] sm:$0x1]
      %s2235 = scalar_lea.vmem %s3, 240
      %v2236 = vld [vmem:[%s2235] sm:$0xff]
      %v2237 = vld [vmem:[%s2235 + $0x8] sm:$0x1]
      %v2238 = vld [vmem:[%s2235 + $0x10] sm:$0xff]
      %v2239 = vld [vmem:[%s2235 + $0x18] sm:$0x1]
      %v2240 = vld [vmem:[%s2235 + $0x20] sm:$0xff]
      %v2241 = vld [vmem:[%s2235 + $0x28] sm:$0x1]
      %v2242 = vmul.f32 %v2233, %v2236
      %v2243 = vmul.f32 %v2234, %v2237
      %v2244 = vmul.f32 %v2233, %v2238
      %v2245 = vmul.f32 %v2234, %v2239
      %v2246 = vmul.f32 %v2233, %v2240
      %v2247 = vmul.f32 %v2234, %v2241
      %v2248 = vadd.f32 %v2227, %v2242
      %v2249 = vadd.f32 %v2228, %v2243
      %v2250 = vadd.f32 %v2229, %v2244
      %v2251 = vadd.f32 %v2230, %v2245
      %v2252 = vadd.f32 %v2231, %v2246
      %v2253 = vadd.f32 %v2232, %v2247
      %s2254 = scalar_lea.vmem %s3, 288
      %v2255 = vld [vmem:[%s2254] sm:$0xff]
      %v2256 = vld [vmem:[%s2254 + $0x8] sm:$0x1]
      %v2257 = vld [vmem:[%s2254 + $0x10] sm:$0xff]
      %v2258 = vld [vmem:[%s2254 + $0x18] sm:$0x1]
      %v2259 = vld [vmem:[%s2254 + $0x20] sm:$0xff]
      %v2260 = vld [vmem:[%s2254 + $0x28] sm:$0x1]
      %2267 = vrot.lane.b32.xlu0 %v2255, 1
      %v2268 = vpop.permute.xlu0 %2267
      %2269 = vrot.lane.b32.xlu0 %v2256, 1
      %v2270 = vpop.permute.xlu0 %2269
      %2271 = vrot.lane.b32.xlu0 %v2257, 1
      %v2272 = vpop.permute.xlu0 %2271
      %2273 = vrot.lane.b32.xlu0 %v2258, 1
      %v2274 = vpop.permute.xlu0 %2273
      %2275 = vrot.lane.b32.xlu0 %v2259, 1
      %v2276 = vpop.permute.xlu0 %2275
      %2277 = vrot.lane.b32.xlu0 %v2260, 1
      %v2278 = vpop.permute.xlu0 %2277
      %v2285 = vmul.f32 %v2233, %v2268
      %v2286 = vmul.f32 %v2234, %v2270
      %v2287 = vmul.f32 %v2233, %v2272
      %v2288 = vmul.f32 %v2234, %v2274
      %v2289 = vmul.f32 %v2233, %v2276
      %v2290 = vmul.f32 %v2234, %v2278
      %2297 = vrot.lane.b32.xlu0 %v2285, 127
      %v2298 = vpop.permute.xlu0 %2297
      %2299 = vrot.lane.b32.xlu0 %v2286, 127
      %v2300 = vpop.permute.xlu0 %2299
      %2301 = vrot.lane.b32.xlu0 %v2287, 127
      %v2302 = vpop.permute.xlu0 %2301
      %2303 = vrot.lane.b32.xlu0 %v2288, 127
      %v2304 = vpop.permute.xlu0 %2303
      %2305 = vrot.lane.b32.xlu0 %v2289, 127
      %v2306 = vpop.permute.xlu0 %2305
      %2307 = vrot.lane.b32.xlu0 %v2290, 127
      %v2308 = vpop.permute.xlu0 %2307
      %v2315 = vadd.f32 %v2248, %v2298
      %v2316 = vadd.f32 %v2249, %v2300
      %v2317 = vadd.f32 %v2250, %v2302
      %v2318 = vadd.f32 %v2251, %v2304
      %v2319 = vadd.f32 %v2252, %v2306
      %v2320 = vadd.f32 %v2253, %v2308
      %s2321 = scalar_lea.vmem %s3, 336
      %v2322 = vld [vmem:[%s2321] sm:$0xff]
      %v2323 = vld [vmem:[%s2321 + $0x8] sm:$0x1]
      %v2324 = vld [vmem:[%s2321 + $0x10] sm:$0xff]
      %v2325 = vld [vmem:[%s2321 + $0x18] sm:$0x1]
      %v2326 = vld [vmem:[%s2321 + $0x20] sm:$0xff]
      %v2327 = vld [vmem:[%s2321 + $0x28] sm:$0x1]
      %2334 = vrot.lane.b32.xlu0 %v2322, 2
      %v2335 = vpop.permute.xlu0 %2334
      %2336 = vrot.lane.b32.xlu0 %v2323, 2
      %v2337 = vpop.permute.xlu0 %2336
      %2338 = vrot.lane.b32.xlu0 %v2324, 2
      %v2339 = vpop.permute.xlu0 %2338
      %2340 = vrot.lane.b32.xlu0 %v2325, 2
      %v2341 = vpop.permute.xlu0 %2340
      %2342 = vrot.lane.b32.xlu0 %v2326, 2
      %v2343 = vpop.permute.xlu0 %2342
      %2344 = vrot.lane.b32.xlu0 %v2327, 2
      %v2345 = vpop.permute.xlu0 %2344
      %v2352 = vmul.f32 %v2233, %v2335
      %v2353 = vmul.f32 %v2234, %v2337
      %v2354 = vmul.f32 %v2233, %v2339
      %v2355 = vmul.f32 %v2234, %v2341
      %v2356 = vmul.f32 %v2233, %v2343
      %v2357 = vmul.f32 %v2234, %v2345
      %2364 = vrot.lane.b32.xlu0 %v2352, 126
      %v2365 = vpop.permute.xlu0 %2364
      %2366 = vrot.lane.b32.xlu0 %v2353, 126
      %v2367 = vpop.permute.xlu0 %2366
      %2368 = vrot.lane.b32.xlu0 %v2354, 126
      %v2369 = vpop.permute.xlu0 %2368
      %2370 = vrot.lane.b32.xlu0 %v2355, 126
      %v2371 = vpop.permute.xlu0 %2370
      %2372 = vrot.lane.b32.xlu0 %v2356, 126
      %v2373 = vpop.permute.xlu0 %2372
      %2374 = vrot.lane.b32.xlu0 %v2357, 126
      %v2375 = vpop.permute.xlu0 %2374
      %v2382 = vadd.f32 %v2315, %v2365
      %v2383 = vadd.f32 %v2316, %v2367
      %v2384 = vadd.f32 %v2317, %v2369
      %v2385 = vadd.f32 %v2318, %v2371
      %v2386 = vadd.f32 %v2319, %v2373
      %v2387 = vadd.f32 %v2320, %v2375
      %s2388 = scalar_lea.vmem %s3, 384
      %v2389 = vld [vmem:[%s2388] sm:$0xff]
      %v2390 = vld [vmem:[%s2388 + $0x8] sm:$0x1]
      %v2391 = vld [vmem:[%s2388 + $0x10] sm:$0xff]
      %v2392 = vld [vmem:[%s2388 + $0x18] sm:$0x1]
      %v2393 = vld [vmem:[%s2388 + $0x20] sm:$0xff]
      %v2394 = vld [vmem:[%s2388 + $0x28] sm:$0x1]
      %2401 = vrot.lane.b32.xlu0 %v2389, 3
      %v2402 = vpop.permute.xlu0 %2401
      %2403 = vrot.lane.b32.xlu0 %v2390, 3
      %v2404 = vpop.permute.xlu0 %2403
      %2405 = vrot.lane.b32.xlu0 %v2391, 3
      %v2406 = vpop.permute.xlu0 %2405
      %2407 = vrot.lane.b32.xlu0 %v2392, 3
      %v2408 = vpop.permute.xlu0 %2407
      %2409 = vrot.lane.b32.xlu0 %v2393, 3
      %v2410 = vpop.permute.xlu0 %2409
      %2411 = vrot.lane.b32.xlu0 %v2394, 3
      %v2412 = vpop.permute.xlu0 %2411
      %v2419 = vmul.f32 %v2233, %v2402
      %v2420 = vmul.f32 %v2234, %v2404
      %v2421 = vmul.f32 %v2233, %v2406
      %v2422 = vmul.f32 %v2234, %v2408
      %v2423 = vmul.f32 %v2233, %v2410
      %v2424 = vmul.f32 %v2234, %v2412
      %2431 = vrot.lane.b32.xlu0 %v2419, 125
      %v2432 = vpop.permute.xlu0 %2431
      %2433 = vrot.lane.b32.xlu0 %v2420, 125
      %v2434 = vpop.permute.xlu0 %2433
      %2435 = vrot.lane.b32.xlu0 %v2421, 125
      %v2436 = vpop.permute.xlu0 %2435
      %2437 = vrot.lane.b32.xlu0 %v2422, 125
      %v2438 = vpop.permute.xlu0 %2437
      %2439 = vrot.lane.b32.xlu0 %v2423, 125
      %v2440 = vpop.permute.xlu0 %2439
      %2441 = vrot.lane.b32.xlu0 %v2424, 125
      %v2442 = vpop.permute.xlu0 %2441
      %v2449 = vadd.f32 %v2382, %v2432
      %v2450 = vadd.f32 %v2383, %v2434
      %v2451 = vadd.f32 %v2384, %v2436
      %v2452 = vadd.f32 %v2385, %v2438
      %v2453 = vadd.f32 %v2386, %v2440
      %v2454 = vadd.f32 %v2387, %v2442
      %s2455 = scalar_lea.vmem %s3, 432
      %v2456 = vld [vmem:[%s2455] sm:$0xff]
      %v2457 = vld [vmem:[%s2455 + $0x8] sm:$0x1]
      %v2458 = vld [vmem:[%s2455 + $0x10] sm:$0xff]
      %v2459 = vld [vmem:[%s2455 + $0x18] sm:$0x1]
      %v2460 = vld [vmem:[%s2455 + $0x20] sm:$0xff]
      %v2461 = vld [vmem:[%s2455 + $0x28] sm:$0x1]
      %2468 = vrot.lane.b32.xlu0 %v2456, 4
      %v2469 = vpop.permute.xlu0 %2468
      %2470 = vrot.lane.b32.xlu0 %v2457, 4
      %v2471 = vpop.permute.xlu0 %2470
      %2472 = vrot.lane.b32.xlu0 %v2458, 4
      %v2473 = vpop.permute.xlu0 %2472
      %2474 = vrot.lane.b32.xlu0 %v2459, 4
      %v2475 = vpop.permute.xlu0 %2474
      %2476 = vrot.lane.b32.xlu0 %v2460, 4
      %v2477 = vpop.permute.xlu0 %2476
      %2478 = vrot.lane.b32.xlu0 %v2461, 4
      %v2479 = vpop.permute.xlu0 %2478
      %v2486 = vmul.f32 %v2233, %v2469
      %v2487 = vmul.f32 %v2234, %v2471
      %v2488 = vmul.f32 %v2233, %v2473
      %v2489 = vmul.f32 %v2234, %v2475
      %v2490 = vmul.f32 %v2233, %v2477
      %v2491 = vmul.f32 %v2234, %v2479
      %2498 = vrot.lane.b32.xlu0 %v2486, 124
      %v2499 = vpop.permute.xlu0 %2498
      %2500 = vrot.lane.b32.xlu0 %v2487, 124
      %v2501 = vpop.permute.xlu0 %2500
      %2502 = vrot.lane.b32.xlu0 %v2488, 124
      %v2503 = vpop.permute.xlu0 %2502
      %2504 = vrot.lane.b32.xlu0 %v2489, 124
      %v2505 = vpop.permute.xlu0 %2504
      %2506 = vrot.lane.b32.xlu0 %v2490, 124
      %v2507 = vpop.permute.xlu0 %2506
      %2508 = vrot.lane.b32.xlu0 %v2491, 124
      %v2509 = vpop.permute.xlu0 %2508
      %v2516 = vadd.f32 %v2449, %v2499
      %v2517 = vadd.f32 %v2450, %v2501
      %v2518 = vadd.f32 %v2451, %v2503
      %v2519 = vadd.f32 %v2452, %v2505
      %v2520 = vadd.f32 %v2453, %v2507
      %v2521 = vadd.f32 %v2454, %v2509
      %v2522 = vld [vmem:[#allocation2 + $0x2] sm:$0xff]
      %v2523 = vld [vmem:[#allocation2 + $0xa] sm:$0x1]
      %s2524 = scalar_lea.vmem %s3, 480
      %v2525 = vld [vmem:[%s2524] sm:$0xff]
      %v2526 = vld [vmem:[%s2524 + $0x8] sm:$0x1]
      %v2527 = vld [vmem:[%s2524 + $0x10] sm:$0xff]
      %v2528 = vld [vmem:[%s2524 + $0x18] sm:$0x1]
      %v2529 = vld [vmem:[%s2524 + $0x20] sm:$0xff]
      %v2530 = vld [vmem:[%s2524 + $0x28] sm:$0x1]
      %v2531 = vmul.f32 %v2522, %v2525
      %v2532 = vmul.f32 %v2523, %v2526
      %v2533 = vmul.f32 %v2522, %v2527
      %v2534 = vmul.f32 %v2523, %v2528
      %v2535 = vmul.f32 %v2522, %v2529
      %v2536 = vmul.f32 %v2523, %v2530
      %v2537 = vadd.f32 %v2516, %v2531
      %v2538 = vadd.f32 %v2517, %v2532
      %v2539 = vadd.f32 %v2518, %v2533
      %v2540 = vadd.f32 %v2519, %v2534
      %v2541 = vadd.f32 %v2520, %v2535
      %v2542 = vadd.f32 %v2521, %v2536
      %s2543 = scalar_lea.vmem %s3, 528
      %v2544 = vld [vmem:[%s2543] sm:$0xff]
      %v2545 = vld [vmem:[%s2543 + $0x8] sm:$0x1]
      %v2546 = vld [vmem:[%s2543 + $0x10] sm:$0xff]
      %v2547 = vld [vmem:[%s2543 + $0x18] sm:$0x1]
      %v2548 = vld [vmem:[%s2543 + $0x20] sm:$0xff]
      %v2549 = vld [vmem:[%s2543 + $0x28] sm:$0x1]
      %2556 = vrot.lane.b32.xlu0 %v2544, 1
      %v2557 = vpop.permute.xlu0 %2556
      %2558 = vrot.lane.b32.xlu0 %v2545, 1
      %v2559 = vpop.permute.xlu0 %2558
      %2560 = vrot.lane.b32.xlu0 %v2546, 1
      %v2561 = vpop.permute.xlu0 %2560
      %2562 = vrot.lane.b32.xlu0 %v2547, 1
      %v2563 = vpop.permute.xlu0 %2562
      %2564 = vrot.lane.b32.xlu0 %v2548, 1
      %v2565 = vpop.permute.xlu0 %2564
      %2566 = vrot.lane.b32.xlu0 %v2549, 1
      %v2567 = vpop.permute.xlu0 %2566
      %v2574 = vmul.f32 %v2522, %v2557
      %v2575 = vmul.f32 %v2523, %v2559
      %v2576 = vmul.f32 %v2522, %v2561
      %v2577 = vmul.f32 %v2523, %v2563
      %v2578 = vmul.f32 %v2522, %v2565
      %v2579 = vmul.f32 %v2523, %v2567
      %2586 = vrot.lane.b32.xlu0 %v2574, 127
      %v2587 = vpop.permute.xlu0 %2586
      %2588 = vrot.lane.b32.xlu0 %v2575, 127
      %v2589 = vpop.permute.xlu0 %2588
      %2590 = vrot.lane.b32.xlu0 %v2576, 127
      %v2591 = vpop.permute.xlu0 %2590
      %2592 = vrot.lane.b32.xlu0 %v2577, 127
      %v2593 = vpop.permute.xlu0 %2592
      %2594 = vrot.lane.b32.xlu0 %v2578, 127
      %v2595 = vpop.permute.xlu0 %2594
      %2596 = vrot.lane.b32.xlu0 %v2579, 127
      %v2597 = vpop.permute.xlu0 %2596
      %v2604 = vadd.f32 %v2537, %v2587
      %v2605 = vadd.f32 %v2538, %v2589
      %v2606 = vadd.f32 %v2539, %v2591
      %v2607 = vadd.f32 %v2540, %v2593
      %v2608 = vadd.f32 %v2541, %v2595
      %v2609 = vadd.f32 %v2542, %v2597
      %s2610 = scalar_lea.vmem %s3, 576
      %v2611 = vld [vmem:[%s2610] sm:$0xff]
      %v2612 = vld [vmem:[%s2610 + $0x8] sm:$0x1]
      %v2613 = vld [vmem:[%s2610 + $0x10] sm:$0xff]
      %v2614 = vld [vmem:[%s2610 + $0x18] sm:$0x1]
      %v2615 = vld [vmem:[%s2610 + $0x20] sm:$0xff]
      %v2616 = vld [vmem:[%s2610 + $0x28] sm:$0x1]
      %2623 = vrot.lane.b32.xlu0 %v2611, 2
      %v2624 = vpop.permute.xlu0 %2623
      %2625 = vrot.lane.b32.xlu0 %v2612, 2
      %v2626 = vpop.permute.xlu0 %2625
      %2627 = vrot.lane.b32.xlu0 %v2613, 2
      %v2628 = vpop.permute.xlu0 %2627
      %2629 = vrot.lane.b32.xlu0 %v2614, 2
      %v2630 = vpop.permute.xlu0 %2629
      %2631 = vrot.lane.b32.xlu0 %v2615, 2
      %v2632 = vpop.permute.xlu0 %2631
      %2633 = vrot.lane.b32.xlu0 %v2616, 2
      %v2634 = vpop.permute.xlu0 %2633
      %v2641 = vmul.f32 %v2522, %v2624
      %v2642 = vmul.f32 %v2523, %v2626
      %v2643 = vmul.f32 %v2522, %v2628
      %v2644 = vmul.f32 %v2523, %v2630
      %v2645 = vmul.f32 %v2522, %v2632
      %v2646 = vmul.f32 %v2523, %v2634
      %2653 = vrot.lane.b32.xlu0 %v2641, 126
      %v2654 = vpop.permute.xlu0 %2653
      %2655 = vrot.lane.b32.xlu0 %v2642, 126
      %v2656 = vpop.permute.xlu0 %2655
      %2657 = vrot.lane.b32.xlu0 %v2643, 126
      %v2658 = vpop.permute.xlu0 %2657
      %2659 = vrot.lane.b32.xlu0 %v2644, 126
      %v2660 = vpop.permute.xlu0 %2659
      %2661 = vrot.lane.b32.xlu0 %v2645, 126
      %v2662 = vpop.permute.xlu0 %2661
      %2663 = vrot.lane.b32.xlu0 %v2646, 126
      %v2664 = vpop.permute.xlu0 %2663
      %v2671 = vadd.f32 %v2604, %v2654
      %v2672 = vadd.f32 %v2605, %v2656
      %v2673 = vadd.f32 %v2606, %v2658
      %v2674 = vadd.f32 %v2607, %v2660
      %v2675 = vadd.f32 %v2608, %v2662
      %v2676 = vadd.f32 %v2609, %v2664
      %s2677 = scalar_lea.vmem %s3, 624
      %v2678 = vld [vmem:[%s2677] sm:$0xff]
      %v2679 = vld [vmem:[%s2677 + $0x8] sm:$0x1]
      %v2680 = vld [vmem:[%s2677 + $0x10] sm:$0xff]
      %v2681 = vld [vmem:[%s2677 + $0x18] sm:$0x1]
      %v2682 = vld [vmem:[%s2677 + $0x20] sm:$0xff]
      %v2683 = vld [vmem:[%s2677 + $0x28] sm:$0x1]
      %2690 = vrot.lane.b32.xlu0 %v2678, 3
      %v2691 = vpop.permute.xlu0 %2690
      %2692 = vrot.lane.b32.xlu0 %v2679, 3
      %v2693 = vpop.permute.xlu0 %2692
      %2694 = vrot.lane.b32.xlu0 %v2680, 3
      %v2695 = vpop.permute.xlu0 %2694
      %2696 = vrot.lane.b32.xlu0 %v2681, 3
      %v2697 = vpop.permute.xlu0 %2696
      %2698 = vrot.lane.b32.xlu0 %v2682, 3
      %v2699 = vpop.permute.xlu0 %2698
      %2700 = vrot.lane.b32.xlu0 %v2683, 3
      %v2701 = vpop.permute.xlu0 %2700
      %v2708 = vmul.f32 %v2522, %v2691
      %v2709 = vmul.f32 %v2523, %v2693
      %v2710 = vmul.f32 %v2522, %v2695
      %v2711 = vmul.f32 %v2523, %v2697
      %v2712 = vmul.f32 %v2522, %v2699
      %v2713 = vmul.f32 %v2523, %v2701
      %2720 = vrot.lane.b32.xlu0 %v2708, 125
      %v2721 = vpop.permute.xlu0 %2720
      %2722 = vrot.lane.b32.xlu0 %v2709, 125
      %v2723 = vpop.permute.xlu0 %2722
      %2724 = vrot.lane.b32.xlu0 %v2710, 125
      %v2725 = vpop.permute.xlu0 %2724
      %2726 = vrot.lane.b32.xlu0 %v2711, 125
      %v2727 = vpop.permute.xlu0 %2726
      %2728 = vrot.lane.b32.xlu0 %v2712, 125
      %v2729 = vpop.permute.xlu0 %2728
      %2730 = vrot.lane.b32.xlu0 %v2713, 125
      %v2731 = vpop.permute.xlu0 %2730
      %v2738 = vadd.f32 %v2671, %v2721
      %v2739 = vadd.f32 %v2672, %v2723
      %v2740 = vadd.f32 %v2673, %v2725
      %v2741 = vadd.f32 %v2674, %v2727
      %v2742 = vadd.f32 %v2675, %v2729
      %v2743 = vadd.f32 %v2676, %v2731
      %s2744 = scalar_lea.vmem %s3, 672
      %v2745 = vld [vmem:[%s2744] sm:$0xff]
      %v2746 = vld [vmem:[%s2744 + $0x8] sm:$0x1]
      %v2747 = vld [vmem:[%s2744 + $0x10] sm:$0xff]
      %v2748 = vld [vmem:[%s2744 + $0x18] sm:$0x1]
      %v2749 = vld [vmem:[%s2744 + $0x20] sm:$0xff]
      %v2750 = vld [vmem:[%s2744 + $0x28] sm:$0x1]
      %2757 = vrot.lane.b32.xlu0 %v2745, 4
      %v2758 = vpop.permute.xlu0 %2757
      %2759 = vrot.lane.b32.xlu0 %v2746, 4
      %v2760 = vpop.permute.xlu0 %2759
      %2761 = vrot.lane.b32.xlu0 %v2747, 4
      %v2762 = vpop.permute.xlu0 %2761
      %2763 = vrot.lane.b32.xlu0 %v2748, 4
      %v2764 = vpop.permute.xlu0 %2763
      %2765 = vrot.lane.b32.xlu0 %v2749, 4
      %v2766 = vpop.permute.xlu0 %2765
      %2767 = vrot.lane.b32.xlu0 %v2750, 4
      %v2768 = vpop.permute.xlu0 %2767
      %v2775 = vmul.f32 %v2522, %v2758
      %v2776 = vmul.f32 %v2523, %v2760
      %v2777 = vmul.f32 %v2522, %v2762
      %v2778 = vmul.f32 %v2523, %v2764
      %v2779 = vmul.f32 %v2522, %v2766
      %v2780 = vmul.f32 %v2523, %v2768
      %2787 = vrot.lane.b32.xlu0 %v2775, 124
      %v2788 = vpop.permute.xlu0 %2787
      %2789 = vrot.lane.b32.xlu0 %v2776, 124
      %v2790 = vpop.permute.xlu0 %2789
      %2791 = vrot.lane.b32.xlu0 %v2777, 124
      %v2792 = vpop.permute.xlu0 %2791
      %2793 = vrot.lane.b32.xlu0 %v2778, 124
      %v2794 = vpop.permute.xlu0 %2793
      %2795 = vrot.lane.b32.xlu0 %v2779, 124
      %v2796 = vpop.permute.xlu0 %2795
      %2797 = vrot.lane.b32.xlu0 %v2780, 124
      %v2798 = vpop.permute.xlu0 %2797
      %v2805 = vadd.f32 %v2738, %v2788
      %v2806 = vadd.f32 %v2739, %v2790
      %v2807 = vadd.f32 %v2740, %v2792
      %v2808 = vadd.f32 %v2741, %v2794
      %v2809 = vadd.f32 %v2742, %v2796
      %v2810 = vadd.f32 %v2743, %v2798
      %v2811 = vld [vmem:[#allocation2 + $0x3] sm:$0xff]
      %v2812 = vld [vmem:[#allocation2 + $0xb] sm:$0x1]
      %s2813 = scalar_lea.vmem %s3, 720
      %v2814 = vld [vmem:[%s2813] sm:$0xff]
      %v2815 = vld [vmem:[%s2813 + $0x8] sm:$0x1]
      %v2816 = vld [vmem:[%s2813 + $0x10] sm:$0xff]
      %v2817 = vld [vmem:[%s2813 + $0x18] sm:$0x1]
      %v2818 = vld [vmem:[%s2813 + $0x20] sm:$0xff]
      %v2819 = vld [vmem:[%s2813 + $0x28] sm:$0x1]
      %v2820 = vmul.f32 %v2811, %v2814
      %v2821 = vmul.f32 %v2812, %v2815
      %v2822 = vmul.f32 %v2811, %v2816
      %v2823 = vmul.f32 %v2812, %v2817
      %v2824 = vmul.f32 %v2811, %v2818
      %v2825 = vmul.f32 %v2812, %v2819
      %v2826 = vadd.f32 %v2805, %v2820
      %v2827 = vadd.f32 %v2806, %v2821
      %v2828 = vadd.f32 %v2807, %v2822
      %v2829 = vadd.f32 %v2808, %v2823
      %v2830 = vadd.f32 %v2809, %v2824
      %v2831 = vadd.f32 %v2810, %v2825
      %s2832 = scalar_lea.vmem %s3, 768
      %v2833 = vld [vmem:[%s2832] sm:$0xff]
      %v2834 = vld [vmem:[%s2832 + $0x8] sm:$0x1]
      %v2835 = vld [vmem:[%s2832 + $0x10] sm:$0xff]
      %v2836 = vld [vmem:[%s2832 + $0x18] sm:$0x1]
      %v2837 = vld [vmem:[%s2832 + $0x20] sm:$0xff]
      %v2838 = vld [vmem:[%s2832 + $0x28] sm:$0x1]
      %2845 = vrot.lane.b32.xlu0 %v2833, 1
      %v2846 = vpop.permute.xlu0 %2845
      %2847 = vrot.lane.b32.xlu0 %v2834, 1
      %v2848 = vpop.permute.xlu0 %2847
      %2849 = vrot.lane.b32.xlu0 %v2835, 1
      %v2850 = vpop.permute.xlu0 %2849
      %2851 = vrot.lane.b32.xlu0 %v2836, 1
      %v2852 = vpop.permute.xlu0 %2851
      %2853 = vrot.lane.b32.xlu0 %v2837, 1
      %v2854 = vpop.permute.xlu0 %2853
      %2855 = vrot.lane.b32.xlu0 %v2838, 1
      %v2856 = vpop.permute.xlu0 %2855
      %v2863 = vmul.f32 %v2811, %v2846
      %v2864 = vmul.f32 %v2812, %v2848
      %v2865 = vmul.f32 %v2811, %v2850
      %v2866 = vmul.f32 %v2812, %v2852
      %v2867 = vmul.f32 %v2811, %v2854
      %v2868 = vmul.f32 %v2812, %v2856
      %2875 = vrot.lane.b32.xlu0 %v2863, 127
      %v2876 = vpop.permute.xlu0 %2875
      %2877 = vrot.lane.b32.xlu0 %v2864, 127
      %v2878 = vpop.permute.xlu0 %2877
      %2879 = vrot.lane.b32.xlu0 %v2865, 127
      %v2880 = vpop.permute.xlu0 %2879
      %2881 = vrot.lane.b32.xlu0 %v2866, 127
      %v2882 = vpop.permute.xlu0 %2881
      %2883 = vrot.lane.b32.xlu0 %v2867, 127
      %v2884 = vpop.permute.xlu0 %2883
      %2885 = vrot.lane.b32.xlu0 %v2868, 127
      %v2886 = vpop.permute.xlu0 %2885
      %v2893 = vadd.f32 %v2826, %v2876
      %v2894 = vadd.f32 %v2827, %v2878
      %v2895 = vadd.f32 %v2828, %v2880
      %v2896 = vadd.f32 %v2829, %v2882
      %v2897 = vadd.f32 %v2830, %v2884
      %v2898 = vadd.f32 %v2831, %v2886
      %s2899 = scalar_lea.vmem %s3, 816
      %v2900 = vld [vmem:[%s2899] sm:$0xff]
      %v2901 = vld [vmem:[%s2899 + $0x8] sm:$0x1]
      %v2902 = vld [vmem:[%s2899 + $0x10] sm:$0xff]
      %v2903 = vld [vmem:[%s2899 + $0x18] sm:$0x1]
      %v2904 = vld [vmem:[%s2899 + $0x20] sm:$0xff]
      %v2905 = vld [vmem:[%s2899 + $0x28] sm:$0x1]
      %2912 = vrot.lane.b32.xlu0 %v2900, 2
      %v2913 = vpop.permute.xlu0 %2912
      %2914 = vrot.lane.b32.xlu0 %v2901, 2
      %v2915 = vpop.permute.xlu0 %2914
      %2916 = vrot.lane.b32.xlu0 %v2902, 2
      %v2917 = vpop.permute.xlu0 %2916
      %2918 = vrot.lane.b32.xlu0 %v2903, 2
      %v2919 = vpop.permute.xlu0 %2918
      %2920 = vrot.lane.b32.xlu0 %v2904, 2
      %v2921 = vpop.permute.xlu0 %2920
      %2922 = vrot.lane.b32.xlu0 %v2905, 2
      %v2923 = vpop.permute.xlu0 %2922
      %v2930 = vmul.f32 %v2811, %v2913
      %v2931 = vmul.f32 %v2812, %v2915
      %v2932 = vmul.f32 %v2811, %v2917
      %v2933 = vmul.f32 %v2812, %v2919
      %v2934 = vmul.f32 %v2811, %v2921
      %v2935 = vmul.f32 %v2812, %v2923
      %2942 = vrot.lane.b32.xlu0 %v2930, 126
      %v2943 = vpop.permute.xlu0 %2942
      %2944 = vrot.lane.b32.xlu0 %v2931, 126
      %v2945 = vpop.permute.xlu0 %2944
      %2946 = vrot.lane.b32.xlu0 %v2932, 126
      %v2947 = vpop.permute.xlu0 %2946
      %2948 = vrot.lane.b32.xlu0 %v2933, 126
      %v2949 = vpop.permute.xlu0 %2948
      %2950 = vrot.lane.b32.xlu0 %v2934, 126
      %v2951 = vpop.permute.xlu0 %2950
      %2952 = vrot.lane.b32.xlu0 %v2935, 126
      %v2953 = vpop.permute.xlu0 %2952
      %v2960 = vadd.f32 %v2893, %v2943
      %v2961 = vadd.f32 %v2894, %v2945
      %v2962 = vadd.f32 %v2895, %v2947
      %v2963 = vadd.f32 %v2896, %v2949
      %v2964 = vadd.f32 %v2897, %v2951
      %v2965 = vadd.f32 %v2898, %v2953
      %s2966 = scalar_lea.vmem %s3, 864
      %v2967 = vld [vmem:[%s2966] sm:$0xff]
      %v2968 = vld [vmem:[%s2966 + $0x8] sm:$0x1]
      %v2969 = vld [vmem:[%s2966 + $0x10] sm:$0xff]
      %v2970 = vld [vmem:[%s2966 + $0x18] sm:$0x1]
      %v2971 = vld [vmem:[%s2966 + $0x20] sm:$0xff]
      %v2972 = vld [vmem:[%s2966 + $0x28] sm:$0x1]
      %2979 = vrot.lane.b32.xlu0 %v2967, 3
      %v2980 = vpop.permute.xlu0 %2979
      %2981 = vrot.lane.b32.xlu0 %v2968, 3
      %v2982 = vpop.permute.xlu0 %2981
      %2983 = vrot.lane.b32.xlu0 %v2969, 3
      %v2984 = vpop.permute.xlu0 %2983
      %2985 = vrot.lane.b32.xlu0 %v2970, 3
      %v2986 = vpop.permute.xlu0 %2985
      %2987 = vrot.lane.b32.xlu0 %v2971, 3
      %v2988 = vpop.permute.xlu0 %2987
      %2989 = vrot.lane.b32.xlu0 %v2972, 3
      %v2990 = vpop.permute.xlu0 %2989
      %v2997 = vmul.f32 %v2811, %v2980
      %v2998 = vmul.f32 %v2812, %v2982
      %v2999 = vmul.f32 %v2811, %v2984
      %v3000 = vmul.f32 %v2812, %v2986
      %v3001 = vmul.f32 %v2811, %v2988
      %v3002 = vmul.f32 %v2812, %v2990
      %3009 = vrot.lane.b32.xlu0 %v2997, 125
      %v3010 = vpop.permute.xlu0 %3009
      %3011 = vrot.lane.b32.xlu0 %v2998, 125
      %v3012 = vpop.permute.xlu0 %3011
      %3013 = vrot.lane.b32.xlu0 %v2999, 125
      %v3014 = vpop.permute.xlu0 %3013
      %3015 = vrot.lane.b32.xlu0 %v3000, 125
      %v3016 = vpop.permute.xlu0 %3015
      %3017 = vrot.lane.b32.xlu0 %v3001, 125
      %v3018 = vpop.permute.xlu0 %3017
      %3019 = vrot.lane.b32.xlu0 %v3002, 125
      %v3020 = vpop.permute.xlu0 %3019
      %v3027 = vadd.f32 %v2960, %v3010
      %v3028 = vadd.f32 %v2961, %v3012
      %v3029 = vadd.f32 %v2962, %v3014
      %v3030 = vadd.f32 %v2963, %v3016
      %v3031 = vadd.f32 %v2964, %v3018
      %v3032 = vadd.f32 %v2965, %v3020
      %s3033 = scalar_lea.vmem %s3, 912
      %v3034 = vld [vmem:[%s3033] sm:$0xff]
      %v3035 = vld [vmem:[%s3033 + $0x8] sm:$0x1]
      %v3036 = vld [vmem:[%s3033 + $0x10] sm:$0xff]
      %v3037 = vld [vmem:[%s3033 + $0x18] sm:$0x1]
      %v3038 = vld [vmem:[%s3033 + $0x20] sm:$0xff]
      %v3039 = vld [vmem:[%s3033 + $0x28] sm:$0x1]
      %3046 = vrot.lane.b32.xlu0 %v3034, 4
      %v3047 = vpop.permute.xlu0 %3046
      %3048 = vrot.lane.b32.xlu0 %v3035, 4
      %v3049 = vpop.permute.xlu0 %3048
      %3050 = vrot.lane.b32.xlu0 %v3036, 4
      %v3051 = vpop.permute.xlu0 %3050
      %3052 = vrot.lane.b32.xlu0 %v3037, 4
      %v3053 = vpop.permute.xlu0 %3052
      %3054 = vrot.lane.b32.xlu0 %v3038, 4
      %v3055 = vpop.permute.xlu0 %3054
      %3056 = vrot.lane.b32.xlu0 %v3039, 4
      %v3057 = vpop.permute.xlu0 %3056
      %v3064 = vmul.f32 %v2811, %v3047
      %v3065 = vmul.f32 %v2812, %v3049
      %v3066 = vmul.f32 %v2811, %v3051
      %v3067 = vmul.f32 %v2812, %v3053
      %v3068 = vmul.f32 %v2811, %v3055
      %v3069 = vmul.f32 %v2812, %v3057
      %3076 = vrot.lane.b32.xlu0 %v3064, 124
      %v3077 = vpop.permute.xlu0 %3076
      %3078 = vrot.lane.b32.xlu0 %v3065, 124
      %v3079 = vpop.permute.xlu0 %3078
      %3080 = vrot.lane.b32.xlu0 %v3066, 124
      %v3081 = vpop.permute.xlu0 %3080
      %3082 = vrot.lane.b32.xlu0 %v3067, 124
      %v3083 = vpop.permute.xlu0 %3082
      %3084 = vrot.lane.b32.xlu0 %v3068, 124
      %v3085 = vpop.permute.xlu0 %3084
      %3086 = vrot.lane.b32.xlu0 %v3069, 124
      %v3087 = vpop.permute.xlu0 %3086
      %v3094 = vadd.f32 %v3027, %v3077
      %v3095 = vadd.f32 %v3028, %v3079
      %v3096 = vadd.f32 %v3029, %v3081
      %v3097 = vadd.f32 %v3030, %v3083
      %v3098 = vadd.f32 %v3031, %v3085
      %v3099 = vadd.f32 %v3032, %v3087
      %v3100 = vld [vmem:[#allocation2 + $0x4] sm:$0xff]
      %v3101 = vld [vmem:[#allocation2 + $0xc] sm:$0x1]
      %s3102 = scalar_lea.vmem %s3, 960
      %v3103 = vld [vmem:[%s3102] sm:$0xff]
      %v3104 = vld [vmem:[%s3102 + $0x8] sm:$0x1]
      %v3105 = vld [vmem:[%s3102 + $0x10] sm:$0xff]
      %v3106 = vld [vmem:[%s3102 + $0x18] sm:$0x1]
      %v3107 = vld [vmem:[%s3102 + $0x20] sm:$0xff]
      %v3108 = vld [vmem:[%s3102 + $0x28] sm:$0x1]
      %v3109 = vmul.f32 %v3100, %v3103
      %v3110 = vmul.f32 %v3101, %v3104
      %v3111 = vmul.f32 %v3100, %v3105
      %v3112 = vmul.f32 %v3101, %v3106
      %v3113 = vmul.f32 %v3100, %v3107
      %v3114 = vmul.f32 %v3101, %v3108
      %v3115 = vadd.f32 %v3094, %v3109
      %v3116 = vadd.f32 %v3095, %v3110
      %v3117 = vadd.f32 %v3096, %v3111
      %v3118 = vadd.f32 %v3097, %v3112
      %v3119 = vadd.f32 %v3098, %v3113
      %v3120 = vadd.f32 %v3099, %v3114
      %s3121 = scalar_lea.vmem %s3, 1008
      %v3122 = vld [vmem:[%s3121] sm:$0xff]
      %v3123 = vld [vmem:[%s3121 + $0x8] sm:$0x1]
      %v3124 = vld [vmem:[%s3121 + $0x10] sm:$0xff]
      %v3125 = vld [vmem:[%s3121 + $0x18] sm:$0x1]
      %v3126 = vld [vmem:[%s3121 + $0x20] sm:$0xff]
      %v3127 = vld [vmem:[%s3121 + $0x28] sm:$0x1]
      %3134 = vrot.lane.b32.xlu0 %v3122, 1
      %v3135 = vpop.permute.xlu0 %3134
      %3136 = vrot.lane.b32.xlu0 %v3123, 1
      %v3137 = vpop.permute.xlu0 %3136
      %3138 = vrot.lane.b32.xlu0 %v3124, 1
      %v3139 = vpop.permute.xlu0 %3138
      %3140 = vrot.lane.b32.xlu0 %v3125, 1
      %v3141 = vpop.permute.xlu0 %3140
      %3142 = vrot.lane.b32.xlu0 %v3126, 1
      %v3143 = vpop.permute.xlu0 %3142
      %3144 = vrot.lane.b32.xlu0 %v3127, 1
      %v3145 = vpop.permute.xlu0 %3144
      %v3152 = vmul.f32 %v3100, %v3135
      %v3153 = vmul.f32 %v3101, %v3137
      %v3154 = vmul.f32 %v3100, %v3139
      %v3155 = vmul.f32 %v3101, %v3141
      %v3156 = vmul.f32 %v3100, %v3143
      %v3157 = vmul.f32 %v3101, %v3145
      %3164 = vrot.lane.b32.xlu0 %v3152, 127
      %v3165 = vpop.permute.xlu0 %3164
      %3166 = vrot.lane.b32.xlu0 %v3153, 127
      %v3167 = vpop.permute.xlu0 %3166
      %3168 = vrot.lane.b32.xlu0 %v3154, 127
      %v3169 = vpop.permute.xlu0 %3168
      %3170 = vrot.lane.b32.xlu0 %v3155, 127
      %v3171 = vpop.permute.xlu0 %3170
      %3172 = vrot.lane.b32.xlu0 %v3156, 127
      %v3173 = vpop.permute.xlu0 %3172
      %3174 = vrot.lane.b32.xlu0 %v3157, 127
      %v3175 = vpop.permute.xlu0 %3174
      %v3182 = vadd.f32 %v3115, %v3165
      %v3183 = vadd.f32 %v3116, %v3167
      %v3184 = vadd.f32 %v3117, %v3169
      %v3185 = vadd.f32 %v3118, %v3171
      %v3186 = vadd.f32 %v3119, %v3173
      %v3187 = vadd.f32 %v3120, %v3175
      %s3188 = scalar_lea.vmem %s3, 1056
      %v3189 = vld [vmem:[%s3188] sm:$0xff]
      %v3190 = vld [vmem:[%s3188 + $0x8] sm:$0x1]
      %v3191 = vld [vmem:[%s3188 + $0x10] sm:$0xff]
      %v3192 = vld [vmem:[%s3188 + $0x18] sm:$0x1]
      %v3193 = vld [vmem:[%s3188 + $0x20] sm:$0xff]
      %v3194 = vld [vmem:[%s3188 + $0x28] sm:$0x1]
      %3201 = vrot.lane.b32.xlu0 %v3189, 2
      %v3202 = vpop.permute.xlu0 %3201
      %3203 = vrot.lane.b32.xlu0 %v3190, 2
      %v3204 = vpop.permute.xlu0 %3203
      %3205 = vrot.lane.b32.xlu0 %v3191, 2
      %v3206 = vpop.permute.xlu0 %3205
      %3207 = vrot.lane.b32.xlu0 %v3192, 2
      %v3208 = vpop.permute.xlu0 %3207
      %3209 = vrot.lane.b32.xlu0 %v3193, 2
      %v3210 = vpop.permute.xlu0 %3209
      %3211 = vrot.lane.b32.xlu0 %v3194, 2
      %v3212 = vpop.permute.xlu0 %3211
      %v3219 = vmul.f32 %v3100, %v3202
      %v3220 = vmul.f32 %v3101, %v3204
      %v3221 = vmul.f32 %v3100, %v3206
      %v3222 = vmul.f32 %v3101, %v3208
      %v3223 = vmul.f32 %v3100, %v3210
      %v3224 = vmul.f32 %v3101, %v3212
      %3231 = vrot.lane.b32.xlu0 %v3219, 126
      %v3232 = vpop.permute.xlu0 %3231
      %3233 = vrot.lane.b32.xlu0 %v3220, 126
      %v3234 = vpop.permute.xlu0 %3233
      %3235 = vrot.lane.b32.xlu0 %v3221, 126
      %v3236 = vpop.permute.xlu0 %3235
      %3237 = vrot.lane.b32.xlu0 %v3222, 126
      %v3238 = vpop.permute.xlu0 %3237
      %3239 = vrot.lane.b32.xlu0 %v3223, 126
      %v3240 = vpop.permute.xlu0 %3239
      %3241 = vrot.lane.b32.xlu0 %v3224, 126
      %v3242 = vpop.permute.xlu0 %3241
      %v3249 = vadd.f32 %v3182, %v3232
      %v3250 = vadd.f32 %v3183, %v3234
      %v3251 = vadd.f32 %v3184, %v3236
      %v3252 = vadd.f32 %v3185, %v3238
      %v3253 = vadd.f32 %v3186, %v3240
      %v3254 = vadd.f32 %v3187, %v3242
      %s3255 = scalar_lea.vmem %s3, 1104
      %v3256 = vld [vmem:[%s3255] sm:$0xff]
      %v3257 = vld [vmem:[%s3255 + $0x8] sm:$0x1]
      %v3258 = vld [vmem:[%s3255 + $0x10] sm:$0xff]
      %v3259 = vld [vmem:[%s3255 + $0x18] sm:$0x1]
      %v3260 = vld [vmem:[%s3255 + $0x20] sm:$0xff]
      %v3261 = vld [vmem:[%s3255 + $0x28] sm:$0x1]
      %3268 = vrot.lane.b32.xlu0 %v3256, 3
      %v3269 = vpop.permute.xlu0 %3268
      %3270 = vrot.lane.b32.xlu0 %v3257, 3
      %v3271 = vpop.permute.xlu0 %3270
      %3272 = vrot.lane.b32.xlu0 %v3258, 3
      %v3273 = vpop.permute.xlu0 %3272
      %3274 = vrot.lane.b32.xlu0 %v3259, 3
      %v3275 = vpop.permute.xlu0 %3274
      %3276 = vrot.lane.b32.xlu0 %v3260, 3
      %v3277 = vpop.permute.xlu0 %3276
      %3278 = vrot.lane.b32.xlu0 %v3261, 3
      %v3279 = vpop.permute.xlu0 %3278
      %v3286 = vmul.f32 %v3100, %v3269
      %v3287 = vmul.f32 %v3101, %v3271
      %v3288 = vmul.f32 %v3100, %v3273
      %v3289 = vmul.f32 %v3101, %v3275
      %v3290 = vmul.f32 %v3100, %v3277
      %v3291 = vmul.f32 %v3101, %v3279
      %3298 = vrot.lane.b32.xlu0 %v3286, 125
      %v3299 = vpop.permute.xlu0 %3298
      %3300 = vrot.lane.b32.xlu0 %v3287, 125
      %v3301 = vpop.permute.xlu0 %3300
      %3302 = vrot.lane.b32.xlu0 %v3288, 125
      %v3303 = vpop.permute.xlu0 %3302
      %3304 = vrot.lane.b32.xlu0 %v3289, 125
      %v3305 = vpop.permute.xlu0 %3304
      %3306 = vrot.lane.b32.xlu0 %v3290, 125
      %v3307 = vpop.permute.xlu0 %3306
      %3308 = vrot.lane.b32.xlu0 %v3291, 125
      %v3309 = vpop.permute.xlu0 %3308
      %v3316 = vadd.f32 %v3249, %v3299
      %v3317 = vadd.f32 %v3250, %v3301
      %v3318 = vadd.f32 %v3251, %v3303
      %v3319 = vadd.f32 %v3252, %v3305
      %v3320 = vadd.f32 %v3253, %v3307
      %v3321 = vadd.f32 %v3254, %v3309
      %s3322 = scalar_lea.vmem %s3, 1152
      %v3323 = vld [vmem:[%s3322] sm:$0xff]
      %v3324 = vld [vmem:[%s3322 + $0x8] sm:$0x1]
      %v3325 = vld [vmem:[%s3322 + $0x10] sm:$0xff]
      %v3326 = vld [vmem:[%s3322 + $0x18] sm:$0x1]
      %v3327 = vld [vmem:[%s3322 + $0x20] sm:$0xff]
      %v3328 = vld [vmem:[%s3322 + $0x28] sm:$0x1]
      %3335 = vrot.lane.b32.xlu0 %v3323, 4
      %v3336 = vpop.permute.xlu0 %3335
      %3337 = vrot.lane.b32.xlu0 %v3324, 4
      %v3338 = vpop.permute.xlu0 %3337
      %3339 = vrot.lane.b32.xlu0 %v3325, 4
      %v3340 = vpop.permute.xlu0 %3339
      %3341 = vrot.lane.b32.xlu0 %v3326, 4
      %v3342 = vpop.permute.xlu0 %3341
      %3343 = vrot.lane.b32.xlu0 %v3327, 4
      %v3344 = vpop.permute.xlu0 %3343
      %3345 = vrot.lane.b32.xlu0 %v3328, 4
      %v3346 = vpop.permute.xlu0 %3345
      %v3353 = vmul.f32 %v3100, %v3336
      %v3354 = vmul.f32 %v3101, %v3338
      %v3355 = vmul.f32 %v3100, %v3340
      %v3356 = vmul.f32 %v3101, %v3342
      %v3357 = vmul.f32 %v3100, %v3344
      %v3358 = vmul.f32 %v3101, %v3346
      %3365 = vrot.lane.b32.xlu0 %v3353, 124
      %v3366 = vpop.permute.xlu0 %3365
      %3367 = vrot.lane.b32.xlu0 %v3354, 124
      %v3368 = vpop.permute.xlu0 %3367
      %3369 = vrot.lane.b32.xlu0 %v3355, 124
      %v3370 = vpop.permute.xlu0 %3369
      %3371 = vrot.lane.b32.xlu0 %v3356, 124
      %v3372 = vpop.permute.xlu0 %3371
      %3373 = vrot.lane.b32.xlu0 %v3357, 124
      %v3374 = vpop.permute.xlu0 %3373
      %3375 = vrot.lane.b32.xlu0 %v3358, 124
      %v3376 = vpop.permute.xlu0 %3375
      %v3383 = vadd.f32 %v3316, %v3366
      %v3384 = vadd.f32 %v3317, %v3368
      %v3385 = vadd.f32 %v3318, %v3370
      %v3386 = vadd.f32 %v3319, %v3372
      %v3387 = vadd.f32 %v3320, %v3374
      %v3388 = vadd.f32 %v3321, %v3376
      %v3389 = vld [vmem:[#allocation2 + $0xd] sm:$0xff]
      %v3390 = vld [vmem:[#allocation2 + $0x15] sm:$0x1]
      %s3391 = scalar_lea.vmem %s3, 1200
      %v3392 = vld [vmem:[%s3391] sm:$0xff]
      %v3393 = vld [vmem:[%s3391 + $0x8] sm:$0x1]
      %v3394 = vld [vmem:[%s3391 + $0x10] sm:$0xff]
      %v3395 = vld [vmem:[%s3391 + $0x18] sm:$0x1]
      %v3396 = vld [vmem:[%s3391 + $0x20] sm:$0xff]
      %v3397 = vld [vmem:[%s3391 + $0x28] sm:$0x1]
      %v3398 = vmul.f32 %v3389, %v3392
      %v3399 = vmul.f32 %v3390, %v3393
      %v3400 = vmul.f32 %v3389, %v3394
      %v3401 = vmul.f32 %v3390, %v3395
      %v3402 = vmul.f32 %v3389, %v3396
      %v3403 = vmul.f32 %v3390, %v3397
      %s3404 = scalar_lea.vmem %s3, 1248
      %v3405 = vld [vmem:[%s3404] sm:$0xff]
      %v3406 = vld [vmem:[%s3404 + $0x8] sm:$0x1]
      %v3407 = vld [vmem:[%s3404 + $0x10] sm:$0xff]
      %v3408 = vld [vmem:[%s3404 + $0x18] sm:$0x1]
      %v3409 = vld [vmem:[%s3404 + $0x20] sm:$0xff]
      %v3410 = vld [vmem:[%s3404 + $0x28] sm:$0x1]
      %3417 = vrot.lane.b32.xlu0 %v3405, 1
      %v3418 = vpop.permute.xlu0 %3417
      %3419 = vrot.lane.b32.xlu0 %v3406, 1
      %v3420 = vpop.permute.xlu0 %3419
      %3421 = vrot.lane.b32.xlu0 %v3407, 1
      %v3422 = vpop.permute.xlu0 %3421
      %3423 = vrot.lane.b32.xlu0 %v3408, 1
      %v3424 = vpop.permute.xlu0 %3423
      %3425 = vrot.lane.b32.xlu0 %v3409, 1
      %v3426 = vpop.permute.xlu0 %3425
      %3427 = vrot.lane.b32.xlu0 %v3410, 1
      %v3428 = vpop.permute.xlu0 %3427
      %v3435 = vmul.f32 %v3389, %v3418
      %v3436 = vmul.f32 %v3390, %v3420
      %v3437 = vmul.f32 %v3389, %v3422
      %v3438 = vmul.f32 %v3390, %v3424
      %v3439 = vmul.f32 %v3389, %v3426
      %v3440 = vmul.f32 %v3390, %v3428
      %3447 = vrot.lane.b32.xlu0 %v3435, 127
      %v3448 = vpop.permute.xlu0 %3447
      %3449 = vrot.lane.b32.xlu0 %v3436, 127
      %v3450 = vpop.permute.xlu0 %3449
      %3451 = vrot.lane.b32.xlu0 %v3437, 127
      %v3452 = vpop.permute.xlu0 %3451
      %3453 = vrot.lane.b32.xlu0 %v3438, 127
      %v3454 = vpop.permute.xlu0 %3453
      %3455 = vrot.lane.b32.xlu0 %v3439, 127
      %v3456 = vpop.permute.xlu0 %3455
      %3457 = vrot.lane.b32.xlu0 %v3440, 127
      %v3458 = vpop.permute.xlu0 %3457
      %v3465 = vadd.f32 %v3398, %v3448
      %v3466 = vadd.f32 %v3399, %v3450
      %v3467 = vadd.f32 %v3400, %v3452
      %v3468 = vadd.f32 %v3401, %v3454
      %v3469 = vadd.f32 %v3402, %v3456
      %v3470 = vadd.f32 %v3403, %v3458
      %s3471 = scalar_lea.vmem %s3, 1296
      %v3472 = vld [vmem:[%s3471] sm:$0xff]
      %v3473 = vld [vmem:[%s3471 + $0x8] sm:$0x1]
      %v3474 = vld [vmem:[%s3471 + $0x10] sm:$0xff]
      %v3475 = vld [vmem:[%s3471 + $0x18] sm:$0x1]
      %v3476 = vld [vmem:[%s3471 + $0x20] sm:$0xff]
      %v3477 = vld [vmem:[%s3471 + $0x28] sm:$0x1]
      %3484 = vrot.lane.b32.xlu0 %v3472, 2
      %v3485 = vpop.permute.xlu0 %3484
      %3486 = vrot.lane.b32.xlu0 %v3473, 2
      %v3487 = vpop.permute.xlu0 %3486
      %3488 = vrot.lane.b32.xlu0 %v3474, 2
      %v3489 = vpop.permute.xlu0 %3488
      %3490 = vrot.lane.b32.xlu0 %v3475, 2
      %v3491 = vpop.permute.xlu0 %3490
      %3492 = vrot.lane.b32.xlu0 %v3476, 2
      %v3493 = vpop.permute.xlu0 %3492
      %3494 = vrot.lane.b32.xlu0 %v3477, 2
      %v3495 = vpop.permute.xlu0 %3494
      %v3502 = vmul.f32 %v3389, %v3485
      %v3503 = vmul.f32 %v3390, %v3487
      %v3504 = vmul.f32 %v3389, %v3489
      %v3505 = vmul.f32 %v3390, %v3491
      %v3506 = vmul.f32 %v3389, %v3493
      %v3507 = vmul.f32 %v3390, %v3495
      %3514 = vrot.lane.b32.xlu0 %v3502, 126
      %v3515 = vpop.permute.xlu0 %3514
      %3516 = vrot.lane.b32.xlu0 %v3503, 126
      %v3517 = vpop.permute.xlu0 %3516
      %3518 = vrot.lane.b32.xlu0 %v3504, 126
      %v3519 = vpop.permute.xlu0 %3518
      %3520 = vrot.lane.b32.xlu0 %v3505, 126
      %v3521 = vpop.permute.xlu0 %3520
      %3522 = vrot.lane.b32.xlu0 %v3506, 126
      %v3523 = vpop.permute.xlu0 %3522
      %3524 = vrot.lane.b32.xlu0 %v3507, 126
      %v3525 = vpop.permute.xlu0 %3524
      %v3532 = vadd.f32 %v3465, %v3515
      %v3533 = vadd.f32 %v3466, %v3517
      %v3534 = vadd.f32 %v3467, %v3519
      %v3535 = vadd.f32 %v3468, %v3521
      %v3536 = vadd.f32 %v3469, %v3523
      %v3537 = vadd.f32 %v3470, %v3525
      %s3538 = scalar_lea.vmem %s3, 1344
      %v3539 = vld [vmem:[%s3538] sm:$0xff]
      %v3540 = vld [vmem:[%s3538 + $0x8] sm:$0x1]
      %v3541 = vld [vmem:[%s3538 + $0x10] sm:$0xff]
      %v3542 = vld [vmem:[%s3538 + $0x18] sm:$0x1]
      %v3543 = vld [vmem:[%s3538 + $0x20] sm:$0xff]
      %v3544 = vld [vmem:[%s3538 + $0x28] sm:$0x1]
      %3551 = vrot.lane.b32.xlu0 %v3539, 3
      %v3552 = vpop.permute.xlu0 %3551
      %3553 = vrot.lane.b32.xlu0 %v3540, 3
      %v3554 = vpop.permute.xlu0 %3553
      %3555 = vrot.lane.b32.xlu0 %v3541, 3
      %v3556 = vpop.permute.xlu0 %3555
      %3557 = vrot.lane.b32.xlu0 %v3542, 3
      %v3558 = vpop.permute.xlu0 %3557
      %3559 = vrot.lane.b32.xlu0 %v3543, 3
      %v3560 = vpop.permute.xlu0 %3559
      %3561 = vrot.lane.b32.xlu0 %v3544, 3
      %v3562 = vpop.permute.xlu0 %3561
      %v3569 = vmul.f32 %v3389, %v3552
      %v3570 = vmul.f32 %v3390, %v3554
      %v3571 = vmul.f32 %v3389, %v3556
      %v3572 = vmul.f32 %v3390, %v3558
      %v3573 = vmul.f32 %v3389, %v3560
      %v3574 = vmul.f32 %v3390, %v3562
      %3581 = vrot.lane.b32.xlu0 %v3569, 125
      %v3582 = vpop.permute.xlu0 %3581
      %3583 = vrot.lane.b32.xlu0 %v3570, 125
      %v3584 = vpop.permute.xlu0 %3583
      %3585 = vrot.lane.b32.xlu0 %v3571, 125
      %v3586 = vpop.permute.xlu0 %3585
      %3587 = vrot.lane.b32.xlu0 %v3572, 125
      %v3588 = vpop.permute.xlu0 %3587
      %3589 = vrot.lane.b32.xlu0 %v3573, 125
      %v3590 = vpop.permute.xlu0 %3589
      %3591 = vrot.lane.b32.xlu0 %v3574, 125
      %v3592 = vpop.permute.xlu0 %3591
      %v3599 = vadd.f32 %v3532, %v3582
      %v3600 = vadd.f32 %v3533, %v3584
      %v3601 = vadd.f32 %v3534, %v3586
      %v3602 = vadd.f32 %v3535, %v3588
      %v3603 = vadd.f32 %v3536, %v3590
      %v3604 = vadd.f32 %v3537, %v3592
      %s3605 = scalar_lea.vmem %s3, 1392
      %v3606 = vld [vmem:[%s3605] sm:$0xff]
      %v3607 = vld [vmem:[%s3605 + $0x8] sm:$0x1]
      %v3608 = vld [vmem:[%s3605 + $0x10] sm:$0xff]
      %v3609 = vld [vmem:[%s3605 + $0x18] sm:$0x1]
      %v3610 = vld [vmem:[%s3605 + $0x20] sm:$0xff]
      %v3611 = vld [vmem:[%s3605 + $0x28] sm:$0x1]
      %3618 = vrot.lane.b32.xlu0 %v3606, 4
      %v3619 = vpop.permute.xlu0 %3618
      %3620 = vrot.lane.b32.xlu0 %v3607, 4
      %v3621 = vpop.permute.xlu0 %3620
      %3622 = vrot.lane.b32.xlu0 %v3608, 4
      %v3623 = vpop.permute.xlu0 %3622
      %3624 = vrot.lane.b32.xlu0 %v3609, 4
      %v3625 = vpop.permute.xlu0 %3624
      %3626 = vrot.lane.b32.xlu0 %v3610, 4
      %v3627 = vpop.permute.xlu0 %3626
      %3628 = vrot.lane.b32.xlu0 %v3611, 4
      %v3629 = vpop.permute.xlu0 %3628
      %v3636 = vmul.f32 %v3389, %v3619
      %v3637 = vmul.f32 %v3390, %v3621
      %v3638 = vmul.f32 %v3389, %v3623
      %v3639 = vmul.f32 %v3390, %v3625
      %v3640 = vmul.f32 %v3389, %v3627
      %v3641 = vmul.f32 %v3390, %v3629
      %3648 = vrot.lane.b32.xlu0 %v3636, 124
      %v3649 = vpop.permute.xlu0 %3648
      %3650 = vrot.lane.b32.xlu0 %v3637, 124
      %v3651 = vpop.permute.xlu0 %3650
      %3652 = vrot.lane.b32.xlu0 %v3638, 124
      %v3653 = vpop.permute.xlu0 %3652
      %3654 = vrot.lane.b32.xlu0 %v3639, 124
      %v3655 = vpop.permute.xlu0 %3654
      %3656 = vrot.lane.b32.xlu0 %v3640, 124
      %v3657 = vpop.permute.xlu0 %3656
      %3658 = vrot.lane.b32.xlu0 %v3641, 124
      %v3659 = vpop.permute.xlu0 %3658
      %v3666 = vadd.f32 %v3599, %v3649
      %v3667 = vadd.f32 %v3600, %v3651
      %v3668 = vadd.f32 %v3601, %v3653
      %v3669 = vadd.f32 %v3602, %v3655
      %v3670 = vadd.f32 %v3603, %v3657
      %v3671 = vadd.f32 %v3604, %v3659
      %v3672 = vld [vmem:[#allocation2 + $0xe] sm:$0xff]
      %v3673 = vld [vmem:[#allocation2 + $0x16] sm:$0x1]
      %s3674 = scalar_lea.vmem %s3, 1440
      %v3675 = vld [vmem:[%s3674] sm:$0xff]
      %v3676 = vld [vmem:[%s3674 + $0x8] sm:$0x1]
      %v3677 = vld [vmem:[%s3674 + $0x10] sm:$0xff]
      %v3678 = vld [vmem:[%s3674 + $0x18] sm:$0x1]
      %v3679 = vld [vmem:[%s3674 + $0x20] sm:$0xff]
      %v3680 = vld [vmem:[%s3674 + $0x28] sm:$0x1]
      %v3681 = vmul.f32 %v3672, %v3675
      %v3682 = vmul.f32 %v3673, %v3676
      %v3683 = vmul.f32 %v3672, %v3677
      %v3684 = vmul.f32 %v3673, %v3678
      %v3685 = vmul.f32 %v3672, %v3679
      %v3686 = vmul.f32 %v3673, %v3680
      %v3687 = vadd.f32 %v3666, %v3681
      %v3688 = vadd.f32 %v3667, %v3682
      %v3689 = vadd.f32 %v3668, %v3683
      %v3690 = vadd.f32 %v3669, %v3684
      %v3691 = vadd.f32 %v3670, %v3685
      %v3692 = vadd.f32 %v3671, %v3686
      %s3693 = scalar_lea.vmem %s3, 1488
      %v3694 = vld [vmem:[%s3693] sm:$0xff]
      %v3695 = vld [vmem:[%s3693 + $0x8] sm:$0x1]
      %v3696 = vld [vmem:[%s3693 + $0x10] sm:$0xff]
      %v3697 = vld [vmem:[%s3693 + $0x18] sm:$0x1]
      %v3698 = vld [vmem:[%s3693 + $0x20] sm:$0xff]
      %v3699 = vld [vmem:[%s3693 + $0x28] sm:$0x1]
      %3706 = vrot.lane.b32.xlu0 %v3694, 1
      %v3707 = vpop.permute.xlu0 %3706
      %3708 = vrot.lane.b32.xlu0 %v3695, 1
      %v3709 = vpop.permute.xlu0 %3708
      %3710 = vrot.lane.b32.xlu0 %v3696, 1
      %v3711 = vpop.permute.xlu0 %3710
      %3712 = vrot.lane.b32.xlu0 %v3697, 1
      %v3713 = vpop.permute.xlu0 %3712
      %3714 = vrot.lane.b32.xlu0 %v3698, 1
      %v3715 = vpop.permute.xlu0 %3714
      %3716 = vrot.lane.b32.xlu0 %v3699, 1
      %v3717 = vpop.permute.xlu0 %3716
      %v3724 = vmul.f32 %v3672, %v3707
      %v3725 = vmul.f32 %v3673, %v3709
      %v3726 = vmul.f32 %v3672, %v3711
      %v3727 = vmul.f32 %v3673, %v3713
      %v3728 = vmul.f32 %v3672, %v3715
      %v3729 = vmul.f32 %v3673, %v3717
      %3736 = vrot.lane.b32.xlu0 %v3724, 127
      %v3737 = vpop.permute.xlu0 %3736
      %3738 = vrot.lane.b32.xlu0 %v3725, 127
      %v3739 = vpop.permute.xlu0 %3738
      %3740 = vrot.lane.b32.xlu0 %v3726, 127
      %v3741 = vpop.permute.xlu0 %3740
      %3742 = vrot.lane.b32.xlu0 %v3727, 127
      %v3743 = vpop.permute.xlu0 %3742
      %3744 = vrot.lane.b32.xlu0 %v3728, 127
      %v3745 = vpop.permute.xlu0 %3744
      %3746 = vrot.lane.b32.xlu0 %v3729, 127
      %v3747 = vpop.permute.xlu0 %3746
      %v3754 = vadd.f32 %v3687, %v3737
      %v3755 = vadd.f32 %v3688, %v3739
      %v3756 = vadd.f32 %v3689, %v3741
      %v3757 = vadd.f32 %v3690, %v3743
      %v3758 = vadd.f32 %v3691, %v3745
      %v3759 = vadd.f32 %v3692, %v3747
      %s3760 = scalar_lea.vmem %s3, 1536
      %v3761 = vld [vmem:[%s3760] sm:$0xff]
      %v3762 = vld [vmem:[%s3760 + $0x8] sm:$0x1]
      %v3763 = vld [vmem:[%s3760 + $0x10] sm:$0xff]
      %v3764 = vld [vmem:[%s3760 + $0x18] sm:$0x1]
      %v3765 = vld [vmem:[%s3760 + $0x20] sm:$0xff]
      %v3766 = vld [vmem:[%s3760 + $0x28] sm:$0x1]
      %3773 = vrot.lane.b32.xlu0 %v3761, 2
      %v3774 = vpop.permute.xlu0 %3773
      %3775 = vrot.lane.b32.xlu0 %v3762, 2
      %v3776 = vpop.permute.xlu0 %3775
      %3777 = vrot.lane.b32.xlu0 %v3763, 2
      %v3778 = vpop.permute.xlu0 %3777
      %3779 = vrot.lane.b32.xlu0 %v3764, 2
      %v3780 = vpop.permute.xlu0 %3779
      %3781 = vrot.lane.b32.xlu0 %v3765, 2
      %v3782 = vpop.permute.xlu0 %3781
      %3783 = vrot.lane.b32.xlu0 %v3766, 2
      %v3784 = vpop.permute.xlu0 %3783
      %v3791 = vmul.f32 %v3672, %v3774
      %v3792 = vmul.f32 %v3673, %v3776
      %v3793 = vmul.f32 %v3672, %v3778
      %v3794 = vmul.f32 %v3673, %v3780
      %v3795 = vmul.f32 %v3672, %v3782
      %v3796 = vmul.f32 %v3673, %v3784
      %3803 = vrot.lane.b32.xlu0 %v3791, 126
      %v3804 = vpop.permute.xlu0 %3803
      %3805 = vrot.lane.b32.xlu0 %v3792, 126
      %v3806 = vpop.permute.xlu0 %3805
      %3807 = vrot.lane.b32.xlu0 %v3793, 126
      %v3808 = vpop.permute.xlu0 %3807
      %3809 = vrot.lane.b32.xlu0 %v3794, 126
      %v3810 = vpop.permute.xlu0 %3809
      %3811 = vrot.lane.b32.xlu0 %v3795, 126
      %v3812 = vpop.permute.xlu0 %3811
      %3813 = vrot.lane.b32.xlu0 %v3796, 126
      %v3814 = vpop.permute.xlu0 %3813
      %v3821 = vadd.f32 %v3754, %v3804
      %v3822 = vadd.f32 %v3755, %v3806
      %v3823 = vadd.f32 %v3756, %v3808
      %v3824 = vadd.f32 %v3757, %v3810
      %v3825 = vadd.f32 %v3758, %v3812
      %v3826 = vadd.f32 %v3759, %v3814
      %s3827 = scalar_lea.vmem %s3, 1584
      %v3828 = vld [vmem:[%s3827] sm:$0xff]
      %v3829 = vld [vmem:[%s3827 + $0x8] sm:$0x1]
      %v3830 = vld [vmem:[%s3827 + $0x10] sm:$0xff]
      %v3831 = vld [vmem:[%s3827 + $0x18] sm:$0x1]
      %v3832 = vld [vmem:[%s3827 + $0x20] sm:$0xff]
      %v3833 = vld [vmem:[%s3827 + $0x28] sm:$0x1]
      %3840 = vrot.lane.b32.xlu0 %v3828, 3
      %v3841 = vpop.permute.xlu0 %3840
      %3842 = vrot.lane.b32.xlu0 %v3829, 3
      %v3843 = vpop.permute.xlu0 %3842
      %3844 = vrot.lane.b32.xlu0 %v3830, 3
      %v3845 = vpop.permute.xlu0 %3844
      %3846 = vrot.lane.b32.xlu0 %v3831, 3
      %v3847 = vpop.permute.xlu0 %3846
      %3848 = vrot.lane.b32.xlu0 %v3832, 3
      %v3849 = vpop.permute.xlu0 %3848
      %3850 = vrot.lane.b32.xlu0 %v3833, 3
      %v3851 = vpop.permute.xlu0 %3850
      %v3858 = vmul.f32 %v3672, %v3841
      %v3859 = vmul.f32 %v3673, %v3843
      %v3860 = vmul.f32 %v3672, %v3845
      %v3861 = vmul.f32 %v3673, %v3847
      %v3862 = vmul.f32 %v3672, %v3849
      %v3863 = vmul.f32 %v3673, %v3851
      %3870 = vrot.lane.b32.xlu0 %v3858, 125
      %v3871 = vpop.permute.xlu0 %3870
      %3872 = vrot.lane.b32.xlu0 %v3859, 125
      %v3873 = vpop.permute.xlu0 %3872
      %3874 = vrot.lane.b32.xlu0 %v3860, 125
      %v3875 = vpop.permute.xlu0 %3874
      %3876 = vrot.lane.b32.xlu0 %v3861, 125
      %v3877 = vpop.permute.xlu0 %3876
      %3878 = vrot.lane.b32.xlu0 %v3862, 125
      %v3879 = vpop.permute.xlu0 %3878
      %3880 = vrot.lane.b32.xlu0 %v3863, 125
      %v3881 = vpop.permute.xlu0 %3880
      %v3888 = vadd.f32 %v3821, %v3871
      %v3889 = vadd.f32 %v3822, %v3873
      %v3890 = vadd.f32 %v3823, %v3875
      %v3891 = vadd.f32 %v3824, %v3877
      %v3892 = vadd.f32 %v3825, %v3879
      %v3893 = vadd.f32 %v3826, %v3881
      %s3894 = scalar_lea.vmem %s3, 1632
      %v3895 = vld [vmem:[%s3894] sm:$0xff]
      %v3896 = vld [vmem:[%s3894 + $0x8] sm:$0x1]
      %v3897 = vld [vmem:[%s3894 + $0x10] sm:$0xff]
      %v3898 = vld [vmem:[%s3894 + $0x18] sm:$0x1]
      %v3899 = vld [vmem:[%s3894 + $0x20] sm:$0xff]
      %v3900 = vld [vmem:[%s3894 + $0x28] sm:$0x1]
      %3907 = vrot.lane.b32.xlu0 %v3895, 4
      %v3908 = vpop.permute.xlu0 %3907
      %3909 = vrot.lane.b32.xlu0 %v3896, 4
      %v3910 = vpop.permute.xlu0 %3909
      %3911 = vrot.lane.b32.xlu0 %v3897, 4
      %v3912 = vpop.permute.xlu0 %3911
      %3913 = vrot.lane.b32.xlu0 %v3898, 4
      %v3914 = vpop.permute.xlu0 %3913
      %3915 = vrot.lane.b32.xlu0 %v3899, 4
      %v3916 = vpop.permute.xlu0 %3915
      %3917 = vrot.lane.b32.xlu0 %v3900, 4
      %v3918 = vpop.permute.xlu0 %3917
      %v3925 = vmul.f32 %v3672, %v3908
      %v3926 = vmul.f32 %v3673, %v3910
      %v3927 = vmul.f32 %v3672, %v3912
      %v3928 = vmul.f32 %v3673, %v3914
      %v3929 = vmul.f32 %v3672, %v3916
      %v3930 = vmul.f32 %v3673, %v3918
      %3937 = vrot.lane.b32.xlu0 %v3925, 124
      %v3938 = vpop.permute.xlu0 %3937
      %3939 = vrot.lane.b32.xlu0 %v3926, 124
      %v3940 = vpop.permute.xlu0 %3939
      %3941 = vrot.lane.b32.xlu0 %v3927, 124
      %v3942 = vpop.permute.xlu0 %3941
      %3943 = vrot.lane.b32.xlu0 %v3928, 124
      %v3944 = vpop.permute.xlu0 %3943
      %3945 = vrot.lane.b32.xlu0 %v3929, 124
      %v3946 = vpop.permute.xlu0 %3945
      %3947 = vrot.lane.b32.xlu0 %v3930, 124
      %v3948 = vpop.permute.xlu0 %3947
      %v3955 = vadd.f32 %v3888, %v3938
      %v3956 = vadd.f32 %v3889, %v3940
      %v3957 = vadd.f32 %v3890, %v3942
      %v3958 = vadd.f32 %v3891, %v3944
      %v3959 = vadd.f32 %v3892, %v3946
      %v3960 = vadd.f32 %v3893, %v3948
      %v3961 = vld [vmem:[#allocation2 + $0xf] sm:$0xff]
      %v3962 = vld [vmem:[#allocation2 + $0x17] sm:$0x1]
      %s3963 = scalar_lea.vmem %s3, 1680
      %v3964 = vld [vmem:[%s3963] sm:$0xff]
      %v3965 = vld [vmem:[%s3963 + $0x8] sm:$0x1]
      %v3966 = vld [vmem:[%s3963 + $0x10] sm:$0xff]
      %v3967 = vld [vmem:[%s3963 + $0x18] sm:$0x1]
      %v3968 = vld [vmem:[%s3963 + $0x20] sm:$0xff]
      %v3969 = vld [vmem:[%s3963 + $0x28] sm:$0x1]
      %v3970 = vmul.f32 %v3961, %v3964
      %v3971 = vmul.f32 %v3962, %v3965
      %v3972 = vmul.f32 %v3961, %v3966
      %v3973 = vmul.f32 %v3962, %v3967
      %v3974 = vmul.f32 %v3961, %v3968
      %v3975 = vmul.f32 %v3962, %v3969
      %v3976 = vadd.f32 %v3955, %v3970
      %v3977 = vadd.f32 %v3956, %v3971
      %v3978 = vadd.f32 %v3957, %v3972
      %v3979 = vadd.f32 %v3958, %v3973
      %v3980 = vadd.f32 %v3959, %v3974
      %v3981 = vadd.f32 %v3960, %v3975
      %s3982 = scalar_lea.vmem %s3, 1728
      %v3983 = vld [vmem:[%s3982] sm:$0xff]
      %v3984 = vld [vmem:[%s3982 + $0x8] sm:$0x1]
      %v3985 = vld [vmem:[%s3982 + $0x10] sm:$0xff]
      %v3986 = vld [vmem:[%s3982 + $0x18] sm:$0x1]
      %v3987 = vld [vmem:[%s3982 + $0x20] sm:$0xff]
      %v3988 = vld [vmem:[%s3982 + $0x28] sm:$0x1]
      %3995 = vrot.lane.b32.xlu0 %v3983, 1
      %v3996 = vpop.permute.xlu0 %3995
      %3997 = vrot.lane.b32.xlu0 %v3984, 1
      %v3998 = vpop.permute.xlu0 %3997
      %3999 = vrot.lane.b32.xlu0 %v3985, 1
      %v4000 = vpop.permute.xlu0 %3999
      %4001 = vrot.lane.b32.xlu0 %v3986, 1
      %v4002 = vpop.permute.xlu0 %4001
      %4003 = vrot.lane.b32.xlu0 %v3987, 1
      %v4004 = vpop.permute.xlu0 %4003
      %4005 = vrot.lane.b32.xlu0 %v3988, 1
      %v4006 = vpop.permute.xlu0 %4005
      %v4013 = vmul.f32 %v3961, %v3996
      %v4014 = vmul.f32 %v3962, %v3998
      %v4015 = vmul.f32 %v3961, %v4000
      %v4016 = vmul.f32 %v3962, %v4002
      %v4017 = vmul.f32 %v3961, %v4004
      %v4018 = vmul.f32 %v3962, %v4006
      %4025 = vrot.lane.b32.xlu0 %v4013, 127
      %v4026 = vpop.permute.xlu0 %4025
      %4027 = vrot.lane.b32.xlu0 %v4014, 127
      %v4028 = vpop.permute.xlu0 %4027
      %4029 = vrot.lane.b32.xlu0 %v4015, 127
      %v4030 = vpop.permute.xlu0 %4029
      %4031 = vrot.lane.b32.xlu0 %v4016, 127
      %v4032 = vpop.permute.xlu0 %4031
      %4033 = vrot.lane.b32.xlu0 %v4017, 127
      %v4034 = vpop.permute.xlu0 %4033
      %4035 = vrot.lane.b32.xlu0 %v4018, 127
      %v4036 = vpop.permute.xlu0 %4035
      %v4043 = vadd.f32 %v3976, %v4026
      %v4044 = vadd.f32 %v3977, %v4028
      %v4045 = vadd.f32 %v3978, %v4030
      %v4046 = vadd.f32 %v3979, %v4032
      %v4047 = vadd.f32 %v3980, %v4034
      %v4048 = vadd.f32 %v3981, %v4036
      %s4049 = scalar_lea.vmem %s3, 1776
      %v4050 = vld [vmem:[%s4049] sm:$0xff]
      %v4051 = vld [vmem:[%s4049 + $0x8] sm:$0x1]
      %v4052 = vld [vmem:[%s4049 + $0x10] sm:$0xff]
      %v4053 = vld [vmem:[%s4049 + $0x18] sm:$0x1]
      %v4054 = vld [vmem:[%s4049 + $0x20] sm:$0xff]
      %v4055 = vld [vmem:[%s4049 + $0x28] sm:$0x1]
      %4062 = vrot.lane.b32.xlu0 %v4050, 2
      %v4063 = vpop.permute.xlu0 %4062
      %4064 = vrot.lane.b32.xlu0 %v4051, 2
      %v4065 = vpop.permute.xlu0 %4064
      %4066 = vrot.lane.b32.xlu0 %v4052, 2
      %v4067 = vpop.permute.xlu0 %4066
      %4068 = vrot.lane.b32.xlu0 %v4053, 2
      %v4069 = vpop.permute.xlu0 %4068
      %4070 = vrot.lane.b32.xlu0 %v4054, 2
      %v4071 = vpop.permute.xlu0 %4070
      %4072 = vrot.lane.b32.xlu0 %v4055, 2
      %v4073 = vpop.permute.xlu0 %4072
      %v4080 = vmul.f32 %v3961, %v4063
      %v4081 = vmul.f32 %v3962, %v4065
      %v4082 = vmul.f32 %v3961, %v4067
      %v4083 = vmul.f32 %v3962, %v4069
      %v4084 = vmul.f32 %v3961, %v4071
      %v4085 = vmul.f32 %v3962, %v4073
      %4092 = vrot.lane.b32.xlu0 %v4080, 126
      %v4093 = vpop.permute.xlu0 %4092
      %4094 = vrot.lane.b32.xlu0 %v4081, 126
      %v4095 = vpop.permute.xlu0 %4094
      %4096 = vrot.lane.b32.xlu0 %v4082, 126
      %v4097 = vpop.permute.xlu0 %4096
      %4098 = vrot.lane.b32.xlu0 %v4083, 126
      %v4099 = vpop.permute.xlu0 %4098
      %4100 = vrot.lane.b32.xlu0 %v4084, 126
      %v4101 = vpop.permute.xlu0 %4100
      %4102 = vrot.lane.b32.xlu0 %v4085, 126
      %v4103 = vpop.permute.xlu0 %4102
      %v4110 = vadd.f32 %v4043, %v4093
      %v4111 = vadd.f32 %v4044, %v4095
      %v4112 = vadd.f32 %v4045, %v4097
      %v4113 = vadd.f32 %v4046, %v4099
      %v4114 = vadd.f32 %v4047, %v4101
      %v4115 = vadd.f32 %v4048, %v4103
      %s4116 = scalar_lea.vmem %s3, 1824
      %v4117 = vld [vmem:[%s4116] sm:$0xff]
      %v4118 = vld [vmem:[%s4116 + $0x8] sm:$0x1]
      %v4119 = vld [vmem:[%s4116 + $0x10] sm:$0xff]
      %v4120 = vld [vmem:[%s4116 + $0x18] sm:$0x1]
      %v4121 = vld [vmem:[%s4116 + $0x20] sm:$0xff]
      %v4122 = vld [vmem:[%s4116 + $0x28] sm:$0x1]
      %4129 = vrot.lane.b32.xlu0 %v4117, 3
      %v4130 = vpop.permute.xlu0 %4129
      %4131 = vrot.lane.b32.xlu0 %v4118, 3
      %v4132 = vpop.permute.xlu0 %4131
      %4133 = vrot.lane.b32.xlu0 %v4119, 3
      %v4134 = vpop.permute.xlu0 %4133
      %4135 = vrot.lane.b32.xlu0 %v4120, 3
      %v4136 = vpop.permute.xlu0 %4135
      %4137 = vrot.lane.b32.xlu0 %v4121, 3
      %v4138 = vpop.permute.xlu0 %4137
      %4139 = vrot.lane.b32.xlu0 %v4122, 3
      %v4140 = vpop.permute.xlu0 %4139
      %v4147 = vmul.f32 %v3961, %v4130
      %v4148 = vmul.f32 %v3962, %v4132
      %v4149 = vmul.f32 %v3961, %v4134
      %v4150 = vmul.f32 %v3962, %v4136
      %v4151 = vmul.f32 %v3961, %v4138
      %v4152 = vmul.f32 %v3962, %v4140
      %4159 = vrot.lane.b32.xlu0 %v4147, 125
      %v4160 = vpop.permute.xlu0 %4159
      %4161 = vrot.lane.b32.xlu0 %v4148, 125
      %v4162 = vpop.permute.xlu0 %4161
      %4163 = vrot.lane.b32.xlu0 %v4149, 125
      %v4164 = vpop.permute.xlu0 %4163
      %4165 = vrot.lane.b32.xlu0 %v4150, 125
      %v4166 = vpop.permute.xlu0 %4165
      %4167 = vrot.lane.b32.xlu0 %v4151, 125
      %v4168 = vpop.permute.xlu0 %4167
      %4169 = vrot.lane.b32.xlu0 %v4152, 125
      %v4170 = vpop.permute.xlu0 %4169
      %v4177 = vadd.f32 %v4110, %v4160
      %v4178 = vadd.f32 %v4111, %v4162
      %v4179 = vadd.f32 %v4112, %v4164
      %v4180 = vadd.f32 %v4113, %v4166
      %v4181 = vadd.f32 %v4114, %v4168
      %v4182 = vadd.f32 %v4115, %v4170
      %s4183 = scalar_lea.vmem %s3, 1872
      %v4184 = vld [vmem:[%s4183] sm:$0xff]
      %v4185 = vld [vmem:[%s4183 + $0x8] sm:$0x1]
      %v4186 = vld [vmem:[%s4183 + $0x10] sm:$0xff]
      %v4187 = vld [vmem:[%s4183 + $0x18] sm:$0x1]
      %v4188 = vld [vmem:[%s4183 + $0x20] sm:$0xff]
      %v4189 = vld [vmem:[%s4183 + $0x28] sm:$0x1]
      %4196 = vrot.lane.b32.xlu0 %v4184, 4
      %v4197 = vpop.permute.xlu0 %4196
      %4198 = vrot.lane.b32.xlu0 %v4185, 4
      %v4199 = vpop.permute.xlu0 %4198
      %4200 = vrot.lane.b32.xlu0 %v4186, 4
      %v4201 = vpop.permute.xlu0 %4200
      %4202 = vrot.lane.b32.xlu0 %v4187, 4
      %v4203 = vpop.permute.xlu0 %4202
      %4204 = vrot.lane.b32.xlu0 %v4188, 4
      %v4205 = vpop.permute.xlu0 %4204
      %4206 = vrot.lane.b32.xlu0 %v4189, 4
      %v4207 = vpop.permute.xlu0 %4206
      %v4214 = vmul.f32 %v3961, %v4197
      %v4215 = vmul.f32 %v3962, %v4199
      %v4216 = vmul.f32 %v3961, %v4201
      %v4217 = vmul.f32 %v3962, %v4203
      %v4218 = vmul.f32 %v3961, %v4205
      %v4219 = vmul.f32 %v3962, %v4207
      %4226 = vrot.lane.b32.xlu0 %v4214, 124
      %v4227 = vpop.permute.xlu0 %4226
      %4228 = vrot.lane.b32.xlu0 %v4215, 124
      %v4229 = vpop.permute.xlu0 %4228
      %4230 = vrot.lane.b32.xlu0 %v4216, 124
      %v4231 = vpop.permute.xlu0 %4230
      %4232 = vrot.lane.b32.xlu0 %v4217, 124
      %v4233 = vpop.permute.xlu0 %4232
      %4234 = vrot.lane.b32.xlu0 %v4218, 124
      %v4235 = vpop.permute.xlu0 %4234
      %4236 = vrot.lane.b32.xlu0 %v4219, 124
      %v4237 = vpop.permute.xlu0 %4236
      %v4244 = vadd.f32 %v4177, %v4227
      %v4245 = vadd.f32 %v4178, %v4229
      %v4246 = vadd.f32 %v4179, %v4231
      %v4247 = vadd.f32 %v4180, %v4233
      %v4248 = vadd.f32 %v4181, %v4235
      %v4249 = vadd.f32 %v4182, %v4237
      %v4250 = vld [vmem:[#allocation2 + $0x10] sm:$0xff]
      %v4251 = vld [vmem:[#allocation2 + $0x18] sm:$0x1]
      %s4252 = scalar_lea.vmem %s3, 1920
      %v4253 = vld [vmem:[%s4252] sm:$0xff]
      %v4254 = vld [vmem:[%s4252 + $0x8] sm:$0x1]
      %v4255 = vld [vmem:[%s4252 + $0x10] sm:$0xff]
      %v4256 = vld [vmem:[%s4252 + $0x18] sm:$0x1]
      %v4257 = vld [vmem:[%s4252 + $0x20] sm:$0xff]
      %v4258 = vld [vmem:[%s4252 + $0x28] sm:$0x1]
      %v4259 = vmul.f32 %v4250, %v4253
      %v4260 = vmul.f32 %v4251, %v4254
      %v4261 = vmul.f32 %v4250, %v4255
      %v4262 = vmul.f32 %v4251, %v4256
      %v4263 = vmul.f32 %v4250, %v4257
      %v4264 = vmul.f32 %v4251, %v4258
      %v4265 = vadd.f32 %v4244, %v4259
      %v4266 = vadd.f32 %v4245, %v4260
      %v4267 = vadd.f32 %v4246, %v4261
      %v4268 = vadd.f32 %v4247, %v4262
      %v4269 = vadd.f32 %v4248, %v4263
      %v4270 = vadd.f32 %v4249, %v4264
      %s4271 = scalar_lea.vmem %s3, 1968
      %v4272 = vld [vmem:[%s4271] sm:$0xff]
      %v4273 = vld [vmem:[%s4271 + $0x8] sm:$0x1]
      %v4274 = vld [vmem:[%s4271 + $0x10] sm:$0xff]
      %v4275 = vld [vmem:[%s4271 + $0x18] sm:$0x1]
      %v4276 = vld [vmem:[%s4271 + $0x20] sm:$0xff]
      %v4277 = vld [vmem:[%s4271 + $0x28] sm:$0x1]
      %4284 = vrot.lane.b32.xlu0 %v4272, 1
      %v4285 = vpop.permute.xlu0 %4284
      %4286 = vrot.lane.b32.xlu0 %v4273, 1
      %v4287 = vpop.permute.xlu0 %4286
      %4288 = vrot.lane.b32.xlu0 %v4274, 1
      %v4289 = vpop.permute.xlu0 %4288
      %4290 = vrot.lane.b32.xlu0 %v4275, 1
      %v4291 = vpop.permute.xlu0 %4290
      %4292 = vrot.lane.b32.xlu0 %v4276, 1
      %v4293 = vpop.permute.xlu0 %4292
      %4294 = vrot.lane.b32.xlu0 %v4277, 1
      %v4295 = vpop.permute.xlu0 %4294
      %v4302 = vmul.f32 %v4250, %v4285
      %v4303 = vmul.f32 %v4251, %v4287
      %v4304 = vmul.f32 %v4250, %v4289
      %v4305 = vmul.f32 %v4251, %v4291
      %v4306 = vmul.f32 %v4250, %v4293
      %v4307 = vmul.f32 %v4251, %v4295
      %4314 = vrot.lane.b32.xlu0 %v4302, 127
      %v4315 = vpop.permute.xlu0 %4314
      %4316 = vrot.lane.b32.xlu0 %v4303, 127
      %v4317 = vpop.permute.xlu0 %4316
      %4318 = vrot.lane.b32.xlu0 %v4304, 127
      %v4319 = vpop.permute.xlu0 %4318
      %4320 = vrot.lane.b32.xlu0 %v4305, 127
      %v4321 = vpop.permute.xlu0 %4320
      %4322 = vrot.lane.b32.xlu0 %v4306, 127
      %v4323 = vpop.permute.xlu0 %4322
      %4324 = vrot.lane.b32.xlu0 %v4307, 127
      %v4325 = vpop.permute.xlu0 %4324
      %v4332 = vadd.f32 %v4265, %v4315
      %v4333 = vadd.f32 %v4266, %v4317
      %v4334 = vadd.f32 %v4267, %v4319
      %v4335 = vadd.f32 %v4268, %v4321
      %v4336 = vadd.f32 %v4269, %v4323
      %v4337 = vadd.f32 %v4270, %v4325
      %s4338 = scalar_lea.vmem %s3, 2016
      %v4339 = vld [vmem:[%s4338] sm:$0xff]
      %v4340 = vld [vmem:[%s4338 + $0x8] sm:$0x1]
      %v4341 = vld [vmem:[%s4338 + $0x10] sm:$0xff]
      %v4342 = vld [vmem:[%s4338 + $0x18] sm:$0x1]
      %v4343 = vld [vmem:[%s4338 + $0x20] sm:$0xff]
      %v4344 = vld [vmem:[%s4338 + $0x28] sm:$0x1]
      %4351 = vrot.lane.b32.xlu0 %v4339, 2
      %v4352 = vpop.permute.xlu0 %4351
      %4353 = vrot.lane.b32.xlu0 %v4340, 2
      %v4354 = vpop.permute.xlu0 %4353
      %4355 = vrot.lane.b32.xlu0 %v4341, 2
      %v4356 = vpop.permute.xlu0 %4355
      %4357 = vrot.lane.b32.xlu0 %v4342, 2
      %v4358 = vpop.permute.xlu0 %4357
      %4359 = vrot.lane.b32.xlu0 %v4343, 2
      %v4360 = vpop.permute.xlu0 %4359
      %4361 = vrot.lane.b32.xlu0 %v4344, 2
      %v4362 = vpop.permute.xlu0 %4361
      %v4369 = vmul.f32 %v4250, %v4352
      %v4370 = vmul.f32 %v4251, %v4354
      %v4371 = vmul.f32 %v4250, %v4356
      %v4372 = vmul.f32 %v4251, %v4358
      %v4373 = vmul.f32 %v4250, %v4360
      %v4374 = vmul.f32 %v4251, %v4362
      %4381 = vrot.lane.b32.xlu0 %v4369, 126
      %v4382 = vpop.permute.xlu0 %4381
      %4383 = vrot.lane.b32.xlu0 %v4370, 126
      %v4384 = vpop.permute.xlu0 %4383
      %4385 = vrot.lane.b32.xlu0 %v4371, 126
      %v4386 = vpop.permute.xlu0 %4385
      %4387 = vrot.lane.b32.xlu0 %v4372, 126
      %v4388 = vpop.permute.xlu0 %4387
      %4389 = vrot.lane.b32.xlu0 %v4373, 126
      %v4390 = vpop.permute.xlu0 %4389
      %4391 = vrot.lane.b32.xlu0 %v4374, 126
      %v4392 = vpop.permute.xlu0 %4391
      %v4399 = vadd.f32 %v4332, %v4382
      %v4400 = vadd.f32 %v4333, %v4384
      %v4401 = vadd.f32 %v4334, %v4386
      %v4402 = vadd.f32 %v4335, %v4388
      %v4403 = vadd.f32 %v4336, %v4390
      %v4404 = vadd.f32 %v4337, %v4392
      %s4405 = scalar_lea.vmem %s3, 2064
      %v4406 = vld [vmem:[%s4405] sm:$0xff]
      %v4407 = vld [vmem:[%s4405 + $0x8] sm:$0x1]
      %v4408 = vld [vmem:[%s4405 + $0x10] sm:$0xff]
      %v4409 = vld [vmem:[%s4405 + $0x18] sm:$0x1]
      %v4410 = vld [vmem:[%s4405 + $0x20] sm:$0xff]
      %v4411 = vld [vmem:[%s4405 + $0x28] sm:$0x1]
      %4418 = vrot.lane.b32.xlu0 %v4406, 3
      %v4419 = vpop.permute.xlu0 %4418
      %4420 = vrot.lane.b32.xlu0 %v4407, 3
      %v4421 = vpop.permute.xlu0 %4420
      %4422 = vrot.lane.b32.xlu0 %v4408, 3
      %v4423 = vpop.permute.xlu0 %4422
      %4424 = vrot.lane.b32.xlu0 %v4409, 3
      %v4425 = vpop.permute.xlu0 %4424
      %4426 = vrot.lane.b32.xlu0 %v4410, 3
      %v4427 = vpop.permute.xlu0 %4426
      %4428 = vrot.lane.b32.xlu0 %v4411, 3
      %v4429 = vpop.permute.xlu0 %4428
      %v4436 = vmul.f32 %v4250, %v4419
      %v4437 = vmul.f32 %v4251, %v4421
      %v4438 = vmul.f32 %v4250, %v4423
      %v4439 = vmul.f32 %v4251, %v4425
      %v4440 = vmul.f32 %v4250, %v4427
      %v4441 = vmul.f32 %v4251, %v4429
      %4448 = vrot.lane.b32.xlu0 %v4436, 125
      %v4449 = vpop.permute.xlu0 %4448
      %4450 = vrot.lane.b32.xlu0 %v4437, 125
      %v4451 = vpop.permute.xlu0 %4450
      %4452 = vrot.lane.b32.xlu0 %v4438, 125
      %v4453 = vpop.permute.xlu0 %4452
      %4454 = vrot.lane.b32.xlu0 %v4439, 125
      %v4455 = vpop.permute.xlu0 %4454
      %4456 = vrot.lane.b32.xlu0 %v4440, 125
      %v4457 = vpop.permute.xlu0 %4456
      %4458 = vrot.lane.b32.xlu0 %v4441, 125
      %v4459 = vpop.permute.xlu0 %4458
      %v4466 = vadd.f32 %v4399, %v4449
      %v4467 = vadd.f32 %v4400, %v4451
      %v4468 = vadd.f32 %v4401, %v4453
      %v4469 = vadd.f32 %v4402, %v4455
      %v4470 = vadd.f32 %v4403, %v4457
      %v4471 = vadd.f32 %v4404, %v4459
      %s4472 = scalar_lea.vmem %s3, 2112
      %v4473 = vld [vmem:[%s4472] sm:$0xff]
      %v4474 = vld [vmem:[%s4472 + $0x8] sm:$0x1]
      %v4475 = vld [vmem:[%s4472 + $0x10] sm:$0xff]
      %v4476 = vld [vmem:[%s4472 + $0x18] sm:$0x1]
      %v4477 = vld [vmem:[%s4472 + $0x20] sm:$0xff]
      %v4478 = vld [vmem:[%s4472 + $0x28] sm:$0x1]
      %4485 = vrot.lane.b32.xlu0 %v4473, 4
      %v4486 = vpop.permute.xlu0 %4485
      %4487 = vrot.lane.b32.xlu0 %v4474, 4
      %v4488 = vpop.permute.xlu0 %4487
      %4489 = vrot.lane.b32.xlu0 %v4475, 4
      %v4490 = vpop.permute.xlu0 %4489
      %4491 = vrot.lane.b32.xlu0 %v4476, 4
      %v4492 = vpop.permute.xlu0 %4491
      %4493 = vrot.lane.b32.xlu0 %v4477, 4
      %v4494 = vpop.permute.xlu0 %4493
      %4495 = vrot.lane.b32.xlu0 %v4478, 4
      %v4496 = vpop.permute.xlu0 %4495
      %v4503 = vmul.f32 %v4250, %v4486
      %v4504 = vmul.f32 %v4251, %v4488
      %v4505 = vmul.f32 %v4250, %v4490
      %v4506 = vmul.f32 %v4251, %v4492
      %v4507 = vmul.f32 %v4250, %v4494
      %v4508 = vmul.f32 %v4251, %v4496
      %4515 = vrot.lane.b32.xlu0 %v4503, 124
      %v4516 = vpop.permute.xlu0 %4515
      %4517 = vrot.lane.b32.xlu0 %v4504, 124
      %v4518 = vpop.permute.xlu0 %4517
      %4519 = vrot.lane.b32.xlu0 %v4505, 124
      %v4520 = vpop.permute.xlu0 %4519
      %4521 = vrot.lane.b32.xlu0 %v4506, 124
      %v4522 = vpop.permute.xlu0 %4521
      %4523 = vrot.lane.b32.xlu0 %v4507, 124
      %v4524 = vpop.permute.xlu0 %4523
      %4525 = vrot.lane.b32.xlu0 %v4508, 124
      %v4526 = vpop.permute.xlu0 %4525
      %v4533 = vadd.f32 %v4466, %v4516
      %v4534 = vadd.f32 %v4467, %v4518
      %v4535 = vadd.f32 %v4468, %v4520
      %v4536 = vadd.f32 %v4469, %v4522
      %v4537 = vadd.f32 %v4470, %v4524
      %v4538 = vadd.f32 %v4471, %v4526
      %v4539 = vld [vmem:[#allocation2 + $0x11] sm:$0xff]
      %v4540 = vld [vmem:[#allocation2 + $0x19] sm:$0x1]
      %s4541 = scalar_lea.vmem %s3, 2160
      %v4542 = vld [vmem:[%s4541] sm:$0xff]
      %v4543 = vld [vmem:[%s4541 + $0x8] sm:$0x1]
      %v4544 = vld [vmem:[%s4541 + $0x10] sm:$0xff]
      %v4545 = vld [vmem:[%s4541 + $0x18] sm:$0x1]
      %v4546 = vld [vmem:[%s4541 + $0x20] sm:$0xff]
      %v4547 = vld [vmem:[%s4541 + $0x28] sm:$0x1]
      %v4548 = vmul.f32 %v4539, %v4542
      %v4549 = vmul.f32 %v4540, %v4543
      %v4550 = vmul.f32 %v4539, %v4544
      %v4551 = vmul.f32 %v4540, %v4545
      %v4552 = vmul.f32 %v4539, %v4546
      %v4553 = vmul.f32 %v4540, %v4547
      %v4554 = vadd.f32 %v4533, %v4548
      %v4555 = vadd.f32 %v4534, %v4549
      %v4556 = vadd.f32 %v4535, %v4550
      %v4557 = vadd.f32 %v4536, %v4551
      %v4558 = vadd.f32 %v4537, %v4552
      %v4559 = vadd.f32 %v4538, %v4553
      %s4560 = scalar_lea.vmem %s3, 2208
      %v4561 = vld [vmem:[%s4560] sm:$0xff]
      %v4562 = vld [vmem:[%s4560 + $0x8] sm:$0x1]
      %v4563 = vld [vmem:[%s4560 + $0x10] sm:$0xff]
      %v4564 = vld [vmem:[%s4560 + $0x18] sm:$0x1]
      %v4565 = vld [vmem:[%s4560 + $0x20] sm:$0xff]
      %v4566 = vld [vmem:[%s4560 + $0x28] sm:$0x1]
      %4573 = vrot.lane.b32.xlu0 %v4561, 1
      %v4574 = vpop.permute.xlu0 %4573
      %4575 = vrot.lane.b32.xlu0 %v4562, 1
      %v4576 = vpop.permute.xlu0 %4575
      %4577 = vrot.lane.b32.xlu0 %v4563, 1
      %v4578 = vpop.permute.xlu0 %4577
      %4579 = vrot.lane.b32.xlu0 %v4564, 1
      %v4580 = vpop.permute.xlu0 %4579
      %4581 = vrot.lane.b32.xlu0 %v4565, 1
      %v4582 = vpop.permute.xlu0 %4581
      %4583 = vrot.lane.b32.xlu0 %v4566, 1
      %v4584 = vpop.permute.xlu0 %4583
      %v4591 = vmul.f32 %v4539, %v4574
      %v4592 = vmul.f32 %v4540, %v4576
      %v4593 = vmul.f32 %v4539, %v4578
      %v4594 = vmul.f32 %v4540, %v4580
      %v4595 = vmul.f32 %v4539, %v4582
      %v4596 = vmul.f32 %v4540, %v4584
      %4603 = vrot.lane.b32.xlu0 %v4591, 127
      %v4604 = vpop.permute.xlu0 %4603
      %4605 = vrot.lane.b32.xlu0 %v4592, 127
      %v4606 = vpop.permute.xlu0 %4605
      %4607 = vrot.lane.b32.xlu0 %v4593, 127
      %v4608 = vpop.permute.xlu0 %4607
      %4609 = vrot.lane.b32.xlu0 %v4594, 127
      %v4610 = vpop.permute.xlu0 %4609
      %4611 = vrot.lane.b32.xlu0 %v4595, 127
      %v4612 = vpop.permute.xlu0 %4611
      %4613 = vrot.lane.b32.xlu0 %v4596, 127
      %v4614 = vpop.permute.xlu0 %4613
      %v4621 = vadd.f32 %v4554, %v4604
      %v4622 = vadd.f32 %v4555, %v4606
      %v4623 = vadd.f32 %v4556, %v4608
      %v4624 = vadd.f32 %v4557, %v4610
      %v4625 = vadd.f32 %v4558, %v4612
      %v4626 = vadd.f32 %v4559, %v4614
      %s4627 = scalar_lea.vmem %s3, 2256
      %v4628 = vld [vmem:[%s4627] sm:$0xff]
      %v4629 = vld [vmem:[%s4627 + $0x8] sm:$0x1]
      %v4630 = vld [vmem:[%s4627 + $0x10] sm:$0xff]
      %v4631 = vld [vmem:[%s4627 + $0x18] sm:$0x1]
      %v4632 = vld [vmem:[%s4627 + $0x20] sm:$0xff]
      %v4633 = vld [vmem:[%s4627 + $0x28] sm:$0x1]
      %4640 = vrot.lane.b32.xlu0 %v4628, 2
      %v4641 = vpop.permute.xlu0 %4640
      %4642 = vrot.lane.b32.xlu0 %v4629, 2
      %v4643 = vpop.permute.xlu0 %4642
      %4644 = vrot.lane.b32.xlu0 %v4630, 2
      %v4645 = vpop.permute.xlu0 %4644
      %4646 = vrot.lane.b32.xlu0 %v4631, 2
      %v4647 = vpop.permute.xlu0 %4646
      %4648 = vrot.lane.b32.xlu0 %v4632, 2
      %v4649 = vpop.permute.xlu0 %4648
      %4650 = vrot.lane.b32.xlu0 %v4633, 2
      %v4651 = vpop.permute.xlu0 %4650
      %v4658 = vmul.f32 %v4539, %v4641
      %v4659 = vmul.f32 %v4540, %v4643
      %v4660 = vmul.f32 %v4539, %v4645
      %v4661 = vmul.f32 %v4540, %v4647
      %v4662 = vmul.f32 %v4539, %v4649
      %v4663 = vmul.f32 %v4540, %v4651
      %4670 = vrot.lane.b32.xlu0 %v4658, 126
      %v4671 = vpop.permute.xlu0 %4670
      %4672 = vrot.lane.b32.xlu0 %v4659, 126
      %v4673 = vpop.permute.xlu0 %4672
      %4674 = vrot.lane.b32.xlu0 %v4660, 126
      %v4675 = vpop.permute.xlu0 %4674
      %4676 = vrot.lane.b32.xlu0 %v4661, 126
      %v4677 = vpop.permute.xlu0 %4676
      %4678 = vrot.lane.b32.xlu0 %v4662, 126
      %v4679 = vpop.permute.xlu0 %4678
      %4680 = vrot.lane.b32.xlu0 %v4663, 126
      %v4681 = vpop.permute.xlu0 %4680
      %v4688 = vadd.f32 %v4621, %v4671
      %v4689 = vadd.f32 %v4622, %v4673
      %v4690 = vadd.f32 %v4623, %v4675
      %v4691 = vadd.f32 %v4624, %v4677
      %v4692 = vadd.f32 %v4625, %v4679
      %v4693 = vadd.f32 %v4626, %v4681
      %s4694 = scalar_lea.vmem %s3, 2304
      %v4695 = vld [vmem:[%s4694] sm:$0xff]
      %v4696 = vld [vmem:[%s4694 + $0x8] sm:$0x1]
      %v4697 = vld [vmem:[%s4694 + $0x10] sm:$0xff]
      %v4698 = vld [vmem:[%s4694 + $0x18] sm:$0x1]
      %v4699 = vld [vmem:[%s4694 + $0x20] sm:$0xff]
      %v4700 = vld [vmem:[%s4694 + $0x28] sm:$0x1]
      %4707 = vrot.lane.b32.xlu0 %v4695, 3
      %v4708 = vpop.permute.xlu0 %4707
      %4709 = vrot.lane.b32.xlu0 %v4696, 3
      %v4710 = vpop.permute.xlu0 %4709
      %4711 = vrot.lane.b32.xlu0 %v4697, 3
      %v4712 = vpop.permute.xlu0 %4711
      %4713 = vrot.lane.b32.xlu0 %v4698, 3
      %v4714 = vpop.permute.xlu0 %4713
      %4715 = vrot.lane.b32.xlu0 %v4699, 3
      %v4716 = vpop.permute.xlu0 %4715
      %4717 = vrot.lane.b32.xlu0 %v4700, 3
      %v4718 = vpop.permute.xlu0 %4717
      %v4725 = vmul.f32 %v4539, %v4708
      %v4726 = vmul.f32 %v4540, %v4710
      %v4727 = vmul.f32 %v4539, %v4712
      %v4728 = vmul.f32 %v4540, %v4714
      %v4729 = vmul.f32 %v4539, %v4716
      %v4730 = vmul.f32 %v4540, %v4718
      %4737 = vrot.lane.b32.xlu0 %v4725, 125
      %v4738 = vpop.permute.xlu0 %4737
      %4739 = vrot.lane.b32.xlu0 %v4726, 125
      %v4740 = vpop.permute.xlu0 %4739
      %4741 = vrot.lane.b32.xlu0 %v4727, 125
      %v4742 = vpop.permute.xlu0 %4741
      %4743 = vrot.lane.b32.xlu0 %v4728, 125
      %v4744 = vpop.permute.xlu0 %4743
      %4745 = vrot.lane.b32.xlu0 %v4729, 125
      %v4746 = vpop.permute.xlu0 %4745
      %4747 = vrot.lane.b32.xlu0 %v4730, 125
      %v4748 = vpop.permute.xlu0 %4747
      %v4755 = vadd.f32 %v4688, %v4738
      %v4756 = vadd.f32 %v4689, %v4740
      %v4757 = vadd.f32 %v4690, %v4742
      %v4758 = vadd.f32 %v4691, %v4744
      %v4759 = vadd.f32 %v4692, %v4746
      %v4760 = vadd.f32 %v4693, %v4748
      %s4761 = scalar_lea.vmem %s3, 2352
      %v4762 = vld [vmem:[%s4761] sm:$0xff]
      %v4763 = vld [vmem:[%s4761 + $0x8] sm:$0x1]
      %v4764 = vld [vmem:[%s4761 + $0x10] sm:$0xff]
      %v4765 = vld [vmem:[%s4761 + $0x18] sm:$0x1]
      %v4766 = vld [vmem:[%s4761 + $0x20] sm:$0xff]
      %v4767 = vld [vmem:[%s4761 + $0x28] sm:$0x1]
      %4774 = vrot.lane.b32.xlu0 %v4762, 4
      %v4775 = vpop.permute.xlu0 %4774
      %4776 = vrot.lane.b32.xlu0 %v4763, 4
      %v4777 = vpop.permute.xlu0 %4776
      %4778 = vrot.lane.b32.xlu0 %v4764, 4
      %v4779 = vpop.permute.xlu0 %4778
      %4780 = vrot.lane.b32.xlu0 %v4765, 4
      %v4781 = vpop.permute.xlu0 %4780
      %4782 = vrot.lane.b32.xlu0 %v4766, 4
      %v4783 = vpop.permute.xlu0 %4782
      %4784 = vrot.lane.b32.xlu0 %v4767, 4
      %v4785 = vpop.permute.xlu0 %4784
      %v4792 = vmul.f32 %v4539, %v4775
      %v4793 = vmul.f32 %v4540, %v4777
      %v4794 = vmul.f32 %v4539, %v4779
      %v4795 = vmul.f32 %v4540, %v4781
      %v4796 = vmul.f32 %v4539, %v4783
      %v4797 = vmul.f32 %v4540, %v4785
      %4804 = vrot.lane.b32.xlu0 %v4792, 124
      %v4805 = vpop.permute.xlu0 %4804
      %4806 = vrot.lane.b32.xlu0 %v4793, 124
      %v4807 = vpop.permute.xlu0 %4806
      %4808 = vrot.lane.b32.xlu0 %v4794, 124
      %v4809 = vpop.permute.xlu0 %4808
      %4810 = vrot.lane.b32.xlu0 %v4795, 124
      %v4811 = vpop.permute.xlu0 %4810
      %4812 = vrot.lane.b32.xlu0 %v4796, 124
      %v4813 = vpop.permute.xlu0 %4812
      %4814 = vrot.lane.b32.xlu0 %v4797, 124
      %v4815 = vpop.permute.xlu0 %4814
      %v4822 = vadd.f32 %v4755, %v4805
      %v4823 = vadd.f32 %v4756, %v4807
      %v4824 = vadd.f32 %v4757, %v4809
      %v4825 = vadd.f32 %v4758, %v4811
      %v4826 = vadd.f32 %v4759, %v4813
      %v4827 = vadd.f32 %v4760, %v4815
      %v4828 = vld [vmem:[#allocation2 + $0x1a] sm:$0xff]
      %v4829 = vld [vmem:[#allocation2 + $0x22] sm:$0x1]
      %s4830 = scalar_lea.vmem %s3, 2400
      %v4831 = vld [vmem:[%s4830] sm:$0xff]
      %v4832 = vld [vmem:[%s4830 + $0x8] sm:$0x1]
      %v4833 = vld [vmem:[%s4830 + $0x10] sm:$0xff]
      %v4834 = vld [vmem:[%s4830 + $0x18] sm:$0x1]
      %v4835 = vld [vmem:[%s4830 + $0x20] sm:$0xff]
      %v4836 = vld [vmem:[%s4830 + $0x28] sm:$0x1]
      %v4837 = vmul.f32 %v4828, %v4831
      %v4838 = vmul.f32 %v4829, %v4832
      %v4839 = vmul.f32 %v4828, %v4833
      %v4840 = vmul.f32 %v4829, %v4834
      %v4841 = vmul.f32 %v4828, %v4835
      %v4842 = vmul.f32 %v4829, %v4836
      %s4843 = scalar_lea.vmem %s3, 2448
      %v4844 = vld [vmem:[%s4843] sm:$0xff]
      %v4845 = vld [vmem:[%s4843 + $0x8] sm:$0x1]
      %v4846 = vld [vmem:[%s4843 + $0x10] sm:$0xff]
      %v4847 = vld [vmem:[%s4843 + $0x18] sm:$0x1]
      %v4848 = vld [vmem:[%s4843 + $0x20] sm:$0xff]
      %v4849 = vld [vmem:[%s4843 + $0x28] sm:$0x1]
      %4856 = vrot.lane.b32.xlu0 %v4844, 1
      %v4857 = vpop.permute.xlu0 %4856
      %4858 = vrot.lane.b32.xlu0 %v4845, 1
      %v4859 = vpop.permute.xlu0 %4858
      %4860 = vrot.lane.b32.xlu0 %v4846, 1
      %v4861 = vpop.permute.xlu0 %4860
      %4862 = vrot.lane.b32.xlu0 %v4847, 1
      %v4863 = vpop.permute.xlu0 %4862
      %4864 = vrot.lane.b32.xlu0 %v4848, 1
      %v4865 = vpop.permute.xlu0 %4864
      %4866 = vrot.lane.b32.xlu0 %v4849, 1
      %v4867 = vpop.permute.xlu0 %4866
      %v4874 = vmul.f32 %v4828, %v4857
      %v4875 = vmul.f32 %v4829, %v4859
      %v4876 = vmul.f32 %v4828, %v4861
      %v4877 = vmul.f32 %v4829, %v4863
      %v4878 = vmul.f32 %v4828, %v4865
      %v4879 = vmul.f32 %v4829, %v4867
      %4886 = vrot.lane.b32.xlu0 %v4874, 127
      %v4887 = vpop.permute.xlu0 %4886
      %4888 = vrot.lane.b32.xlu0 %v4875, 127
      %v4889 = vpop.permute.xlu0 %4888
      %4890 = vrot.lane.b32.xlu0 %v4876, 127
      %v4891 = vpop.permute.xlu0 %4890
      %4892 = vrot.lane.b32.xlu0 %v4877, 127
      %v4893 = vpop.permute.xlu0 %4892
      %4894 = vrot.lane.b32.xlu0 %v4878, 127
      %v4895 = vpop.permute.xlu0 %4894
      %4896 = vrot.lane.b32.xlu0 %v4879, 127
      %v4897 = vpop.permute.xlu0 %4896
      %v4904 = vadd.f32 %v4837, %v4887
      %v4905 = vadd.f32 %v4838, %v4889
      %v4906 = vadd.f32 %v4839, %v4891
      %v4907 = vadd.f32 %v4840, %v4893
      %v4908 = vadd.f32 %v4841, %v4895
      %v4909 = vadd.f32 %v4842, %v4897
      %s4910 = scalar_lea.vmem %s3, 2496
      %v4911 = vld [vmem:[%s4910] sm:$0xff]
      %v4912 = vld [vmem:[%s4910 + $0x8] sm:$0x1]
      %v4913 = vld [vmem:[%s4910 + $0x10] sm:$0xff]
      %v4914 = vld [vmem:[%s4910 + $0x18] sm:$0x1]
      %v4915 = vld [vmem:[%s4910 + $0x20] sm:$0xff]
      %v4916 = vld [vmem:[%s4910 + $0x28] sm:$0x1]
      %4923 = vrot.lane.b32.xlu0 %v4911, 2
      %v4924 = vpop.permute.xlu0 %4923
      %4925 = vrot.lane.b32.xlu0 %v4912, 2
      %v4926 = vpop.permute.xlu0 %4925
      %4927 = vrot.lane.b32.xlu0 %v4913, 2
      %v4928 = vpop.permute.xlu0 %4927
      %4929 = vrot.lane.b32.xlu0 %v4914, 2
      %v4930 = vpop.permute.xlu0 %4929
      %4931 = vrot.lane.b32.xlu0 %v4915, 2
      %v4932 = vpop.permute.xlu0 %4931
      %4933 = vrot.lane.b32.xlu0 %v4916, 2
      %v4934 = vpop.permute.xlu0 %4933
      %v4941 = vmul.f32 %v4828, %v4924
      %v4942 = vmul.f32 %v4829, %v4926
      %v4943 = vmul.f32 %v4828, %v4928
      %v4944 = vmul.f32 %v4829, %v4930
      %v4945 = vmul.f32 %v4828, %v4932
      %v4946 = vmul.f32 %v4829, %v4934
      %4953 = vrot.lane.b32.xlu0 %v4941, 126
      %v4954 = vpop.permute.xlu0 %4953
      %4955 = vrot.lane.b32.xlu0 %v4942, 126
      %v4956 = vpop.permute.xlu0 %4955
      %4957 = vrot.lane.b32.xlu0 %v4943, 126
      %v4958 = vpop.permute.xlu0 %4957
      %4959 = vrot.lane.b32.xlu0 %v4944, 126
      %v4960 = vpop.permute.xlu0 %4959
      %4961 = vrot.lane.b32.xlu0 %v4945, 126
      %v4962 = vpop.permute.xlu0 %4961
      %4963 = vrot.lane.b32.xlu0 %v4946, 126
      %v4964 = vpop.permute.xlu0 %4963
      %v4971 = vadd.f32 %v4904, %v4954
      %v4972 = vadd.f32 %v4905, %v4956
      %v4973 = vadd.f32 %v4906, %v4958
      %v4974 = vadd.f32 %v4907, %v4960
      %v4975 = vadd.f32 %v4908, %v4962
      %v4976 = vadd.f32 %v4909, %v4964
      %s4977 = scalar_lea.vmem %s3, 2544
      %v4978 = vld [vmem:[%s4977] sm:$0xff]
      %v4979 = vld [vmem:[%s4977 + $0x8] sm:$0x1]
      %v4980 = vld [vmem:[%s4977 + $0x10] sm:$0xff]
      %v4981 = vld [vmem:[%s4977 + $0x18] sm:$0x1]
      %v4982 = vld [vmem:[%s4977 + $0x20] sm:$0xff]
      %v4983 = vld [vmem:[%s4977 + $0x28] sm:$0x1]
      %4990 = vrot.lane.b32.xlu0 %v4978, 3
      %v4991 = vpop.permute.xlu0 %4990
      %4992 = vrot.lane.b32.xlu0 %v4979, 3
      %v4993 = vpop.permute.xlu0 %4992
      %4994 = vrot.lane.b32.xlu0 %v4980, 3
      %v4995 = vpop.permute.xlu0 %4994
      %4996 = vrot.lane.b32.xlu0 %v4981, 3
      %v4997 = vpop.permute.xlu0 %4996
      %4998 = vrot.lane.b32.xlu0 %v4982, 3
      %v4999 = vpop.permute.xlu0 %4998
      %5000 = vrot.lane.b32.xlu0 %v4983, 3
      %v5001 = vpop.permute.xlu0 %5000
      %v5008 = vmul.f32 %v4828, %v4991
      %v5009 = vmul.f32 %v4829, %v4993
      %v5010 = vmul.f32 %v4828, %v4995
      %v5011 = vmul.f32 %v4829, %v4997
      %v5012 = vmul.f32 %v4828, %v4999
      %v5013 = vmul.f32 %v4829, %v5001
      %5020 = vrot.lane.b32.xlu0 %v5008, 125
      %v5021 = vpop.permute.xlu0 %5020
      %5022 = vrot.lane.b32.xlu0 %v5009, 125
      %v5023 = vpop.permute.xlu0 %5022
      %5024 = vrot.lane.b32.xlu0 %v5010, 125
      %v5025 = vpop.permute.xlu0 %5024
      %5026 = vrot.lane.b32.xlu0 %v5011, 125
      %v5027 = vpop.permute.xlu0 %5026
      %5028 = vrot.lane.b32.xlu0 %v5012, 125
      %v5029 = vpop.permute.xlu0 %5028
      %5030 = vrot.lane.b32.xlu0 %v5013, 125
      %v5031 = vpop.permute.xlu0 %5030
      %v5038 = vadd.f32 %v4971, %v5021
      %v5039 = vadd.f32 %v4972, %v5023
      %v5040 = vadd.f32 %v4973, %v5025
      %v5041 = vadd.f32 %v4974, %v5027
      %v5042 = vadd.f32 %v4975, %v5029
      %v5043 = vadd.f32 %v4976, %v5031
      %s5044 = scalar_lea.vmem %s3, 2592
      %v5045 = vld [vmem:[%s5044] sm:$0xff]
      %v5046 = vld [vmem:[%s5044 + $0x8] sm:$0x1]
      %v5047 = vld [vmem:[%s5044 + $0x10] sm:$0xff]
      %v5048 = vld [vmem:[%s5044 + $0x18] sm:$0x1]
      %v5049 = vld [vmem:[%s5044 + $0x20] sm:$0xff]
      %v5050 = vld [vmem:[%s5044 + $0x28] sm:$0x1]
      %5057 = vrot.lane.b32.xlu0 %v5045, 4
      %v5058 = vpop.permute.xlu0 %5057
      %5059 = vrot.lane.b32.xlu0 %v5046, 4
      %v5060 = vpop.permute.xlu0 %5059
      %5061 = vrot.lane.b32.xlu0 %v5047, 4
      %v5062 = vpop.permute.xlu0 %5061
      %5063 = vrot.lane.b32.xlu0 %v5048, 4
      %v5064 = vpop.permute.xlu0 %5063
      %5065 = vrot.lane.b32.xlu0 %v5049, 4
      %v5066 = vpop.permute.xlu0 %5065
      %5067 = vrot.lane.b32.xlu0 %v5050, 4
      %v5068 = vpop.permute.xlu0 %5067
      %v5075 = vmul.f32 %v4828, %v5058
      %v5076 = vmul.f32 %v4829, %v5060
      %v5077 = vmul.f32 %v4828, %v5062
      %v5078 = vmul.f32 %v4829, %v5064
      %v5079 = vmul.f32 %v4828, %v5066
      %v5080 = vmul.f32 %v4829, %v5068
      %5087 = vrot.lane.b32.xlu0 %v5075, 124
      %v5088 = vpop.permute.xlu0 %5087
      %5089 = vrot.lane.b32.xlu0 %v5076, 124
      %v5090 = vpop.permute.xlu0 %5089
      %5091 = vrot.lane.b32.xlu0 %v5077, 124
      %v5092 = vpop.permute.xlu0 %5091
      %5093 = vrot.lane.b32.xlu0 %v5078, 124
      %v5094 = vpop.permute.xlu0 %5093
      %5095 = vrot.lane.b32.xlu0 %v5079, 124
      %v5096 = vpop.permute.xlu0 %5095
      %5097 = vrot.lane.b32.xlu0 %v5080, 124
      %v5098 = vpop.permute.xlu0 %5097
      %v5105 = vadd.f32 %v5038, %v5088
      %v5106 = vadd.f32 %v5039, %v5090
      %v5107 = vadd.f32 %v5040, %v5092
      %v5108 = vadd.f32 %v5041, %v5094
      %v5109 = vadd.f32 %v5042, %v5096
      %v5110 = vadd.f32 %v5043, %v5098
      %v5111 = vld [vmem:[#allocation2 + $0x1b] sm:$0xff]
      %v5112 = vld [vmem:[#allocation2 + $0x23] sm:$0x1]
      %s5113 = scalar_lea.vmem %s3, 2640
      %v5114 = vld [vmem:[%s5113] sm:$0xff]
      %v5115 = vld [vmem:[%s5113 + $0x8] sm:$0x1]
      %v5116 = vld [vmem:[%s5113 + $0x10] sm:$0xff]
      %v5117 = vld [vmem:[%s5113 + $0x18] sm:$0x1]
      %v5118 = vld [vmem:[%s5113 + $0x20] sm:$0xff]
      %v5119 = vld [vmem:[%s5113 + $0x28] sm:$0x1]
      %v5120 = vmul.f32 %v5111, %v5114
      %v5121 = vmul.f32 %v5112, %v5115
      %v5122 = vmul.f32 %v5111, %v5116
      %v5123 = vmul.f32 %v5112, %v5117
      %v5124 = vmul.f32 %v5111, %v5118
      %v5125 = vmul.f32 %v5112, %v5119
      %v5126 = vadd.f32 %v5105, %v5120
      %v5127 = vadd.f32 %v5106, %v5121
      %v5128 = vadd.f32 %v5107, %v5122
      %v5129 = vadd.f32 %v5108, %v5123
      %v5130 = vadd.f32 %v5109, %v5124
      %v5131 = vadd.f32 %v5110, %v5125
      %s5132 = scalar_lea.vmem %s3, 2688
      %v5133 = vld [vmem:[%s5132] sm:$0xff]
      %v5134 = vld [vmem:[%s5132 + $0x8] sm:$0x1]
      %v5135 = vld [vmem:[%s5132 + $0x10] sm:$0xff]
      %v5136 = vld [vmem:[%s5132 + $0x18] sm:$0x1]
      %v5137 = vld [vmem:[%s5132 + $0x20] sm:$0xff]
      %v5138 = vld [vmem:[%s5132 + $0x28] sm:$0x1]
      %5145 = vrot.lane.b32.xlu0 %v5133, 1
      %v5146 = vpop.permute.xlu0 %5145
      %5147 = vrot.lane.b32.xlu0 %v5134, 1
      %v5148 = vpop.permute.xlu0 %5147
      %5149 = vrot.lane.b32.xlu0 %v5135, 1
      %v5150 = vpop.permute.xlu0 %5149
      %5151 = vrot.lane.b32.xlu0 %v5136, 1
      %v5152 = vpop.permute.xlu0 %5151
      %5153 = vrot.lane.b32.xlu0 %v5137, 1
      %v5154 = vpop.permute.xlu0 %5153
      %5155 = vrot.lane.b32.xlu0 %v5138, 1
      %v5156 = vpop.permute.xlu0 %5155
      %v5163 = vmul.f32 %v5111, %v5146
      %v5164 = vmul.f32 %v5112, %v5148
      %v5165 = vmul.f32 %v5111, %v5150
      %v5166 = vmul.f32 %v5112, %v5152
      %v5167 = vmul.f32 %v5111, %v5154
      %v5168 = vmul.f32 %v5112, %v5156
      %5175 = vrot.lane.b32.xlu0 %v5163, 127
      %v5176 = vpop.permute.xlu0 %5175
      %5177 = vrot.lane.b32.xlu0 %v5164, 127
      %v5178 = vpop.permute.xlu0 %5177
      %5179 = vrot.lane.b32.xlu0 %v5165, 127
      %v5180 = vpop.permute.xlu0 %5179
      %5181 = vrot.lane.b32.xlu0 %v5166, 127
      %v5182 = vpop.permute.xlu0 %5181
      %5183 = vrot.lane.b32.xlu0 %v5167, 127
      %v5184 = vpop.permute.xlu0 %5183
      %5185 = vrot.lane.b32.xlu0 %v5168, 127
      %v5186 = vpop.permute.xlu0 %5185
      %v5193 = vadd.f32 %v5126, %v5176
      %v5194 = vadd.f32 %v5127, %v5178
      %v5195 = vadd.f32 %v5128, %v5180
      %v5196 = vadd.f32 %v5129, %v5182
      %v5197 = vadd.f32 %v5130, %v5184
      %v5198 = vadd.f32 %v5131, %v5186
      %s5199 = scalar_lea.vmem %s3, 2736
      %v5200 = vld [vmem:[%s5199] sm:$0xff]
      %v5201 = vld [vmem:[%s5199 + $0x8] sm:$0x1]
      %v5202 = vld [vmem:[%s5199 + $0x10] sm:$0xff]
      %v5203 = vld [vmem:[%s5199 + $0x18] sm:$0x1]
      %v5204 = vld [vmem:[%s5199 + $0x20] sm:$0xff]
      %v5205 = vld [vmem:[%s5199 + $0x28] sm:$0x1]
      %5212 = vrot.lane.b32.xlu0 %v5200, 2
      %v5213 = vpop.permute.xlu0 %5212
      %5214 = vrot.lane.b32.xlu0 %v5201, 2
      %v5215 = vpop.permute.xlu0 %5214
      %5216 = vrot.lane.b32.xlu0 %v5202, 2
      %v5217 = vpop.permute.xlu0 %5216
      %5218 = vrot.lane.b32.xlu0 %v5203, 2
      %v5219 = vpop.permute.xlu0 %5218
      %5220 = vrot.lane.b32.xlu0 %v5204, 2
      %v5221 = vpop.permute.xlu0 %5220
      %5222 = vrot.lane.b32.xlu0 %v5205, 2
      %v5223 = vpop.permute.xlu0 %5222
      %v5230 = vmul.f32 %v5111, %v5213
      %v5231 = vmul.f32 %v5112, %v5215
      %v5232 = vmul.f32 %v5111, %v5217
      %v5233 = vmul.f32 %v5112, %v5219
      %v5234 = vmul.f32 %v5111, %v5221
      %v5235 = vmul.f32 %v5112, %v5223
      %5242 = vrot.lane.b32.xlu0 %v5230, 126
      %v5243 = vpop.permute.xlu0 %5242
      %5244 = vrot.lane.b32.xlu0 %v5231, 126
      %v5245 = vpop.permute.xlu0 %5244
      %5246 = vrot.lane.b32.xlu0 %v5232, 126
      %v5247 = vpop.permute.xlu0 %5246
      %5248 = vrot.lane.b32.xlu0 %v5233, 126
      %v5249 = vpop.permute.xlu0 %5248
      %5250 = vrot.lane.b32.xlu0 %v5234, 126
      %v5251 = vpop.permute.xlu0 %5250
      %5252 = vrot.lane.b32.xlu0 %v5235, 126
      %v5253 = vpop.permute.xlu0 %5252
      %v5260 = vadd.f32 %v5193, %v5243
      %v5261 = vadd.f32 %v5194, %v5245
      %v5262 = vadd.f32 %v5195, %v5247
      %v5263 = vadd.f32 %v5196, %v5249
      %v5264 = vadd.f32 %v5197, %v5251
      %v5265 = vadd.f32 %v5198, %v5253
      %s5266 = scalar_lea.vmem %s3, 2784
      %v5267 = vld [vmem:[%s5266] sm:$0xff]
      %v5268 = vld [vmem:[%s5266 + $0x8] sm:$0x1]
      %v5269 = vld [vmem:[%s5266 + $0x10] sm:$0xff]
      %v5270 = vld [vmem:[%s5266 + $0x18] sm:$0x1]
      %v5271 = vld [vmem:[%s5266 + $0x20] sm:$0xff]
      %v5272 = vld [vmem:[%s5266 + $0x28] sm:$0x1]
      %5279 = vrot.lane.b32.xlu0 %v5267, 3
      %v5280 = vpop.permute.xlu0 %5279
      %5281 = vrot.lane.b32.xlu0 %v5268, 3
      %v5282 = vpop.permute.xlu0 %5281
      %5283 = vrot.lane.b32.xlu0 %v5269, 3
      %v5284 = vpop.permute.xlu0 %5283
      %5285 = vrot.lane.b32.xlu0 %v5270, 3
      %v5286 = vpop.permute.xlu0 %5285
      %5287 = vrot.lane.b32.xlu0 %v5271, 3
      %v5288 = vpop.permute.xlu0 %5287
      %5289 = vrot.lane.b32.xlu0 %v5272, 3
      %v5290 = vpop.permute.xlu0 %5289
      %v5297 = vmul.f32 %v5111, %v5280
      %v5298 = vmul.f32 %v5112, %v5282
      %v5299 = vmul.f32 %v5111, %v5284
      %v5300 = vmul.f32 %v5112, %v5286
      %v5301 = vmul.f32 %v5111, %v5288
      %v5302 = vmul.f32 %v5112, %v5290
      %5309 = vrot.lane.b32.xlu0 %v5297, 125
      %v5310 = vpop.permute.xlu0 %5309
      %5311 = vrot.lane.b32.xlu0 %v5298, 125
      %v5312 = vpop.permute.xlu0 %5311
      %5313 = vrot.lane.b32.xlu0 %v5299, 125
      %v5314 = vpop.permute.xlu0 %5313
      %5315 = vrot.lane.b32.xlu0 %v5300, 125
      %v5316 = vpop.permute.xlu0 %5315
      %5317 = vrot.lane.b32.xlu0 %v5301, 125
      %v5318 = vpop.permute.xlu0 %5317
      %5319 = vrot.lane.b32.xlu0 %v5302, 125
      %v5320 = vpop.permute.xlu0 %5319
      %v5327 = vadd.f32 %v5260, %v5310
      %v5328 = vadd.f32 %v5261, %v5312
      %v5329 = vadd.f32 %v5262, %v5314
      %v5330 = vadd.f32 %v5263, %v5316
      %v5331 = vadd.f32 %v5264, %v5318
      %v5332 = vadd.f32 %v5265, %v5320
      %s5333 = scalar_lea.vmem %s3, 2832
      %v5334 = vld [vmem:[%s5333] sm:$0xff]
      %v5335 = vld [vmem:[%s5333 + $0x8] sm:$0x1]
      %v5336 = vld [vmem:[%s5333 + $0x10] sm:$0xff]
      %v5337 = vld [vmem:[%s5333 + $0x18] sm:$0x1]
      %v5338 = vld [vmem:[%s5333 + $0x20] sm:$0xff]
      %v5339 = vld [vmem:[%s5333 + $0x28] sm:$0x1]
      %5346 = vrot.lane.b32.xlu0 %v5334, 4
      %v5347 = vpop.permute.xlu0 %5346
      %5348 = vrot.lane.b32.xlu0 %v5335, 4
      %v5349 = vpop.permute.xlu0 %5348
      %5350 = vrot.lane.b32.xlu0 %v5336, 4
      %v5351 = vpop.permute.xlu0 %5350
      %5352 = vrot.lane.b32.xlu0 %v5337, 4
      %v5353 = vpop.permute.xlu0 %5352
      %5354 = vrot.lane.b32.xlu0 %v5338, 4
      %v5355 = vpop.permute.xlu0 %5354
      %5356 = vrot.lane.b32.xlu0 %v5339, 4
      %v5357 = vpop.permute.xlu0 %5356
      %v5364 = vmul.f32 %v5111, %v5347
      %v5365 = vmul.f32 %v5112, %v5349
      %v5366 = vmul.f32 %v5111, %v5351
      %v5367 = vmul.f32 %v5112, %v5353
      %v5368 = vmul.f32 %v5111, %v5355
      %v5369 = vmul.f32 %v5112, %v5357
      %5376 = vrot.lane.b32.xlu0 %v5364, 124
      %v5377 = vpop.permute.xlu0 %5376
      %5378 = vrot.lane.b32.xlu0 %v5365, 124
      %v5379 = vpop.permute.xlu0 %5378
      %5380 = vrot.lane.b32.xlu0 %v5366, 124
      %v5381 = vpop.permute.xlu0 %5380
      %5382 = vrot.lane.b32.xlu0 %v5367, 124
      %v5383 = vpop.permute.xlu0 %5382
      %5384 = vrot.lane.b32.xlu0 %v5368, 124
      %v5385 = vpop.permute.xlu0 %5384
      %5386 = vrot.lane.b32.xlu0 %v5369, 124
      %v5387 = vpop.permute.xlu0 %5386
      %v5394 = vadd.f32 %v5327, %v5377
      %v5395 = vadd.f32 %v5328, %v5379
      %v5396 = vadd.f32 %v5329, %v5381
      %v5397 = vadd.f32 %v5330, %v5383
      %v5398 = vadd.f32 %v5331, %v5385
      %v5399 = vadd.f32 %v5332, %v5387
      %v5400 = vld [vmem:[#allocation2 + $0x1c] sm:$0xff]
      %v5401 = vld [vmem:[#allocation2 + $0x24] sm:$0x1]
      %s5402 = scalar_lea.vmem %s3, 2880
      %v5403 = vld [vmem:[%s5402] sm:$0xff]
      %v5404 = vld [vmem:[%s5402 + $0x8] sm:$0x1]
      %v5405 = vld [vmem:[%s5402 + $0x10] sm:$0xff]
      %v5406 = vld [vmem:[%s5402 + $0x18] sm:$0x1]
      %v5407 = vld [vmem:[%s5402 + $0x20] sm:$0xff]
      %v5408 = vld [vmem:[%s5402 + $0x28] sm:$0x1]
      %v5409 = vmul.f32 %v5400, %v5403
      %v5410 = vmul.f32 %v5401, %v5404
      %v5411 = vmul.f32 %v5400, %v5405
      %v5412 = vmul.f32 %v5401, %v5406
      %v5413 = vmul.f32 %v5400, %v5407
      %v5414 = vmul.f32 %v5401, %v5408
      %v5415 = vadd.f32 %v5394, %v5409
      %v5416 = vadd.f32 %v5395, %v5410
      %v5417 = vadd.f32 %v5396, %v5411
      %v5418 = vadd.f32 %v5397, %v5412
      %v5419 = vadd.f32 %v5398, %v5413
      %v5420 = vadd.f32 %v5399, %v5414
      %s5421 = scalar_lea.vmem %s3, 2928
      %v5422 = vld [vmem:[%s5421] sm:$0xff]
      %v5423 = vld [vmem:[%s5421 + $0x8] sm:$0x1]
      %v5424 = vld [vmem:[%s5421 + $0x10] sm:$0xff]
      %v5425 = vld [vmem:[%s5421 + $0x18] sm:$0x1]
      %v5426 = vld [vmem:[%s5421 + $0x20] sm:$0xff]
      %v5427 = vld [vmem:[%s5421 + $0x28] sm:$0x1]
      %5434 = vrot.lane.b32.xlu0 %v5422, 1
      %v5435 = vpop.permute.xlu0 %5434
      %5436 = vrot.lane.b32.xlu0 %v5423, 1
      %v5437 = vpop.permute.xlu0 %5436
      %5438 = vrot.lane.b32.xlu0 %v5424, 1
      %v5439 = vpop.permute.xlu0 %5438
      %5440 = vrot.lane.b32.xlu0 %v5425, 1
      %v5441 = vpop.permute.xlu0 %5440
      %5442 = vrot.lane.b32.xlu0 %v5426, 1
      %v5443 = vpop.permute.xlu0 %5442
      %5444 = vrot.lane.b32.xlu0 %v5427, 1
      %v5445 = vpop.permute.xlu0 %5444
      %v5452 = vmul.f32 %v5400, %v5435
      %v5453 = vmul.f32 %v5401, %v5437
      %v5454 = vmul.f32 %v5400, %v5439
      %v5455 = vmul.f32 %v5401, %v5441
      %v5456 = vmul.f32 %v5400, %v5443
      %v5457 = vmul.f32 %v5401, %v5445
      %5464 = vrot.lane.b32.xlu0 %v5452, 127
      %v5465 = vpop.permute.xlu0 %5464
      %5466 = vrot.lane.b32.xlu0 %v5453, 127
      %v5467 = vpop.permute.xlu0 %5466
      %5468 = vrot.lane.b32.xlu0 %v5454, 127
      %v5469 = vpop.permute.xlu0 %5468
      %5470 = vrot.lane.b32.xlu0 %v5455, 127
      %v5471 = vpop.permute.xlu0 %5470
      %5472 = vrot.lane.b32.xlu0 %v5456, 127
      %v5473 = vpop.permute.xlu0 %5472
      %5474 = vrot.lane.b32.xlu0 %v5457, 127
      %v5475 = vpop.permute.xlu0 %5474
      %v5482 = vadd.f32 %v5415, %v5465
      %v5483 = vadd.f32 %v5416, %v5467
      %v5484 = vadd.f32 %v5417, %v5469
      %v5485 = vadd.f32 %v5418, %v5471
      %v5486 = vadd.f32 %v5419, %v5473
      %v5487 = vadd.f32 %v5420, %v5475
      %s5488 = scalar_lea.vmem %s3, 2976
      %v5489 = vld [vmem:[%s5488] sm:$0xff]
      %v5490 = vld [vmem:[%s5488 + $0x8] sm:$0x1]
      %v5491 = vld [vmem:[%s5488 + $0x10] sm:$0xff]
      %v5492 = vld [vmem:[%s5488 + $0x18] sm:$0x1]
      %v5493 = vld [vmem:[%s5488 + $0x20] sm:$0xff]
      %v5494 = vld [vmem:[%s5488 + $0x28] sm:$0x1]
      %5501 = vrot.lane.b32.xlu0 %v5489, 2
      %v5502 = vpop.permute.xlu0 %5501
      %5503 = vrot.lane.b32.xlu0 %v5490, 2
      %v5504 = vpop.permute.xlu0 %5503
      %5505 = vrot.lane.b32.xlu0 %v5491, 2
      %v5506 = vpop.permute.xlu0 %5505
      %5507 = vrot.lane.b32.xlu0 %v5492, 2
      %v5508 = vpop.permute.xlu0 %5507
      %5509 = vrot.lane.b32.xlu0 %v5493, 2
      %v5510 = vpop.permute.xlu0 %5509
      %5511 = vrot.lane.b32.xlu0 %v5494, 2
      %v5512 = vpop.permute.xlu0 %5511
      %v5519 = vmul.f32 %v5400, %v5502
      %v5520 = vmul.f32 %v5401, %v5504
      %v5521 = vmul.f32 %v5400, %v5506
      %v5522 = vmul.f32 %v5401, %v5508
      %v5523 = vmul.f32 %v5400, %v5510
      %v5524 = vmul.f32 %v5401, %v5512
      %5531 = vrot.lane.b32.xlu0 %v5519, 126
      %v5532 = vpop.permute.xlu0 %5531
      %5533 = vrot.lane.b32.xlu0 %v5520, 126
      %v5534 = vpop.permute.xlu0 %5533
      %5535 = vrot.lane.b32.xlu0 %v5521, 126
      %v5536 = vpop.permute.xlu0 %5535
      %5537 = vrot.lane.b32.xlu0 %v5522, 126
      %v5538 = vpop.permute.xlu0 %5537
      %5539 = vrot.lane.b32.xlu0 %v5523, 126
      %v5540 = vpop.permute.xlu0 %5539
      %5541 = vrot.lane.b32.xlu0 %v5524, 126
      %v5542 = vpop.permute.xlu0 %5541
      %v5549 = vadd.f32 %v5482, %v5532
      %v5550 = vadd.f32 %v5483, %v5534
      %v5551 = vadd.f32 %v5484, %v5536
      %v5552 = vadd.f32 %v5485, %v5538
      %v5553 = vadd.f32 %v5486, %v5540
      %v5554 = vadd.f32 %v5487, %v5542
      %s5555 = scalar_lea.vmem %s3, 3024
      %v5556 = vld [vmem:[%s5555] sm:$0xff]
      %v5557 = vld [vmem:[%s5555 + $0x8] sm:$0x1]
      %v5558 = vld [vmem:[%s5555 + $0x10] sm:$0xff]
      %v5559 = vld [vmem:[%s5555 + $0x18] sm:$0x1]
      %v5560 = vld [vmem:[%s5555 + $0x20] sm:$0xff]
      %v5561 = vld [vmem:[%s5555 + $0x28] sm:$0x1]
      %5568 = vrot.lane.b32.xlu0 %v5556, 3
      %v5569 = vpop.permute.xlu0 %5568
      %5570 = vrot.lane.b32.xlu0 %v5557, 3
      %v5571 = vpop.permute.xlu0 %5570
      %5572 = vrot.lane.b32.xlu0 %v5558, 3
      %v5573 = vpop.permute.xlu0 %5572
      %5574 = vrot.lane.b32.xlu0 %v5559, 3
      %v5575 = vpop.permute.xlu0 %5574
      %5576 = vrot.lane.b32.xlu0 %v5560, 3
      %v5577 = vpop.permute.xlu0 %5576
      %5578 = vrot.lane.b32.xlu0 %v5561, 3
      %v5579 = vpop.permute.xlu0 %5578
      %v5586 = vmul.f32 %v5400, %v5569
      %v5587 = vmul.f32 %v5401, %v5571
      %v5588 = vmul.f32 %v5400, %v5573
      %v5589 = vmul.f32 %v5401, %v5575
      %v5590 = vmul.f32 %v5400, %v5577
      %v5591 = vmul.f32 %v5401, %v5579
      %5598 = vrot.lane.b32.xlu0 %v5586, 125
      %v5599 = vpop.permute.xlu0 %5598
      %5600 = vrot.lane.b32.xlu0 %v5587, 125
      %v5601 = vpop.permute.xlu0 %5600
      %5602 = vrot.lane.b32.xlu0 %v5588, 125
      %v5603 = vpop.permute.xlu0 %5602
      %5604 = vrot.lane.b32.xlu0 %v5589, 125
      %v5605 = vpop.permute.xlu0 %5604
      %5606 = vrot.lane.b32.xlu0 %v5590, 125
      %v5607 = vpop.permute.xlu0 %5606
      %5608 = vrot.lane.b32.xlu0 %v5591, 125
      %v5609 = vpop.permute.xlu0 %5608
      %v5616 = vadd.f32 %v5549, %v5599
      %v5617 = vadd.f32 %v5550, %v5601
      %v5618 = vadd.f32 %v5551, %v5603
      %v5619 = vadd.f32 %v5552, %v5605
      %v5620 = vadd.f32 %v5553, %v5607
      %v5621 = vadd.f32 %v5554, %v5609
      %s5622 = scalar_lea.vmem %s3, 3072
      %v5623 = vld [vmem:[%s5622] sm:$0xff]
      %v5624 = vld [vmem:[%s5622 + $0x8] sm:$0x1]
      %v5625 = vld [vmem:[%s5622 + $0x10] sm:$0xff]
      %v5626 = vld [vmem:[%s5622 + $0x18] sm:$0x1]
      %v5627 = vld [vmem:[%s5622 + $0x20] sm:$0xff]
      %v5628 = vld [vmem:[%s5622 + $0x28] sm:$0x1]
      %5635 = vrot.lane.b32.xlu0 %v5623, 4
      %v5636 = vpop.permute.xlu0 %5635
      %5637 = vrot.lane.b32.xlu0 %v5624, 4
      %v5638 = vpop.permute.xlu0 %5637
      %5639 = vrot.lane.b32.xlu0 %v5625, 4
      %v5640 = vpop.permute.xlu0 %5639
      %5641 = vrot.lane.b32.xlu0 %v5626, 4
      %v5642 = vpop.permute.xlu0 %5641
      %5643 = vrot.lane.b32.xlu0 %v5627, 4
      %v5644 = vpop.permute.xlu0 %5643
      %5645 = vrot.lane.b32.xlu0 %v5628, 4
      %v5646 = vpop.permute.xlu0 %5645
      %v5653 = vmul.f32 %v5400, %v5636
      %v5654 = vmul.f32 %v5401, %v5638
      %v5655 = vmul.f32 %v5400, %v5640
      %v5656 = vmul.f32 %v5401, %v5642
      %v5657 = vmul.f32 %v5400, %v5644
      %v5658 = vmul.f32 %v5401, %v5646
      %5665 = vrot.lane.b32.xlu0 %v5653, 124
      %v5666 = vpop.permute.xlu0 %5665
      %5667 = vrot.lane.b32.xlu0 %v5654, 124
      %v5668 = vpop.permute.xlu0 %5667
      %5669 = vrot.lane.b32.xlu0 %v5655, 124
      %v5670 = vpop.permute.xlu0 %5669
      %5671 = vrot.lane.b32.xlu0 %v5656, 124
      %v5672 = vpop.permute.xlu0 %5671
      %5673 = vrot.lane.b32.xlu0 %v5657, 124
      %v5674 = vpop.permute.xlu0 %5673
      %5675 = vrot.lane.b32.xlu0 %v5658, 124
      %v5676 = vpop.permute.xlu0 %5675
      %v5683 = vadd.f32 %v5616, %v5666
      %v5684 = vadd.f32 %v5617, %v5668
      %v5685 = vadd.f32 %v5618, %v5670
      %v5686 = vadd.f32 %v5619, %v5672
      %v5687 = vadd.f32 %v5620, %v5674
      %v5688 = vadd.f32 %v5621, %v5676
      %v5689 = vld [vmem:[#allocation2 + $0x1d] sm:$0xff]
      %v5690 = vld [vmem:[#allocation2 + $0x25] sm:$0x1]
      %s5691 = scalar_lea.vmem %s3, 3120
      %v5692 = vld [vmem:[%s5691] sm:$0xff]
      %v5693 = vld [vmem:[%s5691 + $0x8] sm:$0x1]
      %v5694 = vld [vmem:[%s5691 + $0x10] sm:$0xff]
      %v5695 = vld [vmem:[%s5691 + $0x18] sm:$0x1]
      %v5696 = vld [vmem:[%s5691 + $0x20] sm:$0xff]
      %v5697 = vld [vmem:[%s5691 + $0x28] sm:$0x1]
      %v5698 = vmul.f32 %v5689, %v5692
      %v5699 = vmul.f32 %v5690, %v5693
      %v5700 = vmul.f32 %v5689, %v5694
      %v5701 = vmul.f32 %v5690, %v5695
      %v5702 = vmul.f32 %v5689, %v5696
      %v5703 = vmul.f32 %v5690, %v5697
      %v5704 = vadd.f32 %v5683, %v5698
      %v5705 = vadd.f32 %v5684, %v5699
      %v5706 = vadd.f32 %v5685, %v5700
      %v5707 = vadd.f32 %v5686, %v5701
      %v5708 = vadd.f32 %v5687, %v5702
      %v5709 = vadd.f32 %v5688, %v5703
      %s5710 = scalar_lea.vmem %s3, 3168
      %v5711 = vld [vmem:[%s5710] sm:$0xff]
      %v5712 = vld [vmem:[%s5710 + $0x8] sm:$0x1]
      %v5713 = vld [vmem:[%s5710 + $0x10] sm:$0xff]
      %v5714 = vld [vmem:[%s5710 + $0x18] sm:$0x1]
      %v5715 = vld [vmem:[%s5710 + $0x20] sm:$0xff]
      %v5716 = vld [vmem:[%s5710 + $0x28] sm:$0x1]
      %5723 = vrot.lane.b32.xlu0 %v5711, 1
      %v5724 = vpop.permute.xlu0 %5723
      %5725 = vrot.lane.b32.xlu0 %v5712, 1
      %v5726 = vpop.permute.xlu0 %5725
      %5727 = vrot.lane.b32.xlu0 %v5713, 1
      %v5728 = vpop.permute.xlu0 %5727
      %5729 = vrot.lane.b32.xlu0 %v5714, 1
      %v5730 = vpop.permute.xlu0 %5729
      %5731 = vrot.lane.b32.xlu0 %v5715, 1
      %v5732 = vpop.permute.xlu0 %5731
      %5733 = vrot.lane.b32.xlu0 %v5716, 1
      %v5734 = vpop.permute.xlu0 %5733
      %v5741 = vmul.f32 %v5689, %v5724
      %v5742 = vmul.f32 %v5690, %v5726
      %v5743 = vmul.f32 %v5689, %v5728
      %v5744 = vmul.f32 %v5690, %v5730
      %v5745 = vmul.f32 %v5689, %v5732
      %v5746 = vmul.f32 %v5690, %v5734
      %5753 = vrot.lane.b32.xlu0 %v5741, 127
      %v5754 = vpop.permute.xlu0 %5753
      %5755 = vrot.lane.b32.xlu0 %v5742, 127
      %v5756 = vpop.permute.xlu0 %5755
      %5757 = vrot.lane.b32.xlu0 %v5743, 127
      %v5758 = vpop.permute.xlu0 %5757
      %5759 = vrot.lane.b32.xlu0 %v5744, 127
      %v5760 = vpop.permute.xlu0 %5759
      %5761 = vrot.lane.b32.xlu0 %v5745, 127
      %v5762 = vpop.permute.xlu0 %5761
      %5763 = vrot.lane.b32.xlu0 %v5746, 127
      %v5764 = vpop.permute.xlu0 %5763
      %v5771 = vadd.f32 %v5704, %v5754
      %v5772 = vadd.f32 %v5705, %v5756
      %v5773 = vadd.f32 %v5706, %v5758
      %v5774 = vadd.f32 %v5707, %v5760
      %v5775 = vadd.f32 %v5708, %v5762
      %v5776 = vadd.f32 %v5709, %v5764
      %s5777 = scalar_lea.vmem %s3, 3216
      %v5778 = vld [vmem:[%s5777] sm:$0xff]
      %v5779 = vld [vmem:[%s5777 + $0x8] sm:$0x1]
      %v5780 = vld [vmem:[%s5777 + $0x10] sm:$0xff]
      %v5781 = vld [vmem:[%s5777 + $0x18] sm:$0x1]
      %v5782 = vld [vmem:[%s5777 + $0x20] sm:$0xff]
      %v5783 = vld [vmem:[%s5777 + $0x28] sm:$0x1]
      %5790 = vrot.lane.b32.xlu0 %v5778, 2
      %v5791 = vpop.permute.xlu0 %5790
      %5792 = vrot.lane.b32.xlu0 %v5779, 2
      %v5793 = vpop.permute.xlu0 %5792
      %5794 = vrot.lane.b32.xlu0 %v5780, 2
      %v5795 = vpop.permute.xlu0 %5794
      %5796 = vrot.lane.b32.xlu0 %v5781, 2
      %v5797 = vpop.permute.xlu0 %5796
      %5798 = vrot.lane.b32.xlu0 %v5782, 2
      %v5799 = vpop.permute.xlu0 %5798
      %5800 = vrot.lane.b32.xlu0 %v5783, 2
      %v5801 = vpop.permute.xlu0 %5800
      %v5808 = vmul.f32 %v5689, %v5791
      %v5809 = vmul.f32 %v5690, %v5793
      %v5810 = vmul.f32 %v5689, %v5795
      %v5811 = vmul.f32 %v5690, %v5797
      %v5812 = vmul.f32 %v5689, %v5799
      %v5813 = vmul.f32 %v5690, %v5801
      %5820 = vrot.lane.b32.xlu0 %v5808, 126
      %v5821 = vpop.permute.xlu0 %5820
      %5822 = vrot.lane.b32.xlu0 %v5809, 126
      %v5823 = vpop.permute.xlu0 %5822
      %5824 = vrot.lane.b32.xlu0 %v5810, 126
      %v5825 = vpop.permute.xlu0 %5824
      %5826 = vrot.lane.b32.xlu0 %v5811, 126
      %v5827 = vpop.permute.xlu0 %5826
      %5828 = vrot.lane.b32.xlu0 %v5812, 126
      %v5829 = vpop.permute.xlu0 %5828
      %5830 = vrot.lane.b32.xlu0 %v5813, 126
      %v5831 = vpop.permute.xlu0 %5830
      %v5838 = vadd.f32 %v5771, %v5821
      %v5839 = vadd.f32 %v5772, %v5823
      %v5840 = vadd.f32 %v5773, %v5825
      %v5841 = vadd.f32 %v5774, %v5827
      %v5842 = vadd.f32 %v5775, %v5829
      %v5843 = vadd.f32 %v5776, %v5831
      %s5844 = scalar_lea.vmem %s3, 3264
      %v5845 = vld [vmem:[%s5844] sm:$0xff]
      %v5846 = vld [vmem:[%s5844 + $0x8] sm:$0x1]
      %v5847 = vld [vmem:[%s5844 + $0x10] sm:$0xff]
      %v5848 = vld [vmem:[%s5844 + $0x18] sm:$0x1]
      %v5849 = vld [vmem:[%s5844 + $0x20] sm:$0xff]
      %v5850 = vld [vmem:[%s5844 + $0x28] sm:$0x1]
      %5857 = vrot.lane.b32.xlu0 %v5845, 3
      %v5858 = vpop.permute.xlu0 %5857
      %5859 = vrot.lane.b32.xlu0 %v5846, 3
      %v5860 = vpop.permute.xlu0 %5859
      %5861 = vrot.lane.b32.xlu0 %v5847, 3
      %v5862 = vpop.permute.xlu0 %5861
      %5863 = vrot.lane.b32.xlu0 %v5848, 3
      %v5864 = vpop.permute.xlu0 %5863
      %5865 = vrot.lane.b32.xlu0 %v5849, 3
      %v5866 = vpop.permute.xlu0 %5865
      %5867 = vrot.lane.b32.xlu0 %v5850, 3
      %v5868 = vpop.permute.xlu0 %5867
      %v5875 = vmul.f32 %v5689, %v5858
      %v5876 = vmul.f32 %v5690, %v5860
      %v5877 = vmul.f32 %v5689, %v5862
      %v5878 = vmul.f32 %v5690, %v5864
      %v5879 = vmul.f32 %v5689, %v5866
      %v5880 = vmul.f32 %v5690, %v5868
      %5887 = vrot.lane.b32.xlu0 %v5875, 125
      %v5888 = vpop.permute.xlu0 %5887
      %5889 = vrot.lane.b32.xlu0 %v5876, 125
      %v5890 = vpop.permute.xlu0 %5889
      %5891 = vrot.lane.b32.xlu0 %v5877, 125
      %v5892 = vpop.permute.xlu0 %5891
      %5893 = vrot.lane.b32.xlu0 %v5878, 125
      %v5894 = vpop.permute.xlu0 %5893
      %5895 = vrot.lane.b32.xlu0 %v5879, 125
      %v5896 = vpop.permute.xlu0 %5895
      %5897 = vrot.lane.b32.xlu0 %v5880, 125
      %v5898 = vpop.permute.xlu0 %5897
      %v5905 = vadd.f32 %v5838, %v5888
      %v5906 = vadd.f32 %v5839, %v5890
      %v5907 = vadd.f32 %v5840, %v5892
      %v5908 = vadd.f32 %v5841, %v5894
      %v5909 = vadd.f32 %v5842, %v5896
      %v5910 = vadd.f32 %v5843, %v5898
      %s5911 = scalar_lea.vmem %s3, 3312
      %v5912 = vld [vmem:[%s5911] sm:$0xff]
      %v5913 = vld [vmem:[%s5911 + $0x8] sm:$0x1]
      %v5914 = vld [vmem:[%s5911 + $0x10] sm:$0xff]
      %v5915 = vld [vmem:[%s5911 + $0x18] sm:$0x1]
      %v5916 = vld [vmem:[%s5911 + $0x20] sm:$0xff]
      %v5917 = vld [vmem:[%s5911 + $0x28] sm:$0x1]
      %5924 = vrot.lane.b32.xlu0 %v5912, 4
      %v5925 = vpop.permute.xlu0 %5924
      %5926 = vrot.lane.b32.xlu0 %v5913, 4
      %v5927 = vpop.permute.xlu0 %5926
      %5928 = vrot.lane.b32.xlu0 %v5914, 4
      %v5929 = vpop.permute.xlu0 %5928
      %5930 = vrot.lane.b32.xlu0 %v5915, 4
      %v5931 = vpop.permute.xlu0 %5930
      %5932 = vrot.lane.b32.xlu0 %v5916, 4
      %v5933 = vpop.permute.xlu0 %5932
      %5934 = vrot.lane.b32.xlu0 %v5917, 4
      %v5935 = vpop.permute.xlu0 %5934
      %v5942 = vmul.f32 %v5689, %v5925
      %v5943 = vmul.f32 %v5690, %v5927
      %v5944 = vmul.f32 %v5689, %v5929
      %v5945 = vmul.f32 %v5690, %v5931
      %v5946 = vmul.f32 %v5689, %v5933
      %v5947 = vmul.f32 %v5690, %v5935
      %5954 = vrot.lane.b32.xlu0 %v5942, 124
      %v5955 = vpop.permute.xlu0 %5954
      %5956 = vrot.lane.b32.xlu0 %v5943, 124
      %v5957 = vpop.permute.xlu0 %5956
      %5958 = vrot.lane.b32.xlu0 %v5944, 124
      %v5959 = vpop.permute.xlu0 %5958
      %5960 = vrot.lane.b32.xlu0 %v5945, 124
      %v5961 = vpop.permute.xlu0 %5960
      %5962 = vrot.lane.b32.xlu0 %v5946, 124
      %v5963 = vpop.permute.xlu0 %5962
      %5964 = vrot.lane.b32.xlu0 %v5947, 124
      %v5965 = vpop.permute.xlu0 %5964
      %v5972 = vadd.f32 %v5905, %v5955
      %v5973 = vadd.f32 %v5906, %v5957
      %v5974 = vadd.f32 %v5907, %v5959
      %v5975 = vadd.f32 %v5908, %v5961
      %v5976 = vadd.f32 %v5909, %v5963
      %v5977 = vadd.f32 %v5910, %v5965
      %v5978 = vld [vmem:[#allocation2 + $0x1e] sm:$0xff]
      %v5979 = vld [vmem:[#allocation2 + $0x26] sm:$0x1]
      %s5980 = scalar_lea.vmem %s3, 3360
      %v5981 = vld [vmem:[%s5980] sm:$0xff]
      %v5982 = vld [vmem:[%s5980 + $0x8] sm:$0x1]
      %v5983 = vld [vmem:[%s5980 + $0x10] sm:$0xff]
      %v5984 = vld [vmem:[%s5980 + $0x18] sm:$0x1]
      %v5985 = vld [vmem:[%s5980 + $0x20] sm:$0xff]
      %v5986 = vld [vmem:[%s5980 + $0x28] sm:$0x1]
      %v5987 = vmul.f32 %v5978, %v5981
      %v5988 = vmul.f32 %v5979, %v5982
      %v5989 = vmul.f32 %v5978, %v5983
      %v5990 = vmul.f32 %v5979, %v5984
      %v5991 = vmul.f32 %v5978, %v5985
      %v5992 = vmul.f32 %v5979, %v5986
      %v5993 = vadd.f32 %v5972, %v5987
      %v5994 = vadd.f32 %v5973, %v5988
      %v5995 = vadd.f32 %v5974, %v5989
      %v5996 = vadd.f32 %v5975, %v5990
      %v5997 = vadd.f32 %v5976, %v5991
      %v5998 = vadd.f32 %v5977, %v5992
      %s5999 = scalar_lea.vmem %s3, 3408
      %v6000 = vld [vmem:[%s5999] sm:$0xff]
      %v6001 = vld [vmem:[%s5999 + $0x8] sm:$0x1]
      %v6002 = vld [vmem:[%s5999 + $0x10] sm:$0xff]
      %v6003 = vld [vmem:[%s5999 + $0x18] sm:$0x1]
      %v6004 = vld [vmem:[%s5999 + $0x20] sm:$0xff]
      %v6005 = vld [vmem:[%s5999 + $0x28] sm:$0x1]
      %6012 = vrot.lane.b32.xlu0 %v6000, 1
      %v6013 = vpop.permute.xlu0 %6012
      %6014 = vrot.lane.b32.xlu0 %v6001, 1
      %v6015 = vpop.permute.xlu0 %6014
      %6016 = vrot.lane.b32.xlu0 %v6002, 1
      %v6017 = vpop.permute.xlu0 %6016
      %6018 = vrot.lane.b32.xlu0 %v6003, 1
      %v6019 = vpop.permute.xlu0 %6018
      %6020 = vrot.lane.b32.xlu0 %v6004, 1
      %v6021 = vpop.permute.xlu0 %6020
      %6022 = vrot.lane.b32.xlu0 %v6005, 1
      %v6023 = vpop.permute.xlu0 %6022
      %v6030 = vmul.f32 %v5978, %v6013
      %v6031 = vmul.f32 %v5979, %v6015
      %v6032 = vmul.f32 %v5978, %v6017
      %v6033 = vmul.f32 %v5979, %v6019
      %v6034 = vmul.f32 %v5978, %v6021
      %v6035 = vmul.f32 %v5979, %v6023
      %6042 = vrot.lane.b32.xlu0 %v6030, 127
      %v6043 = vpop.permute.xlu0 %6042
      %6044 = vrot.lane.b32.xlu0 %v6031, 127
      %v6045 = vpop.permute.xlu0 %6044
      %6046 = vrot.lane.b32.xlu0 %v6032, 127
      %v6047 = vpop.permute.xlu0 %6046
      %6048 = vrot.lane.b32.xlu0 %v6033, 127
      %v6049 = vpop.permute.xlu0 %6048
      %6050 = vrot.lane.b32.xlu0 %v6034, 127
      %v6051 = vpop.permute.xlu0 %6050
      %6052 = vrot.lane.b32.xlu0 %v6035, 127
      %v6053 = vpop.permute.xlu0 %6052
      %v6060 = vadd.f32 %v5993, %v6043
      %v6061 = vadd.f32 %v5994, %v6045
      %v6062 = vadd.f32 %v5995, %v6047
      %v6063 = vadd.f32 %v5996, %v6049
      %v6064 = vadd.f32 %v5997, %v6051
      %v6065 = vadd.f32 %v5998, %v6053
      %s6066 = scalar_lea.vmem %s3, 3456
      %v6067 = vld [vmem:[%s6066] sm:$0xff]
      %v6068 = vld [vmem:[%s6066 + $0x8] sm:$0x1]
      %v6069 = vld [vmem:[%s6066 + $0x10] sm:$0xff]
      %v6070 = vld [vmem:[%s6066 + $0x18] sm:$0x1]
      %v6071 = vld [vmem:[%s6066 + $0x20] sm:$0xff]
      %v6072 = vld [vmem:[%s6066 + $0x28] sm:$0x1]
      %6079 = vrot.lane.b32.xlu0 %v6067, 2
      %v6080 = vpop.permute.xlu0 %6079
      %6081 = vrot.lane.b32.xlu0 %v6068, 2
      %v6082 = vpop.permute.xlu0 %6081
      %6083 = vrot.lane.b32.xlu0 %v6069, 2
      %v6084 = vpop.permute.xlu0 %6083
      %6085 = vrot.lane.b32.xlu0 %v6070, 2
      %v6086 = vpop.permute.xlu0 %6085
      %6087 = vrot.lane.b32.xlu0 %v6071, 2
      %v6088 = vpop.permute.xlu0 %6087
      %6089 = vrot.lane.b32.xlu0 %v6072, 2
      %v6090 = vpop.permute.xlu0 %6089
      %v6097 = vmul.f32 %v5978, %v6080
      %v6098 = vmul.f32 %v5979, %v6082
      %v6099 = vmul.f32 %v5978, %v6084
      %v6100 = vmul.f32 %v5979, %v6086
      %v6101 = vmul.f32 %v5978, %v6088
      %v6102 = vmul.f32 %v5979, %v6090
      %6109 = vrot.lane.b32.xlu0 %v6097, 126
      %v6110 = vpop.permute.xlu0 %6109
      %6111 = vrot.lane.b32.xlu0 %v6098, 126
      %v6112 = vpop.permute.xlu0 %6111
      %6113 = vrot.lane.b32.xlu0 %v6099, 126
      %v6114 = vpop.permute.xlu0 %6113
      %6115 = vrot.lane.b32.xlu0 %v6100, 126
      %v6116 = vpop.permute.xlu0 %6115
      %6117 = vrot.lane.b32.xlu0 %v6101, 126
      %v6118 = vpop.permute.xlu0 %6117
      %6119 = vrot.lane.b32.xlu0 %v6102, 126
      %v6120 = vpop.permute.xlu0 %6119
      %v6127 = vadd.f32 %v6060, %v6110
      %v6128 = vadd.f32 %v6061, %v6112
      %v6129 = vadd.f32 %v6062, %v6114
      %v6130 = vadd.f32 %v6063, %v6116
      %v6131 = vadd.f32 %v6064, %v6118
      %v6132 = vadd.f32 %v6065, %v6120
      %s6133 = scalar_lea.vmem %s3, 3504
      %v6134 = vld [vmem:[%s6133] sm:$0xff]
      %v6135 = vld [vmem:[%s6133 + $0x8] sm:$0x1]
      %v6136 = vld [vmem:[%s6133 + $0x10] sm:$0xff]
      %v6137 = vld [vmem:[%s6133 + $0x18] sm:$0x1]
      %v6138 = vld [vmem:[%s6133 + $0x20] sm:$0xff]
      %v6139 = vld [vmem:[%s6133 + $0x28] sm:$0x1]
      %6146 = vrot.lane.b32.xlu0 %v6134, 3
      %v6147 = vpop.permute.xlu0 %6146
      %6148 = vrot.lane.b32.xlu0 %v6135, 3
      %v6149 = vpop.permute.xlu0 %6148
      %6150 = vrot.lane.b32.xlu0 %v6136, 3
      %v6151 = vpop.permute.xlu0 %6150
      %6152 = vrot.lane.b32.xlu0 %v6137, 3
      %v6153 = vpop.permute.xlu0 %6152
      %6154 = vrot.lane.b32.xlu0 %v6138, 3
      %v6155 = vpop.permute.xlu0 %6154
      %6156 = vrot.lane.b32.xlu0 %v6139, 3
      %v6157 = vpop.permute.xlu0 %6156
      %v6164 = vmul.f32 %v5978, %v6147
      %v6165 = vmul.f32 %v5979, %v6149
      %v6166 = vmul.f32 %v5978, %v6151
      %v6167 = vmul.f32 %v5979, %v6153
      %v6168 = vmul.f32 %v5978, %v6155
      %v6169 = vmul.f32 %v5979, %v6157
      %6176 = vrot.lane.b32.xlu0 %v6164, 125
      %v6177 = vpop.permute.xlu0 %6176
      %6178 = vrot.lane.b32.xlu0 %v6165, 125
      %v6179 = vpop.permute.xlu0 %6178
      %6180 = vrot.lane.b32.xlu0 %v6166, 125
      %v6181 = vpop.permute.xlu0 %6180
      %6182 = vrot.lane.b32.xlu0 %v6167, 125
      %v6183 = vpop.permute.xlu0 %6182
      %6184 = vrot.lane.b32.xlu0 %v6168, 125
      %v6185 = vpop.permute.xlu0 %6184
      %6186 = vrot.lane.b32.xlu0 %v6169, 125
      %v6187 = vpop.permute.xlu0 %6186
      %v6194 = vadd.f32 %v6127, %v6177
      %v6195 = vadd.f32 %v6128, %v6179
      %v6196 = vadd.f32 %v6129, %v6181
      %v6197 = vadd.f32 %v6130, %v6183
      %v6198 = vadd.f32 %v6131, %v6185
      %v6199 = vadd.f32 %v6132, %v6187
      %s6200 = scalar_lea.vmem %s3, 3552
      %v6201 = vld [vmem:[%s6200] sm:$0xff]
      %v6202 = vld [vmem:[%s6200 + $0x8] sm:$0x1]
      %v6203 = vld [vmem:[%s6200 + $0x10] sm:$0xff]
      %v6204 = vld [vmem:[%s6200 + $0x18] sm:$0x1]
      %v6205 = vld [vmem:[%s6200 + $0x20] sm:$0xff]
      %v6206 = vld [vmem:[%s6200 + $0x28] sm:$0x1]
      %6213 = vrot.lane.b32.xlu0 %v6201, 4
      %v6214 = vpop.permute.xlu0 %6213
      %6215 = vrot.lane.b32.xlu0 %v6202, 4
      %v6216 = vpop.permute.xlu0 %6215
      %6217 = vrot.lane.b32.xlu0 %v6203, 4
      %v6218 = vpop.permute.xlu0 %6217
      %6219 = vrot.lane.b32.xlu0 %v6204, 4
      %v6220 = vpop.permute.xlu0 %6219
      %6221 = vrot.lane.b32.xlu0 %v6205, 4
      %v6222 = vpop.permute.xlu0 %6221
      %6223 = vrot.lane.b32.xlu0 %v6206, 4
      %v6224 = vpop.permute.xlu0 %6223
      %v6231 = vmul.f32 %v5978, %v6214
      %v6232 = vmul.f32 %v5979, %v6216
      %v6233 = vmul.f32 %v5978, %v6218
      %v6234 = vmul.f32 %v5979, %v6220
      %v6235 = vmul.f32 %v5978, %v6222
      %v6236 = vmul.f32 %v5979, %v6224
      %6243 = vrot.lane.b32.xlu0 %v6231, 124
      %v6244 = vpop.permute.xlu0 %6243
      %6245 = vrot.lane.b32.xlu0 %v6232, 124
      %v6246 = vpop.permute.xlu0 %6245
      %6247 = vrot.lane.b32.xlu0 %v6233, 124
      %v6248 = vpop.permute.xlu0 %6247
      %6249 = vrot.lane.b32.xlu0 %v6234, 124
      %v6250 = vpop.permute.xlu0 %6249
      %6251 = vrot.lane.b32.xlu0 %v6235, 124
      %v6252 = vpop.permute.xlu0 %6251
      %6253 = vrot.lane.b32.xlu0 %v6236, 124
      %v6254 = vpop.permute.xlu0 %6253
      %v6261 = vadd.f32 %v6194, %v6244
      %v6262 = vadd.f32 %v6195, %v6246
      %v6263 = vadd.f32 %v6196, %v6248
      %v6264 = vadd.f32 %v6197, %v6250
      %v6265 = vadd.f32 %v6198, %v6252
      %v6266 = vadd.f32 %v6199, %v6254
      %v6267 = vadd.f32 %v3383, %v4822
      %v6268 = vadd.f32 %v3384, %v4823
      %v6269 = vadd.f32 %v3385, %v4824
      %v6270 = vadd.f32 %v3386, %v4825
      %v6271 = vadd.f32 %v3387, %v4826
      %v6272 = vadd.f32 %v3388, %v4827
      %v6273 = vadd.f32 %v6267, %v6261
      %v6274 = vadd.f32 %v6268, %v6262
      %v6275 = vadd.f32 %v6269, %v6263
      %v6276 = vadd.f32 %v6270, %v6264
      %v6277 = vadd.f32 %v6271, %v6265
      %v6278 = vadd.f32 %v6272, %v6266
      %v6279 = vmax.f32 %v6273, 0.0
      %v6280 = vmax.f32 %v6274, 0.0
      %v6281 = vmax.f32 %v6275, 0.0
      %v6282 = vmax.f32 %v6276, 0.0
      %v6283 = vmax.f32 %v6277, 0.0
      %v6284 = vmax.f32 %v6278, 0.0
      %v6287 = vrot.slane %v6281, 7
      %v6288 = vrot.slane %v6282, 7
      %v6289 = vsel %vm676, %v6287, %v6288
      %v6294 = vrot.slane %v6283, 6
      %v6295 = vrot.slane %v6284, 6
      %v6296 = vsel %vm1055, %v6294, %v6295
      %v6299 = vsel %vm676, %v6280, %v6287
      %v6300 = vsel %vm1055, %v6289, %v6294
      %6304 = vrot.lane.b32.xlu0 %v6279, 127
      %v6305 = vpop.permute.xlu0 %6304
      %6306 = vrot.lane.b32.xlu0 %v6299, 127
      %v6307 = vpop.permute.xlu0 %6306
      %6308 = vrot.lane.b32.xlu0 %v6300, 127
      %v6309 = vpop.permute.xlu0 %6308
      %6310 = vrot.lane.b32.xlu0 %v6296, 127
      %v6311 = vpop.permute.xlu0 %6310
      %v6316 = vmax.f32 %v6279, %v6305
      %v6317 = vmax.f32 %v6299, %v6307
      %v6318 = vmax.f32 %v6300, %v6309
      %v6319 = vmax.f32 %v6296, %v6311
      %v6320 = vld [vmem:[%s7] sm:$0xff]
      %vm6321 = vcmask 64512
      %v6323 = vsel %vm6321, %v6316, 0
      %v6326 = vsel %vm6321, %v6317, 0
      %v6329 = vsel %vm6321, %v6318, 0
      %v6332 = vsel %vm6321, %v6319, 0
      %6334 = vmatprep.subr.mxu0 0.0
      %6335 = vmatpush1.msra.mxu0 0.0
      %6336 = vmatprep.subr.mxu0 0.0
      %6337 = vmatpush1.msra.mxu0 0.0
      %6338 = vmatprep.subr.mxu0 0.0
      %6339 = vmatpush1.msra.mxu0 0.0
      %6340 = vmatprep.subr.mxu0 0.0
      %6341 = vmatpush1.msra.mxu0 0.0
      %6342 = vmatprep.subr.mxu0 0.0
      %6343 = vmatpush1.msra.mxu0 0.0
      %6344 = vmatprep.subr.mxu0 0.0
      %6345 = vmatpush1.msra.mxu0 0.0
      %6346 = vmatprep.subr.mxu0 0.0
      %6347 = vmatpush1.msra.mxu0 0.0
      %6348 = vmatprep.subr.mxu0 0.0
      %6349 = vmatpush1.msra.mxu0 0.0
      %6350 = vmatprep.subr.mxu0 0.0
      %6351 = vmatpush1.msra.mxu0 0.0
      %6352 = vmatprep.subr.mxu0 0.0
      %6353 = vmatpush1.msra.mxu0 0.0
      %6354 = vmatprep.subr.mxu0 0.0
      %6355 = vmatpush1.msra.mxu0 0.0
      %6356 = vmatprep.subr.mxu0 0.0
      %6357 = vmatpush1.msra.mxu0 0.0
      %6358 = vmatprep.subr.mxu0 0.0
      %6359 = vmatpush1.msra.mxu0 0.0
      %6360 = vmatprep.subr.mxu0 0.0
      %6361 = vmatpush1.msra.mxu0 0.0
      %6362 = vmatprep.subr.mxu0 0.0
      %6363 = vmatpush1.msra.mxu0 0.0
      %6364 = vmatprep.subr.mxu0 0.0
      %6365 = vmatpush1.msra.mxu0 %v6320
      %6366 = vmatprep.subr.mxu0 0.0
      %6367 = vmatpush2.msra.mxu0 0.0
      %6368 = vmatprep.subr.mxu0 0.0
      %6369 = vmatpush2.msra.mxu0 0.0
      %6370 = vmatprep.subr.mxu0 0.0
      %6371 = vmatpush2.msra.mxu0 0.0
      %6372 = vmatprep.subr.mxu0 0.0
      %6373 = vmatpush2.msra.mxu0 0.0
      %6374 = vmatprep.subr.mxu0 0.0
      %6375 = vmatpush2.msra.mxu0 0.0
      %6376 = vmatprep.subr.mxu0 0.0
      %6377 = vmatpush2.msra.mxu0 0.0
      %6378 = vmatprep.subr.mxu0 0.0
      %6379 = vmatpush2.msra.mxu0 0.0
      %6380 = vmatprep.subr.mxu0 0.0
      %6381 = vmatpush2.msra.mxu0 0.0
      %6382 = vmatprep.subr.mxu0 0.0
      %6383 = vmatpush2.msra.mxu0 0.0
      %6384 = vmatprep.subr.mxu0 0.0
      %6385 = vmatpush2.msra.mxu0 0.0
      %6386 = vmatprep.subr.mxu0 0.0
      %6387 = vmatpush2.msra.mxu0 0.0
      %6388 = vmatprep.subr.mxu0 0.0
      %6389 = vmatpush2.msra.mxu0 0.0
      %6390 = vmatprep.subr.mxu0 0.0
      %6391 = vmatpush2.msra.mxu0 0.0
      %6392 = vmatprep.subr.mxu0 0.0
      %6393 = vmatpush2.msra.mxu0 0.0
      %6394 = vmatprep.subr.mxu0 0.0
      %6395 = vmatpush2.msra.mxu0 0.0
      %6396 = vmatprep.subr.mxu0 0.0
      %6397 = vmatpush2.msra.mxu0 0.0
      %6398 = vmatprep.mubr.f32.mxu0 0.0
      %6399 = vmatmul.mubr.f32.gmra.mxu0 %v6323
      %v6400 = vpop.f32.mrf.mxu0
      %v6401 = vadd.f32 0.0, %v6400
      %v6402 = vpop.f32.mrf.mxu0
      %6403 = vmatprep.mubr.f32.mxu0 0.0
      %6404 = vmatmul.mubr.f32.gmra.mxu0 %v6326
      %v6405 = vpop.f32.mrf.mxu0
      %v6406 = vadd.f32 0.0, %v6405
      %v6407 = vpop.f32.mrf.mxu0
      %6408 = vmatprep.mubr.f32.mxu0 0.0
      %6409 = vmatmul.mubr.f32.gmra.mxu0 %v6329
      %v6410 = vpop.f32.mrf.mxu0
      %v6411 = vadd.f32 0.0, %v6410
      %v6412 = vpop.f32.mrf.mxu0
      %6413 = vmatprep.mubr.f32.mxu0 0.0
      %6414 = vmatmul.mubr.f32.gmra.mxu0 %v6332
      %v6415 = vpop.f32.mrf.mxu0
      %v6416 = vadd.f32 0.0, %v6415
      %v6417 = vpop.f32.mrf.mxu0
      %6418 = vdwg.mxu0
      %v6423 = vrot.slane %v6401, 1
      %v6424 = vrot.slane %v6406, 1
      %v6425 = vsel %vm1421, %v6423, %v6424
      %v6426 = vrot.slane %v6411, 1
      %v6427 = vsel %vm1421, %v6424, %v6426
      %v6428 = vrot.slane %v6416, 1
      %v6429 = vsel %vm1421, %v6426, %v6428
      %v6434 = vmax.f32 %v6401, %v6425
      %v6435 = vmax.f32 %v6406, %v6427
      %v6436 = vmax.f32 %v6411, %v6429
      %v6437 = vmax.f32 %v6416, %v6428
      %v6438 = vld [vmem:[%s8] sm:$0xff]
      %v6439 = vld [vmem:[%s8 + $0x8] sm:$0xf]
      %vm6440 = vcmask 211968
      %v6442 = vsel %vm6440, %v6438, 0
      %v6445 = vsel %vm6440, %v6439, 0
      %v6448 = vsel %vm1055, %v6437, 0
      %6450 = vmatprep.subr.mxu0 0.0
      %6451 = vmatpush1.msra.mxu0 0.0
      %6452 = vmatprep.subr.mxu0 0.0
      %6453 = vmatpush1.msra.mxu0 0.0
      %6454 = vmatprep.subr.mxu0 0.0
      %6455 = vmatpush1.msra.mxu0 0.0
      %6456 = vmatprep.subr.mxu0 0.0
      %6457 = vmatpush1.msra.mxu0 0.0
      %6458 = vmatprep.subr.mxu0 0.0
      %6459 = vmatpush1.msra.mxu0 0.0
      %6460 = vmatprep.subr.mxu0 0.0
      %6461 = vmatpush1.msra.mxu0 0.0
      %6462 = vmatprep.subr.mxu0 0.0
      %6463 = vmatpush1.msra.mxu0 0.0
      %6464 = vmatprep.subr.mxu0 0.0
      %6465 = vmatpush1.msra.mxu0 0.0
      %6466 = vmatprep.subr.mxu0 0.0
      %6467 = vmatpush1.msra.mxu0 0.0
      %6468 = vmatprep.subr.mxu0 0.0
      %6469 = vmatpush1.msra.mxu0 0.0
      %6470 = vmatprep.subr.mxu0 0.0
      %6471 = vmatpush1.msra.mxu0 0.0
      %6472 = vmatprep.subr.mxu0 0.0
      %6473 = vmatpush1.msra.mxu0 0.0
      %6474 = vmatprep.subr.mxu0 0.0
      %6475 = vmatpush1.msra.mxu0 %v6448
      %6476 = vmatprep.subr.mxu0 0.0
      %6477 = vmatpush1.msra.mxu0 %v6436
      %6478 = vmatprep.subr.mxu0 0.0
      %6479 = vmatpush1.msra.mxu0 %v6435
      %6480 = vmatprep.subr.mxu0 0.0
      %6481 = vmatpush1.msra.mxu0 %v6434
      %6482 = vmatprep.subr.mxu0 0.0
      %6483 = vmatpush2.msra.mxu0 0.0
      %6484 = vmatprep.subr.mxu0 0.0
      %6485 = vmatpush2.msra.mxu0 0.0
      %6486 = vmatprep.subr.mxu0 0.0
      %6487 = vmatpush2.msra.mxu0 0.0
      %6488 = vmatprep.subr.mxu0 0.0
      %6489 = vmatpush2.msra.mxu0 0.0
      %6490 = vmatprep.subr.mxu0 0.0
      %6491 = vmatpush2.msra.mxu0 0.0
      %6492 = vmatprep.subr.mxu0 0.0
      %6493 = vmatpush2.msra.mxu0 0.0
      %6494 = vmatprep.subr.mxu0 0.0
      %6495 = vmatpush2.msra.mxu0 0.0
      %6496 = vmatprep.subr.mxu0 0.0
      %6497 = vmatpush2.msra.mxu0 0.0
      %6498 = vmatprep.subr.mxu0 0.0
      %6499 = vmatpush2.msra.mxu0 0.0
      %6500 = vmatprep.subr.mxu0 0.0
      %6501 = vmatpush2.msra.mxu0 0.0
      %6502 = vmatprep.subr.mxu0 0.0
      %6503 = vmatpush2.msra.mxu0 0.0
      %6504 = vmatprep.subr.mxu0 0.0
      %6505 = vmatpush2.msra.mxu0 0.0
      %6506 = vmatprep.subr.mxu0 0.0
      %6507 = vmatpush2.msra.mxu0 0.0
      %6508 = vmatprep.subr.mxu0 0.0
      %6509 = vmatpush2.msra.mxu0 0.0
      %6510 = vmatprep.subr.mxu0 0.0
      %6511 = vmatpush2.msra.mxu0 0.0
      %6512 = vmatprep.subr.mxu0 0.0
      %6513 = vmatpush2.msra.mxu0 0.0
      %6514 = vmatprep.mubr.f32.mxu0 0.0
      %6515 = vmatmul.mubr.f32.gmra.mxu0 %v6442
      %v6516 = vpop.f32.mrf.mxu0
      %v6517 = vadd.f32 0.0, %v6516
      %v6518 = vpop.f32.mrf.mxu0
      %6519 = vmatprep.mubr.f32.mxu0 0.0
      %6520 = vmatmul.mubr.f32.gmra.mxu0 %v6445
      %v6521 = vpop.f32.mrf.mxu0
      %v6522 = vadd.f32 0.0, %v6521
      %v6523 = vpop.f32.mrf.mxu0
      %6524 = vdwg.mxu0
      %vm6525 = vcmask 31744
      %6526 = vst.msk [vmem:[%s332] sm:$0xff] %vm6525, %v6517
      %vm6527 = vcmask 27648
      %6528 = vst.msk [vmem:[%s332 + $0x8] sm:$0xf] %vm6527, %v6522
      %p6529 = scmp.lt.s32.totalorder %s20, 1
      %s6530 = scalar_select %p6529, %s20, 1
      %s6531 = smul.addr %s6530, 2
      %s6532 = smul.addr %s6531, 8
      %s6533 = scalar_lea.vmem %s9, %s6532
      // Predicated region
      $region57: #{forward.2} parent=55 // pred_check
        %p6534 = pneg %p232
      $region58: #{forward.2} parent=55 // pred_check_branch
        %6536 = sbr.rel (%p6534) target = $region60
      $region59: #{forward.2} parent=55 // pred_region
        _
      $region60: #{forward.2} parent=55 // pred_fallthru
        _
    $region56: #{forward.2} parent=5 // pred_fallthru
      _
    %p6537 = scmp.le.s32.totalorder 2, %s15
    // Predicated region
    $region61: #{forward.2} parent=5 // pred_check
      %p6538 = pneg %p6537
    $region62: #{forward.2} parent=5 // pred_check_branch
      %6540 = sbr.rel (%p6538) target = $region64
    $region63: #{forward.2} parent=5 // pred_region
      %s6541 = ssub.s32 %s15, 2
      // Predicated region
      $region65: #{forward.2} parent=63 // pred_check
        %p6542 = pneg %p238
      $region66: #{forward.2} parent=63 // pred_check_branch
        %6544 = sbr.rel (%p6542) target = $region68
      $region67: #{forward.2} parent=63 // pred_region
        %p6545 = scmp.lt.s32.totalorder %s21, 1
        %s6546 = scalar_select %p6545, %s21, 1
        %s6547 = smul.addr %s6546, 2
        %s6548 = smul.addr %s6547, 8
        %s6549 = scalar_lea.vmem %s9, %s6548
      $region68: #{forward.2} parent=63 // pred_fallthru
        _
    $region64: #{forward.2} parent=5 // pred_fallthru
      _
  $region6: #{forward.2} parent=0 // loop_footer
    %s19 = sadd.s32 1, %s15
  $region7: #{forward.2} parent=0 // loop_footer_branch
    %14 = sbr.rel target = $region3
  $region8: #{forward.2} parent=0 // loop_exit
    _

</llo_original>
